<compile_context>
chip_gen: v7x
topology: tpu7x:2x2x1
jax: 0.10.0
libtpu: 0.0.40
codegen_flags: <defaults>
</compile_context>

<pallas_src>
import jax
import jax.numpy as jnp
from jax.experimental import pallas as pl
from jax.experimental.pallas import tpu as pltpu
import numpy as np


# -----------------------------------------------------------------------------
# Pallas kernel: full Network.forward
# -----------------------------------------------------------------------------
def network_kernel(
    # auto-DMA'd (VMEM / SMEM) inputs -----------------------------------------
    x_ref,       # (T*Bp, input_dim)   bf16   time-major, batch padded to Bp
    img_ref,     # (Bp, img_dim)       bf16
    len_ref,     # (Bp, 1)             i32    (padded rows are 0)
    tmax_ref,    # (1, 1)              i32    SMEM scalar: max(lengths)
    # deferred inputs (stay in HBM; DMA'd while the GRU loop runs) -------------
    y_hbm,       # (Bp, J, P)          bf16
    W1h_hbm,     # (Hp, P)             bf16   linear1 (hidden part, padded rows)
    W1i_hbm,     # (img_dim, P)        bf16   linear1 (img part)
    W2_hbm,      # (P, P)              bf16
    # GRU weights (needed immediately) -----------------------------------------
    Wimg_ref,    # (img_dim, Hp)       bf16   img_linear, padded H->Hp
    bimg_ref,    # (1, Hp)             f32
    Wif_ref,     # (input_dim, 3*Hp)   bf16   fused [Wir|Wiz|Win], gate-padded
    bif_ref,     # (1, 3*Hp)           f32    fused [bir+bhr | biz+bhz | bin]
    Whf_ref,     # (Hp, 3*Hp)          bf16   fused [Whr|Whz|Whn], gate-padded
    bhn_ref,     # (1, Hp)             f32
    b1_ref,      # (1, P)              f32
    b2_ref,      # (1, P)              f32
    # output -------------------------------------------------------------------
    out_ref,     # (Bp, J)             f32
    # scratch ------------------------------------------------------------------
    y_vmem,      # (Bp, J, P)          bf16
    W1h_vmem,    # (Hp, P)             bf16
    W1i_vmem,    # (img_dim, P)        bf16
    W2_vmem,     # (P, P)              bf16
    dma_sem,     # DMA semaphores (4,)
    gx_ref,      # (T*Bp, 3*Hp)        f32
    h_ref,       # (Bp, Hp)            f32
    hsel_ref,    # (Bp, Hp)            f32
):
    f32 = jnp.float32
    bf16 = jnp.bfloat16

    Bp = img_ref.shape[0]
    T = x_ref.shape[0] // Bp
    Hp = Wimg_ref.shape[1]

    # Kick off the head-weight / y DMAs first; they complete under the GRU loop.
    cp_y = pltpu.make_async_copy(y_hbm, y_vmem, dma_sem.at[0])
    cp_w1h = pltpu.make_async_copy(W1h_hbm, W1h_vmem, dma_sem.at[1])
    cp_w1i = pltpu.make_async_copy(W1i_hbm, W1i_vmem, dma_sem.at[2])
    cp_w2 = pltpu.make_async_copy(W2_hbm, W2_vmem, dma_sem.at[3])
    cp_y.start(); cp_w1h.start(); cp_w1i.start(); cp_w2.start()

    tmax = tmax_ref[0, 0]                    # scalar read before any .wait()
    img = img_ref[...]                       # bf16 (Bp, img_dim)

    # self.img_linear(img).unsqueeze(0) -> initial GRU hidden state (pad lanes = 0)
    h_ref[...] = (jnp.dot(img, Wimg_ref[...], preferred_element_type=f32)
                  + bimg_ref[...])
    hsel_ref[...] = jnp.zeros_like(hsel_ref)

    # Hoisted input-side gate projections for ALL T steps, into bounded VMEM scratch:
    #   gx[t*Bp+b, g*Hp:(g+1)*Hp] = x[t,b] @ Wi_g  (+ pre-folded biases)
    gx_ref[...] = (jnp.dot(x_ref[...], Wif_ref[...], preferred_element_type=f32)
                   + bif_ref[...])

    bhn = bhn_ref[...]                       # (1, Hp) f32

    # Statically unrolled GRU time loop; one fused MXU matmul per executed step.
    for t in range(T):
        @pl.when(tmax > t)                   # steps past max(lengths) can't matter
        def _step():
            h = h_ref[...]
            gx_t = gx_ref[t * Bp:(t + 1) * Bp, :]            # (Bp, 3*Hp), aligned
            gh = jnp.dot(h.astype(bf16), Whf_ref[...],
                         preferred_element_type=f32)         # (Bp, 3*Hp)
            r = jax.nn.sigmoid(gx_t[:, 0:Hp] + gh[:, 0:Hp])
            z = jax.nn.sigmoid(gx_t[:, Hp:2 * Hp] + gh[:, Hp:2 * Hp])
            n = jnp.tanh(gx_t[:, 2 * Hp:3 * Hp] + r * (gh[:, 2 * Hp:3 * Hp] + bhn))
            h_ref[...] = n + z * (h - n)                     # == (1-z)*n + z*h

        @pl.when(jnp.int32(t + 1) == tmax)   # lstm_out[-1]: state at step max(lengths)
        def _capture():
            hsel_ref[...] = h_ref[...]

    # pad_packed_sequence + lstm_out[-1]:
    #   row b is h(step max_len) if lengths[b] == max_len else the zero padding.
    mask = len_ref[...] == tmax                              # (Bp, 1) bool
    lstm_last = jnp.where(mask, hsel_ref[...], 0.0)          # (Bp, Hp), NaN-safe

    # linear1(cat(lstm_last, img)) == lstm_last @ W1h + img @ W1i + b1
    cp_w1h.wait(); cp_w1i.wait()
    d = (jnp.dot(lstm_last.astype(bf16), W1h_vmem[...], preferred_element_type=f32)
         + jnp.dot(img, W1i_vmem[...], preferred_element_type=f32)
         + b1_ref[...])
    d = jnp.maximum(d, 0.0)                                  # ReLU
    cp_w2.wait()
    d = (jnp.dot(d.astype(bf16), W2_vmem[...], preferred_element_type=f32)
         + b2_ref[...])

    # einsum('ijk,ik->ij', y, data)
    cp_y.wait()
    s = jnp.sum(y_vmem[...].astype(f32) * d[:, None, :], axis=-1)   # (Bp, J)

    # nn.Softmax() on a 2-D tensor -> softmax over dim=1 (last axis here).
    s = s - jnp.max(s, axis=-1, keepdims=True)
    e = jnp.exp(s)
    out_ref[...] = e / jnp.sum(e, axis=-1, keepdims=True)


# -----------------------------------------------------------------------------
# One-time weight preparation: fuse gates, pad H -> Hp (256 lanes/gate), cast bf16
# -----------------------------------------------------------------------------
def prepare_params(p, hidden_dim, Hp=256):
    H = hidden_dim
    f32 = jnp.float32
    bf = jnp.bfloat16
    D = p["Wir"].shape[0]
    I = p["Wimg"].shape[0]
    P = p["W1h"].shape[1]

    Wi = jnp.zeros((D, 3 * Hp), f32)
    Wi = (Wi.at[:, 0:H].set(p["Wir"])
            .at[:, Hp:Hp + H].set(p["Wiz"])
            .at[:, 2 * Hp:2 * Hp + H].set(p["Win"]))
    bi = jnp.zeros((1, 3 * Hp), f32)
    bi = (bi.at[:, 0:H].set(p["bir"] + p["bhr"])
            .at[:, Hp:Hp + H].set(p["biz"] + p["bhz"])
            .at[:, 2 * Hp:2 * Hp + H].set(p["bin"]))
    Wh = jnp.zeros((Hp, 3 * Hp), f32)
    Wh = (Wh.at[0:H, 0:H].set(p["Whr"])
            .at[0:H, Hp:Hp + H].set(p["Whz"])
            .at[0:H, 2 * Hp:2 * Hp + H].set(p["Whn"]))
    bhn = jnp.zeros((1, Hp), f32).at[:, 0:H].set(p["bhn"])
    Wimg = jnp.zeros((I, Hp), f32).at[:, 0:H].set(p["Wimg"])
    bimg = jnp.zeros((1, Hp), f32).at[:, 0:H].set(p["bimg"])
    W1h = jnp.zeros((Hp, P), f32).at[0:H, :].set(p["W1h"])

    return dict(
        Wimg=Wimg.astype(bf), bimg=bimg,
        Wif=Wi.astype(bf), bif=bi,
        Whf=Wh.astype(bf), bhn=bhn,
        W1h=W1h.astype(bf), W1i=p["W1i"].astype(bf), b1=p["b1"],
        W2=p["W2"].astype(bf), b2=p["b2"],
    )


@jax.jit
def network_forward(x, img, lengths, y, fp):
    T, B, D = x.shape
    J, P = y.shape[1], y.shape[2]
    I = img.shape[1]
    Hp = fp["Wimg"].shape[1]
    Bp = ((B + 7) // 8) * 8           # pad batch so per-step slices are sublane-aligned
    pad = Bp - B

    x_p = jnp.pad(x, ((0, 0), (0, pad), (0, 0)))
    img_p = jnp.pad(img, ((0, pad), (0, 0)))
    y_p = jnp.pad(y, ((0, pad), (0, 0), (0, 0))).astype(jnp.bfloat16)
    len_p = jnp.pad(lengths.astype(jnp.int32), (0, pad)).reshape(Bp, 1)
    tmax = jnp.max(lengths.astype(jnp.int32)).reshape(1, 1)

    x2d = x_p.reshape(T * Bp, D).astype(jnp.bfloat16)
    img_bf = img_p.astype(jnp.bfloat16)

    args = [
        x2d, img_bf, len_p, tmax,
        y_p, fp["W1h"], fp["W1i"], fp["W2"],
        fp["Wimg"], fp["bimg"], fp["Wif"], fp["bif"], fp["Whf"], fp["bhn"],
        fp["b1"], fp["b2"],
    ]
    vmem = pl.BlockSpec(memory_space=pltpu.MemorySpace.VMEM)
    smem = pl.BlockSpec(memory_space=pltpu.MemorySpace.SMEM)
    anyspace = pl.BlockSpec(memory_space=pl.ANY)
    in_specs = [vmem, vmem, vmem, smem, anyspace, anyspace, anyspace, anyspace] \
        + [vmem] * 8

    out = pl.pallas_call(
        network_kernel,
        out_shape=jax.ShapeDtypeStruct((Bp, J), jnp.float32),
        in_specs=in_specs,
        out_specs=vmem,
        scratch_shapes=[
            pltpu.VMEM((Bp, J, P), jnp.bfloat16),       # y
            pltpu.VMEM((Hp, P), jnp.bfloat16),          # W1h
            pltpu.VMEM((I, P), jnp.bfloat16),           # W1i
            pltpu.VMEM((P, P), jnp.bfloat16),           # W2
            pltpu.SemaphoreType.DMA((4,)),
            pltpu.VMEM((T * Bp, 3 * Hp), jnp.float32),  # gx
            pltpu.VMEM((Bp, Hp), jnp.float32),          # h
            pltpu.VMEM((Bp, Hp), jnp.float32),          # h_sel
        ],
    )(*args)
    return out[:B]


# -----------------------------------------------------------------------------
# Pure-JAX reference (same math & same bf16 matmul precision) for the sanity check
# -----------------------------------------------------------------------------
def reference_forward(x, img, lengths, y, p):
    f32 = jnp.float32
    bf = jnp.bfloat16

    def mm(a, w):
        return jnp.dot(a.astype(bf), w.astype(bf), preferred_element_type=f32)

    T = x.shape[0]
    lengths = lengths.astype(jnp.int32)
    tmax = jnp.max(lengths)

    h = mm(img, p["Wimg"]) + p["bimg"]
    h_sel = jnp.zeros_like(h)
    for t in range(T):
        x_t = x[t]
        r = jax.nn.sigmoid(mm(x_t, p["Wir"]) + p["bir"] + mm(h, p["Whr"]) + p["bhr"])
        z = jax.nn.sigmoid(mm(x_t, p["Wiz"]) + p["biz"] + mm(h, p["Whz"]) + p["bhz"])
        n = jnp.tanh(mm(x_t, p["Win"]) + p["bin"] + r * (mm(h, p["Whn"]) + p["bhn"]))
        h = (1.0 - z) * n + z * h
        h_sel = jnp.where(t + 1 == tmax, h, h_sel)

    mask = lengths.reshape(-1, 1) == tmax
    lstm_last = jnp.where(mask, h_sel, 0.0)
    d = mm(lstm_last, p["W1h"]) + mm(img, p["W1i"]) + p["b1"]
    d = jnp.maximum(d, 0.0)
    d = mm(d, p["W2"]) + p["b2"]
    s = jnp.einsum("bjk,bk->bj", y.astype(bf).astype(f32), d)
    return jax.nn.softmax(s, axis=-1)


# -----------------------------------------------------------------------------
# Deterministic parameter init (PyTorch-style uniform(-1/sqrt(fan_in), ...))
# -----------------------------------------------------------------------------
def init_params(key, input_dim, hidden_dim, img_dim, proj_dim=300):
    def uni(key, shape, fan_in):
        b = 1.0 / np.sqrt(fan_in)
        return jax.random.uniform(key, shape, jnp.float32, -b, b)

    keys = iter(jax.random.split(key, 32))
    H, D, I, P = hidden_dim, input_dim, img_dim, proj_dim
    p = {}
    p["Wimg"] = uni(next(keys), (I, H), I)
    p["bimg"] = uni(next(keys), (1, H), I)
    for name, shape, fan in (("Wir", (D, H), H), ("Wiz", (D, H), H), ("Win", (D, H), H),
                             ("Whr", (H, H), H), ("Whz", (H, H), H), ("Whn", (H, H), H)):
        p[name] = uni(next(keys), shape, fan)
    for name in ("bir", "biz", "bin", "bhr", "bhz", "bhn"):
        p[name] = uni(next(keys), (1, H), H)
    p["W1h"] = uni(next(keys), (H, P), H + I)
    p["W1i"] = uni(next(keys), (I, P), H + I)
    p["b1"] = uni(next(keys), (1, P), H + I)
    p["W2"] = uni(next(keys), (P, P), P)
    p["b2"] = uni(next(keys), (1, P), P)
    return p


if __name__ == "__main__":
    # Small shapes consistent with the module defaults.
    T, B = 8, 4                 # seq len, batch
    INPUT_DIM, HIDDEN_DIM, IMG_DIM, PROJ = 300, 150, 512, 300
    J = 6                       # number of candidates in y

    key = jax.random.PRNGKey(0)
    k_x, k_img, k_y, k_p = jax.random.split(key, 4)

    x = jax.random.normal(k_x, (T, B, INPUT_DIM), jnp.float32)
    img = jax.random.normal(k_img, (B, IMG_DIM), jnp.float32)
    y = 0.1 * jax.random.normal(k_y, (B, J, PROJ), jnp.float32)
    # Unsorted lengths (pack_padded_sequence is called with enforce_sorted=False),
    # with max(lengths) < T to exercise pad_packed_sequence / lstm_out[-1] semantics.
    lengths = jnp.array([5, 7, 7, 3], dtype=jnp.int32)

    params = init_params(k_p, INPUT_DIM, HIDDEN_DIM, IMG_DIM, PROJ)
    fused = prepare_params(params, HIDDEN_DIM, Hp=256)   # one-time weight prep

    out = network_forward(x, img, lengths, y, fused)
    out = jax.block_until_ready(out)

    ref = jax.block_until_ready(reference_forward(x, img, lengths, y, params))
    assert out.shape == (B, J)
    assert np.allclose(np.asarray(out), np.asarray(ref), atol=1e-2, rtol=1e-2), (
        "Pallas output does not match reference")
    assert np.allclose(np.asarray(out).sum(axis=-1), 1.0, atol=1e-4)

    print("KERNEL_OK")
</pallas_src>

<mosaic_0001>
module attributes {stable_mosaic.version = 11 : i64} {
  func.func @network_kernel(%arg0: memref<64x300xbf16, #tpu.memory_space<vmem>>, %arg1: memref<8x512xbf16, #tpu.memory_space<vmem>>, %arg2: memref<8x1xi32, #tpu.memory_space<vmem>>, %arg3: memref<1x1xi32, #tpu.memory_space<smem>>, %arg4: memref<8x6x300xbf16, #tpu.memory_space<any>>, %arg5: memref<256x300xbf16, #tpu.memory_space<any>>, %arg6: memref<512x300xbf16, #tpu.memory_space<any>>, %arg7: memref<300x300xbf16, #tpu.memory_space<any>>, %arg8: memref<512x256xbf16, #tpu.memory_space<vmem>>, %arg9: memref<1x256xf32, #tpu.memory_space<vmem>>, %arg10: memref<300x768xbf16, #tpu.memory_space<vmem>>, %arg11: memref<1x768xf32, #tpu.memory_space<vmem>>, %arg12: memref<256x768xbf16, #tpu.memory_space<vmem>>, %arg13: memref<1x256xf32, #tpu.memory_space<vmem>>, %arg14: memref<1x300xf32, #tpu.memory_space<vmem>>, %arg15: memref<1x300xf32, #tpu.memory_space<vmem>>, %arg16: memref<8x6xf32, #tpu.memory_space<vmem>>, %arg17: memref<8x6x300xbf16, #tpu.memory_space<vmem>>, %arg18: memref<256x300xbf16, #tpu.memory_space<vmem>>, %arg19: memref<512x300xbf16, #tpu.memory_space<vmem>>, %arg20: memref<300x300xbf16, #tpu.memory_space<vmem>>, %arg21: memref<4x!tpu.dma_semaphore, #tpu.memory_space<semaphore_mem>>, %arg22: memref<64x768xf32, #tpu.memory_space<vmem>>, %arg23: memref<8x256xf32, #tpu.memory_space<vmem>>, %arg24: memref<8x256xf32, #tpu.memory_space<vmem>>) attributes {dimension_semantics = [], scalar_prefetch = 0 : i64, scratch_operands = 8 : i64, tpu.core_type = #tpu.core_type<tc>} {
    %c0_i32 = arith.constant 0 : i32
    %0 = tpu.memref_slice %arg21[%c0_i32] : memref<4x!tpu.dma_semaphore, #tpu.memory_space<semaphore_mem>> -> memref<1x!tpu.dma_semaphore, #tpu.memory_space<semaphore_mem>>
    %1 = tpu.memref_squeeze %0 : memref<1x!tpu.dma_semaphore, #tpu.memory_space<semaphore_mem>> -> memref<!tpu.dma_semaphore, #tpu.memory_space<semaphore_mem>>
    tpu.enqueue_dma source(%arg4 : memref<8x6x300xbf16, #tpu.memory_space<any>>) target(%arg17 : memref<8x6x300xbf16, #tpu.memory_space<vmem>>) target_semaphore(%1 : memref<!tpu.dma_semaphore, #tpu.memory_space<semaphore_mem>>)
    %c1_i32 = arith.constant 1 : i32
    %2 = tpu.memref_slice %arg21[%c1_i32] : memref<4x!tpu.dma_semaphore, #tpu.memory_space<semaphore_mem>> -> memref<1x!tpu.dma_semaphore, #tpu.memory_space<semaphore_mem>>
    %3 = tpu.memref_squeeze %2 : memref<1x!tpu.dma_semaphore, #tpu.memory_space<semaphore_mem>> -> memref<!tpu.dma_semaphore, #tpu.memory_space<semaphore_mem>>
    tpu.enqueue_dma source(%arg5 : memref<256x300xbf16, #tpu.memory_space<any>>) target(%arg18 : memref<256x300xbf16, #tpu.memory_space<vmem>>) target_semaphore(%3 : memref<!tpu.dma_semaphore, #tpu.memory_space<semaphore_mem>>)
    %c2_i32 = arith.constant 2 : i32
    %4 = tpu.memref_slice %arg21[%c2_i32] : memref<4x!tpu.dma_semaphore, #tpu.memory_space<semaphore_mem>> -> memref<1x!tpu.dma_semaphore, #tpu.memory_space<semaphore_mem>>
    %5 = tpu.memref_squeeze %4 : memref<1x!tpu.dma_semaphore, #tpu.memory_space<semaphore_mem>> -> memref<!tpu.dma_semaphore, #tpu.memory_space<semaphore_mem>>
    tpu.enqueue_dma source(%arg6 : memref<512x300xbf16, #tpu.memory_space<any>>) target(%arg19 : memref<512x300xbf16, #tpu.memory_space<vmem>>) target_semaphore(%5 : memref<!tpu.dma_semaphore, #tpu.memory_space<semaphore_mem>>)
    %c3_i32 = arith.constant 3 : i32
    %6 = tpu.memref_slice %arg21[%c3_i32] : memref<4x!tpu.dma_semaphore, #tpu.memory_space<semaphore_mem>> -> memref<1x!tpu.dma_semaphore, #tpu.memory_space<semaphore_mem>>
    %7 = tpu.memref_squeeze %6 : memref<1x!tpu.dma_semaphore, #tpu.memory_space<semaphore_mem>> -> memref<!tpu.dma_semaphore, #tpu.memory_space<semaphore_mem>>
    tpu.enqueue_dma source(%arg7 : memref<300x300xbf16, #tpu.memory_space<any>>) target(%arg20 : memref<300x300xbf16, #tpu.memory_space<vmem>>) target_semaphore(%7 : memref<!tpu.dma_semaphore, #tpu.memory_space<semaphore_mem>>)
    %c0 = arith.constant 0 : index
    %c0_0 = arith.constant 0 : index
    %8 = memref.load %arg3[%c0, %c0_0] : memref<1x1xi32, #tpu.memory_space<smem>>
    %c0_1 = arith.constant 0 : index
    %c0_2 = arith.constant 0 : index
    %9 = vector.load %arg1[%c0_1, %c0_2] : memref<8x512xbf16, #tpu.memory_space<vmem>>, vector<8x512xbf16>
    %c0_3 = arith.constant 0 : index
    %c0_4 = arith.constant 0 : index
    %10 = vector.load %arg8[%c0_3, %c0_4] : memref<512x256xbf16, #tpu.memory_space<vmem>>, vector<512x256xbf16>
    %cst = arith.constant dense<0.000000e+00> : vector<8x256xf32>
    %11 = tpu.matmul %9, %10, %cst {dimension_numbers = #tpu.dot_dimension_numbers<[1], [0], [0], [1], [0, 0, 1, 1], [], []>} : vector<8x512xbf16>, vector<512x256xbf16>, vector<8x256xf32> -> vector<8x256xf32>
    %c0_5 = arith.constant 0 : index
    %c0_6 = arith.constant 0 : index
    %12 = vector.load %arg9[%c0_5, %c0_6] : memref<1x256xf32, #tpu.memory_space<vmem>>, vector<1x256xf32>
    %13 = vector.broadcast %12 : vector<1x256xf32> to vector<8x256xf32>
    %14 = arith.addf %11, %13 : vector<8x256xf32>
    %c0_7 = arith.constant 0 : index
    %c0_8 = arith.constant 0 : index
    %15 = vector.load %arg23[%c0_7, %c0_8] : memref<8x256xf32, #tpu.memory_space<vmem>>, vector<8x256xf32>
    tpu.vector_store %arg23[%c0_7, %c0_8], %14 {strides = array<i32>} : memref<8x256xf32, #tpu.memory_space<vmem>>, vector<8x256xf32>,
    %cst_9 = arith.constant 0.000000e+00 : f32
    %16 = vector.broadcast %cst_9 : f32 to vector<8x256xf32>
    %c0_10 = arith.constant 0 : index
    %c0_11 = arith.constant 0 : index
    %17 = vector.load %arg24[%c0_10, %c0_11] : memref<8x256xf32, #tpu.memory_space<vmem>>, vector<8x256xf32>
    tpu.vector_store %arg24[%c0_10, %c0_11], %16 {strides = array<i32>} : memref<8x256xf32, #tpu.memory_space<vmem>>, vector<8x256xf32>,
    %c0_12 = arith.constant 0 : index
    %c0_13 = arith.constant 0 : index
    %18 = vector.load %arg0[%c0_12, %c0_13] : memref<64x300xbf16, #tpu.memory_space<vmem>>, vector<64x300xbf16>
    %c0_14 = arith.constant 0 : index
    %c0_15 = arith.constant 0 : index
    %19 = vector.load %arg10[%c0_14, %c0_15] : memref<300x768xbf16, #tpu.memory_space<vmem>>, vector<300x768xbf16>
    %cst_16 = arith.constant dense<0.000000e+00> : vector<64x768xf32>
    %20 = tpu.matmul %18, %19, %cst_16 {dimension_numbers = #tpu.dot_dimension_numbers<[1], [0], [0], [1], [0, 0, 1, 1], [], []>} : vector<64x300xbf16>, vector<300x768xbf16>, vector<64x768xf32> -> vector<64x768xf32>
    %c0_17 = arith.constant 0 : index
    %c0_18 = arith.constant 0 : index
    %21 = vector.load %arg11[%c0_17, %c0_18] : memref<1x768xf32, #tpu.memory_space<vmem>>, vector<1x768xf32>
    %22 = vector.broadcast %21 : vector<1x768xf32> to vector<64x768xf32>
    %23 = arith.addf %20, %22 : vector<64x768xf32>
    %c0_19 = arith.constant 0 : index
    %c0_20 = arith.constant 0 : index
    %24 = vector.load %arg22[%c0_19, %c0_20] : memref<64x768xf32, #tpu.memory_space<vmem>>, vector<64x768xf32>
    tpu.vector_store %arg22[%c0_19, %c0_20], %23 {strides = array<i32>} : memref<64x768xf32, #tpu.memory_space<vmem>>, vector<64x768xf32>,
    %c0_21 = arith.constant 0 : index
    %c0_22 = arith.constant 0 : index
    %25 = vector.load %arg13[%c0_21, %c0_22] : memref<1x256xf32, #tpu.memory_space<vmem>>, vector<1x256xf32>
    %c0_i32_23 = arith.constant 0 : i32
    %26 = arith.cmpi sgt, %8, %c0_i32_23 : i32
    %27 = arith.extui %26 : i1 to i32
    %c0_i32_24 = arith.constant 0 : i32
    %28 = arith.cmpi ne, %27, %c0_i32_24 : i32
    scf.if %28 {
      %c0_81 = arith.constant 0 : index
      %c0_82 = arith.constant 0 : index
      %123 = vector.load %arg23[%c0_81, %c0_82] : memref<8x256xf32, #tpu.memory_space<vmem>>, vector<8x256xf32>
      %c0_83 = arith.constant 0 : index
      %c0_84 = arith.constant 0 : index
      %124 = vector.load %arg22[%c0_83, %c0_84] : memref<64x768xf32, #tpu.memory_space<vmem>>, vector<8x768xf32>
      %125 = arith.truncf %123 : vector<8x256xf32> to vector<8x256xbf16>
      %c0_85 = arith.constant 0 : index
      %c0_86 = arith.constant 0 : index
      %126 = vector.load %arg12[%c0_85, %c0_86] : memref<256x768xbf16, #tpu.memory_space<vmem>>, vector<256x768xbf16>
      %cst_87 = arith.constant dense<0.000000e+00> : vector<8x768xf32>
      %127 = tpu.matmul %125, %126, %cst_87 {dimension_numbers = #tpu.dot_dimension_numbers<[1], [0], [0], [1], [0, 0, 1, 1], [], []>} : vector<8x256xbf16>, vector<256x768xbf16>, vector<8x768xf32> -> vector<8x768xf32>
      %128 = vector.extract_strided_slice %124 {offsets = [0, 0], sizes = [8, 256], strides = [1, 1]} : vector<8x768xf32> to vector<8x256xf32>
      %129 = vector.extract_strided_slice %127 {offsets = [0, 0], sizes = [8, 256], strides = [1, 1]} : vector<8x768xf32> to vector<8x256xf32>
      %130 = arith.addf %128, %129 : vector<8x256xf32>
      %131 = arith.negf %130 : vector<8x256xf32>
      %132 = math.exp %131 : vector<8x256xf32>
      %cst_88 = arith.constant 1.000000e+00 : f32
      %133 = vector.broadcast %cst_88 : f32 to vector<8x256xf32>
      %134 = arith.addf %133, %132 : vector<8x256xf32>
      %135 = arith.divf %133, %134 : vector<8x256xf32>
      %136 = vector.extract_strided_slice %124 {offsets = [0, 256], sizes = [8, 256], strides = [1, 1]} : vector<8x768xf32> to vector<8x256xf32>
      %137 = vector.extract_strided_slice %127 {offsets = [0, 256], sizes = [8, 256], strides = [1, 1]} : vector<8x768xf32> to vector<8x256xf32>
      %138 = arith.addf %136, %137 : vector<8x256xf32>
      %139 = arith.negf %138 : vector<8x256xf32>
      %140 = math.exp %139 : vector<8x256xf32>
      %cst_89 = arith.constant 1.000000e+00 : f32
      %141 = vector.broadcast %cst_89 : f32 to vector<8x256xf32>
      %142 = arith.addf %141, %140 : vector<8x256xf32>
      %143 = arith.divf %141, %142 : vector<8x256xf32>
      %144 = vector.extract_strided_slice %124 {offsets = [0, 512], sizes = [8, 256], strides = [1, 1]} : vector<8x768xf32> to vector<8x256xf32>
      %145 = vector.extract_strided_slice %127 {offsets = [0, 512], sizes = [8, 256], strides = [1, 1]} : vector<8x768xf32> to vector<8x256xf32>
      %146 = vector.broadcast %25 : vector<1x256xf32> to vector<8x256xf32>
      %147 = arith.addf %145, %146 : vector<8x256xf32>
      %148 = arith.mulf %135, %147 : vector<8x256xf32>
      %149 = arith.addf %144, %148 : vector<8x256xf32>
      %150 = math.tanh %149 : vector<8x256xf32>
      %151 = arith.subf %123, %150 : vector<8x256xf32>
      %152 = arith.mulf %143, %151 : vector<8x256xf32>
      %153 = arith.addf %150, %152 : vector<8x256xf32>
      %c0_90 = arith.constant 0 : index
      %c0_91 = arith.constant 0 : index
      %154 = vector.load %arg23[%c0_90, %c0_91] : memref<8x256xf32, #tpu.memory_space<vmem>>, vector<8x256xf32>
      tpu.vector_store %arg23[%c0_90, %c0_91], %153 {strides = array<i32>} : memref<8x256xf32, #tpu.memory_space<vmem>>, vector<8x256xf32>,
    } else {
    }
    %c1_i32_25 = arith.constant 1 : i32
    %29 = arith.cmpi eq, %c1_i32_25, %8 : i32
    %30 = arith.extui %29 : i1 to i32
    %c0_i32_26 = arith.constant 0 : i32
    %31 = arith.cmpi ne, %30, %c0_i32_26 : i32
    scf.if %31 {
      %c0_81 = arith.constant 0 : index
      %c0_82 = arith.constant 0 : index
      %123 = vector.load %arg23[%c0_81, %c0_82] : memref<8x256xf32, #tpu.memory_space<vmem>>, vector<8x256xf32>
      %c0_83 = arith.constant 0 : index
      %c0_84 = arith.constant 0 : index
      %124 = vector.load %arg24[%c0_83, %c0_84] : memref<8x256xf32, #tpu.memory_space<vmem>>, vector<8x256xf32>
      tpu.vector_store %arg24[%c0_83, %c0_84], %123 {strides = array<i32>} : memref<8x256xf32, #tpu.memory_space<vmem>>, vector<8x256xf32>,
    } else {
    }
    %c1_i32_27 = arith.constant 1 : i32
    %32 = arith.cmpi sgt, %8, %c1_i32_27 : i32
    %33 = arith.extui %32 : i1 to i32
    %c0_i32_28 = arith.constant 0 : i32
    %34 = arith.cmpi ne, %33, %c0_i32_28 : i32
    scf.if %34 {
      %c0_81 = arith.constant 0 : index
      %c0_82 = arith.constant 0 : index
      %123 = vector.load %arg23[%c0_81, %c0_82] : memref<8x256xf32, #tpu.memory_space<vmem>>, vector<8x256xf32>
      %c8 = arith.constant 8 : index
      %c0_83 = arith.constant 0 : index
      %124 = vector.load %arg22[%c8, %c0_83] : memref<64x768xf32, #tpu.memory_space<vmem>>, vector<8x768xf32>
      %125 = arith.truncf %123 : vector<8x256xf32> to vector<8x256xbf16>
      %c0_84 = arith.constant 0 : index
      %c0_85 = arith.constant 0 : index
      %126 = vector.load %arg12[%c0_84, %c0_85] : memref<256x768xbf16, #tpu.memory_space<vmem>>, vector<256x768xbf16>
      %cst_86 = arith.constant dense<0.000000e+00> : vector<8x768xf32>
      %127 = tpu.matmul %125, %126, %cst_86 {dimension_numbers = #tpu.dot_dimension_numbers<[1], [0], [0], [1], [0, 0, 1, 1], [], []>} : vector<8x256xbf16>, vector<256x768xbf16>, vector<8x768xf32> -> vector<8x768xf32>
      %128 = vector.extract_strided_slice %124 {offsets = [0, 0], sizes = [8, 256], strides = [1, 1]} : vector<8x768xf32> to vector<8x256xf32>
      %129 = vector.extract_strided_slice %127 {offsets = [0, 0], sizes = [8, 256], strides = [1, 1]} : vector<8x768xf32> to vector<8x256xf32>
      %130 = arith.addf %128, %129 : vector<8x256xf32>
      %131 = arith.negf %130 : vector<8x256xf32>
      %132 = math.exp %131 : vector<8x256xf32>
      %cst_87 = arith.constant 1.000000e+00 : f32
      %133 = vector.broadcast %cst_87 : f32 to vector<8x256xf32>
      %134 = arith.addf %133, %132 : vector<8x256xf32>
      %135 = arith.divf %133, %134 : vector<8x256xf32>
      %136 = vector.extract_strided_slice %124 {offsets = [0, 256], sizes = [8, 256], strides = [1, 1]} : vector<8x768xf32> to vector<8x256xf32>
      %137 = vector.extract_strided_slice %127 {offsets = [0, 256], sizes = [8, 256], strides = [1, 1]} : vector<8x768xf32> to vector<8x256xf32>
      %138 = arith.addf %136, %137 : vector<8x256xf32>
      %139 = arith.negf %138 : vector<8x256xf32>
      %140 = math.exp %139 : vector<8x256xf32>
      %cst_88 = arith.constant 1.000000e+00 : f32
      %141 = vector.broadcast %cst_88 : f32 to vector<8x256xf32>
      %142 = arith.addf %141, %140 : vector<8x256xf32>
      %143 = arith.divf %141, %142 : vector<8x256xf32>
      %144 = vector.extract_strided_slice %124 {offsets = [0, 512], sizes = [8, 256], strides = [1, 1]} : vector<8x768xf32> to vector<8x256xf32>
      %145 = vector.extract_strided_slice %127 {offsets = [0, 512], sizes = [8, 256], strides = [1, 1]} : vector<8x768xf32> to vector<8x256xf32>
      %146 = vector.broadcast %25 : vector<1x256xf32> to vector<8x256xf32>
      %147 = arith.addf %145, %146 : vector<8x256xf32>
      %148 = arith.mulf %135, %147 : vector<8x256xf32>
      %149 = arith.addf %144, %148 : vector<8x256xf32>
      %150 = math.tanh %149 : vector<8x256xf32>
      %151 = arith.subf %123, %150 : vector<8x256xf32>
      %152 = arith.mulf %143, %151 : vector<8x256xf32>
      %153 = arith.addf %150, %152 : vector<8x256xf32>
      %c0_89 = arith.constant 0 : index
      %c0_90 = arith.constant 0 : index
      %154 = vector.load %arg23[%c0_89, %c0_90] : memref<8x256xf32, #tpu.memory_space<vmem>>, vector<8x256xf32>
      tpu.vector_store %arg23[%c0_89, %c0_90], %153 {strides = array<i32>} : memref<8x256xf32, #tpu.memory_space<vmem>>, vector<8x256xf32>,
    } else {
    }
    %c2_i32_29 = arith.constant 2 : i32
    %35 = arith.cmpi eq, %c2_i32_29, %8 : i32
    %36 = arith.extui %35 : i1 to i32
    %c0_i32_30 = arith.constant 0 : i32
    %37 = arith.cmpi ne, %36, %c0_i32_30 : i32
    scf.if %37 {
      %c0_81 = arith.constant 0 : index
      %c0_82 = arith.constant 0 : index
      %123 = vector.load %arg23[%c0_81, %c0_82] : memref<8x256xf32, #tpu.memory_space<vmem>>, vector<8x256xf32>
      %c0_83 = arith.constant 0 : index
      %c0_84 = arith.constant 0 : index
      %124 = vector.load %arg24[%c0_83, %c0_84] : memref<8x256xf32, #tpu.memory_space<vmem>>, vector<8x256xf32>
      tpu.vector_store %arg24[%c0_83, %c0_84], %123 {strides = array<i32>} : memref<8x256xf32, #tpu.memory_space<vmem>>, vector<8x256xf32>,
    } else {
    }
    %c2_i32_31 = arith.constant 2 : i32
    %38 = arith.cmpi sgt, %8, %c2_i32_31 : i32
    %39 = arith.extui %38 : i1 to i32
    %c0_i32_32 = arith.constant 0 : i32
    %40 = arith.cmpi ne, %39, %c0_i32_32 : i32
    scf.if %40 {
      %c0_81 = arith.constant 0 : index
      %c0_82 = arith.constant 0 : index
      %123 = vector.load %arg23[%c0_81, %c0_82] : memref<8x256xf32, #tpu.memory_space<vmem>>, vector<8x256xf32>
      %c16 = arith.constant 16 : index
      %c0_83 = arith.constant 0 : index
      %124 = vector.load %arg22[%c16, %c0_83] : memref<64x768xf32, #tpu.memory_space<vmem>>, vector<8x768xf32>
      %125 = arith.truncf %123 : vector<8x256xf32> to vector<8x256xbf16>
      %c0_84 = arith.constant 0 : index
      %c0_85 = arith.constant 0 : index
      %126 = vector.load %arg12[%c0_84, %c0_85] : memref<256x768xbf16, #tpu.memory_space<vmem>>, vector<256x768xbf16>
      %cst_86 = arith.constant dense<0.000000e+00> : vector<8x768xf32>
      %127 = tpu.matmul %125, %126, %cst_86 {dimension_numbers = #tpu.dot_dimension_numbers<[1], [0], [0], [1], [0, 0, 1, 1], [], []>} : vector<8x256xbf16>, vector<256x768xbf16>, vector<8x768xf32> -> vector<8x768xf32>
      %128 = vector.extract_strided_slice %124 {offsets = [0, 0], sizes = [8, 256], strides = [1, 1]} : vector<8x768xf32> to vector<8x256xf32>
      %129 = vector.extract_strided_slice %127 {offsets = [0, 0], sizes = [8, 256], strides = [1, 1]} : vector<8x768xf32> to vector<8x256xf32>
      %130 = arith.addf %128, %129 : vector<8x256xf32>
      %131 = arith.negf %130 : vector<8x256xf32>
      %132 = math.exp %131 : vector<8x256xf32>
      %cst_87 = arith.constant 1.000000e+00 : f32
      %133 = vector.broadcast %cst_87 : f32 to vector<8x256xf32>
      %134 = arith.addf %133, %132 : vector<8x256xf32>
      %135 = arith.divf %133, %134 : vector<8x256xf32>
      %136 = vector.extract_strided_slice %124 {offsets = [0, 256], sizes = [8, 256], strides = [1, 1]} : vector<8x768xf32> to vector<8x256xf32>
      %137 = vector.extract_strided_slice %127 {offsets = [0, 256], sizes = [8, 256], strides = [1, 1]} : vector<8x768xf32> to vector<8x256xf32>
      %138 = arith.addf %136, %137 : vector<8x256xf32>
      %139 = arith.negf %138 : vector<8x256xf32>
      %140 = math.exp %139 : vector<8x256xf32>
      %cst_88 = arith.constant 1.000000e+00 : f32
      %141 = vector.broadcast %cst_88 : f32 to vector<8x256xf32>
      %142 = arith.addf %141, %140 : vector<8x256xf32>
      %143 = arith.divf %141, %142 : vector<8x256xf32>
      %144 = vector.extract_strided_slice %124 {offsets = [0, 512], sizes = [8, 256], strides = [1, 1]} : vector<8x768xf32> to vector<8x256xf32>
      %145 = vector.extract_strided_slice %127 {offsets = [0, 512], sizes = [8, 256], strides = [1, 1]} : vector<8x768xf32> to vector<8x256xf32>
      %146 = vector.broadcast %25 : vector<1x256xf32> to vector<8x256xf32>
      %147 = arith.addf %145, %146 : vector<8x256xf32>
      %148 = arith.mulf %135, %147 : vector<8x256xf32>
      %149 = arith.addf %144, %148 : vector<8x256xf32>
      %150 = math.tanh %149 : vector<8x256xf32>
      %151 = arith.subf %123, %150 : vector<8x256xf32>
      %152 = arith.mulf %143, %151 : vector<8x256xf32>
      %153 = arith.addf %150, %152 : vector<8x256xf32>
      %c0_89 = arith.constant 0 : index
      %c0_90 = arith.constant 0 : index
      %154 = vector.load %arg23[%c0_89, %c0_90] : memref<8x256xf32, #tpu.memory_space<vmem>>, vector<8x256xf32>
      tpu.vector_store %arg23[%c0_89, %c0_90], %153 {strides = array<i32>} : memref<8x256xf32, #tpu.memory_space<vmem>>, vector<8x256xf32>,
    } else {
    }
    %c3_i32_33 = arith.constant 3 : i32
    %41 = arith.cmpi eq, %c3_i32_33, %8 : i32
    %42 = arith.extui %41 : i1 to i32
    %c0_i32_34 = arith.constant 0 : i32
    %43 = arith.cmpi ne, %42, %c0_i32_34 : i32
    scf.if %43 {
      %c0_81 = arith.constant 0 : index
      %c0_82 = arith.constant 0 : index
      %123 = vector.load %arg23[%c0_81, %c0_82] : memref<8x256xf32, #tpu.memory_space<vmem>>, vector<8x256xf32>
      %c0_83 = arith.constant 0 : index
      %c0_84 = arith.constant 0 : index
      %124 = vector.load %arg24[%c0_83, %c0_84] : memref<8x256xf32, #tpu.memory_space<vmem>>, vector<8x256xf32>
      tpu.vector_store %arg24[%c0_83, %c0_84], %123 {strides = array<i32>} : memref<8x256xf32, #tpu.memory_space<vmem>>, vector<8x256xf32>,
    } else {
    }
    %c3_i32_35 = arith.constant 3 : i32
    %44 = arith.cmpi sgt, %8, %c3_i32_35 : i32
    %45 = arith.extui %44 : i1 to i32
    %c0_i32_36 = arith.constant 0 : i32
    %46 = arith.cmpi ne, %45, %c0_i32_36 : i32
    scf.if %46 {
      %c0_81 = arith.constant 0 : index
      %c0_82 = arith.constant 0 : index
      %123 = vector.load %arg23[%c0_81, %c0_82] : memref<8x256xf32, #tpu.memory_space<vmem>>, vector<8x256xf32>
      %c24 = arith.constant 24 : index
      %c0_83 = arith.constant 0 : index
      %124 = vector.load %arg22[%c24, %c0_83] : memref<64x768xf32, #tpu.memory_space<vmem>>, vector<8x768xf32>
      %125 = arith.truncf %123 : vector<8x256xf32> to vector<8x256xbf16>
      %c0_84 = arith.constant 0 : index
      %c0_85 = arith.constant 0 : index
      %126 = vector.load %arg12[%c0_84, %c0_85] : memref<256x768xbf16, #tpu.memory_space<vmem>>, vector<256x768xbf16>
      %cst_86 = arith.constant dense<0.000000e+00> : vector<8x768xf32>
      %127 = tpu.matmul %125, %126, %cst_86 {dimension_numbers = #tpu.dot_dimension_numbers<[1], [0], [0], [1], [0, 0, 1, 1], [], []>} : vector<8x256xbf16>, vector<256x768xbf16>, vector<8x768xf32> -> vector<8x768xf32>
      %128 = vector.extract_strided_slice %124 {offsets = [0, 0], sizes = [8, 256], strides = [1, 1]} : vector<8x768xf32> to vector<8x256xf32>
      %129 = vector.extract_strided_slice %127 {offsets = [0, 0], sizes = [8, 256], strides = [1, 1]} : vector<8x768xf32> to vector<8x256xf32>
      %130 = arith.addf %128, %129 : vector<8x256xf32>
      %131 = arith.negf %130 : vector<8x256xf32>
      %132 = math.exp %131 : vector<8x256xf32>
      %cst_87 = arith.constant 1.000000e+00 : f32
      %133 = vector.broadcast %cst_87 : f32 to vector<8x256xf32>
      %134 = arith.addf %133, %132 : vector<8x256xf32>
      %135 = arith.divf %133, %134 : vector<8x256xf32>
      %136 = vector.extract_strided_slice %124 {offsets = [0, 256], sizes = [8, 256], strides = [1, 1]} : vector<8x768xf32> to vector<8x256xf32>
      %137 = vector.extract_strided_slice %127 {offsets = [0, 256], sizes = [8, 256], strides = [1, 1]} : vector<8x768xf32> to vector<8x256xf32>
      %138 = arith.addf %136, %137 : vector<8x256xf32>
      %139 = arith.negf %138 : vector<8x256xf32>
      %140 = math.exp %139 : vector<8x256xf32>
      %cst_88 = arith.constant 1.000000e+00 : f32
      %141 = vector.broadcast %cst_88 : f32 to vector<8x256xf32>
      %142 = arith.addf %141, %140 : vector<8x256xf32>
      %143 = arith.divf %141, %142 : vector<8x256xf32>
      %144 = vector.extract_strided_slice %124 {offsets = [0, 512], sizes = [8, 256], strides = [1, 1]} : vector<8x768xf32> to vector<8x256xf32>
      %145 = vector.extract_strided_slice %127 {offsets = [0, 512], sizes = [8, 256], strides = [1, 1]} : vector<8x768xf32> to vector<8x256xf32>
      %146 = vector.broadcast %25 : vector<1x256xf32> to vector<8x256xf32>
      %147 = arith.addf %145, %146 : vector<8x256xf32>
      %148 = arith.mulf %135, %147 : vector<8x256xf32>
      %149 = arith.addf %144, %148 : vector<8x256xf32>
      %150 = math.tanh %149 : vector<8x256xf32>
      %151 = arith.subf %123, %150 : vector<8x256xf32>
      %152 = arith.mulf %143, %151 : vector<8x256xf32>
      %153 = arith.addf %150, %152 : vector<8x256xf32>
      %c0_89 = arith.constant 0 : index
      %c0_90 = arith.constant 0 : index
      %154 = vector.load %arg23[%c0_89, %c0_90] : memref<8x256xf32, #tpu.memory_space<vmem>>, vector<8x256xf32>
      tpu.vector_store %arg23[%c0_89, %c0_90], %153 {strides = array<i32>} : memref<8x256xf32, #tpu.memory_space<vmem>>, vector<8x256xf32>,
    } else {
    }
    %c4_i32 = arith.constant 4 : i32
    %47 = arith.cmpi eq, %c4_i32, %8 : i32
    %48 = arith.extui %47 : i1 to i32
    %c0_i32_37 = arith.constant 0 : i32
    %49 = arith.cmpi ne, %48, %c0_i32_37 : i32
    scf.if %49 {
      %c0_81 = arith.constant 0 : index
      %c0_82 = arith.constant 0 : index
      %123 = vector.load %arg23[%c0_81, %c0_82] : memref<8x256xf32, #tpu.memory_space<vmem>>, vector<8x256xf32>
      %c0_83 = arith.constant 0 : index
      %c0_84 = arith.constant 0 : index
      %124 = vector.load %arg24[%c0_83, %c0_84] : memref<8x256xf32, #tpu.memory_space<vmem>>, vector<8x256xf32>
      tpu.vector_store %arg24[%c0_83, %c0_84], %123 {strides = array<i32>} : memref<8x256xf32, #tpu.memory_space<vmem>>, vector<8x256xf32>,
    } else {
    }
    %c4_i32_38 = arith.constant 4 : i32
    %50 = arith.cmpi sgt, %8, %c4_i32_38 : i32
    %51 = arith.extui %50 : i1 to i32
    %c0_i32_39 = arith.constant 0 : i32
    %52 = arith.cmpi ne, %51, %c0_i32_39 : i32
    scf.if %52 {
      %c0_81 = arith.constant 0 : index
      %c0_82 = arith.constant 0 : index
      %123 = vector.load %arg23[%c0_81, %c0_82] : memref<8x256xf32, #tpu.memory_space<vmem>>, vector<8x256xf32>
      %c32 = arith.constant 32 : index
      %c0_83 = arith.constant 0 : index
      %124 = vector.load %arg22[%c32, %c0_83] : memref<64x768xf32, #tpu.memory_space<vmem>>, vector<8x768xf32>
      %125 = arith.truncf %123 : vector<8x256xf32> to vector<8x256xbf16>
      %c0_84 = arith.constant 0 : index
      %c0_85 = arith.constant 0 : index
      %126 = vector.load %arg12[%c0_84, %c0_85] : memref<256x768xbf16, #tpu.memory_space<vmem>>, vector<256x768xbf16>
      %cst_86 = arith.constant dense<0.000000e+00> : vector<8x768xf32>
      %127 = tpu.matmul %125, %126, %cst_86 {dimension_numbers = #tpu.dot_dimension_numbers<[1], [0], [0], [1], [0, 0, 1, 1], [], []>} : vector<8x256xbf16>, vector<256x768xbf16>, vector<8x768xf32> -> vector<8x768xf32>
      %128 = vector.extract_strided_slice %124 {offsets = [0, 0], sizes = [8, 256], strides = [1, 1]} : vector<8x768xf32> to vector<8x256xf32>
      %129 = vector.extract_strided_slice %127 {offsets = [0, 0], sizes = [8, 256], strides = [1, 1]} : vector<8x768xf32> to vector<8x256xf32>
      %130 = arith.addf %128, %129 : vector<8x256xf32>
      %131 = arith.negf %130 : vector<8x256xf32>
      %132 = math.exp %131 : vector<8x256xf32>
      %cst_87 = arith.constant 1.000000e+00 : f32
      %133 = vector.broadcast %cst_87 : f32 to vector<8x256xf32>
      %134 = arith.addf %133, %132 : vector<8x256xf32>
      %135 = arith.divf %133, %134 : vector<8x256xf32>
      %136 = vector.extract_strided_slice %124 {offsets = [0, 256], sizes = [8, 256], strides = [1, 1]} : vector<8x768xf32> to vector<8x256xf32>
      %137 = vector.extract_strided_slice %127 {offsets = [0, 256], sizes = [8, 256], strides = [1, 1]} : vector<8x768xf32> to vector<8x256xf32>
      %138 = arith.addf %136, %137 : vector<8x256xf32>
      %139 = arith.negf %138 : vector<8x256xf32>
      %140 = math.exp %139 : vector<8x256xf32>
      %cst_88 = arith.constant 1.000000e+00 : f32
      %141 = vector.broadcast %cst_88 : f32 to vector<8x256xf32>
      %142 = arith.addf %141, %140 : vector<8x256xf32>
      %143 = arith.divf %141, %142 : vector<8x256xf32>
      %144 = vector.extract_strided_slice %124 {offsets = [0, 512], sizes = [8, 256], strides = [1, 1]} : vector<8x768xf32> to vector<8x256xf32>
      %145 = vector.extract_strided_slice %127 {offsets = [0, 512], sizes = [8, 256], strides = [1, 1]} : vector<8x768xf32> to vector<8x256xf32>
      %146 = vector.broadcast %25 : vector<1x256xf32> to vector<8x256xf32>
      %147 = arith.addf %145, %146 : vector<8x256xf32>
      %148 = arith.mulf %135, %147 : vector<8x256xf32>
      %149 = arith.addf %144, %148 : vector<8x256xf32>
      %150 = math.tanh %149 : vector<8x256xf32>
      %151 = arith.subf %123, %150 : vector<8x256xf32>
      %152 = arith.mulf %143, %151 : vector<8x256xf32>
      %153 = arith.addf %150, %152 : vector<8x256xf32>
      %c0_89 = arith.constant 0 : index
      %c0_90 = arith.constant 0 : index
      %154 = vector.load %arg23[%c0_89, %c0_90] : memref<8x256xf32, #tpu.memory_space<vmem>>, vector<8x256xf32>
      tpu.vector_store %arg23[%c0_89, %c0_90], %153 {strides = array<i32>} : memref<8x256xf32, #tpu.memory_space<vmem>>, vector<8x256xf32>,
    } else {
    }
    %c5_i32 = arith.constant 5 : i32
    %53 = arith.cmpi eq, %c5_i32, %8 : i32
    %54 = arith.extui %53 : i1 to i32
    %c0_i32_40 = arith.constant 0 : i32
    %55 = arith.cmpi ne, %54, %c0_i32_40 : i32
    scf.if %55 {
      %c0_81 = arith.constant 0 : index
      %c0_82 = arith.constant 0 : index
      %123 = vector.load %arg23[%c0_81, %c0_82] : memref<8x256xf32, #tpu.memory_space<vmem>>, vector<8x256xf32>
      %c0_83 = arith.constant 0 : index
      %c0_84 = arith.constant 0 : index
      %124 = vector.load %arg24[%c0_83, %c0_84] : memref<8x256xf32, #tpu.memory_space<vmem>>, vector<8x256xf32>
      tpu.vector_store %arg24[%c0_83, %c0_84], %123 {strides = array<i32>} : memref<8x256xf32, #tpu.memory_space<vmem>>, vector<8x256xf32>,
    } else {
    }
    %c5_i32_41 = arith.constant 5 : i32
    %56 = arith.cmpi sgt, %8, %c5_i32_41 : i32
    %57 = arith.extui %56 : i1 to i32
    %c0_i32_42 = arith.constant 0 : i32
    %58 = arith.cmpi ne, %57, %c0_i32_42 : i32
    scf.if %58 {
      %c0_81 = arith.constant 0 : index
      %c0_82 = arith.constant 0 : index
      %123 = vector.load %arg23[%c0_81, %c0_82] : memref<8x256xf32, #tpu.memory_space<vmem>>, vector<8x256xf32>
      %c40 = arith.constant 40 : index
      %c0_83 = arith.constant 0 : index
      %124 = vector.load %arg22[%c40, %c0_83] : memref<64x768xf32, #tpu.memory_space<vmem>>, vector<8x768xf32>
      %125 = arith.truncf %123 : vector<8x256xf32> to vector<8x256xbf16>
      %c0_84 = arith.constant 0 : index
      %c0_85 = arith.constant 0 : index
      %126 = vector.load %arg12[%c0_84, %c0_85] : memref<256x768xbf16, #tpu.memory_space<vmem>>, vector<256x768xbf16>
      %cst_86 = arith.constant dense<0.000000e+00> : vector<8x768xf32>
      %127 = tpu.matmul %125, %126, %cst_86 {dimension_numbers = #tpu.dot_dimension_numbers<[1], [0], [0], [1], [0, 0, 1, 1], [], []>} : vector<8x256xbf16>, vector<256x768xbf16>, vector<8x768xf32> -> vector<8x768xf32>
      %128 = vector.extract_strided_slice %124 {offsets = [0, 0], sizes = [8, 256], strides = [1, 1]} : vector<8x768xf32> to vector<8x256xf32>
      %129 = vector.extract_strided_slice %127 {offsets = [0, 0], sizes = [8, 256], strides = [1, 1]} : vector<8x768xf32> to vector<8x256xf32>
      %130 = arith.addf %128, %129 : vector<8x256xf32>
      %131 = arith.negf %130 : vector<8x256xf32>
      %132 = math.exp %131 : vector<8x256xf32>
      %cst_87 = arith.constant 1.000000e+00 : f32
      %133 = vector.broadcast %cst_87 : f32 to vector<8x256xf32>
      %134 = arith.addf %133, %132 : vector<8x256xf32>
      %135 = arith.divf %133, %134 : vector<8x256xf32>
      %136 = vector.extract_strided_slice %124 {offsets = [0, 256], sizes = [8, 256], strides = [1, 1]} : vector<8x768xf32> to vector<8x256xf32>
      %137 = vector.extract_strided_slice %127 {offsets = [0, 256], sizes = [8, 256], strides = [1, 1]} : vector<8x768xf32> to vector<8x256xf32>
      %138 = arith.addf %136, %137 : vector<8x256xf32>
      %139 = arith.negf %138 : vector<8x256xf32>
      %140 = math.exp %139 : vector<8x256xf32>
      %cst_88 = arith.constant 1.000000e+00 : f32
      %141 = vector.broadcast %cst_88 : f32 to vector<8x256xf32>
      %142 = arith.addf %141, %140 : vector<8x256xf32>
      %143 = arith.divf %141, %142 : vector<8x256xf32>
      %144 = vector.extract_strided_slice %124 {offsets = [0, 512], sizes = [8, 256], strides = [1, 1]} : vector<8x768xf32> to vector<8x256xf32>
      %145 = vector.extract_strided_slice %127 {offsets = [0, 512], sizes = [8, 256], strides = [1, 1]} : vector<8x768xf32> to vector<8x256xf32>
      %146 = vector.broadcast %25 : vector<1x256xf32> to vector<8x256xf32>
      %147 = arith.addf %145, %146 : vector<8x256xf32>
      %148 = arith.mulf %135, %147 : vector<8x256xf32>
      %149 = arith.addf %144, %148 : vector<8x256xf32>
      %150 = math.tanh %149 : vector<8x256xf32>
      %151 = arith.subf %123, %150 : vector<8x256xf32>
      %152 = arith.mulf %143, %151 : vector<8x256xf32>
      %153 = arith.addf %150, %152 : vector<8x256xf32>
      %c0_89 = arith.constant 0 : index
      %c0_90 = arith.constant 0 : index
      %154 = vector.load %arg23[%c0_89, %c0_90] : memref<8x256xf32, #tpu.memory_space<vmem>>, vector<8x256xf32>
      tpu.vector_store %arg23[%c0_89, %c0_90], %153 {strides = array<i32>} : memref<8x256xf32, #tpu.memory_space<vmem>>, vector<8x256xf32>,
    } else {
    }
    %c6_i32 = arith.constant 6 : i32
    %59 = arith.cmpi eq, %c6_i32, %8 : i32
    %60 = arith.extui %59 : i1 to i32
    %c0_i32_43 = arith.constant 0 : i32
    %61 = arith.cmpi ne, %60, %c0_i32_43 : i32
    scf.if %61 {
      %c0_81 = arith.constant 0 : index
      %c0_82 = arith.constant 0 : index
      %123 = vector.load %arg23[%c0_81, %c0_82] : memref<8x256xf32, #tpu.memory_space<vmem>>, vector<8x256xf32>
      %c0_83 = arith.constant 0 : index
      %c0_84 = arith.constant 0 : index
      %124 = vector.load %arg24[%c0_83, %c0_84] : memref<8x256xf32, #tpu.memory_space<vmem>>, vector<8x256xf32>
      tpu.vector_store %arg24[%c0_83, %c0_84], %123 {strides = array<i32>} : memref<8x256xf32, #tpu.memory_space<vmem>>, vector<8x256xf32>,
    } else {
    }
    %c6_i32_44 = arith.constant 6 : i32
    %62 = arith.cmpi sgt, %8, %c6_i32_44 : i32
    %63 = arith.extui %62 : i1 to i32
    %c0_i32_45 = arith.constant 0 : i32
    %64 = arith.cmpi ne, %63, %c0_i32_45 : i32
    scf.if %64 {
      %c0_81 = arith.constant 0 : index
      %c0_82 = arith.constant 0 : index
      %123 = vector.load %arg23[%c0_81, %c0_82] : memref<8x256xf32, #tpu.memory_space<vmem>>, vector<8x256xf32>
      %c48 = arith.constant 48 : index
      %c0_83 = arith.constant 0 : index
      %124 = vector.load %arg22[%c48, %c0_83] : memref<64x768xf32, #tpu.memory_space<vmem>>, vector<8x768xf32>
      %125 = arith.truncf %123 : vector<8x256xf32> to vector<8x256xbf16>
      %c0_84 = arith.constant 0 : index
      %c0_85 = arith.constant 0 : index
      %126 = vector.load %arg12[%c0_84, %c0_85] : memref<256x768xbf16, #tpu.memory_space<vmem>>, vector<256x768xbf16>
      %cst_86 = arith.constant dense<0.000000e+00> : vector<8x768xf32>
      %127 = tpu.matmul %125, %126, %cst_86 {dimension_numbers = #tpu.dot_dimension_numbers<[1], [0], [0], [1], [0, 0, 1, 1], [], []>} : vector<8x256xbf16>, vector<256x768xbf16>, vector<8x768xf32> -> vector<8x768xf32>
      %128 = vector.extract_strided_slice %124 {offsets = [0, 0], sizes = [8, 256], strides = [1, 1]} : vector<8x768xf32> to vector<8x256xf32>
      %129 = vector.extract_strided_slice %127 {offsets = [0, 0], sizes = [8, 256], strides = [1, 1]} : vector<8x768xf32> to vector<8x256xf32>
      %130 = arith.addf %128, %129 : vector<8x256xf32>
      %131 = arith.negf %130 : vector<8x256xf32>
      %132 = math.exp %131 : vector<8x256xf32>
      %cst_87 = arith.constant 1.000000e+00 : f32
      %133 = vector.broadcast %cst_87 : f32 to vector<8x256xf32>
      %134 = arith.addf %133, %132 : vector<8x256xf32>
      %135 = arith.divf %133, %134 : vector<8x256xf32>
      %136 = vector.extract_strided_slice %124 {offsets = [0, 256], sizes = [8, 256], strides = [1, 1]} : vector<8x768xf32> to vector<8x256xf32>
      %137 = vector.extract_strided_slice %127 {offsets = [0, 256], sizes = [8, 256], strides = [1, 1]} : vector<8x768xf32> to vector<8x256xf32>
      %138 = arith.addf %136, %137 : vector<8x256xf32>
      %139 = arith.negf %138 : vector<8x256xf32>
      %140 = math.exp %139 : vector<8x256xf32>
      %cst_88 = arith.constant 1.000000e+00 : f32
      %141 = vector.broadcast %cst_88 : f32 to vector<8x256xf32>
      %142 = arith.addf %141, %140 : vector<8x256xf32>
      %143 = arith.divf %141, %142 : vector<8x256xf32>
      %144 = vector.extract_strided_slice %124 {offsets = [0, 512], sizes = [8, 256], strides = [1, 1]} : vector<8x768xf32> to vector<8x256xf32>
      %145 = vector.extract_strided_slice %127 {offsets = [0, 512], sizes = [8, 256], strides = [1, 1]} : vector<8x768xf32> to vector<8x256xf32>
      %146 = vector.broadcast %25 : vector<1x256xf32> to vector<8x256xf32>
      %147 = arith.addf %145, %146 : vector<8x256xf32>
      %148 = arith.mulf %135, %147 : vector<8x256xf32>
      %149 = arith.addf %144, %148 : vector<8x256xf32>
      %150 = math.tanh %149 : vector<8x256xf32>
      %151 = arith.subf %123, %150 : vector<8x256xf32>
      %152 = arith.mulf %143, %151 : vector<8x256xf32>
      %153 = arith.addf %150, %152 : vector<8x256xf32>
      %c0_89 = arith.constant 0 : index
      %c0_90 = arith.constant 0 : index
      %154 = vector.load %arg23[%c0_89, %c0_90] : memref<8x256xf32, #tpu.memory_space<vmem>>, vector<8x256xf32>
      tpu.vector_store %arg23[%c0_89, %c0_90], %153 {strides = array<i32>} : memref<8x256xf32, #tpu.memory_space<vmem>>, vector<8x256xf32>,
    } else {
    }
    %c7_i32 = arith.constant 7 : i32
    %65 = arith.cmpi eq, %c7_i32, %8 : i32
    %66 = arith.extui %65 : i1 to i32
    %c0_i32_46 = arith.constant 0 : i32
    %67 = arith.cmpi ne, %66, %c0_i32_46 : i32
    scf.if %67 {
      %c0_81 = arith.constant 0 : index
      %c0_82 = arith.constant 0 : index
      %123 = vector.load %arg23[%c0_81, %c0_82] : memref<8x256xf32, #tpu.memory_space<vmem>>, vector<8x256xf32>
      %c0_83 = arith.constant 0 : index
      %c0_84 = arith.constant 0 : index
      %124 = vector.load %arg24[%c0_83, %c0_84] : memref<8x256xf32, #tpu.memory_space<vmem>>, vector<8x256xf32>
      tpu.vector_store %arg24[%c0_83, %c0_84], %123 {strides = array<i32>} : memref<8x256xf32, #tpu.memory_space<vmem>>, vector<8x256xf32>,
    } else {
    }
    %c7_i32_47 = arith.constant 7 : i32
    %68 = arith.cmpi sgt, %8, %c7_i32_47 : i32
    %69 = arith.extui %68 : i1 to i32
    %c0_i32_48 = arith.constant 0 : i32
    %70 = arith.cmpi ne, %69, %c0_i32_48 : i32
    scf.if %70 {
      %c0_81 = arith.constant 0 : index
      %c0_82 = arith.constant 0 : index
      %123 = vector.load %arg23[%c0_81, %c0_82] : memref<8x256xf32, #tpu.memory_space<vmem>>, vector<8x256xf32>
      %c56 = arith.constant 56 : index
      %c0_83 = arith.constant 0 : index
      %124 = vector.load %arg22[%c56, %c0_83] : memref<64x768xf32, #tpu.memory_space<vmem>>, vector<8x768xf32>
      %125 = arith.truncf %123 : vector<8x256xf32> to vector<8x256xbf16>
      %c0_84 = arith.constant 0 : index
      %c0_85 = arith.constant 0 : index
      %126 = vector.load %arg12[%c0_84, %c0_85] : memref<256x768xbf16, #tpu.memory_space<vmem>>, vector<256x768xbf16>
      %cst_86 = arith.constant dense<0.000000e+00> : vector<8x768xf32>
      %127 = tpu.matmul %125, %126, %cst_86 {dimension_numbers = #tpu.dot_dimension_numbers<[1], [0], [0], [1], [0, 0, 1, 1], [], []>} : vector<8x256xbf16>, vector<256x768xbf16>, vector<8x768xf32> -> vector<8x768xf32>
      %128 = vector.extract_strided_slice %124 {offsets = [0, 0], sizes = [8, 256], strides = [1, 1]} : vector<8x768xf32> to vector<8x256xf32>
      %129 = vector.extract_strided_slice %127 {offsets = [0, 0], sizes = [8, 256], strides = [1, 1]} : vector<8x768xf32> to vector<8x256xf32>
      %130 = arith.addf %128, %129 : vector<8x256xf32>
      %131 = arith.negf %130 : vector<8x256xf32>
      %132 = math.exp %131 : vector<8x256xf32>
      %cst_87 = arith.constant 1.000000e+00 : f32
      %133 = vector.broadcast %cst_87 : f32 to vector<8x256xf32>
      %134 = arith.addf %133, %132 : vector<8x256xf32>
      %135 = arith.divf %133, %134 : vector<8x256xf32>
      %136 = vector.extract_strided_slice %124 {offsets = [0, 256], sizes = [8, 256], strides = [1, 1]} : vector<8x768xf32> to vector<8x256xf32>
      %137 = vector.extract_strided_slice %127 {offsets = [0, 256], sizes = [8, 256], strides = [1, 1]} : vector<8x768xf32> to vector<8x256xf32>
      %138 = arith.addf %136, %137 : vector<8x256xf32>
      %139 = arith.negf %138 : vector<8x256xf32>
      %140 = math.exp %139 : vector<8x256xf32>
      %cst_88 = arith.constant 1.000000e+00 : f32
      %141 = vector.broadcast %cst_88 : f32 to vector<8x256xf32>
      %142 = arith.addf %141, %140 : vector<8x256xf32>
      %143 = arith.divf %141, %142 : vector<8x256xf32>
      %144 = vector.extract_strided_slice %124 {offsets = [0, 512], sizes = [8, 256], strides = [1, 1]} : vector<8x768xf32> to vector<8x256xf32>
      %145 = vector.extract_strided_slice %127 {offsets = [0, 512], sizes = [8, 256], strides = [1, 1]} : vector<8x768xf32> to vector<8x256xf32>
      %146 = vector.broadcast %25 : vector<1x256xf32> to vector<8x256xf32>
      %147 = arith.addf %145, %146 : vector<8x256xf32>
      %148 = arith.mulf %135, %147 : vector<8x256xf32>
      %149 = arith.addf %144, %148 : vector<8x256xf32>
      %150 = math.tanh %149 : vector<8x256xf32>
      %151 = arith.subf %123, %150 : vector<8x256xf32>
      %152 = arith.mulf %143, %151 : vector<8x256xf32>
      %153 = arith.addf %150, %152 : vector<8x256xf32>
      %c0_89 = arith.constant 0 : index
      %c0_90 = arith.constant 0 : index
      %154 = vector.load %arg23[%c0_89, %c0_90] : memref<8x256xf32, #tpu.memory_space<vmem>>, vector<8x256xf32>
      tpu.vector_store %arg23[%c0_89, %c0_90], %153 {strides = array<i32>} : memref<8x256xf32, #tpu.memory_space<vmem>>, vector<8x256xf32>,
    } else {
    }
    %c8_i32 = arith.constant 8 : i32
    %71 = arith.cmpi eq, %c8_i32, %8 : i32
    %72 = arith.extui %71 : i1 to i32
    %c0_i32_49 = arith.constant 0 : i32
    %73 = arith.cmpi ne, %72, %c0_i32_49 : i32
    scf.if %73 {
      %c0_81 = arith.constant 0 : index
      %c0_82 = arith.constant 0 : index
      %123 = vector.load %arg23[%c0_81, %c0_82] : memref<8x256xf32, #tpu.memory_space<vmem>>, vector<8x256xf32>
      %c0_83 = arith.constant 0 : index
      %c0_84 = arith.constant 0 : index
      %124 = vector.load %arg24[%c0_83, %c0_84] : memref<8x256xf32, #tpu.memory_space<vmem>>, vector<8x256xf32>
      tpu.vector_store %arg24[%c0_83, %c0_84], %123 {strides = array<i32>} : memref<8x256xf32, #tpu.memory_space<vmem>>, vector<8x256xf32>,
    } else {
    }
    %c0_50 = arith.constant 0 : index
    %c0_51 = arith.constant 0 : index
    %74 = vector.load %arg2[%c0_50, %c0_51] : memref<8x1xi32, #tpu.memory_space<vmem>>, vector<8x1xi32>
    %75 = vector.broadcast %8 : i32 to vector<8x1xi32>
    %76 = arith.cmpi eq, %74, %75 : vector<8x1xi32>
    %c0_52 = arith.constant 0 : index
    %c0_53 = arith.constant 0 : index
    %77 = vector.load %arg24[%c0_52, %c0_53] : memref<8x256xf32, #tpu.memory_space<vmem>>, vector<8x256xf32>
    %cst_54 = arith.constant 0.000000e+00 : f32
    %78 = vector.shape_cast %76 : vector<8x1xi1> to vector<8x1xi1>
    %79 = vector.broadcast %78 : vector<8x1xi1> to vector<8x256xi1>
    %80 = vector.broadcast %cst_54 : f32 to vector<8x256xf32>
    %81 = arith.select %79, %77, %80 : vector<8x256xi1>, vector<8x256xf32>
    %c1_i32_55 = arith.constant 1 : i32
    %82 = tpu.memref_slice %arg21[%c1_i32_55] : memref<4x!tpu.dma_semaphore, #tpu.memory_space<semaphore_mem>> -> memref<1x!tpu.dma_semaphore, #tpu.memory_space<semaphore_mem>>
    %83 = tpu.memref_squeeze %82 : memref<1x!tpu.dma_semaphore, #tpu.memory_space<semaphore_mem>> -> memref<!tpu.dma_semaphore, #tpu.memory_space<semaphore_mem>>
    tpu.wait_dma2 semaphore(%83 : memref<!tpu.dma_semaphore, #tpu.memory_space<semaphore_mem>>) src(%arg5 : memref<256x300xbf16, #tpu.memory_space<any>>) dst(%arg18 : memref<256x300xbf16, #tpu.memory_space<vmem>>)
    %c2_i32_56 = arith.constant 2 : i32
    %84 = tpu.memref_slice %arg21[%c2_i32_56] : memref<4x!tpu.dma_semaphore, #tpu.memory_space<semaphore_mem>> -> memref<1x!tpu.dma_semaphore, #tpu.memory_space<semaphore_mem>>
    %85 = tpu.memref_squeeze %84 : memref<1x!tpu.dma_semaphore, #tpu.memory_space<semaphore_mem>> -> memref<!tpu.dma_semaphore, #tpu.memory_space<semaphore_mem>>
    tpu.wait_dma2 semaphore(%85 : memref<!tpu.dma_semaphore, #tpu.memory_space<semaphore_mem>>) src(%arg6 : memref<512x300xbf16, #tpu.memory_space<any>>) dst(%arg19 : memref<512x300xbf16, #tpu.memory_space<vmem>>)
    %86 = arith.truncf %81 : vector<8x256xf32> to vector<8x256xbf16>
    %c0_57 = arith.constant 0 : index
    %c0_58 = arith.constant 0 : index
    %87 = vector.load %arg18[%c0_57, %c0_58] : memref<256x300xbf16, #tpu.memory_space<vmem>>, vector<256x300xbf16>
    %cst_59 = arith.constant dense<0.000000e+00> : vector<8x300xf32>
    %88 = tpu.matmul %86, %87, %cst_59 {dimension_numbers = #tpu.dot_dimension_numbers<[1], [0], [0], [1], [0, 0, 1, 1], [], []>} : vector<8x256xbf16>, vector<256x300xbf16>, vector<8x300xf32> -> vector<8x300xf32>
    %c0_60 = arith.constant 0 : index
    %c0_61 = arith.constant 0 : index
    %89 = vector.load %arg19[%c0_60, %c0_61] : memref<512x300xbf16, #tpu.memory_space<vmem>>, vector<512x300xbf16>
    %cst_62 = arith.constant dense<0.000000e+00> : vector<8x300xf32>
    %90 = tpu.matmul %9, %89, %cst_62 {dimension_numbers = #tpu.dot_dimension_numbers<[1], [0], [0], [1], [0, 0, 1, 1], [], []>} : vector<8x512xbf16>, vector<512x300xbf16>, vector<8x300xf32> -> vector<8x300xf32>
    %91 = arith.addf %88, %90 : vector<8x300xf32>
    %c0_63 = arith.constant 0 : index
    %c0_64 = arith.constant 0 : index
    %92 = vector.load %arg14[%c0_63, %c0_64] : memref<1x300xf32, #tpu.memory_space<vmem>>, vector<1x300xf32>
    %93 = vector.broadcast %92 : vector<1x300xf32> to vector<8x300xf32>
    %94 = arith.addf %91, %93 : vector<8x300xf32>
    %cst_65 = arith.constant 0.000000e+00 : f32
    %95 = vector.broadcast %cst_65 : f32 to vector<8x300xf32>
    %96 = arith.maximumf %94, %95 : vector<8x300xf32>
    %c3_i32_66 = arith.constant 3 : i32
    %97 = tpu.memref_slice %arg21[%c3_i32_66] : memref<4x!tpu.dma_semaphore, #tpu.memory_space<semaphore_mem>> -> memref<1x!tpu.dma_semaphore, #tpu.memory_space<semaphore_mem>>
    %98 = tpu.memref_squeeze %97 : memref<1x!tpu.dma_semaphore, #tpu.memory_space<semaphore_mem>> -> memref<!tpu.dma_semaphore, #tpu.memory_space<semaphore_mem>>
    tpu.wait_dma2 semaphore(%98 : memref<!tpu.dma_semaphore, #tpu.memory_space<semaphore_mem>>) src(%arg7 : memref<300x300xbf16, #tpu.memory_space<any>>) dst(%arg20 : memref<300x300xbf16, #tpu.memory_space<vmem>>)
    %99 = arith.truncf %96 : vector<8x300xf32> to vector<8x300xbf16>
    %c0_67 = arith.constant 0 : index
    %c0_68 = arith.constant 0 : index
    %100 = vector.load %arg20[%c0_67, %c0_68] : memref<300x300xbf16, #tpu.memory_space<vmem>>, vector<300x300xbf16>
    %cst_69 = arith.constant dense<0.000000e+00> : vector<8x300xf32>
    %101 = tpu.matmul %99, %100, %cst_69 {dimension_numbers = #tpu.dot_dimension_numbers<[1], [0], [0], [1], [0, 0, 1, 1], [], []>} : vector<8x300xbf16>, vector<300x300xbf16>, vector<8x300xf32> -> vector<8x300xf32>
    %c0_70 = arith.constant 0 : index
    %c0_71 = arith.constant 0 : index
    %102 = vector.load %arg15[%c0_70, %c0_71] : memref<1x300xf32, #tpu.memory_space<vmem>>, vector<1x300xf32>
    %103 = vector.broadcast %102 : vector<1x300xf32> to vector<8x300xf32>
    %104 = arith.addf %101, %103 : vector<8x300xf32>
    %c0_i32_72 = arith.constant 0 : i32
    %105 = tpu.memref_slice %arg21[%c0_i32_72] : memref<4x!tpu.dma_semaphore, #tpu.memory_space<semaphore_mem>> -> memref<1x!tpu.dma_semaphore, #tpu.memory_space<semaphore_mem>>
    %106 = tpu.memref_squeeze %105 : memref<1x!tpu.dma_semaphore, #tpu.memory_space<semaphore_mem>> -> memref<!tpu.dma_semaphore, #tpu.memory_space<semaphore_mem>>
    tpu.wait_dma2 semaphore(%106 : memref<!tpu.dma_semaphore, #tpu.memory_space<semaphore_mem>>) src(%arg4 : memref<8x6x300xbf16, #tpu.memory_space<any>>) dst(%arg17 : memref<8x6x300xbf16, #tpu.memory_space<vmem>>)
    %c0_73 = arith.constant 0 : index
    %c0_74 = arith.constant 0 : index
    %c0_75 = arith.constant 0 : index
    %107 = vector.load %arg17[%c0_73, %c0_74, %c0_75] : memref<8x6x300xbf16, #tpu.memory_space<vmem>>, vector<8x6x300xbf16>
    %108 = arith.extf %107 : vector<8x6x300xbf16> to vector<8x6x300xf32>
    %109 = vector.shape_cast %104 : vector<8x300xf32> to vector<8x1x300xf32>
    %110 = vector.broadcast %109 : vector<8x1x300xf32> to vector<8x6x300xf32>
    %111 = arith.mulf %108, %110 : vector<8x6x300xf32>
    %cst_76 = arith.constant dense<0.000000e+00> : vector<8x6xf32>
    %112 = vector.multi_reduction <add>, %111, %cst_76 [2] : vector<8x6x300xf32> to vector<8x6xf32>
    %cst_77 = arith.constant dense<0xFF800000> : vector<8xf32>
    %113 = vector.multi_reduction <maximumf>, %112, %cst_77 [1] : vector<8x6xf32> to vector<8xf32>
    %114 = vector.shape_cast %113 : vector<8xf32> to vector<8x1xf32>
    %115 = vector.broadcast %114 : vector<8x1xf32> to vector<8x6xf32>
    %116 = arith.subf %112, %115 : vector<8x6xf32>
    %117 = math.exp %116 : vector<8x6xf32>
    %cst_78 = arith.constant dense<0.000000e+00> : vector<8xf32>
    %118 = vector.multi_reduction <add>, %117, %cst_78 [1] : vector<8x6xf32> to vector<8xf32>
    %119 = vector.shape_cast %118 : vector<8xf32> to vector<8x1xf32>
    %120 = vector.broadcast %119 : vector<8x1xf32> to vector<8x6xf32>
    %121 = arith.divf %117, %120 : vector<8x6xf32>
    %c0_79 = arith.constant 0 : index
    %c0_80 = arith.constant 0 : index
    %122 = vector.load %arg16[%c0_79, %c0_80] : memref<8x6xf32, #tpu.memory_space<vmem>>, vector<8x6xf32>
    tpu.vector_store %arg16[%c0_79, %c0_80], %121 {strides = array<i32>} : memref<8x6xf32, #tpu.memory_space<vmem>>, vector<8x6xf32>,
    return
  }
}

</mosaic_0001>

<llo_original>
// kernel: network_forward.1
$region0: #{network_forward.1}
  #allocation0 [shape = 'u32[]', space=smem, size = 0x4, offset = 0x4, fixed_abs, tag = 'smem constant byte address 0x4 - core index']
  #allocation1 [shape = 'u32[144,128]{1,0:T(1,128)}', space=vmem, size = 0x12000, scoped, tag = 'internal scratch']
  #allocation2 [shape = 'bf16[8,6,300]{2,1,0:T(8,128)(2,1)}', space=vmem, size = 0xc000, scoped, tag = 'scratch operand']
  #allocation3 [shape = 'bf16[256,300]{1,0:T(16,128)(2,1)}', space=vmem, size = 0x30000, scoped, tag = 'scratch operand']
  #allocation4 [shape = 'bf16[512,300]{1,0:T(16,128)(2,1)}', space=vmem, size = 0x60000, scoped, tag = 'scratch operand']
  #allocation5 [shape = 'bf16[300,300]{1,0:T(8,128)(2,1)}', space=vmem, size = 0x39000, scoped, tag = 'scratch operand']
  #allocation6 [shape = 's32[4]{0}', space=sflag, size = 0x10, scoped, tag = 'scratch operand']
  #allocation7 [shape = 'f32[64,768]{1,0:T(8,128)}', space=vmem, size = 0x30000, scoped, tag = 'scratch operand']
  #allocation8 [shape = 'f32[8,256]{1,0:T(8,128)}', space=vmem, size = 0x2000, scoped, tag = 'scratch operand']
  #allocation9 [shape = 'f32[8,256]{1,0:T(8,128)}', space=vmem, size = 0x2000, scoped, tag = 'scratch operand']
  #allocation10 [shape = 's32[1,1]{1,0:T(1,128)S(6)}', space=smem, size = 0x200, scoped, tag = 'scoped memory for network_forward.1']
  #allocation13 [shape = 's32[]', space=sflag, size = 0x4, offset = 0, fixed_abs, tag = 'sflag constant byte address 0x0 - dummy sync flag']
  #allocation14 [shape = 's32[]', space=sflag, size = 0x4, offset = 0, fixed_abs, tag = 'sflag constant byte address 0x0 - dummy sync flag']
  #allocation15 [shape = 's32[]', space=sflag, size = 0x4, offset = 0, fixed_abs, tag = 'sflag constant byte address 0x0 - dummy sync flag']
  #allocation16 [shape = 's32[]', space=sflag, size = 0x4, offset = 0, fixed_abs, tag = 'sflag constant byte address 0x0 - dummy sync flag']
  %s0 = inlined_call_operand.vmem [shape: bf16[64,300], index: 0, kind: input, shape index: {}]
  %s1 = inlined_call_operand.vmem [shape: bf16[8,512], index: 1, kind: input, shape index: {}]
  %s2 = inlined_call_operand.vmem [shape: s32[8,1], index: 2, kind: input, shape index: {}]
  %s3 = inlined_call_operand.<no memory space> [shape: s32[1,1], index: 3, kind: input, shape index: {}]
  %s4 = inlined_call_operand.vmem [shape: bf16[8,6,300], index: 4, kind: input, shape index: {}]
  %s5 = inlined_call_operand.vmem [shape: bf16[256,300], index: 5, kind: input, shape index: {}]
  %s6 = inlined_call_operand.vmem [shape: bf16[512,300], index: 6, kind: input, shape index: {}]
  %s7 = inlined_call_operand.vmem [shape: bf16[300,300], index: 7, kind: input, shape index: {}]
  %s8 = inlined_call_operand.hbm [shape: bf16[512,256], index: 8, kind: input, shape index: {}]
  %s9 = inlined_call_operand.vmem [shape: f32[1,256], index: 9, kind: input, shape index: {}]
  %s10 = inlined_call_operand.vmem [shape: bf16[300,768], index: 10, kind: input, shape index: {}]
  %s11 = inlined_call_operand.vmem [shape: f32[1,768], index: 11, kind: input, shape index: {}]
  %s12 = inlined_call_operand.vmem [shape: bf16[256,768], index: 12, kind: input, shape index: {}]
  %s13 = inlined_call_operand.vmem [shape: f32[1,256], index: 13, kind: input, shape index: {}]
  %s14 = inlined_call_operand.vmem [shape: f32[1,300], index: 14, kind: input, shape index: {}]
  %s15 = inlined_call_operand.vmem [shape: f32[1,300], index: 15, kind: input, shape index: {}]
  %s16 = inlined_call_operand.vmem [shape: f32[8,6], index: 16, kind: output, shape index: {}]
  %s17 = sld [smem:[#allocation0]]
  $region268: #{network_forward.1} parent=0
    _
  %s19 = ssub.s32 1, %s17
  %s20 = scalar_select 0, %s19, %s17
  %21 = sst [smem:[#allocation10]] %s3
  $region1: #{network_forward.1} parent=0
    #allocation11 [shape = 'u8[262144]{0}', space=vmem, size = 0x40000, scoped, tag = 'input window, operand 8, single buffered']
    #allocation12 [shape = 's32[1]{0}', space=sflag, size = 0x4, scoped, tag = 'scoped memory for network_forward.1']
    %22 = vsyncpa [#allocation12], 0
    // Predicated region
    $region2: #{network_forward.1} parent=1 // pred_check
      _
    $region3: #{network_forward.1} parent=1 // pred_check_branch
      %24 = sbr.rel (0) target = $region5
    $region4: #{network_forward.1} parent=1 // pred_region
      _
    $region5: #{network_forward.1} parent=1 // pred_fallthru
      _
    // Predicated region
    $region6: #{network_forward.1} parent=1 // pred_check
      _
    $region7: #{network_forward.1} parent=1 // pred_check_branch
      %26 = sbr.rel (0) target = $region9
    $region8: #{network_forward.1} parent=1 // pred_region
      _
    $region9: #{network_forward.1} parent=1 // pred_fallthru
      _
    // Predicated region
    $region10: #{network_forward.1} parent=1 // pred_check
      _
    $region11: #{network_forward.1} parent=1 // pred_check_branch
      %28 = sbr.rel (0) target = $region13
    $region12: #{network_forward.1} parent=1 // pred_region
      _
    $region13: #{network_forward.1} parent=1 // pred_fallthru
      _
    // Predicated region
    $region14: #{network_forward.1} parent=1 // pred_check
      _
    $region15: #{network_forward.1} parent=1 // pred_check_branch
      %30 = sbr.rel (0) target = $region17
    $region16: #{network_forward.1} parent=1 // pred_region
      _
    $region17: #{network_forward.1} parent=1 // pred_fallthru
      _
    // Predicated region
    $region18: #{network_forward.1} parent=1 // pred_check
      _
    $region19: #{network_forward.1} parent=1 // pred_check_branch
      %32 = sbr.rel (0) target = $region21
    $region20: #{network_forward.1} parent=1 // pred_region
      %s34 = ssub.s32 8192, 8192
      %35 = vsyncadd [#allocation12], %s34
      %s36 = sshll.u32 [#allocation11], 4
      %s37 = int_to_ptr.vmem [resolvable:$true] %s36
      %42 = dma.hbm_to_vmem [thread:$0]  %s8, 8192, %s37, [#allocation12], 128, 128, 8
    $region21: #{network_forward.1} parent=1 // pred_fallthru
      _
    // Predicated region
    $region22: #{network_forward.1} parent=1 // pred_check
      _
    $region23: #{network_forward.1} parent=1 // pred_check_branch
      %44 = sbr.rel (0) target = $region25
    $region24: #{network_forward.1} parent=1 // pred_region
      _
    $region25: #{network_forward.1} parent=1 // pred_fallthru
      _
    // Predicated region
    $region26: #{network_forward.1} parent=1 // pred_check
      _
    $region27: #{network_forward.1} parent=1 // pred_check_branch
      %46 = sbr.rel (0) target = $region29
    $region28: #{network_forward.1} parent=1 // pred_region
      _
    $region29: #{network_forward.1} parent=1 // pred_fallthru
      _
    // Predicated region
    $region30: #{network_forward.1} parent=1 // pred_check
      _
    $region31: #{network_forward.1} parent=1 // pred_check_branch
      %48 = sbr.rel (0) target = $region33
    $region32: #{network_forward.1} parent=1 // pred_region
      _
    $region33: #{network_forward.1} parent=1 // pred_fallthru
      _
    // Predicated region
    $region34: #{network_forward.1} parent=1 // pred_check
      _
    $region35: #{network_forward.1} parent=1 // pred_check_branch
      %50 = sbr.rel (0) target = $region37
    $region36: #{network_forward.1} parent=1 // pred_region
      _
    $region37: #{network_forward.1} parent=1 // pred_fallthru
      _
    // Predicated region
    $region38: #{network_forward.1} parent=1 // pred_check
      _
    $region39: #{network_forward.1} parent=1 // pred_check_branch
      %52 = sbr.rel (0) target = $region41
    $region40: #{network_forward.1} parent=1 // pred_region
      _
    $region41: #{network_forward.1} parent=1 // pred_fallthru
      _
    // Predicated region
    $region42: #{network_forward.1} parent=1 // pred_check
      _
    $region43: #{network_forward.1} parent=1 // pred_check_branch
      %54 = sbr.rel (0) target = $region45
    $region44: #{network_forward.1} parent=1 // pred_region
      _
    $region45: #{network_forward.1} parent=1 // pred_fallthru
      _
    // Predicated region
    $region46: #{network_forward.1} parent=1 // pred_check
      _
    $region47: #{network_forward.1} parent=1 // pred_check_branch
      %56 = sbr.rel (0) target = $region49
    $region48: #{network_forward.1} parent=1 // pred_region
      _
    $region49: #{network_forward.1} parent=1 // pred_fallthru
      _
    // Predicated region
    $region50: #{network_forward.1} parent=1 // pred_check
      _
    $region51: #{network_forward.1} parent=1 // pred_check_branch
      %58 = sbr.rel (0) target = $region53
    $region52: #{network_forward.1} parent=1 // pred_region
      %59 = dma.done [#allocation12], 8192
    $region53: #{network_forward.1} parent=1 // pred_fallthru
      _
    %p62 = scmp.lt.u32.totalorder 96, 8
    %p63 = pneg %p62
    // Predicated region
    $region54: #{network_forward.1} parent=1 // pred_check
      _
    $region55: #{network_forward.1} parent=1 // pred_check_branch
      %65 = sbr.rel (%p62) target = $region57
    $region56: #{network_forward.1} parent=1 // pred_region
      %s80 = sand.u32 96, 7
      %p81 = scmp.eq.s32.totalorder %s80, 0
      // Predicated region
      $region69: #{network_forward.1} parent=56 // pred_check
        %p82 = pneg %p81
      $region70: #{network_forward.1} parent=56 // pred_check_branch
        %84 = sbr.rel (%p82) target = $region72
      $region71: #{network_forward.1} parent=56 // pred_region
        loop: start=0, step=1, limit=1
        $region73: #{network_forward.1} parent=71 // loop_pre_header
          _
        $region74: #{network_forward.1} parent=71 // loop_header
          %s86 = sphi 0, %s90
          %p87 = scmp.ge.s32.totalorder %s86, 1
          %s91 = sphi %s4, %s4
          %s92 = sphi [#allocation2], [#allocation2]
        $region75: #{network_forward.1} parent=71 // loop_header_branch
          %89 = sbr.rel (%p87) target = $region79
        $region76: #{network_forward.1} parent=71 // loop_body
          %v93 = vld [vmem:[%s91] sm:$0xff]
          %94 = vst [vmem:[%s92] sm:$0xff] %v93
          %v95 = vld [vmem:[%s91 + $0x8] sm:$0xff]
          %96 = vst [vmem:[%s92 + $0x8] sm:$0xff] %v95
          %v97 = vld [vmem:[%s91 + $0x10] sm:$0xff]
          %98 = vst [vmem:[%s92 + $0x10] sm:$0xff] %v97
          %v99 = vld [vmem:[%s91 + $0x18] sm:$0xff]
          %100 = vst [vmem:[%s92 + $0x18] sm:$0xff] %v99
          %v101 = vld [vmem:[%s91 + $0x20] sm:$0xff]
          %102 = vst [vmem:[%s92 + $0x20] sm:$0xff] %v101
          %v103 = vld [vmem:[%s91 + $0x28] sm:$0xff]
          %104 = vst [vmem:[%s92 + $0x28] sm:$0xff] %v103
          %v105 = vld [vmem:[%s91 + $0x30] sm:$0xff]
          %106 = vst [vmem:[%s92 + $0x30] sm:$0xff] %v105
          %v107 = vld [vmem:[%s91 + $0x38] sm:$0xff]
          %108 = vst [vmem:[%s92 + $0x38] sm:$0xff] %v107
          %v109 = vld [vmem:[%s91 + $0x40] sm:$0xff]
          %110 = vst [vmem:[%s92 + $0x40] sm:$0xff] %v109
          %v111 = vld [vmem:[%s91 + $0x48] sm:$0xff]
          %112 = vst [vmem:[%s92 + $0x48] sm:$0xff] %v111
          %v113 = vld [vmem:[%s91 + $0x50] sm:$0xff]
          %114 = vst [vmem:[%s92 + $0x50] sm:$0xff] %v113
          %v115 = vld [vmem:[%s91 + $0x58] sm:$0xff]
          %116 = vst [vmem:[%s92 + $0x58] sm:$0xff] %v115
        $region77: #{network_forward.1} parent=71 // loop_footer
          %s90 = sadd.s32 1, %s86
        $region78: #{network_forward.1} parent=71 // loop_footer_branch
          %85 = sbr.rel target = $region74
        $region79: #{network_forward.1} parent=71 // loop_exit
          _
      $region72: #{network_forward.1} parent=56 // pred_fallthru
        _
      %p117 = pneg %p81
      // Predicated region
      $region80: #{network_forward.1} parent=56 // pred_check
        _
      $region81: #{network_forward.1} parent=56 // pred_check_branch
        %119 = sbr.rel (%p81) target = $region83
      $region82: #{network_forward.1} parent=56 // pred_region
        %s120 = sand.u32 96, 7
      $region83: #{network_forward.1} parent=56 // pred_fallthru
        _
    $region57: #{network_forward.1} parent=1 // pred_fallthru
      _
    // Predicated region
    $region58: #{network_forward.1} parent=1 // pred_check
      %p66 = pneg %p62
    $region59: #{network_forward.1} parent=1 // pred_check_branch
      %68 = sbr.rel (%p66) target = $region61
    $region60: #{network_forward.1} parent=1 // pred_region
      %s69 = sshllo.u32 0, 96
      loop: start=0, step=1, limit=1
      $region62: #{network_forward.1} parent=60 // loop_pre_header
        _
      $region63: #{network_forward.1} parent=60 // loop_header
        %s71 = sphi 0, %s75
        %p72 = scmp.ge.s32.totalorder %s71, 1
        %s76 = sphi %s4, %s4
        %s77 = sphi [#allocation2], [#allocation2]
      $region64: #{network_forward.1} parent=60 // loop_header_branch
        %74 = sbr.rel (%p72) target = $region68
      $region65: #{network_forward.1} parent=60 // loop_body
        %v78 = vld [vmem:[%s76] sm:%s69]
        %79 = vst [vmem:[%s77] sm:%s69] %v78
      $region66: #{network_forward.1} parent=60 // loop_footer
        %s75 = sadd.s32 1, %s71
      $region67: #{network_forward.1} parent=60 // loop_footer_branch
        %70 = sbr.rel target = $region63
      $region68: #{network_forward.1} parent=60 // loop_exit
        _
    $region61: #{network_forward.1} parent=1 // pred_fallthru
      _
    // Predicated region
    $region84: #{network_forward.1} parent=1 // pred_check
      _
    $region85: #{network_forward.1} parent=1 // pred_check_branch
      %123 = sbr.rel (0) target = $region87
    $region86: #{network_forward.1} parent=1 // pred_region
      %124 = vsyncadd [#allocation6], 1536
    $region87: #{network_forward.1} parent=1 // pred_fallthru
      _
    %s125 = scalar_lea.sflag [#allocation6], 1
    %p127 = scmp.lt.u32.totalorder 4, 8
    %p128 = pneg %p127
    // Predicated region
    $region88: #{network_forward.1} parent=1 // pred_check
      _
    $region89: #{network_forward.1} parent=1 // pred_check_branch
      %130 = sbr.rel (%p127) target = $region91
    $region90: #{network_forward.1} parent=1 // pred_region
      %s335 = sand.u32 4, 7
      %p336 = scmp.eq.s32.totalorder %s335, 0
      %p337 = pneg %p336
      // Predicated region
      $region103: #{network_forward.1} parent=90 // pred_check
        _
      $region104: #{network_forward.1} parent=90 // pred_check_branch
        %339 = sbr.rel (%p336) target = $region106
      $region105: #{network_forward.1} parent=90 // pred_region
        %s340 = sand.u32 4, 7
        %s341 = ssub.s32 4, %s340
        %s342 = scalar_lea.vmem %s5, %s341
        %s343 = ssub.s32 4, %s340
        %s344 = scalar_lea.vmem [#allocation3], %s343
        loop: start=0, step=1, limit=1
        $region107: #{network_forward.1} parent=105 // loop_pre_header
          _
        $region108: #{network_forward.1} parent=105 // loop_header
          %s346 = sphi 0, %s350
          %p347 = scmp.ge.s32.totalorder %s346, 1
          %s351 = sphi %s5, %s5
          %s352 = sphi [#allocation3], [#allocation3]
        $region109: #{network_forward.1} parent=105 // loop_header_branch
          %349 = sbr.rel (%p347) target = $region113
        $region110: #{network_forward.1} parent=105 // loop_body
          _
        $region111: #{network_forward.1} parent=105 // loop_footer
          %s350 = sadd.s32 1, %s346
        $region112: #{network_forward.1} parent=105 // loop_footer_branch
          %345 = sbr.rel target = $region108
        $region113: #{network_forward.1} parent=105 // loop_exit
          _
        %s353 = sshllo.u32 0, %s340
        loop: start=0, step=1, limit=1
        $region114: #{network_forward.1} parent=105 // loop_pre_header
          _
        $region115: #{network_forward.1} parent=105 // loop_header
          %s355 = sphi 0, %s359
          %p356 = scmp.ge.s32.totalorder %s355, 1
          %s360 = sphi %s342, %s342
          %s361 = sphi %s344, %s344
        $region116: #{network_forward.1} parent=105 // loop_header_branch
          %358 = sbr.rel (%p356) target = $region120
        $region117: #{network_forward.1} parent=105 // loop_body
          %v362 = vld [vmem:[%s360] sm:%s353]
          %363 = vst [vmem:[%s361] sm:%s353] %v362
          %v364 = vld [vmem:[%s360 + $0xc] sm:%s353]
          %365 = vst [vmem:[%s361 + $0x4] sm:%s353] %v364
          %v366 = vld [vmem:[%s360 + $0x4] sm:%s353]
          %367 = vst [vmem:[%s361 + $0x8] sm:%s353] %v366
          %v368 = vld [vmem:[%s360 + $0x10] sm:%s353]
          %369 = vst [vmem:[%s361 + $0xc] sm:%s353] %v368
          %v370 = vld [vmem:[%s360 + $0x8] sm:%s353]
          %371 = vst [vmem:[%s361 + $0x10] sm:%s353] %v370
          %v372 = vld [vmem:[%s360 + $0x14] sm:%s353]
          %373 = vst [vmem:[%s361 + $0x14] sm:%s353] %v372
          %v374 = vld [vmem:[%s360 + $0x18] sm:%s353]
          %375 = vst [vmem:[%s361 + $0x18] sm:%s353] %v374
          %v376 = vld [vmem:[%s360 + $0x24] sm:%s353]
          %377 = vst [vmem:[%s361 + $0x1c] sm:%s353] %v376
          %v378 = vld [vmem:[%s360 + $0x1c] sm:%s353]
          %379 = vst [vmem:[%s361 + $0x20] sm:%s353] %v378
          %v380 = vld [vmem:[%s360 + $0x28] sm:%s353]
          %381 = vst [vmem:[%s361 + $0x24] sm:%s353] %v380
          %v382 = vld [vmem:[%s360 + $0x20] sm:%s353]
          %383 = vst [vmem:[%s361 + $0x28] sm:%s353] %v382
          %v384 = vld [vmem:[%s360 + $0x2c] sm:%s353]
          %385 = vst [vmem:[%s361 + $0x2c] sm:%s353] %v384
          %v386 = vld [vmem:[%s360 + $0x30] sm:%s353]
          %387 = vst [vmem:[%s361 + $0x30] sm:%s353] %v386
          %v388 = vld [vmem:[%s360 + $0x3c] sm:%s353]
          %389 = vst [vmem:[%s361 + $0x34] sm:%s353] %v388
          %v390 = vld [vmem:[%s360 + $0x34] sm:%s353]
          %391 = vst [vmem:[%s361 + $0x38] sm:%s353] %v390
          %v392 = vld [vmem:[%s360 + $0x40] sm:%s353]
          %393 = vst [vmem:[%s361 + $0x3c] sm:%s353] %v392
          %v394 = vld [vmem:[%s360 + $0x38] sm:%s353]
          %395 = vst [vmem:[%s361 + $0x40] sm:%s353] %v394
          %v396 = vld [vmem:[%s360 + $0x44] sm:%s353]
          %397 = vst [vmem:[%s361 + $0x44] sm:%s353] %v396
          %v398 = vld [vmem:[%s360 + $0x48] sm:%s353]
          %399 = vst [vmem:[%s361 + $0x48] sm:%s353] %v398
          %v400 = vld [vmem:[%s360 + $0x54] sm:%s353]
          %401 = vst [vmem:[%s361 + $0x4c] sm:%s353] %v400
          %v402 = vld [vmem:[%s360 + $0x4c] sm:%s353]
          %403 = vst [vmem:[%s361 + $0x50] sm:%s353] %v402
          %v404 = vld [vmem:[%s360 + $0x58] sm:%s353]
          %405 = vst [vmem:[%s361 + $0x54] sm:%s353] %v404
          %v406 = vld [vmem:[%s360 + $0x50] sm:%s353]
          %407 = vst [vmem:[%s361 + $0x58] sm:%s353] %v406
          %v408 = vld [vmem:[%s360 + $0x5c] sm:%s353]
          %409 = vst [vmem:[%s361 + $0x5c] sm:%s353] %v408
          %v410 = vld [vmem:[%s360 + $0x60] sm:%s353]
          %411 = vst [vmem:[%s361 + $0x60] sm:%s353] %v410
          %v412 = vld [vmem:[%s360 + $0x6c] sm:%s353]
          %413 = vst [vmem:[%s361 + $0x64] sm:%s353] %v412
          %v414 = vld [vmem:[%s360 + $0x64] sm:%s353]
          %415 = vst [vmem:[%s361 + $0x68] sm:%s353] %v414
          %v416 = vld [vmem:[%s360 + $0x70] sm:%s353]
          %417 = vst [vmem:[%s361 + $0x6c] sm:%s353] %v416
          %v418 = vld [vmem:[%s360 + $0x68] sm:%s353]
          %419 = vst [vmem:[%s361 + $0x70] sm:%s353] %v418
          %v420 = vld [vmem:[%s360 + $0x74] sm:%s353]
          %421 = vst [vmem:[%s361 + $0x74] sm:%s353] %v420
          %v422 = vld [vmem:[%s360 + $0x78] sm:%s353]
          %423 = vst [vmem:[%s361 + $0x78] sm:%s353] %v422
          %v424 = vld [vmem:[%s360 + $0x84] sm:%s353]
          %425 = vst [vmem:[%s361 + $0x7c] sm:%s353] %v424
          %v426 = vld [vmem:[%s360 + $0x7c] sm:%s353]
          %427 = vst [vmem:[%s361 + $0x80] sm:%s353] %v426
          %v428 = vld [vmem:[%s360 + $0x88] sm:%s353]
          %429 = vst [vmem:[%s361 + $0x84] sm:%s353] %v428
          %v430 = vld [vmem:[%s360 + $0x80] sm:%s353]
          %431 = vst [vmem:[%s361 + $0x88] sm:%s353] %v430
          %v432 = vld [vmem:[%s360 + $0x8c] sm:%s353]
          %433 = vst [vmem:[%s361 + $0x8c] sm:%s353] %v432
          %v434 = vld [vmem:[%s360 + $0x90] sm:%s353]
          %435 = vst [vmem:[%s361 + $0x90] sm:%s353] %v434
          %v436 = vld [vmem:[%s360 + $0x9c] sm:%s353]
          %437 = vst [vmem:[%s361 + $0x94] sm:%s353] %v436
          %v438 = vld [vmem:[%s360 + $0x94] sm:%s353]
          %439 = vst [vmem:[%s361 + $0x98] sm:%s353] %v438
          %v440 = vld [vmem:[%s360 + $0xa0] sm:%s353]
          %441 = vst [vmem:[%s361 + $0x9c] sm:%s353] %v440
          %v442 = vld [vmem:[%s360 + $0x98] sm:%s353]
          %443 = vst [vmem:[%s361 + $0xa0] sm:%s353] %v442
          %v444 = vld [vmem:[%s360 + $0xa4] sm:%s353]
          %445 = vst [vmem:[%s361 + $0xa4] sm:%s353] %v444
          %v446 = vld [vmem:[%s360 + $0xa8] sm:%s353]
          %447 = vst [vmem:[%s361 + $0xa8] sm:%s353] %v446
          %v448 = vld [vmem:[%s360 + $0xb4] sm:%s353]
          %449 = vst [vmem:[%s361 + $0xac] sm:%s353] %v448
          %v450 = vld [vmem:[%s360 + $0xac] sm:%s353]
          %451 = vst [vmem:[%s361 + $0xb0] sm:%s353] %v450
          %v452 = vld [vmem:[%s360 + $0xb8] sm:%s353]
          %453 = vst [vmem:[%s361 + $0xb4] sm:%s353] %v452
          %v454 = vld [vmem:[%s360 + $0xb0] sm:%s353]
          %455 = vst [vmem:[%s361 + $0xb8] sm:%s353] %v454
          %v456 = vld [vmem:[%s360 + $0xbc] sm:%s353]
          %457 = vst [vmem:[%s361 + $0xbc] sm:%s353] %v456
          %v458 = vld [vmem:[%s360 + $0xc0] sm:%s353]
          %459 = vst [vmem:[%s361 + $0xc0] sm:%s353] %v458
          %v460 = vld [vmem:[%s360 + $0xcc] sm:%s353]
          %461 = vst [vmem:[%s361 + $0xc4] sm:%s353] %v460
          %v462 = vld [vmem:[%s360 + $0xc4] sm:%s353]
          %463 = vst [vmem:[%s361 + $0xc8] sm:%s353] %v462
          %v464 = vld [vmem:[%s360 + $0xd0] sm:%s353]
          %465 = vst [vmem:[%s361 + $0xcc] sm:%s353] %v464
          %v466 = vld [vmem:[%s360 + $0xc8] sm:%s353]
          %467 = vst [vmem:[%s361 + $0xd0] sm:%s353] %v466
          %v468 = vld [vmem:[%s360 + $0xd4] sm:%s353]
          %469 = vst [vmem:[%s361 + $0xd4] sm:%s353] %v468
          %v470 = vld [vmem:[%s360 + $0xd8] sm:%s353]
          %471 = vst [vmem:[%s361 + $0xd8] sm:%s353] %v470
          %v472 = vld [vmem:[%s360 + $0xe4] sm:%s353]
          %473 = vst [vmem:[%s361 + $0xdc] sm:%s353] %v472
          %v474 = vld [vmem:[%s360 + $0xdc] sm:%s353]
          %475 = vst [vmem:[%s361 + $0xe0] sm:%s353] %v474
          %v476 = vld [vmem:[%s360 + $0xe8] sm:%s353]
          %477 = vst [vmem:[%s361 + $0xe4] sm:%s353] %v476
          %v478 = vld [vmem:[%s360 + $0xe0] sm:%s353]
          %479 = vst [vmem:[%s361 + $0xe8] sm:%s353] %v478
          %v480 = vld [vmem:[%s360 + $0xec] sm:%s353]
          %481 = vst [vmem:[%s361 + $0xec] sm:%s353] %v480
          %v482 = vld [vmem:[%s360 + $0xf0] sm:%s353]
          %483 = vst [vmem:[%s361 + $0xf0] sm:%s353] %v482
          %v484 = vld [vmem:[%s360 + $0xfc] sm:%s353]
          %485 = vst [vmem:[%s361 + $0xf4] sm:%s353] %v484
          %v486 = vld [vmem:[%s360 + $0xf4] sm:%s353]
          %487 = vst [vmem:[%s361 + $0xf8] sm:%s353] %v486
          %v488 = vld [vmem:[%s360 + $0x100] sm:%s353]
          %489 = vst [vmem:[%s361 + $0xfc] sm:%s353] %v488
          %v490 = vld [vmem:[%s360 + $0xf8] sm:%s353]
          %491 = vst [vmem:[%s361 + $0x100] sm:%s353] %v490
          %v492 = vld [vmem:[%s360 + $0x104] sm:%s353]
          %493 = vst [vmem:[%s361 + $0x104] sm:%s353] %v492
          %v494 = vld [vmem:[%s360 + $0x108] sm:%s353]
          %495 = vst [vmem:[%s361 + $0x108] sm:%s353] %v494
          %v496 = vld [vmem:[%s360 + $0x114] sm:%s353]
          %497 = vst [vmem:[%s361 + $0x10c] sm:%s353] %v496
          %v498 = vld [vmem:[%s360 + $0x10c] sm:%s353]
          %499 = vst [vmem:[%s361 + $0x110] sm:%s353] %v498
          %v500 = vld [vmem:[%s360 + $0x118] sm:%s353]
          %501 = vst [vmem:[%s361 + $0x114] sm:%s353] %v500
          %v502 = vld [vmem:[%s360 + $0x110] sm:%s353]
          %503 = vst [vmem:[%s361 + $0x118] sm:%s353] %v502
          %v504 = vld [vmem:[%s360 + $0x11c] sm:%s353]
          %505 = vst [vmem:[%s361 + $0x11c] sm:%s353] %v504
          %v506 = vld [vmem:[%s360 + $0x120] sm:%s353]
          %507 = vst [vmem:[%s361 + $0x120] sm:%s353] %v506
          %v508 = vld [vmem:[%s360 + $0x12c] sm:%s353]
          %509 = vst [vmem:[%s361 + $0x124] sm:%s353] %v508
          %v510 = vld [vmem:[%s360 + $0x124] sm:%s353]
          %511 = vst [vmem:[%s361 + $0x128] sm:%s353] %v510
          %v512 = vld [vmem:[%s360 + $0x130] sm:%s353]
          %513 = vst [vmem:[%s361 + $0x12c] sm:%s353] %v512
          %v514 = vld [vmem:[%s360 + $0x128] sm:%s353]
          %515 = vst [vmem:[%s361 + $0x130] sm:%s353] %v514
          %v516 = vld [vmem:[%s360 + $0x134] sm:%s353]
          %517 = vst [vmem:[%s361 + $0x134] sm:%s353] %v516
          %v518 = vld [vmem:[%s360 + $0x138] sm:%s353]
          %519 = vst [vmem:[%s361 + $0x138] sm:%s353] %v518
          %v520 = vld [vmem:[%s360 + $0x144] sm:%s353]
          %521 = vst [vmem:[%s361 + $0x13c] sm:%s353] %v520
          %v522 = vld [vmem:[%s360 + $0x13c] sm:%s353]
          %523 = vst [vmem:[%s361 + $0x140] sm:%s353] %v522
          %v524 = vld [vmem:[%s360 + $0x148] sm:%s353]
          %525 = vst [vmem:[%s361 + $0x144] sm:%s353] %v524
          %v526 = vld [vmem:[%s360 + $0x140] sm:%s353]
          %527 = vst [vmem:[%s361 + $0x148] sm:%s353] %v526
          %v528 = vld [vmem:[%s360 + $0x14c] sm:%s353]
          %529 = vst [vmem:[%s361 + $0x14c] sm:%s353] %v528
          %v530 = vld [vmem:[%s360 + $0x150] sm:%s353]
          %531 = vst [vmem:[%s361 + $0x150] sm:%s353] %v530
          %v532 = vld [vmem:[%s360 + $0x15c] sm:%s353]
          %533 = vst [vmem:[%s361 + $0x154] sm:%s353] %v532
          %v534 = vld [vmem:[%s360 + $0x154] sm:%s353]
          %535 = vst [vmem:[%s361 + $0x158] sm:%s353] %v534
          %v536 = vld [vmem:[%s360 + $0x160] sm:%s353]
          %537 = vst [vmem:[%s361 + $0x15c] sm:%s353] %v536
          %v538 = vld [vmem:[%s360 + $0x158] sm:%s353]
          %539 = vst [vmem:[%s361 + $0x160] sm:%s353] %v538
          %v540 = vld [vmem:[%s360 + $0x164] sm:%s353]
          %541 = vst [vmem:[%s361 + $0x164] sm:%s353] %v540
          %v542 = vld [vmem:[%s360 + $0x168] sm:%s353]
          %543 = vst [vmem:[%s361 + $0x168] sm:%s353] %v542
          %v544 = vld [vmem:[%s360 + $0x174] sm:%s353]
          %545 = vst [vmem:[%s361 + $0x16c] sm:%s353] %v544
          %v546 = vld [vmem:[%s360 + $0x16c] sm:%s353]
          %547 = vst [vmem:[%s361 + $0x170] sm:%s353] %v546
          %v548 = vld [vmem:[%s360 + $0x178] sm:%s353]
          %549 = vst [vmem:[%s361 + $0x174] sm:%s353] %v548
          %v550 = vld [vmem:[%s360 + $0x170] sm:%s353]
          %551 = vst [vmem:[%s361 + $0x178] sm:%s353] %v550
          %v552 = vld [vmem:[%s360 + $0x17c] sm:%s353]
          %553 = vst [vmem:[%s361 + $0x17c] sm:%s353] %v552
        $region118: #{network_forward.1} parent=105 // loop_footer
          %s359 = sadd.s32 1, %s355
        $region119: #{network_forward.1} parent=105 // loop_footer_branch
          %354 = sbr.rel target = $region115
        $region120: #{network_forward.1} parent=105 // loop_exit
          _
      $region106: #{network_forward.1} parent=90 // pred_fallthru
        _
    $region91: #{network_forward.1} parent=1 // pred_fallthru
      _
    // Predicated region
    $region92: #{network_forward.1} parent=1 // pred_check
      %p131 = pneg %p127
    $region93: #{network_forward.1} parent=1 // pred_check_branch
      %133 = sbr.rel (%p131) target = $region95
    $region94: #{network_forward.1} parent=1 // pred_region
      %s134 = sshllo.u32 0, 4
      loop: start=0, step=1, limit=1
      $region96: #{network_forward.1} parent=94 // loop_pre_header
        _
      $region97: #{network_forward.1} parent=94 // loop_header
        %s136 = sphi 0, %s140
        %p137 = scmp.ge.s32.totalorder %s136, 1
        %s141 = sphi %s5, %s5
        %s142 = sphi [#allocation3], [#allocation3]
      $region98: #{network_forward.1} parent=94 // loop_header_branch
        %139 = sbr.rel (%p137) target = $region102
      $region99: #{network_forward.1} parent=94 // loop_body
        %v143 = vld [vmem:[%s141] sm:%s134]
        %144 = vst [vmem:[%s142] sm:%s134] %v143
        %v145 = vld [vmem:[%s141 + $0xc] sm:%s134]
        %146 = vst [vmem:[%s142 + $0x4] sm:%s134] %v145
        %v147 = vld [vmem:[%s141 + $0x4] sm:%s134]
        %148 = vst [vmem:[%s142 + $0x8] sm:%s134] %v147
        %v149 = vld [vmem:[%s141 + $0x10] sm:%s134]
        %150 = vst [vmem:[%s142 + $0xc] sm:%s134] %v149
        %v151 = vld [vmem:[%s141 + $0x8] sm:%s134]
        %152 = vst [vmem:[%s142 + $0x10] sm:%s134] %v151
        %v153 = vld [vmem:[%s141 + $0x14] sm:%s134]
        %154 = vst [vmem:[%s142 + $0x14] sm:%s134] %v153
        %v155 = vld [vmem:[%s141 + $0x18] sm:%s134]
        %156 = vst [vmem:[%s142 + $0x18] sm:%s134] %v155
        %v157 = vld [vmem:[%s141 + $0x24] sm:%s134]
        %158 = vst [vmem:[%s142 + $0x1c] sm:%s134] %v157
        %v159 = vld [vmem:[%s141 + $0x1c] sm:%s134]
        %160 = vst [vmem:[%s142 + $0x20] sm:%s134] %v159
        %v161 = vld [vmem:[%s141 + $0x28] sm:%s134]
        %162 = vst [vmem:[%s142 + $0x24] sm:%s134] %v161
        %v163 = vld [vmem:[%s141 + $0x20] sm:%s134]
        %164 = vst [vmem:[%s142 + $0x28] sm:%s134] %v163
        %v165 = vld [vmem:[%s141 + $0x2c] sm:%s134]
        %166 = vst [vmem:[%s142 + $0x2c] sm:%s134] %v165
        %v167 = vld [vmem:[%s141 + $0x30] sm:%s134]
        %168 = vst [vmem:[%s142 + $0x30] sm:%s134] %v167
        %v169 = vld [vmem:[%s141 + $0x3c] sm:%s134]
        %170 = vst [vmem:[%s142 + $0x34] sm:%s134] %v169
        %v171 = vld [vmem:[%s141 + $0x34] sm:%s134]
        %172 = vst [vmem:[%s142 + $0x38] sm:%s134] %v171
        %v173 = vld [vmem:[%s141 + $0x40] sm:%s134]
        %174 = vst [vmem:[%s142 + $0x3c] sm:%s134] %v173
        %v175 = vld [vmem:[%s141 + $0x38] sm:%s134]
        %176 = vst [vmem:[%s142 + $0x40] sm:%s134] %v175
        %v177 = vld [vmem:[%s141 + $0x44] sm:%s134]
        %178 = vst [vmem:[%s142 + $0x44] sm:%s134] %v177
        %v179 = vld [vmem:[%s141 + $0x48] sm:%s134]
        %180 = vst [vmem:[%s142 + $0x48] sm:%s134] %v179
        %v181 = vld [vmem:[%s141 + $0x54] sm:%s134]
        %182 = vst [vmem:[%s142 + $0x4c] sm:%s134] %v181
        %v183 = vld [vmem:[%s141 + $0x4c] sm:%s134]
        %184 = vst [vmem:[%s142 + $0x50] sm:%s134] %v183
        %v185 = vld [vmem:[%s141 + $0x58] sm:%s134]
        %186 = vst [vmem:[%s142 + $0x54] sm:%s134] %v185
        %v187 = vld [vmem:[%s141 + $0x50] sm:%s134]
        %188 = vst [vmem:[%s142 + $0x58] sm:%s134] %v187
        %v189 = vld [vmem:[%s141 + $0x5c] sm:%s134]
        %190 = vst [vmem:[%s142 + $0x5c] sm:%s134] %v189
        %v191 = vld [vmem:[%s141 + $0x60] sm:%s134]
        %192 = vst [vmem:[%s142 + $0x60] sm:%s134] %v191
        %v193 = vld [vmem:[%s141 + $0x6c] sm:%s134]
        %194 = vst [vmem:[%s142 + $0x64] sm:%s134] %v193
        %v195 = vld [vmem:[%s141 + $0x64] sm:%s134]
        %196 = vst [vmem:[%s142 + $0x68] sm:%s134] %v195
        %v197 = vld [vmem:[%s141 + $0x70] sm:%s134]
        %198 = vst [vmem:[%s142 + $0x6c] sm:%s134] %v197
        %v199 = vld [vmem:[%s141 + $0x68] sm:%s134]
        %200 = vst [vmem:[%s142 + $0x70] sm:%s134] %v199
        %v201 = vld [vmem:[%s141 + $0x74] sm:%s134]
        %202 = vst [vmem:[%s142 + $0x74] sm:%s134] %v201
        %v203 = vld [vmem:[%s141 + $0x78] sm:%s134]
        %204 = vst [vmem:[%s142 + $0x78] sm:%s134] %v203
        %v205 = vld [vmem:[%s141 + $0x84] sm:%s134]
        %206 = vst [vmem:[%s142 + $0x7c] sm:%s134] %v205
        %v207 = vld [vmem:[%s141 + $0x7c] sm:%s134]
        %208 = vst [vmem:[%s142 + $0x80] sm:%s134] %v207
        %v209 = vld [vmem:[%s141 + $0x88] sm:%s134]
        %210 = vst [vmem:[%s142 + $0x84] sm:%s134] %v209
        %v211 = vld [vmem:[%s141 + $0x80] sm:%s134]
        %212 = vst [vmem:[%s142 + $0x88] sm:%s134] %v211
        %v213 = vld [vmem:[%s141 + $0x8c] sm:%s134]
        %214 = vst [vmem:[%s142 + $0x8c] sm:%s134] %v213
        %v215 = vld [vmem:[%s141 + $0x90] sm:%s134]
        %216 = vst [vmem:[%s142 + $0x90] sm:%s134] %v215
        %v217 = vld [vmem:[%s141 + $0x9c] sm:%s134]
        %218 = vst [vmem:[%s142 + $0x94] sm:%s134] %v217
        %v219 = vld [vmem:[%s141 + $0x94] sm:%s134]
        %220 = vst [vmem:[%s142 + $0x98] sm:%s134] %v219
        %v221 = vld [vmem:[%s141 + $0xa0] sm:%s134]
        %222 = vst [vmem:[%s142 + $0x9c] sm:%s134] %v221
        %v223 = vld [vmem:[%s141 + $0x98] sm:%s134]
        %224 = vst [vmem:[%s142 + $0xa0] sm:%s134] %v223
        %v225 = vld [vmem:[%s141 + $0xa4] sm:%s134]
        %226 = vst [vmem:[%s142 + $0xa4] sm:%s134] %v225
        %v227 = vld [vmem:[%s141 + $0xa8] sm:%s134]
        %228 = vst [vmem:[%s142 + $0xa8] sm:%s134] %v227
        %v229 = vld [vmem:[%s141 + $0xb4] sm:%s134]
        %230 = vst [vmem:[%s142 + $0xac] sm:%s134] %v229
        %v231 = vld [vmem:[%s141 + $0xac] sm:%s134]
        %232 = vst [vmem:[%s142 + $0xb0] sm:%s134] %v231
        %v233 = vld [vmem:[%s141 + $0xb8] sm:%s134]
        %234 = vst [vmem:[%s142 + $0xb4] sm:%s134] %v233
        %v235 = vld [vmem:[%s141 + $0xb0] sm:%s134]
        %236 = vst [vmem:[%s142 + $0xb8] sm:%s134] %v235
        %v237 = vld [vmem:[%s141 + $0xbc] sm:%s134]
        %238 = vst [vmem:[%s142 + $0xbc] sm:%s134] %v237
        %v239 = vld [vmem:[%s141 + $0xc0] sm:%s134]
        %240 = vst [vmem:[%s142 + $0xc0] sm:%s134] %v239
        %v241 = vld [vmem:[%s141 + $0xcc] sm:%s134]
        %242 = vst [vmem:[%s142 + $0xc4] sm:%s134] %v241
        %v243 = vld [vmem:[%s141 + $0xc4] sm:%s134]
        %244 = vst [vmem:[%s142 + $0xc8] sm:%s134] %v243
        %v245 = vld [vmem:[%s141 + $0xd0] sm:%s134]
        %246 = vst [vmem:[%s142 + $0xcc] sm:%s134] %v245
        %v247 = vld [vmem:[%s141 + $0xc8] sm:%s134]
        %248 = vst [vmem:[%s142 + $0xd0] sm:%s134] %v247
        %v249 = vld [vmem:[%s141 + $0xd4] sm:%s134]
        %250 = vst [vmem:[%s142 + $0xd4] sm:%s134] %v249
        %v251 = vld [vmem:[%s141 + $0xd8] sm:%s134]
        %252 = vst [vmem:[%s142 + $0xd8] sm:%s134] %v251
        %v253 = vld [vmem:[%s141 + $0xe4] sm:%s134]
        %254 = vst [vmem:[%s142 + $0xdc] sm:%s134] %v253
        %v255 = vld [vmem:[%s141 + $0xdc] sm:%s134]
        %256 = vst [vmem:[%s142 + $0xe0] sm:%s134] %v255
        %v257 = vld [vmem:[%s141 + $0xe8] sm:%s134]
        %258 = vst [vmem:[%s142 + $0xe4] sm:%s134] %v257
        %v259 = vld [vmem:[%s141 + $0xe0] sm:%s134]
        %260 = vst [vmem:[%s142 + $0xe8] sm:%s134] %v259
        %v261 = vld [vmem:[%s141 + $0xec] sm:%s134]
        %262 = vst [vmem:[%s142 + $0xec] sm:%s134] %v261
        %v263 = vld [vmem:[%s141 + $0xf0] sm:%s134]
        %264 = vst [vmem:[%s142 + $0xf0] sm:%s134] %v263
        %v265 = vld [vmem:[%s141 + $0xfc] sm:%s134]
        %266 = vst [vmem:[%s142 + $0xf4] sm:%s134] %v265
        %v267 = vld [vmem:[%s141 + $0xf4] sm:%s134]
        %268 = vst [vmem:[%s142 + $0xf8] sm:%s134] %v267
        %v269 = vld [vmem:[%s141 + $0x100] sm:%s134]
        %270 = vst [vmem:[%s142 + $0xfc] sm:%s134] %v269
        %v271 = vld [vmem:[%s141 + $0xf8] sm:%s134]
        %272 = vst [vmem:[%s142 + $0x100] sm:%s134] %v271
        %v273 = vld [vmem:[%s141 + $0x104] sm:%s134]
        %274 = vst [vmem:[%s142 + $0x104] sm:%s134] %v273
        %v275 = vld [vmem:[%s141 + $0x108] sm:%s134]
        %276 = vst [vmem:[%s142 + $0x108] sm:%s134] %v275
        %v277 = vld [vmem:[%s141 + $0x114] sm:%s134]
        %278 = vst [vmem:[%s142 + $0x10c] sm:%s134] %v277
        %v279 = vld [vmem:[%s141 + $0x10c] sm:%s134]
        %280 = vst [vmem:[%s142 + $0x110] sm:%s134] %v279
        %v281 = vld [vmem:[%s141 + $0x118] sm:%s134]
        %282 = vst [vmem:[%s142 + $0x114] sm:%s134] %v281
        %v283 = vld [vmem:[%s141 + $0x110] sm:%s134]
        %284 = vst [vmem:[%s142 + $0x118] sm:%s134] %v283
        %v285 = vld [vmem:[%s141 + $0x11c] sm:%s134]
        %286 = vst [vmem:[%s142 + $0x11c] sm:%s134] %v285
        %v287 = vld [vmem:[%s141 + $0x120] sm:%s134]
        %288 = vst [vmem:[%s142 + $0x120] sm:%s134] %v287
        %v289 = vld [vmem:[%s141 + $0x12c] sm:%s134]
        %290 = vst [vmem:[%s142 + $0x124] sm:%s134] %v289
        %v291 = vld [vmem:[%s141 + $0x124] sm:%s134]
        %292 = vst [vmem:[%s142 + $0x128] sm:%s134] %v291
        %v293 = vld [vmem:[%s141 + $0x130] sm:%s134]
        %294 = vst [vmem:[%s142 + $0x12c] sm:%s134] %v293
        %v295 = vld [vmem:[%s141 + $0x128] sm:%s134]
        %296 = vst [vmem:[%s142 + $0x130] sm:%s134] %v295
        %v297 = vld [vmem:[%s141 + $0x134] sm:%s134]
        %298 = vst [vmem:[%s142 + $0x134] sm:%s134] %v297
        %v299 = vld [vmem:[%s141 + $0x138] sm:%s134]
        %300 = vst [vmem:[%s142 + $0x138] sm:%s134] %v299
        %v301 = vld [vmem:[%s141 + $0x144] sm:%s134]
        %302 = vst [vmem:[%s142 + $0x13c] sm:%s134] %v301
        %v303 = vld [vmem:[%s141 + $0x13c] sm:%s134]
        %304 = vst [vmem:[%s142 + $0x140] sm:%s134] %v303
        %v305 = vld [vmem:[%s141 + $0x148] sm:%s134]
        %306 = vst [vmem:[%s142 + $0x144] sm:%s134] %v305
        %v307 = vld [vmem:[%s141 + $0x140] sm:%s134]
        %308 = vst [vmem:[%s142 + $0x148] sm:%s134] %v307
        %v309 = vld [vmem:[%s141 + $0x14c] sm:%s134]
        %310 = vst [vmem:[%s142 + $0x14c] sm:%s134] %v309
        %v311 = vld [vmem:[%s141 + $0x150] sm:%s134]
        %312 = vst [vmem:[%s142 + $0x150] sm:%s134] %v311
        %v313 = vld [vmem:[%s141 + $0x15c] sm:%s134]
        %314 = vst [vmem:[%s142 + $0x154] sm:%s134] %v313
        %v315 = vld [vmem:[%s141 + $0x154] sm:%s134]
        %316 = vst [vmem:[%s142 + $0x158] sm:%s134] %v315
        %v317 = vld [vmem:[%s141 + $0x160] sm:%s134]
        %318 = vst [vmem:[%s142 + $0x15c] sm:%s134] %v317
        %v319 = vld [vmem:[%s141 + $0x158] sm:%s134]
        %320 = vst [vmem:[%s142 + $0x160] sm:%s134] %v319
        %v321 = vld [vmem:[%s141 + $0x164] sm:%s134]
        %322 = vst [vmem:[%s142 + $0x164] sm:%s134] %v321
        %v323 = vld [vmem:[%s141 + $0x168] sm:%s134]
        %324 = vst [vmem:[%s142 + $0x168] sm:%s134] %v323
        %v325 = vld [vmem:[%s141 + $0x174] sm:%s134]
        %326 = vst [vmem:[%s142 + $0x16c] sm:%s134] %v325
        %v327 = vld [vmem:[%s141 + $0x16c] sm:%s134]
        %328 = vst [vmem:[%s142 + $0x170] sm:%s134] %v327
        %v329 = vld [vmem:[%s141 + $0x178] sm:%s134]
        %330 = vst [vmem:[%s142 + $0x174] sm:%s134] %v329
        %v331 = vld [vmem:[%s141 + $0x170] sm:%s134]
        %332 = vst [vmem:[%s142 + $0x178] sm:%s134] %v331
        %v333 = vld [vmem:[%s141 + $0x17c] sm:%s134]
        %334 = vst [vmem:[%s142 + $0x17c] sm:%s134] %v333
      $region100: #{network_forward.1} parent=94 // loop_footer
        %s140 = sadd.s32 1, %s136
      $region101: #{network_forward.1} parent=94 // loop_footer_branch
        %135 = sbr.rel target = $region97
      $region102: #{network_forward.1} parent=94 // loop_exit
        _
    $region95: #{network_forward.1} parent=1 // pred_fallthru
      _
    // Predicated region
    $region121: #{network_forward.1} parent=1 // pred_check
      _
    $region122: #{network_forward.1} parent=1 // pred_check_branch
      %556 = sbr.rel (0) target = $region124
    $region123: #{network_forward.1} parent=1 // pred_region
      %557 = vsyncadd %s125, 6144
    $region124: #{network_forward.1} parent=1 // pred_fallthru
      _
    %s558 = scalar_lea.sflag [#allocation6], 2
    %p560 = scmp.lt.u32.totalorder 4, 8
    %p561 = pneg %p560
    // Predicated region
    $region125: #{network_forward.1} parent=1 // pred_check
      _
    $region126: #{network_forward.1} parent=1 // pred_check_branch
      %563 = sbr.rel (%p560) target = $region128
    $region127: #{network_forward.1} parent=1 // pred_region
      %s960 = sand.u32 4, 7
      %p961 = scmp.eq.s32.totalorder %s960, 0
      %p962 = pneg %p961
      // Predicated region
      $region140: #{network_forward.1} parent=127 // pred_check
        _
      $region141: #{network_forward.1} parent=127 // pred_check_branch
        %964 = sbr.rel (%p961) target = $region143
      $region142: #{network_forward.1} parent=127 // pred_region
        %s965 = sand.u32 4, 7
        %s966 = ssub.s32 4, %s965
        %s967 = scalar_lea.vmem %s6, %s966
        %s968 = ssub.s32 4, %s965
        %s969 = scalar_lea.vmem [#allocation4], %s968
        loop: start=0, step=1, limit=1
        $region144: #{network_forward.1} parent=142 // loop_pre_header
          _
        $region145: #{network_forward.1} parent=142 // loop_header
          %s971 = sphi 0, %s975
          %p972 = scmp.ge.s32.totalorder %s971, 1
          %s976 = sphi %s6, %s6
          %s977 = sphi [#allocation4], [#allocation4]
        $region146: #{network_forward.1} parent=142 // loop_header_branch
          %974 = sbr.rel (%p972) target = $region150
        $region147: #{network_forward.1} parent=142 // loop_body
          _
        $region148: #{network_forward.1} parent=142 // loop_footer
          %s975 = sadd.s32 1, %s971
        $region149: #{network_forward.1} parent=142 // loop_footer_branch
          %970 = sbr.rel target = $region145
        $region150: #{network_forward.1} parent=142 // loop_exit
          _
        %s978 = sshllo.u32 0, %s965
        loop: start=0, step=1, limit=1
        $region151: #{network_forward.1} parent=142 // loop_pre_header
          _
        $region152: #{network_forward.1} parent=142 // loop_header
          %s980 = sphi 0, %s984
          %p981 = scmp.ge.s32.totalorder %s980, 1
          %s985 = sphi %s967, %s967
          %s986 = sphi %s969, %s969
        $region153: #{network_forward.1} parent=142 // loop_header_branch
          %983 = sbr.rel (%p981) target = $region157
        $region154: #{network_forward.1} parent=142 // loop_body
          %v987 = vld [vmem:[%s985] sm:%s978]
          %988 = vst [vmem:[%s986] sm:%s978] %v987
          %v989 = vld [vmem:[%s985 + $0xc] sm:%s978]
          %990 = vst [vmem:[%s986 + $0x4] sm:%s978] %v989
          %v991 = vld [vmem:[%s985 + $0x4] sm:%s978]
          %992 = vst [vmem:[%s986 + $0x8] sm:%s978] %v991
          %v993 = vld [vmem:[%s985 + $0x10] sm:%s978]
          %994 = vst [vmem:[%s986 + $0xc] sm:%s978] %v993
          %v995 = vld [vmem:[%s985 + $0x8] sm:%s978]
          %996 = vst [vmem:[%s986 + $0x10] sm:%s978] %v995
          %v997 = vld [vmem:[%s985 + $0x14] sm:%s978]
          %998 = vst [vmem:[%s986 + $0x14] sm:%s978] %v997
          %v999 = vld [vmem:[%s985 + $0x18] sm:%s978]
          %1000 = vst [vmem:[%s986 + $0x18] sm:%s978] %v999
          %v1001 = vld [vmem:[%s985 + $0x24] sm:%s978]
          %1002 = vst [vmem:[%s986 + $0x1c] sm:%s978] %v1001
          %v1003 = vld [vmem:[%s985 + $0x1c] sm:%s978]
          %1004 = vst [vmem:[%s986 + $0x20] sm:%s978] %v1003
          %v1005 = vld [vmem:[%s985 + $0x28] sm:%s978]
          %1006 = vst [vmem:[%s986 + $0x24] sm:%s978] %v1005
          %v1007 = vld [vmem:[%s985 + $0x20] sm:%s978]
          %1008 = vst [vmem:[%s986 + $0x28] sm:%s978] %v1007
          %v1009 = vld [vmem:[%s985 + $0x2c] sm:%s978]
          %1010 = vst [vmem:[%s986 + $0x2c] sm:%s978] %v1009
          %v1011 = vld [vmem:[%s985 + $0x30] sm:%s978]
          %1012 = vst [vmem:[%s986 + $0x30] sm:%s978] %v1011
          %v1013 = vld [vmem:[%s985 + $0x3c] sm:%s978]
          %1014 = vst [vmem:[%s986 + $0x34] sm:%s978] %v1013
          %v1015 = vld [vmem:[%s985 + $0x34] sm:%s978]
          %1016 = vst [vmem:[%s986 + $0x38] sm:%s978] %v1015
          %v1017 = vld [vmem:[%s985 + $0x40] sm:%s978]
          %1018 = vst [vmem:[%s986 + $0x3c] sm:%s978] %v1017
          %v1019 = vld [vmem:[%s985 + $0x38] sm:%s978]
          %1020 = vst [vmem:[%s986 + $0x40] sm:%s978] %v1019
          %v1021 = vld [vmem:[%s985 + $0x44] sm:%s978]
          %1022 = vst [vmem:[%s986 + $0x44] sm:%s978] %v1021
          %v1023 = vld [vmem:[%s985 + $0x48] sm:%s978]
          %1024 = vst [vmem:[%s986 + $0x48] sm:%s978] %v1023
          %v1025 = vld [vmem:[%s985 + $0x54] sm:%s978]
          %1026 = vst [vmem:[%s986 + $0x4c] sm:%s978] %v1025
          %v1027 = vld [vmem:[%s985 + $0x4c] sm:%s978]
          %1028 = vst [vmem:[%s986 + $0x50] sm:%s978] %v1027
          %v1029 = vld [vmem:[%s985 + $0x58] sm:%s978]
          %1030 = vst [vmem:[%s986 + $0x54] sm:%s978] %v1029
          %v1031 = vld [vmem:[%s985 + $0x50] sm:%s978]
          %1032 = vst [vmem:[%s986 + $0x58] sm:%s978] %v1031
          %v1033 = vld [vmem:[%s985 + $0x5c] sm:%s978]
          %1034 = vst [vmem:[%s986 + $0x5c] sm:%s978] %v1033
          %v1035 = vld [vmem:[%s985 + $0x60] sm:%s978]
          %1036 = vst [vmem:[%s986 + $0x60] sm:%s978] %v1035
          %v1037 = vld [vmem:[%s985 + $0x6c] sm:%s978]
          %1038 = vst [vmem:[%s986 + $0x64] sm:%s978] %v1037
          %v1039 = vld [vmem:[%s985 + $0x64] sm:%s978]
          %1040 = vst [vmem:[%s986 + $0x68] sm:%s978] %v1039
          %v1041 = vld [vmem:[%s985 + $0x70] sm:%s978]
          %1042 = vst [vmem:[%s986 + $0x6c] sm:%s978] %v1041
          %v1043 = vld [vmem:[%s985 + $0x68] sm:%s978]
          %1044 = vst [vmem:[%s986 + $0x70] sm:%s978] %v1043
          %v1045 = vld [vmem:[%s985 + $0x74] sm:%s978]
          %1046 = vst [vmem:[%s986 + $0x74] sm:%s978] %v1045
          %v1047 = vld [vmem:[%s985 + $0x78] sm:%s978]
          %1048 = vst [vmem:[%s986 + $0x78] sm:%s978] %v1047
          %v1049 = vld [vmem:[%s985 + $0x84] sm:%s978]
          %1050 = vst [vmem:[%s986 + $0x7c] sm:%s978] %v1049
          %v1051 = vld [vmem:[%s985 + $0x7c] sm:%s978]
          %1052 = vst [vmem:[%s986 + $0x80] sm:%s978] %v1051
          %v1053 = vld [vmem:[%s985 + $0x88] sm:%s978]
          %1054 = vst [vmem:[%s986 + $0x84] sm:%s978] %v1053
          %v1055 = vld [vmem:[%s985 + $0x80] sm:%s978]
          %1056 = vst [vmem:[%s986 + $0x88] sm:%s978] %v1055
          %v1057 = vld [vmem:[%s985 + $0x8c] sm:%s978]
          %1058 = vst [vmem:[%s986 + $0x8c] sm:%s978] %v1057
          %v1059 = vld [vmem:[%s985 + $0x90] sm:%s978]
          %1060 = vst [vmem:[%s986 + $0x90] sm:%s978] %v1059
          %v1061 = vld [vmem:[%s985 + $0x9c] sm:%s978]
          %1062 = vst [vmem:[%s986 + $0x94] sm:%s978] %v1061
          %v1063 = vld [vmem:[%s985 + $0x94] sm:%s978]
          %1064 = vst [vmem:[%s986 + $0x98] sm:%s978] %v1063
          %v1065 = vld [vmem:[%s985 + $0xa0] sm:%s978]
          %1066 = vst [vmem:[%s986 + $0x9c] sm:%s978] %v1065
          %v1067 = vld [vmem:[%s985 + $0x98] sm:%s978]
          %1068 = vst [vmem:[%s986 + $0xa0] sm:%s978] %v1067
          %v1069 = vld [vmem:[%s985 + $0xa4] sm:%s978]
          %1070 = vst [vmem:[%s986 + $0xa4] sm:%s978] %v1069
          %v1071 = vld [vmem:[%s985 + $0xa8] sm:%s978]
          %1072 = vst [vmem:[%s986 + $0xa8] sm:%s978] %v1071
          %v1073 = vld [vmem:[%s985 + $0xb4] sm:%s978]
          %1074 = vst [vmem:[%s986 + $0xac] sm:%s978] %v1073
          %v1075 = vld [vmem:[%s985 + $0xac] sm:%s978]
          %1076 = vst [vmem:[%s986 + $0xb0] sm:%s978] %v1075
          %v1077 = vld [vmem:[%s985 + $0xb8] sm:%s978]
          %1078 = vst [vmem:[%s986 + $0xb4] sm:%s978] %v1077
          %v1079 = vld [vmem:[%s985 + $0xb0] sm:%s978]
          %1080 = vst [vmem:[%s986 + $0xb8] sm:%s978] %v1079
          %v1081 = vld [vmem:[%s985 + $0xbc] sm:%s978]
          %1082 = vst [vmem:[%s986 + $0xbc] sm:%s978] %v1081
          %v1083 = vld [vmem:[%s985 + $0xc0] sm:%s978]
          %1084 = vst [vmem:[%s986 + $0xc0] sm:%s978] %v1083
          %v1085 = vld [vmem:[%s985 + $0xcc] sm:%s978]
          %1086 = vst [vmem:[%s986 + $0xc4] sm:%s978] %v1085
          %v1087 = vld [vmem:[%s985 + $0xc4] sm:%s978]
          %1088 = vst [vmem:[%s986 + $0xc8] sm:%s978] %v1087
          %v1089 = vld [vmem:[%s985 + $0xd0] sm:%s978]
          %1090 = vst [vmem:[%s986 + $0xcc] sm:%s978] %v1089
          %v1091 = vld [vmem:[%s985 + $0xc8] sm:%s978]
          %1092 = vst [vmem:[%s986 + $0xd0] sm:%s978] %v1091
          %v1093 = vld [vmem:[%s985 + $0xd4] sm:%s978]
          %1094 = vst [vmem:[%s986 + $0xd4] sm:%s978] %v1093
          %v1095 = vld [vmem:[%s985 + $0xd8] sm:%s978]
          %1096 = vst [vmem:[%s986 + $0xd8] sm:%s978] %v1095
          %v1097 = vld [vmem:[%s985 + $0xe4] sm:%s978]
          %1098 = vst [vmem:[%s986 + $0xdc] sm:%s978] %v1097
          %v1099 = vld [vmem:[%s985 + $0xdc] sm:%s978]
          %1100 = vst [vmem:[%s986 + $0xe0] sm:%s978] %v1099
          %v1101 = vld [vmem:[%s985 + $0xe8] sm:%s978]
          %1102 = vst [vmem:[%s986 + $0xe4] sm:%s978] %v1101
          %v1103 = vld [vmem:[%s985 + $0xe0] sm:%s978]
          %1104 = vst [vmem:[%s986 + $0xe8] sm:%s978] %v1103
          %v1105 = vld [vmem:[%s985 + $0xec] sm:%s978]
          %1106 = vst [vmem:[%s986 + $0xec] sm:%s978] %v1105
          %v1107 = vld [vmem:[%s985 + $0xf0] sm:%s978]
          %1108 = vst [vmem:[%s986 + $0xf0] sm:%s978] %v1107
          %v1109 = vld [vmem:[%s985 + $0xfc] sm:%s978]
          %1110 = vst [vmem:[%s986 + $0xf4] sm:%s978] %v1109
          %v1111 = vld [vmem:[%s985 + $0xf4] sm:%s978]
          %1112 = vst [vmem:[%s986 + $0xf8] sm:%s978] %v1111
          %v1113 = vld [vmem:[%s985 + $0x100] sm:%s978]
          %1114 = vst [vmem:[%s986 + $0xfc] sm:%s978] %v1113
          %v1115 = vld [vmem:[%s985 + $0xf8] sm:%s978]
          %1116 = vst [vmem:[%s986 + $0x100] sm:%s978] %v1115
          %v1117 = vld [vmem:[%s985 + $0x104] sm:%s978]
          %1118 = vst [vmem:[%s986 + $0x104] sm:%s978] %v1117
          %v1119 = vld [vmem:[%s985 + $0x108] sm:%s978]
          %1120 = vst [vmem:[%s986 + $0x108] sm:%s978] %v1119
          %v1121 = vld [vmem:[%s985 + $0x114] sm:%s978]
          %1122 = vst [vmem:[%s986 + $0x10c] sm:%s978] %v1121
          %v1123 = vld [vmem:[%s985 + $0x10c] sm:%s978]
          %1124 = vst [vmem:[%s986 + $0x110] sm:%s978] %v1123
          %v1125 = vld [vmem:[%s985 + $0x118] sm:%s978]
          %1126 = vst [vmem:[%s986 + $0x114] sm:%s978] %v1125
          %v1127 = vld [vmem:[%s985 + $0x110] sm:%s978]
          %1128 = vst [vmem:[%s986 + $0x118] sm:%s978] %v1127
          %v1129 = vld [vmem:[%s985 + $0x11c] sm:%s978]
          %1130 = vst [vmem:[%s986 + $0x11c] sm:%s978] %v1129
          %v1131 = vld [vmem:[%s985 + $0x120] sm:%s978]
          %1132 = vst [vmem:[%s986 + $0x120] sm:%s978] %v1131
          %v1133 = vld [vmem:[%s985 + $0x12c] sm:%s978]
          %1134 = vst [vmem:[%s986 + $0x124] sm:%s978] %v1133
          %v1135 = vld [vmem:[%s985 + $0x124] sm:%s978]
          %1136 = vst [vmem:[%s986 + $0x128] sm:%s978] %v1135
          %v1137 = vld [vmem:[%s985 + $0x130] sm:%s978]
          %1138 = vst [vmem:[%s986 + $0x12c] sm:%s978] %v1137
          %v1139 = vld [vmem:[%s985 + $0x128] sm:%s978]
          %1140 = vst [vmem:[%s986 + $0x130] sm:%s978] %v1139
          %v1141 = vld [vmem:[%s985 + $0x134] sm:%s978]
          %1142 = vst [vmem:[%s986 + $0x134] sm:%s978] %v1141
          %v1143 = vld [vmem:[%s985 + $0x138] sm:%s978]
          %1144 = vst [vmem:[%s986 + $0x138] sm:%s978] %v1143
          %v1145 = vld [vmem:[%s985 + $0x144] sm:%s978]
          %1146 = vst [vmem:[%s986 + $0x13c] sm:%s978] %v1145
          %v1147 = vld [vmem:[%s985 + $0x13c] sm:%s978]
          %1148 = vst [vmem:[%s986 + $0x140] sm:%s978] %v1147
          %v1149 = vld [vmem:[%s985 + $0x148] sm:%s978]
          %1150 = vst [vmem:[%s986 + $0x144] sm:%s978] %v1149
          %v1151 = vld [vmem:[%s985 + $0x140] sm:%s978]
          %1152 = vst [vmem:[%s986 + $0x148] sm:%s978] %v1151
          %v1153 = vld [vmem:[%s985 + $0x14c] sm:%s978]
          %1154 = vst [vmem:[%s986 + $0x14c] sm:%s978] %v1153
          %v1155 = vld [vmem:[%s985 + $0x150] sm:%s978]
          %1156 = vst [vmem:[%s986 + $0x150] sm:%s978] %v1155
          %v1157 = vld [vmem:[%s985 + $0x15c] sm:%s978]
          %1158 = vst [vmem:[%s986 + $0x154] sm:%s978] %v1157
          %v1159 = vld [vmem:[%s985 + $0x154] sm:%s978]
          %1160 = vst [vmem:[%s986 + $0x158] sm:%s978] %v1159
          %v1161 = vld [vmem:[%s985 + $0x160] sm:%s978]
          %1162 = vst [vmem:[%s986 + $0x15c] sm:%s978] %v1161
          %v1163 = vld [vmem:[%s985 + $0x158] sm:%s978]
          %1164 = vst [vmem:[%s986 + $0x160] sm:%s978] %v1163
          %v1165 = vld [vmem:[%s985 + $0x164] sm:%s978]
          %1166 = vst [vmem:[%s986 + $0x164] sm:%s978] %v1165
          %v1167 = vld [vmem:[%s985 + $0x168] sm:%s978]
          %1168 = vst [vmem:[%s986 + $0x168] sm:%s978] %v1167
          %v1169 = vld [vmem:[%s985 + $0x174] sm:%s978]
          %1170 = vst [vmem:[%s986 + $0x16c] sm:%s978] %v1169
          %v1171 = vld [vmem:[%s985 + $0x16c] sm:%s978]
          %1172 = vst [vmem:[%s986 + $0x170] sm:%s978] %v1171
          %v1173 = vld [vmem:[%s985 + $0x178] sm:%s978]
          %1174 = vst [vmem:[%s986 + $0x174] sm:%s978] %v1173
          %v1175 = vld [vmem:[%s985 + $0x170] sm:%s978]
          %1176 = vst [vmem:[%s986 + $0x178] sm:%s978] %v1175
          %v1177 = vld [vmem:[%s985 + $0x17c] sm:%s978]
          %1178 = vst [vmem:[%s986 + $0x17c] sm:%s978] %v1177
          %v1179 = vld [vmem:[%s985 + $0x180] sm:%s978]
          %1180 = vst [vmem:[%s986 + $0x180] sm:%s978] %v1179
          %v1181 = vld [vmem:[%s985 + $0x18c] sm:%s978]
          %1182 = vst [vmem:[%s986 + $0x184] sm:%s978] %v1181
          %v1183 = vld [vmem:[%s985 + $0x184] sm:%s978]
          %1184 = vst [vmem:[%s986 + $0x188] sm:%s978] %v1183
          %v1185 = vld [vmem:[%s985 + $0x190] sm:%s978]
          %1186 = vst [vmem:[%s986 + $0x18c] sm:%s978] %v1185
          %v1187 = vld [vmem:[%s985 + $0x188] sm:%s978]
          %1188 = vst [vmem:[%s986 + $0x190] sm:%s978] %v1187
          %v1189 = vld [vmem:[%s985 + $0x194] sm:%s978]
          %1190 = vst [vmem:[%s986 + $0x194] sm:%s978] %v1189
          %v1191 = vld [vmem:[%s985 + $0x198] sm:%s978]
          %1192 = vst [vmem:[%s986 + $0x198] sm:%s978] %v1191
          %v1193 = vld [vmem:[%s985 + $0x1a4] sm:%s978]
          %1194 = vst [vmem:[%s986 + $0x19c] sm:%s978] %v1193
          %v1195 = vld [vmem:[%s985 + $0x19c] sm:%s978]
          %1196 = vst [vmem:[%s986 + $0x1a0] sm:%s978] %v1195
          %v1197 = vld [vmem:[%s985 + $0x1a8] sm:%s978]
          %1198 = vst [vmem:[%s986 + $0x1a4] sm:%s978] %v1197
          %v1199 = vld [vmem:[%s985 + $0x1a0] sm:%s978]
          %1200 = vst [vmem:[%s986 + $0x1a8] sm:%s978] %v1199
          %v1201 = vld [vmem:[%s985 + $0x1ac] sm:%s978]
          %1202 = vst [vmem:[%s986 + $0x1ac] sm:%s978] %v1201
          %v1203 = vld [vmem:[%s985 + $0x1b0] sm:%s978]
          %1204 = vst [vmem:[%s986 + $0x1b0] sm:%s978] %v1203
          %v1205 = vld [vmem:[%s985 + $0x1bc] sm:%s978]
          %1206 = vst [vmem:[%s986 + $0x1b4] sm:%s978] %v1205
          %v1207 = vld [vmem:[%s985 + $0x1b4] sm:%s978]
          %1208 = vst [vmem:[%s986 + $0x1b8] sm:%s978] %v1207
          %v1209 = vld [vmem:[%s985 + $0x1c0] sm:%s978]
          %1210 = vst [vmem:[%s986 + $0x1bc] sm:%s978] %v1209
          %v1211 = vld [vmem:[%s985 + $0x1b8] sm:%s978]
          %1212 = vst [vmem:[%s986 + $0x1c0] sm:%s978] %v1211
          %v1213 = vld [vmem:[%s985 + $0x1c4] sm:%s978]
          %1214 = vst [vmem:[%s986 + $0x1c4] sm:%s978] %v1213
          %v1215 = vld [vmem:[%s985 + $0x1c8] sm:%s978]
          %1216 = vst [vmem:[%s986 + $0x1c8] sm:%s978] %v1215
          %v1217 = vld [vmem:[%s985 + $0x1d4] sm:%s978]
          %1218 = vst [vmem:[%s986 + $0x1cc] sm:%s978] %v1217
          %v1219 = vld [vmem:[%s985 + $0x1cc] sm:%s978]
          %1220 = vst [vmem:[%s986 + $0x1d0] sm:%s978] %v1219
          %v1221 = vld [vmem:[%s985 + $0x1d8] sm:%s978]
          %1222 = vst [vmem:[%s986 + $0x1d4] sm:%s978] %v1221
          %v1223 = vld [vmem:[%s985 + $0x1d0] sm:%s978]
          %1224 = vst [vmem:[%s986 + $0x1d8] sm:%s978] %v1223
          %v1225 = vld [vmem:[%s985 + $0x1dc] sm:%s978]
          %1226 = vst [vmem:[%s986 + $0x1dc] sm:%s978] %v1225
          %v1227 = vld [vmem:[%s985 + $0x1e0] sm:%s978]
          %1228 = vst [vmem:[%s986 + $0x1e0] sm:%s978] %v1227
          %v1229 = vld [vmem:[%s985 + $0x1ec] sm:%s978]
          %1230 = vst [vmem:[%s986 + $0x1e4] sm:%s978] %v1229
          %v1231 = vld [vmem:[%s985 + $0x1e4] sm:%s978]
          %1232 = vst [vmem:[%s986 + $0x1e8] sm:%s978] %v1231
          %v1233 = vld [vmem:[%s985 + $0x1f0] sm:%s978]
          %1234 = vst [vmem:[%s986 + $0x1ec] sm:%s978] %v1233
          %v1235 = vld [vmem:[%s985 + $0x1e8] sm:%s978]
          %1236 = vst [vmem:[%s986 + $0x1f0] sm:%s978] %v1235
          %v1237 = vld [vmem:[%s985 + $0x1f4] sm:%s978]
          %1238 = vst [vmem:[%s986 + $0x1f4] sm:%s978] %v1237
          %v1239 = vld [vmem:[%s985 + $0x1f8] sm:%s978]
          %1240 = vst [vmem:[%s986 + $0x1f8] sm:%s978] %v1239
          %v1241 = vld [vmem:[%s985 + $0x204] sm:%s978]
          %1242 = vst [vmem:[%s986 + $0x1fc] sm:%s978] %v1241
          %v1243 = vld [vmem:[%s985 + $0x1fc] sm:%s978]
          %1244 = vst [vmem:[%s986 + $0x200] sm:%s978] %v1243
          %v1245 = vld [vmem:[%s985 + $0x208] sm:%s978]
          %1246 = vst [vmem:[%s986 + $0x204] sm:%s978] %v1245
          %v1247 = vld [vmem:[%s985 + $0x200] sm:%s978]
          %1248 = vst [vmem:[%s986 + $0x208] sm:%s978] %v1247
          %v1249 = vld [vmem:[%s985 + $0x20c] sm:%s978]
          %1250 = vst [vmem:[%s986 + $0x20c] sm:%s978] %v1249
          %v1251 = vld [vmem:[%s985 + $0x210] sm:%s978]
          %1252 = vst [vmem:[%s986 + $0x210] sm:%s978] %v1251
          %v1253 = vld [vmem:[%s985 + $0x21c] sm:%s978]
          %1254 = vst [vmem:[%s986 + $0x214] sm:%s978] %v1253
          %v1255 = vld [vmem:[%s985 + $0x214] sm:%s978]
          %1256 = vst [vmem:[%s986 + $0x218] sm:%s978] %v1255
          %v1257 = vld [vmem:[%s985 + $0x220] sm:%s978]
          %1258 = vst [vmem:[%s986 + $0x21c] sm:%s978] %v1257
          %v1259 = vld [vmem:[%s985 + $0x218] sm:%s978]
          %1260 = vst [vmem:[%s986 + $0x220] sm:%s978] %v1259
          %v1261 = vld [vmem:[%s985 + $0x224] sm:%s978]
          %1262 = vst [vmem:[%s986 + $0x224] sm:%s978] %v1261
          %v1263 = vld [vmem:[%s985 + $0x228] sm:%s978]
          %1264 = vst [vmem:[%s986 + $0x228] sm:%s978] %v1263
          %v1265 = vld [vmem:[%s985 + $0x234] sm:%s978]
          %1266 = vst [vmem:[%s986 + $0x22c] sm:%s978] %v1265
          %v1267 = vld [vmem:[%s985 + $0x22c] sm:%s978]
          %1268 = vst [vmem:[%s986 + $0x230] sm:%s978] %v1267
          %v1269 = vld [vmem:[%s985 + $0x238] sm:%s978]
          %1270 = vst [vmem:[%s986 + $0x234] sm:%s978] %v1269
          %v1271 = vld [vmem:[%s985 + $0x230] sm:%s978]
          %1272 = vst [vmem:[%s986 + $0x238] sm:%s978] %v1271
          %v1273 = vld [vmem:[%s985 + $0x23c] sm:%s978]
          %1274 = vst [vmem:[%s986 + $0x23c] sm:%s978] %v1273
          %v1275 = vld [vmem:[%s985 + $0x240] sm:%s978]
          %1276 = vst [vmem:[%s986 + $0x240] sm:%s978] %v1275
          %v1277 = vld [vmem:[%s985 + $0x24c] sm:%s978]
          %1278 = vst [vmem:[%s986 + $0x244] sm:%s978] %v1277
          %v1279 = vld [vmem:[%s985 + $0x244] sm:%s978]
          %1280 = vst [vmem:[%s986 + $0x248] sm:%s978] %v1279
          %v1281 = vld [vmem:[%s985 + $0x250] sm:%s978]
          %1282 = vst [vmem:[%s986 + $0x24c] sm:%s978] %v1281
          %v1283 = vld [vmem:[%s985 + $0x248] sm:%s978]
          %1284 = vst [vmem:[%s986 + $0x250] sm:%s978] %v1283
          %v1285 = vld [vmem:[%s985 + $0x254] sm:%s978]
          %1286 = vst [vmem:[%s986 + $0x254] sm:%s978] %v1285
          %v1287 = vld [vmem:[%s985 + $0x258] sm:%s978]
          %1288 = vst [vmem:[%s986 + $0x258] sm:%s978] %v1287
          %v1289 = vld [vmem:[%s985 + $0x264] sm:%s978]
          %1290 = vst [vmem:[%s986 + $0x25c] sm:%s978] %v1289
          %v1291 = vld [vmem:[%s985 + $0x25c] sm:%s978]
          %1292 = vst [vmem:[%s986 + $0x260] sm:%s978] %v1291
          %v1293 = vld [vmem:[%s985 + $0x268] sm:%s978]
          %1294 = vst [vmem:[%s986 + $0x264] sm:%s978] %v1293
          %v1295 = vld [vmem:[%s985 + $0x260] sm:%s978]
          %1296 = vst [vmem:[%s986 + $0x268] sm:%s978] %v1295
          %v1297 = vld [vmem:[%s985 + $0x26c] sm:%s978]
          %1298 = vst [vmem:[%s986 + $0x26c] sm:%s978] %v1297
          %v1299 = vld [vmem:[%s985 + $0x270] sm:%s978]
          %1300 = vst [vmem:[%s986 + $0x270] sm:%s978] %v1299
          %v1301 = vld [vmem:[%s985 + $0x27c] sm:%s978]
          %1302 = vst [vmem:[%s986 + $0x274] sm:%s978] %v1301
          %v1303 = vld [vmem:[%s985 + $0x274] sm:%s978]
          %1304 = vst [vmem:[%s986 + $0x278] sm:%s978] %v1303
          %v1305 = vld [vmem:[%s985 + $0x280] sm:%s978]
          %1306 = vst [vmem:[%s986 + $0x27c] sm:%s978] %v1305
          %v1307 = vld [vmem:[%s985 + $0x278] sm:%s978]
          %1308 = vst [vmem:[%s986 + $0x280] sm:%s978] %v1307
          %v1309 = vld [vmem:[%s985 + $0x284] sm:%s978]
          %1310 = vst [vmem:[%s986 + $0x284] sm:%s978] %v1309
          %v1311 = vld [vmem:[%s985 + $0x288] sm:%s978]
          %1312 = vst [vmem:[%s986 + $0x288] sm:%s978] %v1311
          %v1313 = vld [vmem:[%s985 + $0x294] sm:%s978]
          %1314 = vst [vmem:[%s986 + $0x28c] sm:%s978] %v1313
          %v1315 = vld [vmem:[%s985 + $0x28c] sm:%s978]
          %1316 = vst [vmem:[%s986 + $0x290] sm:%s978] %v1315
          %v1317 = vld [vmem:[%s985 + $0x298] sm:%s978]
          %1318 = vst [vmem:[%s986 + $0x294] sm:%s978] %v1317
          %v1319 = vld [vmem:[%s985 + $0x290] sm:%s978]
          %1320 = vst [vmem:[%s986 + $0x298] sm:%s978] %v1319
          %v1321 = vld [vmem:[%s985 + $0x29c] sm:%s978]
          %1322 = vst [vmem:[%s986 + $0x29c] sm:%s978] %v1321
          %v1323 = vld [vmem:[%s985 + $0x2a0] sm:%s978]
          %1324 = vst [vmem:[%s986 + $0x2a0] sm:%s978] %v1323
          %v1325 = vld [vmem:[%s985 + $0x2ac] sm:%s978]
          %1326 = vst [vmem:[%s986 + $0x2a4] sm:%s978] %v1325
          %v1327 = vld [vmem:[%s985 + $0x2a4] sm:%s978]
          %1328 = vst [vmem:[%s986 + $0x2a8] sm:%s978] %v1327
          %v1329 = vld [vmem:[%s985 + $0x2b0] sm:%s978]
          %1330 = vst [vmem:[%s986 + $0x2ac] sm:%s978] %v1329
          %v1331 = vld [vmem:[%s985 + $0x2a8] sm:%s978]
          %1332 = vst [vmem:[%s986 + $0x2b0] sm:%s978] %v1331
          %v1333 = vld [vmem:[%s985 + $0x2b4] sm:%s978]
          %1334 = vst [vmem:[%s986 + $0x2b4] sm:%s978] %v1333
          %v1335 = vld [vmem:[%s985 + $0x2b8] sm:%s978]
          %1336 = vst [vmem:[%s986 + $0x2b8] sm:%s978] %v1335
          %v1337 = vld [vmem:[%s985 + $0x2c4] sm:%s978]
          %1338 = vst [vmem:[%s986 + $0x2bc] sm:%s978] %v1337
          %v1339 = vld [vmem:[%s985 + $0x2bc] sm:%s978]
          %1340 = vst [vmem:[%s986 + $0x2c0] sm:%s978] %v1339
          %v1341 = vld [vmem:[%s985 + $0x2c8] sm:%s978]
          %1342 = vst [vmem:[%s986 + $0x2c4] sm:%s978] %v1341
          %v1343 = vld [vmem:[%s985 + $0x2c0] sm:%s978]
          %1344 = vst [vmem:[%s986 + $0x2c8] sm:%s978] %v1343
          %v1345 = vld [vmem:[%s985 + $0x2cc] sm:%s978]
          %1346 = vst [vmem:[%s986 + $0x2cc] sm:%s978] %v1345
          %v1347 = vld [vmem:[%s985 + $0x2d0] sm:%s978]
          %1348 = vst [vmem:[%s986 + $0x2d0] sm:%s978] %v1347
          %v1349 = vld [vmem:[%s985 + $0x2dc] sm:%s978]
          %1350 = vst [vmem:[%s986 + $0x2d4] sm:%s978] %v1349
          %v1351 = vld [vmem:[%s985 + $0x2d4] sm:%s978]
          %1352 = vst [vmem:[%s986 + $0x2d8] sm:%s978] %v1351
          %v1353 = vld [vmem:[%s985 + $0x2e0] sm:%s978]
          %1354 = vst [vmem:[%s986 + $0x2dc] sm:%s978] %v1353
          %v1355 = vld [vmem:[%s985 + $0x2d8] sm:%s978]
          %1356 = vst [vmem:[%s986 + $0x2e0] sm:%s978] %v1355
          %v1357 = vld [vmem:[%s985 + $0x2e4] sm:%s978]
          %1358 = vst [vmem:[%s986 + $0x2e4] sm:%s978] %v1357
          %v1359 = vld [vmem:[%s985 + $0x2e8] sm:%s978]
          %1360 = vst [vmem:[%s986 + $0x2e8] sm:%s978] %v1359
          %v1361 = vld [vmem:[%s985 + $0x2f4] sm:%s978]
          %1362 = vst [vmem:[%s986 + $0x2ec] sm:%s978] %v1361
          %v1363 = vld [vmem:[%s985 + $0x2ec] sm:%s978]
          %1364 = vst [vmem:[%s986 + $0x2f0] sm:%s978] %v1363
          %v1365 = vld [vmem:[%s985 + $0x2f8] sm:%s978]
          %1366 = vst [vmem:[%s986 + $0x2f4] sm:%s978] %v1365
          %v1367 = vld [vmem:[%s985 + $0x2f0] sm:%s978]
          %1368 = vst [vmem:[%s986 + $0x2f8] sm:%s978] %v1367
          %v1369 = vld [vmem:[%s985 + $0x2fc] sm:%s978]
          %1370 = vst [vmem:[%s986 + $0x2fc] sm:%s978] %v1369
        $region155: #{network_forward.1} parent=142 // loop_footer
          %s984 = sadd.s32 1, %s980
        $region156: #{network_forward.1} parent=142 // loop_footer_branch
          %979 = sbr.rel target = $region152
        $region157: #{network_forward.1} parent=142 // loop_exit
          _
      $region143: #{network_forward.1} parent=127 // pred_fallthru
        _
    $region128: #{network_forward.1} parent=1 // pred_fallthru
      _
    // Predicated region
    $region129: #{network_forward.1} parent=1 // pred_check
      %p564 = pneg %p560
    $region130: #{network_forward.1} parent=1 // pred_check_branch
      %566 = sbr.rel (%p564) target = $region132
    $region131: #{network_forward.1} parent=1 // pred_region
      %s567 = sshllo.u32 0, 4
      loop: start=0, step=1, limit=1
      $region133: #{network_forward.1} parent=131 // loop_pre_header
        _
      $region134: #{network_forward.1} parent=131 // loop_header
        %s569 = sphi 0, %s573
        %p570 = scmp.ge.s32.totalorder %s569, 1
        %s574 = sphi %s6, %s6
        %s575 = sphi [#allocation4], [#allocation4]
      $region135: #{network_forward.1} parent=131 // loop_header_branch
        %572 = sbr.rel (%p570) target = $region139
      $region136: #{network_forward.1} parent=131 // loop_body
        %v576 = vld [vmem:[%s574] sm:%s567]
        %577 = vst [vmem:[%s575] sm:%s567] %v576
        %v578 = vld [vmem:[%s574 + $0xc] sm:%s567]
        %579 = vst [vmem:[%s575 + $0x4] sm:%s567] %v578
        %v580 = vld [vmem:[%s574 + $0x4] sm:%s567]
        %581 = vst [vmem:[%s575 + $0x8] sm:%s567] %v580
        %v582 = vld [vmem:[%s574 + $0x10] sm:%s567]
        %583 = vst [vmem:[%s575 + $0xc] sm:%s567] %v582
        %v584 = vld [vmem:[%s574 + $0x8] sm:%s567]
        %585 = vst [vmem:[%s575 + $0x10] sm:%s567] %v584
        %v586 = vld [vmem:[%s574 + $0x14] sm:%s567]
        %587 = vst [vmem:[%s575 + $0x14] sm:%s567] %v586
        %v588 = vld [vmem:[%s574 + $0x18] sm:%s567]
        %589 = vst [vmem:[%s575 + $0x18] sm:%s567] %v588
        %v590 = vld [vmem:[%s574 + $0x24] sm:%s567]
        %591 = vst [vmem:[%s575 + $0x1c] sm:%s567] %v590
        %v592 = vld [vmem:[%s574 + $0x1c] sm:%s567]
        %593 = vst [vmem:[%s575 + $0x20] sm:%s567] %v592
        %v594 = vld [vmem:[%s574 + $0x28] sm:%s567]
        %595 = vst [vmem:[%s575 + $0x24] sm:%s567] %v594
        %v596 = vld [vmem:[%s574 + $0x20] sm:%s567]
        %597 = vst [vmem:[%s575 + $0x28] sm:%s567] %v596
        %v598 = vld [vmem:[%s574 + $0x2c] sm:%s567]
        %599 = vst [vmem:[%s575 + $0x2c] sm:%s567] %v598
        %v600 = vld [vmem:[%s574 + $0x30] sm:%s567]
        %601 = vst [vmem:[%s575 + $0x30] sm:%s567] %v600
        %v602 = vld [vmem:[%s574 + $0x3c] sm:%s567]
        %603 = vst [vmem:[%s575 + $0x34] sm:%s567] %v602
        %v604 = vld [vmem:[%s574 + $0x34] sm:%s567]
        %605 = vst [vmem:[%s575 + $0x38] sm:%s567] %v604
        %v606 = vld [vmem:[%s574 + $0x40] sm:%s567]
        %607 = vst [vmem:[%s575 + $0x3c] sm:%s567] %v606
        %v608 = vld [vmem:[%s574 + $0x38] sm:%s567]
        %609 = vst [vmem:[%s575 + $0x40] sm:%s567] %v608
        %v610 = vld [vmem:[%s574 + $0x44] sm:%s567]
        %611 = vst [vmem:[%s575 + $0x44] sm:%s567] %v610
        %v612 = vld [vmem:[%s574 + $0x48] sm:%s567]
        %613 = vst [vmem:[%s575 + $0x48] sm:%s567] %v612
        %v614 = vld [vmem:[%s574 + $0x54] sm:%s567]
        %615 = vst [vmem:[%s575 + $0x4c] sm:%s567] %v614
        %v616 = vld [vmem:[%s574 + $0x4c] sm:%s567]
        %617 = vst [vmem:[%s575 + $0x50] sm:%s567] %v616
        %v618 = vld [vmem:[%s574 + $0x58] sm:%s567]
        %619 = vst [vmem:[%s575 + $0x54] sm:%s567] %v618
        %v620 = vld [vmem:[%s574 + $0x50] sm:%s567]
        %621 = vst [vmem:[%s575 + $0x58] sm:%s567] %v620
        %v622 = vld [vmem:[%s574 + $0x5c] sm:%s567]
        %623 = vst [vmem:[%s575 + $0x5c] sm:%s567] %v622
        %v624 = vld [vmem:[%s574 + $0x60] sm:%s567]
        %625 = vst [vmem:[%s575 + $0x60] sm:%s567] %v624
        %v626 = vld [vmem:[%s574 + $0x6c] sm:%s567]
        %627 = vst [vmem:[%s575 + $0x64] sm:%s567] %v626
        %v628 = vld [vmem:[%s574 + $0x64] sm:%s567]
        %629 = vst [vmem:[%s575 + $0x68] sm:%s567] %v628
        %v630 = vld [vmem:[%s574 + $0x70] sm:%s567]
        %631 = vst [vmem:[%s575 + $0x6c] sm:%s567] %v630
        %v632 = vld [vmem:[%s574 + $0x68] sm:%s567]
        %633 = vst [vmem:[%s575 + $0x70] sm:%s567] %v632
        %v634 = vld [vmem:[%s574 + $0x74] sm:%s567]
        %635 = vst [vmem:[%s575 + $0x74] sm:%s567] %v634
        %v636 = vld [vmem:[%s574 + $0x78] sm:%s567]
        %637 = vst [vmem:[%s575 + $0x78] sm:%s567] %v636
        %v638 = vld [vmem:[%s574 + $0x84] sm:%s567]
        %639 = vst [vmem:[%s575 + $0x7c] sm:%s567] %v638
        %v640 = vld [vmem:[%s574 + $0x7c] sm:%s567]
        %641 = vst [vmem:[%s575 + $0x80] sm:%s567] %v640
        %v642 = vld [vmem:[%s574 + $0x88] sm:%s567]
        %643 = vst [vmem:[%s575 + $0x84] sm:%s567] %v642
        %v644 = vld [vmem:[%s574 + $0x80] sm:%s567]
        %645 = vst [vmem:[%s575 + $0x88] sm:%s567] %v644
        %v646 = vld [vmem:[%s574 + $0x8c] sm:%s567]
        %647 = vst [vmem:[%s575 + $0x8c] sm:%s567] %v646
        %v648 = vld [vmem:[%s574 + $0x90] sm:%s567]
        %649 = vst [vmem:[%s575 + $0x90] sm:%s567] %v648
        %v650 = vld [vmem:[%s574 + $0x9c] sm:%s567]
        %651 = vst [vmem:[%s575 + $0x94] sm:%s567] %v650
        %v652 = vld [vmem:[%s574 + $0x94] sm:%s567]
        %653 = vst [vmem:[%s575 + $0x98] sm:%s567] %v652
        %v654 = vld [vmem:[%s574 + $0xa0] sm:%s567]
        %655 = vst [vmem:[%s575 + $0x9c] sm:%s567] %v654
        %v656 = vld [vmem:[%s574 + $0x98] sm:%s567]
        %657 = vst [vmem:[%s575 + $0xa0] sm:%s567] %v656
        %v658 = vld [vmem:[%s574 + $0xa4] sm:%s567]
        %659 = vst [vmem:[%s575 + $0xa4] sm:%s567] %v658
        %v660 = vld [vmem:[%s574 + $0xa8] sm:%s567]
        %661 = vst [vmem:[%s575 + $0xa8] sm:%s567] %v660
        %v662 = vld [vmem:[%s574 + $0xb4] sm:%s567]
        %663 = vst [vmem:[%s575 + $0xac] sm:%s567] %v662
        %v664 = vld [vmem:[%s574 + $0xac] sm:%s567]
        %665 = vst [vmem:[%s575 + $0xb0] sm:%s567] %v664
        %v666 = vld [vmem:[%s574 + $0xb8] sm:%s567]
        %667 = vst [vmem:[%s575 + $0xb4] sm:%s567] %v666
        %v668 = vld [vmem:[%s574 + $0xb0] sm:%s567]
        %669 = vst [vmem:[%s575 + $0xb8] sm:%s567] %v668
        %v670 = vld [vmem:[%s574 + $0xbc] sm:%s567]
        %671 = vst [vmem:[%s575 + $0xbc] sm:%s567] %v670
        %v672 = vld [vmem:[%s574 + $0xc0] sm:%s567]
        %673 = vst [vmem:[%s575 + $0xc0] sm:%s567] %v672
        %v674 = vld [vmem:[%s574 + $0xcc] sm:%s567]
        %675 = vst [vmem:[%s575 + $0xc4] sm:%s567] %v674
        %v676 = vld [vmem:[%s574 + $0xc4] sm:%s567]
        %677 = vst [vmem:[%s575 + $0xc8] sm:%s567] %v676
        %v678 = vld [vmem:[%s574 + $0xd0] sm:%s567]
        %679 = vst [vmem:[%s575 + $0xcc] sm:%s567] %v678
        %v680 = vld [vmem:[%s574 + $0xc8] sm:%s567]
        %681 = vst [vmem:[%s575 + $0xd0] sm:%s567] %v680
        %v682 = vld [vmem:[%s574 + $0xd4] sm:%s567]
        %683 = vst [vmem:[%s575 + $0xd4] sm:%s567] %v682
        %v684 = vld [vmem:[%s574 + $0xd8] sm:%s567]
        %685 = vst [vmem:[%s575 + $0xd8] sm:%s567] %v684
        %v686 = vld [vmem:[%s574 + $0xe4] sm:%s567]
        %687 = vst [vmem:[%s575 + $0xdc] sm:%s567] %v686
        %v688 = vld [vmem:[%s574 + $0xdc] sm:%s567]
        %689 = vst [vmem:[%s575 + $0xe0] sm:%s567] %v688
        %v690 = vld [vmem:[%s574 + $0xe8] sm:%s567]
        %691 = vst [vmem:[%s575 + $0xe4] sm:%s567] %v690
        %v692 = vld [vmem:[%s574 + $0xe0] sm:%s567]
        %693 = vst [vmem:[%s575 + $0xe8] sm:%s567] %v692
        %v694 = vld [vmem:[%s574 + $0xec] sm:%s567]
        %695 = vst [vmem:[%s575 + $0xec] sm:%s567] %v694
        %v696 = vld [vmem:[%s574 + $0xf0] sm:%s567]
        %697 = vst [vmem:[%s575 + $0xf0] sm:%s567] %v696
        %v698 = vld [vmem:[%s574 + $0xfc] sm:%s567]
        %699 = vst [vmem:[%s575 + $0xf4] sm:%s567] %v698
        %v700 = vld [vmem:[%s574 + $0xf4] sm:%s567]
        %701 = vst [vmem:[%s575 + $0xf8] sm:%s567] %v700
        %v702 = vld [vmem:[%s574 + $0x100] sm:%s567]
        %703 = vst [vmem:[%s575 + $0xfc] sm:%s567] %v702
        %v704 = vld [vmem:[%s574 + $0xf8] sm:%s567]
        %705 = vst [vmem:[%s575 + $0x100] sm:%s567] %v704
        %v706 = vld [vmem:[%s574 + $0x104] sm:%s567]
        %707 = vst [vmem:[%s575 + $0x104] sm:%s567] %v706
        %v708 = vld [vmem:[%s574 + $0x108] sm:%s567]
        %709 = vst [vmem:[%s575 + $0x108] sm:%s567] %v708
        %v710 = vld [vmem:[%s574 + $0x114] sm:%s567]
        %711 = vst [vmem:[%s575 + $0x10c] sm:%s567] %v710
        %v712 = vld [vmem:[%s574 + $0x10c] sm:%s567]
        %713 = vst [vmem:[%s575 + $0x110] sm:%s567] %v712
        %v714 = vld [vmem:[%s574 + $0x118] sm:%s567]
        %715 = vst [vmem:[%s575 + $0x114] sm:%s567] %v714
        %v716 = vld [vmem:[%s574 + $0x110] sm:%s567]
        %717 = vst [vmem:[%s575 + $0x118] sm:%s567] %v716
        %v718 = vld [vmem:[%s574 + $0x11c] sm:%s567]
        %719 = vst [vmem:[%s575 + $0x11c] sm:%s567] %v718
        %v720 = vld [vmem:[%s574 + $0x120] sm:%s567]
        %721 = vst [vmem:[%s575 + $0x120] sm:%s567] %v720
        %v722 = vld [vmem:[%s574 + $0x12c] sm:%s567]
        %723 = vst [vmem:[%s575 + $0x124] sm:%s567] %v722
        %v724 = vld [vmem:[%s574 + $0x124] sm:%s567]
        %725 = vst [vmem:[%s575 + $0x128] sm:%s567] %v724
        %v726 = vld [vmem:[%s574 + $0x130] sm:%s567]
        %727 = vst [vmem:[%s575 + $0x12c] sm:%s567] %v726
        %v728 = vld [vmem:[%s574 + $0x128] sm:%s567]
        %729 = vst [vmem:[%s575 + $0x130] sm:%s567] %v728
        %v730 = vld [vmem:[%s574 + $0x134] sm:%s567]
        %731 = vst [vmem:[%s575 + $0x134] sm:%s567] %v730
        %v732 = vld [vmem:[%s574 + $0x138] sm:%s567]
        %733 = vst [vmem:[%s575 + $0x138] sm:%s567] %v732
        %v734 = vld [vmem:[%s574 + $0x144] sm:%s567]
        %735 = vst [vmem:[%s575 + $0x13c] sm:%s567] %v734
        %v736 = vld [vmem:[%s574 + $0x13c] sm:%s567]
        %737 = vst [vmem:[%s575 + $0x140] sm:%s567] %v736
        %v738 = vld [vmem:[%s574 + $0x148] sm:%s567]
        %739 = vst [vmem:[%s575 + $0x144] sm:%s567] %v738
        %v740 = vld [vmem:[%s574 + $0x140] sm:%s567]
        %741 = vst [vmem:[%s575 + $0x148] sm:%s567] %v740
        %v742 = vld [vmem:[%s574 + $0x14c] sm:%s567]
        %743 = vst [vmem:[%s575 + $0x14c] sm:%s567] %v742
        %v744 = vld [vmem:[%s574 + $0x150] sm:%s567]
        %745 = vst [vmem:[%s575 + $0x150] sm:%s567] %v744
        %v746 = vld [vmem:[%s574 + $0x15c] sm:%s567]
        %747 = vst [vmem:[%s575 + $0x154] sm:%s567] %v746
        %v748 = vld [vmem:[%s574 + $0x154] sm:%s567]
        %749 = vst [vmem:[%s575 + $0x158] sm:%s567] %v748
        %v750 = vld [vmem:[%s574 + $0x160] sm:%s567]
        %751 = vst [vmem:[%s575 + $0x15c] sm:%s567] %v750
        %v752 = vld [vmem:[%s574 + $0x158] sm:%s567]
        %753 = vst [vmem:[%s575 + $0x160] sm:%s567] %v752
        %v754 = vld [vmem:[%s574 + $0x164] sm:%s567]
        %755 = vst [vmem:[%s575 + $0x164] sm:%s567] %v754
        %v756 = vld [vmem:[%s574 + $0x168] sm:%s567]
        %757 = vst [vmem:[%s575 + $0x168] sm:%s567] %v756
        %v758 = vld [vmem:[%s574 + $0x174] sm:%s567]
        %759 = vst [vmem:[%s575 + $0x16c] sm:%s567] %v758
        %v760 = vld [vmem:[%s574 + $0x16c] sm:%s567]
        %761 = vst [vmem:[%s575 + $0x170] sm:%s567] %v760
        %v762 = vld [vmem:[%s574 + $0x178] sm:%s567]
        %763 = vst [vmem:[%s575 + $0x174] sm:%s567] %v762
        %v764 = vld [vmem:[%s574 + $0x170] sm:%s567]
        %765 = vst [vmem:[%s575 + $0x178] sm:%s567] %v764
        %v766 = vld [vmem:[%s574 + $0x17c] sm:%s567]
        %767 = vst [vmem:[%s575 + $0x17c] sm:%s567] %v766
        %v768 = vld [vmem:[%s574 + $0x180] sm:%s567]
        %769 = vst [vmem:[%s575 + $0x180] sm:%s567] %v768
        %v770 = vld [vmem:[%s574 + $0x18c] sm:%s567]
        %771 = vst [vmem:[%s575 + $0x184] sm:%s567] %v770
        %v772 = vld [vmem:[%s574 + $0x184] sm:%s567]
        %773 = vst [vmem:[%s575 + $0x188] sm:%s567] %v772
        %v774 = vld [vmem:[%s574 + $0x190] sm:%s567]
        %775 = vst [vmem:[%s575 + $0x18c] sm:%s567] %v774
        %v776 = vld [vmem:[%s574 + $0x188] sm:%s567]
        %777 = vst [vmem:[%s575 + $0x190] sm:%s567] %v776
        %v778 = vld [vmem:[%s574 + $0x194] sm:%s567]
        %779 = vst [vmem:[%s575 + $0x194] sm:%s567] %v778
        %v780 = vld [vmem:[%s574 + $0x198] sm:%s567]
        %781 = vst [vmem:[%s575 + $0x198] sm:%s567] %v780
        %v782 = vld [vmem:[%s574 + $0x1a4] sm:%s567]
        %783 = vst [vmem:[%s575 + $0x19c] sm:%s567] %v782
        %v784 = vld [vmem:[%s574 + $0x19c] sm:%s567]
        %785 = vst [vmem:[%s575 + $0x1a0] sm:%s567] %v784
        %v786 = vld [vmem:[%s574 + $0x1a8] sm:%s567]
        %787 = vst [vmem:[%s575 + $0x1a4] sm:%s567] %v786
        %v788 = vld [vmem:[%s574 + $0x1a0] sm:%s567]
        %789 = vst [vmem:[%s575 + $0x1a8] sm:%s567] %v788
        %v790 = vld [vmem:[%s574 + $0x1ac] sm:%s567]
        %791 = vst [vmem:[%s575 + $0x1ac] sm:%s567] %v790
        %v792 = vld [vmem:[%s574 + $0x1b0] sm:%s567]
        %793 = vst [vmem:[%s575 + $0x1b0] sm:%s567] %v792
        %v794 = vld [vmem:[%s574 + $0x1bc] sm:%s567]
        %795 = vst [vmem:[%s575 + $0x1b4] sm:%s567] %v794
        %v796 = vld [vmem:[%s574 + $0x1b4] sm:%s567]
        %797 = vst [vmem:[%s575 + $0x1b8] sm:%s567] %v796
        %v798 = vld [vmem:[%s574 + $0x1c0] sm:%s567]
        %799 = vst [vmem:[%s575 + $0x1bc] sm:%s567] %v798
        %v800 = vld [vmem:[%s574 + $0x1b8] sm:%s567]
        %801 = vst [vmem:[%s575 + $0x1c0] sm:%s567] %v800
        %v802 = vld [vmem:[%s574 + $0x1c4] sm:%s567]
        %803 = vst [vmem:[%s575 + $0x1c4] sm:%s567] %v802
        %v804 = vld [vmem:[%s574 + $0x1c8] sm:%s567]
        %805 = vst [vmem:[%s575 + $0x1c8] sm:%s567] %v804
        %v806 = vld [vmem:[%s574 + $0x1d4] sm:%s567]
        %807 = vst [vmem:[%s575 + $0x1cc] sm:%s567] %v806
        %v808 = vld [vmem:[%s574 + $0x1cc] sm:%s567]
        %809 = vst [vmem:[%s575 + $0x1d0] sm:%s567] %v808
        %v810 = vld [vmem:[%s574 + $0x1d8] sm:%s567]
        %811 = vst [vmem:[%s575 + $0x1d4] sm:%s567] %v810
        %v812 = vld [vmem:[%s574 + $0x1d0] sm:%s567]
        %813 = vst [vmem:[%s575 + $0x1d8] sm:%s567] %v812
        %v814 = vld [vmem:[%s574 + $0x1dc] sm:%s567]
        %815 = vst [vmem:[%s575 + $0x1dc] sm:%s567] %v814
        %v816 = vld [vmem:[%s574 + $0x1e0] sm:%s567]
        %817 = vst [vmem:[%s575 + $0x1e0] sm:%s567] %v816
        %v818 = vld [vmem:[%s574 + $0x1ec] sm:%s567]
        %819 = vst [vmem:[%s575 + $0x1e4] sm:%s567] %v818
        %v820 = vld [vmem:[%s574 + $0x1e4] sm:%s567]
        %821 = vst [vmem:[%s575 + $0x1e8] sm:%s567] %v820
        %v822 = vld [vmem:[%s574 + $0x1f0] sm:%s567]
        %823 = vst [vmem:[%s575 + $0x1ec] sm:%s567] %v822
        %v824 = vld [vmem:[%s574 + $0x1e8] sm:%s567]
        %825 = vst [vmem:[%s575 + $0x1f0] sm:%s567] %v824
        %v826 = vld [vmem:[%s574 + $0x1f4] sm:%s567]
        %827 = vst [vmem:[%s575 + $0x1f4] sm:%s567] %v826
        %v828 = vld [vmem:[%s574 + $0x1f8] sm:%s567]
        %829 = vst [vmem:[%s575 + $0x1f8] sm:%s567] %v828
        %v830 = vld [vmem:[%s574 + $0x204] sm:%s567]
        %831 = vst [vmem:[%s575 + $0x1fc] sm:%s567] %v830
        %v832 = vld [vmem:[%s574 + $0x1fc] sm:%s567]
        %833 = vst [vmem:[%s575 + $0x200] sm:%s567] %v832
        %v834 = vld [vmem:[%s574 + $0x208] sm:%s567]
        %835 = vst [vmem:[%s575 + $0x204] sm:%s567] %v834
        %v836 = vld [vmem:[%s574 + $0x200] sm:%s567]
        %837 = vst [vmem:[%s575 + $0x208] sm:%s567] %v836
        %v838 = vld [vmem:[%s574 + $0x20c] sm:%s567]
        %839 = vst [vmem:[%s575 + $0x20c] sm:%s567] %v838
        %v840 = vld [vmem:[%s574 + $0x210] sm:%s567]
        %841 = vst [vmem:[%s575 + $0x210] sm:%s567] %v840
        %v842 = vld [vmem:[%s574 + $0x21c] sm:%s567]
        %843 = vst [vmem:[%s575 + $0x214] sm:%s567] %v842
        %v844 = vld [vmem:[%s574 + $0x214] sm:%s567]
        %845 = vst [vmem:[%s575 + $0x218] sm:%s567] %v844
        %v846 = vld [vmem:[%s574 + $0x220] sm:%s567]
        %847 = vst [vmem:[%s575 + $0x21c] sm:%s567] %v846
        %v848 = vld [vmem:[%s574 + $0x218] sm:%s567]
        %849 = vst [vmem:[%s575 + $0x220] sm:%s567] %v848
        %v850 = vld [vmem:[%s574 + $0x224] sm:%s567]
        %851 = vst [vmem:[%s575 + $0x224] sm:%s567] %v850
        %v852 = vld [vmem:[%s574 + $0x228] sm:%s567]
        %853 = vst [vmem:[%s575 + $0x228] sm:%s567] %v852
        %v854 = vld [vmem:[%s574 + $0x234] sm:%s567]
        %855 = vst [vmem:[%s575 + $0x22c] sm:%s567] %v854
        %v856 = vld [vmem:[%s574 + $0x22c] sm:%s567]
        %857 = vst [vmem:[%s575 + $0x230] sm:%s567] %v856
        %v858 = vld [vmem:[%s574 + $0x238] sm:%s567]
        %859 = vst [vmem:[%s575 + $0x234] sm:%s567] %v858
        %v860 = vld [vmem:[%s574 + $0x230] sm:%s567]
        %861 = vst [vmem:[%s575 + $0x238] sm:%s567] %v860
        %v862 = vld [vmem:[%s574 + $0x23c] sm:%s567]
        %863 = vst [vmem:[%s575 + $0x23c] sm:%s567] %v862
        %v864 = vld [vmem:[%s574 + $0x240] sm:%s567]
        %865 = vst [vmem:[%s575 + $0x240] sm:%s567] %v864
        %v866 = vld [vmem:[%s574 + $0x24c] sm:%s567]
        %867 = vst [vmem:[%s575 + $0x244] sm:%s567] %v866
        %v868 = vld [vmem:[%s574 + $0x244] sm:%s567]
        %869 = vst [vmem:[%s575 + $0x248] sm:%s567] %v868
        %v870 = vld [vmem:[%s574 + $0x250] sm:%s567]
        %871 = vst [vmem:[%s575 + $0x24c] sm:%s567] %v870
        %v872 = vld [vmem:[%s574 + $0x248] sm:%s567]
        %873 = vst [vmem:[%s575 + $0x250] sm:%s567] %v872
        %v874 = vld [vmem:[%s574 + $0x254] sm:%s567]
        %875 = vst [vmem:[%s575 + $0x254] sm:%s567] %v874
        %v876 = vld [vmem:[%s574 + $0x258] sm:%s567]
        %877 = vst [vmem:[%s575 + $0x258] sm:%s567] %v876
        %v878 = vld [vmem:[%s574 + $0x264] sm:%s567]
        %879 = vst [vmem:[%s575 + $0x25c] sm:%s567] %v878
        %v880 = vld [vmem:[%s574 + $0x25c] sm:%s567]
        %881 = vst [vmem:[%s575 + $0x260] sm:%s567] %v880
        %v882 = vld [vmem:[%s574 + $0x268] sm:%s567]
        %883 = vst [vmem:[%s575 + $0x264] sm:%s567] %v882
        %v884 = vld [vmem:[%s574 + $0x260] sm:%s567]
        %885 = vst [vmem:[%s575 + $0x268] sm:%s567] %v884
        %v886 = vld [vmem:[%s574 + $0x26c] sm:%s567]
        %887 = vst [vmem:[%s575 + $0x26c] sm:%s567] %v886
        %v888 = vld [vmem:[%s574 + $0x270] sm:%s567]
        %889 = vst [vmem:[%s575 + $0x270] sm:%s567] %v888
        %v890 = vld [vmem:[%s574 + $0x27c] sm:%s567]
        %891 = vst [vmem:[%s575 + $0x274] sm:%s567] %v890
        %v892 = vld [vmem:[%s574 + $0x274] sm:%s567]
        %893 = vst [vmem:[%s575 + $0x278] sm:%s567] %v892
        %v894 = vld [vmem:[%s574 + $0x280] sm:%s567]
        %895 = vst [vmem:[%s575 + $0x27c] sm:%s567] %v894
        %v896 = vld [vmem:[%s574 + $0x278] sm:%s567]
        %897 = vst [vmem:[%s575 + $0x280] sm:%s567] %v896
        %v898 = vld [vmem:[%s574 + $0x284] sm:%s567]
        %899 = vst [vmem:[%s575 + $0x284] sm:%s567] %v898
        %v900 = vld [vmem:[%s574 + $0x288] sm:%s567]
        %901 = vst [vmem:[%s575 + $0x288] sm:%s567] %v900
        %v902 = vld [vmem:[%s574 + $0x294] sm:%s567]
        %903 = vst [vmem:[%s575 + $0x28c] sm:%s567] %v902
        %v904 = vld [vmem:[%s574 + $0x28c] sm:%s567]
        %905 = vst [vmem:[%s575 + $0x290] sm:%s567] %v904
        %v906 = vld [vmem:[%s574 + $0x298] sm:%s567]
        %907 = vst [vmem:[%s575 + $0x294] sm:%s567] %v906
        %v908 = vld [vmem:[%s574 + $0x290] sm:%s567]
        %909 = vst [vmem:[%s575 + $0x298] sm:%s567] %v908
        %v910 = vld [vmem:[%s574 + $0x29c] sm:%s567]
        %911 = vst [vmem:[%s575 + $0x29c] sm:%s567] %v910
        %v912 = vld [vmem:[%s574 + $0x2a0] sm:%s567]
        %913 = vst [vmem:[%s575 + $0x2a0] sm:%s567] %v912
        %v914 = vld [vmem:[%s574 + $0x2ac] sm:%s567]
        %915 = vst [vmem:[%s575 + $0x2a4] sm:%s567] %v914
        %v916 = vld [vmem:[%s574 + $0x2a4] sm:%s567]
        %917 = vst [vmem:[%s575 + $0x2a8] sm:%s567] %v916
        %v918 = vld [vmem:[%s574 + $0x2b0] sm:%s567]
        %919 = vst [vmem:[%s575 + $0x2ac] sm:%s567] %v918
        %v920 = vld [vmem:[%s574 + $0x2a8] sm:%s567]
        %921 = vst [vmem:[%s575 + $0x2b0] sm:%s567] %v920
        %v922 = vld [vmem:[%s574 + $0x2b4] sm:%s567]
        %923 = vst [vmem:[%s575 + $0x2b4] sm:%s567] %v922
        %v924 = vld [vmem:[%s574 + $0x2b8] sm:%s567]
        %925 = vst [vmem:[%s575 + $0x2b8] sm:%s567] %v924
        %v926 = vld [vmem:[%s574 + $0x2c4] sm:%s567]
        %927 = vst [vmem:[%s575 + $0x2bc] sm:%s567] %v926
        %v928 = vld [vmem:[%s574 + $0x2bc] sm:%s567]
        %929 = vst [vmem:[%s575 + $0x2c0] sm:%s567] %v928
        %v930 = vld [vmem:[%s574 + $0x2c8] sm:%s567]
        %931 = vst [vmem:[%s575 + $0x2c4] sm:%s567] %v930
        %v932 = vld [vmem:[%s574 + $0x2c0] sm:%s567]
        %933 = vst [vmem:[%s575 + $0x2c8] sm:%s567] %v932
        %v934 = vld [vmem:[%s574 + $0x2cc] sm:%s567]
        %935 = vst [vmem:[%s575 + $0x2cc] sm:%s567] %v934
        %v936 = vld [vmem:[%s574 + $0x2d0] sm:%s567]
        %937 = vst [vmem:[%s575 + $0x2d0] sm:%s567] %v936
        %v938 = vld [vmem:[%s574 + $0x2dc] sm:%s567]
        %939 = vst [vmem:[%s575 + $0x2d4] sm:%s567] %v938
        %v940 = vld [vmem:[%s574 + $0x2d4] sm:%s567]
        %941 = vst [vmem:[%s575 + $0x2d8] sm:%s567] %v940
        %v942 = vld [vmem:[%s574 + $0x2e0] sm:%s567]
        %943 = vst [vmem:[%s575 + $0x2dc] sm:%s567] %v942
        %v944 = vld [vmem:[%s574 + $0x2d8] sm:%s567]
        %945 = vst [vmem:[%s575 + $0x2e0] sm:%s567] %v944
        %v946 = vld [vmem:[%s574 + $0x2e4] sm:%s567]
        %947 = vst [vmem:[%s575 + $0x2e4] sm:%s567] %v946
        %v948 = vld [vmem:[%s574 + $0x2e8] sm:%s567]
        %949 = vst [vmem:[%s575 + $0x2e8] sm:%s567] %v948
        %v950 = vld [vmem:[%s574 + $0x2f4] sm:%s567]
        %951 = vst [vmem:[%s575 + $0x2ec] sm:%s567] %v950
        %v952 = vld [vmem:[%s574 + $0x2ec] sm:%s567]
        %953 = vst [vmem:[%s575 + $0x2f0] sm:%s567] %v952
        %v954 = vld [vmem:[%s574 + $0x2f8] sm:%s567]
        %955 = vst [vmem:[%s575 + $0x2f4] sm:%s567] %v954
        %v956 = vld [vmem:[%s574 + $0x2f0] sm:%s567]
        %957 = vst [vmem:[%s575 + $0x2f8] sm:%s567] %v956
        %v958 = vld [vmem:[%s574 + $0x2fc] sm:%s567]
        %959 = vst [vmem:[%s575 + $0x2fc] sm:%s567] %v958
      $region137: #{network_forward.1} parent=131 // loop_footer
        %s573 = sadd.s32 1, %s569
      $region138: #{network_forward.1} parent=131 // loop_footer_branch
        %568 = sbr.rel target = $region134
      $region139: #{network_forward.1} parent=131 // loop_exit
        _
    $region132: #{network_forward.1} parent=1 // pred_fallthru
      _
    // Predicated region
    $region158: #{network_forward.1} parent=1 // pred_check
      _
    $region159: #{network_forward.1} parent=1 // pred_check_branch
      %1373 = sbr.rel (0) target = $region161
    $region160: #{network_forward.1} parent=1 // pred_region
      %1374 = vsyncadd %s558, 12288
    $region161: #{network_forward.1} parent=1 // pred_fallthru
      _
    %s1375 = scalar_lea.sflag [#allocation6], 3
    %p1377 = scmp.lt.u32.totalorder 456, 8
    %p1378 = pneg %p1377
    // Predicated region
    $region162: #{network_forward.1} parent=1 // pred_check
      _
    $region163: #{network_forward.1} parent=1 // pred_check_branch
      %1380 = sbr.rel (%p1377) target = $region165
    $region164: #{network_forward.1} parent=1 // pred_region
      %s1395 = sand.u32 456, 7
      %p1396 = scmp.eq.s32.totalorder %s1395, 0
      // Predicated region
      $region177: #{network_forward.1} parent=164 // pred_check
        %p1397 = pneg %p1396
      $region178: #{network_forward.1} parent=164 // pred_check_branch
        %1399 = sbr.rel (%p1397) target = $region180
      $region179: #{network_forward.1} parent=164 // pred_region
        loop: start=0, step=1, limit=1
        $region181: #{network_forward.1} parent=179 // loop_pre_header
          _
        $region182: #{network_forward.1} parent=179 // loop_header
          %s1401 = sphi 0, %s1405
          %p1402 = scmp.ge.s32.totalorder %s1401, 1
          %s1406 = sphi %s7, %s7
          %s1407 = sphi [#allocation5], [#allocation5]
        $region183: #{network_forward.1} parent=179 // loop_header_branch
          %1404 = sbr.rel (%p1402) target = $region187
        $region184: #{network_forward.1} parent=179 // loop_body
          %v1408 = vld [vmem:[%s1406] sm:$0xff]
          %1409 = vst [vmem:[%s1407] sm:$0xff] %v1408
          %v1410 = vld [vmem:[%s1406 + $0x8] sm:$0xff]
          %1411 = vst [vmem:[%s1407 + $0x8] sm:$0xff] %v1410
          %v1412 = vld [vmem:[%s1406 + $0x10] sm:$0xff]
          %1413 = vst [vmem:[%s1407 + $0x10] sm:$0xff] %v1412
          %v1414 = vld [vmem:[%s1406 + $0x18] sm:$0xff]
          %1415 = vst [vmem:[%s1407 + $0x18] sm:$0xff] %v1414
          %v1416 = vld [vmem:[%s1406 + $0x20] sm:$0xff]
          %1417 = vst [vmem:[%s1407 + $0x20] sm:$0xff] %v1416
          %v1418 = vld [vmem:[%s1406 + $0x28] sm:$0xff]
          %1419 = vst [vmem:[%s1407 + $0x28] sm:$0xff] %v1418
          %v1420 = vld [vmem:[%s1406 + $0x30] sm:$0xff]
          %1421 = vst [vmem:[%s1407 + $0x30] sm:$0xff] %v1420
          %v1422 = vld [vmem:[%s1406 + $0x38] sm:$0xff]
          %1423 = vst [vmem:[%s1407 + $0x38] sm:$0xff] %v1422
          %v1424 = vld [vmem:[%s1406 + $0x40] sm:$0xff]
          %1425 = vst [vmem:[%s1407 + $0x40] sm:$0xff] %v1424
          %v1426 = vld [vmem:[%s1406 + $0x48] sm:$0xff]
          %1427 = vst [vmem:[%s1407 + $0x48] sm:$0xff] %v1426
          %v1428 = vld [vmem:[%s1406 + $0x50] sm:$0xff]
          %1429 = vst [vmem:[%s1407 + $0x50] sm:$0xff] %v1428
          %v1430 = vld [vmem:[%s1406 + $0x58] sm:$0xff]
          %1431 = vst [vmem:[%s1407 + $0x58] sm:$0xff] %v1430
          %v1432 = vld [vmem:[%s1406 + $0x60] sm:$0xff]
          %1433 = vst [vmem:[%s1407 + $0x60] sm:$0xff] %v1432
          %v1434 = vld [vmem:[%s1406 + $0x68] sm:$0xff]
          %1435 = vst [vmem:[%s1407 + $0x68] sm:$0xff] %v1434
          %v1436 = vld [vmem:[%s1406 + $0x70] sm:$0xff]
          %1437 = vst [vmem:[%s1407 + $0x70] sm:$0xff] %v1436
          %v1438 = vld [vmem:[%s1406 + $0x78] sm:$0xff]
          %1439 = vst [vmem:[%s1407 + $0x78] sm:$0xff] %v1438
          %v1440 = vld [vmem:[%s1406 + $0x80] sm:$0xff]
          %1441 = vst [vmem:[%s1407 + $0x80] sm:$0xff] %v1440
          %v1442 = vld [vmem:[%s1406 + $0x88] sm:$0xff]
          %1443 = vst [vmem:[%s1407 + $0x88] sm:$0xff] %v1442
          %v1444 = vld [vmem:[%s1406 + $0x90] sm:$0xff]
          %1445 = vst [vmem:[%s1407 + $0x90] sm:$0xff] %v1444
          %v1446 = vld [vmem:[%s1406 + $0x98] sm:$0xff]
          %1447 = vst [vmem:[%s1407 + $0x98] sm:$0xff] %v1446
          %v1448 = vld [vmem:[%s1406 + $0xa0] sm:$0xff]
          %1449 = vst [vmem:[%s1407 + $0xa0] sm:$0xff] %v1448
          %v1450 = vld [vmem:[%s1406 + $0xa8] sm:$0xff]
          %1451 = vst [vmem:[%s1407 + $0xa8] sm:$0xff] %v1450
          %v1452 = vld [vmem:[%s1406 + $0xb0] sm:$0xff]
          %1453 = vst [vmem:[%s1407 + $0xb0] sm:$0xff] %v1452
          %v1454 = vld [vmem:[%s1406 + $0xb8] sm:$0xff]
          %1455 = vst [vmem:[%s1407 + $0xb8] sm:$0xff] %v1454
          %v1456 = vld [vmem:[%s1406 + $0xc0] sm:$0xff]
          %1457 = vst [vmem:[%s1407 + $0xc0] sm:$0xff] %v1456
          %v1458 = vld [vmem:[%s1406 + $0xc8] sm:$0xff]
          %1459 = vst [vmem:[%s1407 + $0xc8] sm:$0xff] %v1458
          %v1460 = vld [vmem:[%s1406 + $0xd0] sm:$0xff]
          %1461 = vst [vmem:[%s1407 + $0xd0] sm:$0xff] %v1460
          %v1462 = vld [vmem:[%s1406 + $0xd8] sm:$0xff]
          %1463 = vst [vmem:[%s1407 + $0xd8] sm:$0xff] %v1462
          %v1464 = vld [vmem:[%s1406 + $0xe0] sm:$0xff]
          %1465 = vst [vmem:[%s1407 + $0xe0] sm:$0xff] %v1464
          %v1466 = vld [vmem:[%s1406 + $0xe8] sm:$0xff]
          %1467 = vst [vmem:[%s1407 + $0xe8] sm:$0xff] %v1466
          %v1468 = vld [vmem:[%s1406 + $0xf0] sm:$0xff]
          %1469 = vst [vmem:[%s1407 + $0xf0] sm:$0xff] %v1468
          %v1470 = vld [vmem:[%s1406 + $0xf8] sm:$0xff]
          %1471 = vst [vmem:[%s1407 + $0xf8] sm:$0xff] %v1470
          %v1472 = vld [vmem:[%s1406 + $0x100] sm:$0xff]
          %1473 = vst [vmem:[%s1407 + $0x100] sm:$0xff] %v1472
          %v1474 = vld [vmem:[%s1406 + $0x108] sm:$0xff]
          %1475 = vst [vmem:[%s1407 + $0x108] sm:$0xff] %v1474
          %v1476 = vld [vmem:[%s1406 + $0x110] sm:$0xff]
          %1477 = vst [vmem:[%s1407 + $0x110] sm:$0xff] %v1476
          %v1478 = vld [vmem:[%s1406 + $0x118] sm:$0xff]
          %1479 = vst [vmem:[%s1407 + $0x118] sm:$0xff] %v1478
          %v1480 = vld [vmem:[%s1406 + $0x120] sm:$0xff]
          %1481 = vst [vmem:[%s1407 + $0x120] sm:$0xff] %v1480
          %v1482 = vld [vmem:[%s1406 + $0x128] sm:$0xff]
          %1483 = vst [vmem:[%s1407 + $0x128] sm:$0xff] %v1482
          %v1484 = vld [vmem:[%s1406 + $0x130] sm:$0xff]
          %1485 = vst [vmem:[%s1407 + $0x130] sm:$0xff] %v1484
          %v1486 = vld [vmem:[%s1406 + $0x138] sm:$0xff]
          %1487 = vst [vmem:[%s1407 + $0x138] sm:$0xff] %v1486
          %v1488 = vld [vmem:[%s1406 + $0x140] sm:$0xff]
          %1489 = vst [vmem:[%s1407 + $0x140] sm:$0xff] %v1488
          %v1490 = vld [vmem:[%s1406 + $0x148] sm:$0xff]
          %1491 = vst [vmem:[%s1407 + $0x148] sm:$0xff] %v1490
          %v1492 = vld [vmem:[%s1406 + $0x150] sm:$0xff]
          %1493 = vst [vmem:[%s1407 + $0x150] sm:$0xff] %v1492
          %v1494 = vld [vmem:[%s1406 + $0x158] sm:$0xff]
          %1495 = vst [vmem:[%s1407 + $0x158] sm:$0xff] %v1494
          %v1496 = vld [vmem:[%s1406 + $0x160] sm:$0xff]
          %1497 = vst [vmem:[%s1407 + $0x160] sm:$0xff] %v1496
          %v1498 = vld [vmem:[%s1406 + $0x168] sm:$0xff]
          %1499 = vst [vmem:[%s1407 + $0x168] sm:$0xff] %v1498
          %v1500 = vld [vmem:[%s1406 + $0x170] sm:$0xff]
          %1501 = vst [vmem:[%s1407 + $0x170] sm:$0xff] %v1500
          %v1502 = vld [vmem:[%s1406 + $0x178] sm:$0xff]
          %1503 = vst [vmem:[%s1407 + $0x178] sm:$0xff] %v1502
          %v1504 = vld [vmem:[%s1406 + $0x180] sm:$0xff]
          %1505 = vst [vmem:[%s1407 + $0x180] sm:$0xff] %v1504
          %v1506 = vld [vmem:[%s1406 + $0x188] sm:$0xff]
          %1507 = vst [vmem:[%s1407 + $0x188] sm:$0xff] %v1506
          %v1508 = vld [vmem:[%s1406 + $0x190] sm:$0xff]
          %1509 = vst [vmem:[%s1407 + $0x190] sm:$0xff] %v1508
          %v1510 = vld [vmem:[%s1406 + $0x198] sm:$0xff]
          %1511 = vst [vmem:[%s1407 + $0x198] sm:$0xff] %v1510
          %v1512 = vld [vmem:[%s1406 + $0x1a0] sm:$0xff]
          %1513 = vst [vmem:[%s1407 + $0x1a0] sm:$0xff] %v1512
          %v1514 = vld [vmem:[%s1406 + $0x1a8] sm:$0xff]
          %1515 = vst [vmem:[%s1407 + $0x1a8] sm:$0xff] %v1514
          %v1516 = vld [vmem:[%s1406 + $0x1b0] sm:$0xff]
          %1517 = vst [vmem:[%s1407 + $0x1b0] sm:$0xff] %v1516
          %v1518 = vld [vmem:[%s1406 + $0x1b8] sm:$0xff]
          %1519 = vst [vmem:[%s1407 + $0x1b8] sm:$0xff] %v1518
          %v1520 = vld [vmem:[%s1406 + $0x1c0] sm:$0xff]
          %1521 = vst [vmem:[%s1407 + $0x1c0] sm:$0xff] %v1520
        $region185: #{network_forward.1} parent=179 // loop_footer
          %s1405 = sadd.s32 1, %s1401
        $region186: #{network_forward.1} parent=179 // loop_footer_branch
          %1400 = sbr.rel target = $region182
        $region187: #{network_forward.1} parent=179 // loop_exit
          _
      $region180: #{network_forward.1} parent=164 // pred_fallthru
        _
      %p1522 = pneg %p1396
      // Predicated region
      $region188: #{network_forward.1} parent=164 // pred_check
        _
      $region189: #{network_forward.1} parent=164 // pred_check_branch
        %1524 = sbr.rel (%p1396) target = $region191
      $region190: #{network_forward.1} parent=164 // pred_region
        %s1525 = sand.u32 456, 7
      $region191: #{network_forward.1} parent=164 // pred_fallthru
        _
    $region165: #{network_forward.1} parent=1 // pred_fallthru
      _
    // Predicated region
    $region166: #{network_forward.1} parent=1 // pred_check
      %p1381 = pneg %p1377
    $region167: #{network_forward.1} parent=1 // pred_check_branch
      %1383 = sbr.rel (%p1381) target = $region169
    $region168: #{network_forward.1} parent=1 // pred_region
      %s1384 = sshllo.u32 0, 456
      loop: start=0, step=1, limit=1
      $region170: #{network_forward.1} parent=168 // loop_pre_header
        _
      $region171: #{network_forward.1} parent=168 // loop_header
        %s1386 = sphi 0, %s1390
        %p1387 = scmp.ge.s32.totalorder %s1386, 1
        %s1391 = sphi %s7, %s7
        %s1392 = sphi [#allocation5], [#allocation5]
      $region172: #{network_forward.1} parent=168 // loop_header_branch
        %1389 = sbr.rel (%p1387) target = $region176
      $region173: #{network_forward.1} parent=168 // loop_body
        %v1393 = vld [vmem:[%s1391] sm:%s1384]
        %1394 = vst [vmem:[%s1392] sm:%s1384] %v1393
      $region174: #{network_forward.1} parent=168 // loop_footer
        %s1390 = sadd.s32 1, %s1386
      $region175: #{network_forward.1} parent=168 // loop_footer_branch
        %1385 = sbr.rel target = $region171
      $region176: #{network_forward.1} parent=168 // loop_exit
        _
    $region169: #{network_forward.1} parent=1 // pred_fallthru
      _
    // Predicated region
    $region192: #{network_forward.1} parent=1 // pred_check
      _
    $region193: #{network_forward.1} parent=1 // pred_check_branch
      %1528 = sbr.rel (0) target = $region195
    $region194: #{network_forward.1} parent=1 // pred_region
      %1529 = vsyncadd %s1375, 7296
    $region195: #{network_forward.1} parent=1 // pred_fallthru
      _
    %s1530 = sld [smem:[#allocation10]]
    %v1531 = vld [vmem:[%s1] sm:$0xff]
    %v1532 = vld [vmem:[%s1 + $0x8] sm:$0xff]
    %v1533 = vld [vmem:[#allocation11] sm:$0xff]
    %v1534 = vld [vmem:[#allocation11 + $0x8] sm:$0xff]
    %v1535 = vld [vmem:[#allocation11 + $0x10] sm:$0xff]
    %v1536 = vld [vmem:[#allocation11 + $0x18] sm:$0xff]
    %v1537 = vld [vmem:[#allocation11 + $0x20] sm:$0xff]
    %v1538 = vld [vmem:[#allocation11 + $0x28] sm:$0xff]
    %v1539 = vld [vmem:[#allocation11 + $0x30] sm:$0xff]
    %v1540 = vld [vmem:[#allocation11 + $0x38] sm:$0xff]
    %v1541 = vld [vmem:[#allocation11 + $0x40] sm:$0xff]
    %v1542 = vld [vmem:[#allocation11 + $0x48] sm:$0xff]
    %v1543 = vld [vmem:[#allocation11 + $0x50] sm:$0xff]
    %v1544 = vld [vmem:[#allocation11 + $0x58] sm:$0xff]
    %v1545 = vld [vmem:[#allocation11 + $0x60] sm:$0xff]
    %v1546 = vld [vmem:[#allocation11 + $0x68] sm:$0xff]
    %v1547 = vld [vmem:[#allocation11 + $0x70] sm:$0xff]
    %v1548 = vld [vmem:[#allocation11 + $0x78] sm:$0xff]
    %v1549 = vld [vmem:[#allocation11 + $0x80] sm:$0xff]
    %v1550 = vld [vmem:[#allocation11 + $0x88] sm:$0xff]
    %v1551 = vld [vmem:[#allocation11 + $0x90] sm:$0xff]
    %v1552 = vld [vmem:[#allocation11 + $0x98] sm:$0xff]
    %v1553 = vld [vmem:[#allocation11 + $0xa0] sm:$0xff]
    %v1554 = vld [vmem:[#allocation11 + $0xa8] sm:$0xff]
    %v1555 = vld [vmem:[#allocation11 + $0xb0] sm:$0xff]
    %v1556 = vld [vmem:[#allocation11 + $0xb8] sm:$0xff]
    %v1557 = vld [vmem:[#allocation11 + $0xc0] sm:$0xff]
    %v1558 = vld [vmem:[#allocation11 + $0xc8] sm:$0xff]
    %v1559 = vld [vmem:[#allocation11 + $0xd0] sm:$0xff]
    %v1560 = vld [vmem:[#allocation11 + $0xd8] sm:$0xff]
    %v1561 = vld [vmem:[#allocation11 + $0xe0] sm:$0xff]
    %v1562 = vld [vmem:[#allocation11 + $0xe8] sm:$0xff]
    %v1563 = vld [vmem:[#allocation11 + $0xf0] sm:$0xff]
    %v1564 = vld [vmem:[#allocation11 + $0xf8] sm:$0xff]
    %v1565 = vld [vmem:[#allocation11 + $0x100] sm:$0xff]
    %v1566 = vld [vmem:[#allocation11 + $0x108] sm:$0xff]
    %v1567 = vld [vmem:[#allocation11 + $0x110] sm:$0xff]
    %v1568 = vld [vmem:[#allocation11 + $0x118] sm:$0xff]
    %v1569 = vld [vmem:[#allocation11 + $0x120] sm:$0xff]
    %v1570 = vld [vmem:[#allocation11 + $0x128] sm:$0xff]
    %v1571 = vld [vmem:[#allocation11 + $0x130] sm:$0xff]
    %v1572 = vld [vmem:[#allocation11 + $0x138] sm:$0xff]
    %v1573 = vld [vmem:[#allocation11 + $0x140] sm:$0xff]
    %v1574 = vld [vmem:[#allocation11 + $0x148] sm:$0xff]
    %v1575 = vld [vmem:[#allocation11 + $0x150] sm:$0xff]
    %v1576 = vld [vmem:[#allocation11 + $0x158] sm:$0xff]
    %v1577 = vld [vmem:[#allocation11 + $0x160] sm:$0xff]
    %v1578 = vld [vmem:[#allocation11 + $0x168] sm:$0xff]
    %v1579 = vld [vmem:[#allocation11 + $0x170] sm:$0xff]
    %v1580 = vld [vmem:[#allocation11 + $0x178] sm:$0xff]
    %v1581 = vld [vmem:[#allocation11 + $0x180] sm:$0xff]
    %v1582 = vld [vmem:[#allocation11 + $0x188] sm:$0xff]
    %v1583 = vld [vmem:[#allocation11 + $0x190] sm:$0xff]
    %v1584 = vld [vmem:[#allocation11 + $0x198] sm:$0xff]
    %v1585 = vld [vmem:[#allocation11 + $0x1a0] sm:$0xff]
    %v1586 = vld [vmem:[#allocation11 + $0x1a8] sm:$0xff]
    %v1587 = vld [vmem:[#allocation11 + $0x1b0] sm:$0xff]
    %v1588 = vld [vmem:[#allocation11 + $0x1b8] sm:$0xff]
    %v1589 = vld [vmem:[#allocation11 + $0x1c0] sm:$0xff]
    %v1590 = vld [vmem:[#allocation11 + $0x1c8] sm:$0xff]
    %v1591 = vld [vmem:[#allocation11 + $0x1d0] sm:$0xff]
    %v1592 = vld [vmem:[#allocation11 + $0x1d8] sm:$0xff]
    %v1593 = vld [vmem:[#allocation11 + $0x1e0] sm:$0xff]
    %v1594 = vld [vmem:[#allocation11 + $0x1e8] sm:$0xff]
    %v1595 = vld [vmem:[#allocation11 + $0x1f0] sm:$0xff]
    %v1596 = vld [vmem:[#allocation11 + $0x1f8] sm:$0xff]
    %v1597 = vld [vmem:[%s9] sm:$0x3]
    %v1599 = vlaneseq
    %v1600 = vshrl.u32 %v1599, 7
    %v1601 = vsub.s32 0, %v1600
    %v1602 = vrot.slane %v1597, %v1601
    %v1603 = vlaneseq
    %v1604 = vshrl.u32 %v1603, 7
    %v1605 = vsub.s32 1, %v1604
    %v1606 = vrot.slane %v1597, %v1605
    %v1611 = vunpack.c.l.b16 %v1531
    %v1612 = vunpack.c.h.b16 %v1531
    %v1613 = vunpack.c.l.b16 %v1532
    %v1614 = vunpack.c.h.b16 %v1532
    %v1615 = vpack.c.b16 %v1611, %v1611
    %v1616 = vpack.c.b16 %v1612, %v1612
    %v1617 = vpack.c.b16 %v1613, %v1613
    %v1618 = vpack.c.b16 %v1614, %v1614
    %v1687 = vunpack.c.l.b16 %v1533
    %v1688 = vunpack.c.h.b16 %v1533
    %v1689 = vunpack.c.l.b16 %v1534
    %v1690 = vunpack.c.h.b16 %v1534
    %v1691 = vunpack.c.l.b16 %v1535
    %v1692 = vunpack.c.h.b16 %v1535
    %v1693 = vunpack.c.l.b16 %v1536
    %v1694 = vunpack.c.h.b16 %v1536
    %v1695 = vunpack.c.l.b16 %v1537
    %v1696 = vunpack.c.h.b16 %v1537
    %v1697 = vunpack.c.l.b16 %v1538
    %v1698 = vunpack.c.h.b16 %v1538
    %v1699 = vunpack.c.l.b16 %v1539
    %v1700 = vunpack.c.h.b16 %v1539
    %v1701 = vunpack.c.l.b16 %v1540
    %v1702 = vunpack.c.h.b16 %v1540
    %v1703 = vunpack.c.l.b16 %v1541
    %v1704 = vunpack.c.h.b16 %v1541
    %v1705 = vunpack.c.l.b16 %v1542
    %v1706 = vunpack.c.h.b16 %v1542
    %v1707 = vunpack.c.l.b16 %v1543
    %v1708 = vunpack.c.h.b16 %v1543
    %v1709 = vunpack.c.l.b16 %v1544
    %v1710 = vunpack.c.h.b16 %v1544
    %v1711 = vunpack.c.l.b16 %v1545
    %v1712 = vunpack.c.h.b16 %v1545
    %v1713 = vunpack.c.l.b16 %v1546
    %v1714 = vunpack.c.h.b16 %v1546
    %v1715 = vunpack.c.l.b16 %v1547
    %v1716 = vunpack.c.h.b16 %v1547
    %v1717 = vunpack.c.l.b16 %v1548
    %v1718 = vunpack.c.h.b16 %v1548
    %v1719 = vunpack.c.l.b16 %v1549
    %v1720 = vunpack.c.h.b16 %v1549
    %v1721 = vunpack.c.l.b16 %v1550
    %v1722 = vunpack.c.h.b16 %v1550
    %v1723 = vunpack.c.l.b16 %v1551
    %v1724 = vunpack.c.h.b16 %v1551
    %v1725 = vunpack.c.l.b16 %v1552
    %v1726 = vunpack.c.h.b16 %v1552
    %v1727 = vunpack.c.l.b16 %v1553
    %v1728 = vunpack.c.h.b16 %v1553
    %v1729 = vunpack.c.l.b16 %v1554
    %v1730 = vunpack.c.h.b16 %v1554
    %v1731 = vunpack.c.l.b16 %v1555
    %v1732 = vunpack.c.h.b16 %v1555
    %v1733 = vunpack.c.l.b16 %v1556
    %v1734 = vunpack.c.h.b16 %v1556
    %v1735 = vunpack.c.l.b16 %v1557
    %v1736 = vunpack.c.h.b16 %v1557
    %v1737 = vunpack.c.l.b16 %v1558
    %v1738 = vunpack.c.h.b16 %v1558
    %v1739 = vunpack.c.l.b16 %v1559
    %v1740 = vunpack.c.h.b16 %v1559
    %v1741 = vunpack.c.l.b16 %v1560
    %v1742 = vunpack.c.h.b16 %v1560
    %v1743 = vunpack.c.l.b16 %v1561
    %v1744 = vunpack.c.h.b16 %v1561
    %v1745 = vunpack.c.l.b16 %v1562
    %v1746 = vunpack.c.h.b16 %v1562
    %v1747 = vunpack.c.l.b16 %v1563
    %v1748 = vunpack.c.h.b16 %v1563
    %v1749 = vunpack.c.l.b16 %v1564
    %v1750 = vunpack.c.h.b16 %v1564
    %v1751 = vunpack.c.l.b16 %v1565
    %v1752 = vunpack.c.h.b16 %v1565
    %v1753 = vunpack.c.l.b16 %v1566
    %v1754 = vunpack.c.h.b16 %v1566
    %v1755 = vunpack.c.l.b16 %v1567
    %v1756 = vunpack.c.h.b16 %v1567
    %v1757 = vunpack.c.l.b16 %v1568
    %v1758 = vunpack.c.h.b16 %v1568
    %v1759 = vunpack.c.l.b16 %v1569
    %v1760 = vunpack.c.h.b16 %v1569
    %v1761 = vunpack.c.l.b16 %v1570
    %v1762 = vunpack.c.h.b16 %v1570
    %v1763 = vunpack.c.l.b16 %v1571
    %v1764 = vunpack.c.h.b16 %v1571
    %v1765 = vunpack.c.l.b16 %v1572
    %v1766 = vunpack.c.h.b16 %v1572
    %v1767 = vunpack.c.l.b16 %v1573
    %v1768 = vunpack.c.h.b16 %v1573
    %v1769 = vunpack.c.l.b16 %v1574
    %v1770 = vunpack.c.h.b16 %v1574
    %v1771 = vunpack.c.l.b16 %v1575
    %v1772 = vunpack.c.h.b16 %v1575
    %v1773 = vunpack.c.l.b16 %v1576
    %v1774 = vunpack.c.h.b16 %v1576
    %v1775 = vunpack.c.l.b16 %v1577
    %v1776 = vunpack.c.h.b16 %v1577
    %v1777 = vunpack.c.l.b16 %v1578
    %v1778 = vunpack.c.h.b16 %v1578
    %v1779 = vunpack.c.l.b16 %v1579
    %v1780 = vunpack.c.h.b16 %v1579
    %v1781 = vunpack.c.l.b16 %v1580
    %v1782 = vunpack.c.h.b16 %v1580
    %v1783 = vunpack.c.l.b16 %v1581
    %v1784 = vunpack.c.h.b16 %v1581
    %v1785 = vunpack.c.l.b16 %v1582
    %v1786 = vunpack.c.h.b16 %v1582
    %v1787 = vunpack.c.l.b16 %v1583
    %v1788 = vunpack.c.h.b16 %v1583
    %v1789 = vunpack.c.l.b16 %v1584
    %v1790 = vunpack.c.h.b16 %v1584
    %v1791 = vunpack.c.l.b16 %v1585
    %v1792 = vunpack.c.h.b16 %v1585
    %v1793 = vunpack.c.l.b16 %v1586
    %v1794 = vunpack.c.h.b16 %v1586
    %v1795 = vunpack.c.l.b16 %v1587
    %v1796 = vunpack.c.h.b16 %v1587
    %v1797 = vunpack.c.l.b16 %v1588
    %v1798 = vunpack.c.h.b16 %v1588
    %v1799 = vunpack.c.l.b16 %v1589
    %v1800 = vunpack.c.h.b16 %v1589
    %v1801 = vunpack.c.l.b16 %v1590
    %v1802 = vunpack.c.h.b16 %v1590
    %v1803 = vunpack.c.l.b16 %v1591
    %v1804 = vunpack.c.h.b16 %v1591
    %v1805 = vunpack.c.l.b16 %v1592
    %v1806 = vunpack.c.h.b16 %v1592
    %v1807 = vunpack.c.l.b16 %v1593
    %v1808 = vunpack.c.h.b16 %v1593
    %v1809 = vunpack.c.l.b16 %v1594
    %v1810 = vunpack.c.h.b16 %v1594
    %v1811 = vunpack.c.l.b16 %v1595
    %v1812 = vunpack.c.h.b16 %v1595
    %v1813 = vunpack.c.l.b16 %v1596
    %v1814 = vunpack.c.h.b16 %v1596
    %v1815 = vpack.c.b16 %v1689, %v1687
    %v1816 = vpack.c.b16 %v1690, %v1688
    %v1817 = vpack.c.b16 %v1693, %v1691
    %v1818 = vpack.c.b16 %v1694, %v1692
    %v1819 = vpack.c.b16 %v1697, %v1695
    %v1820 = vpack.c.b16 %v1698, %v1696
    %v1821 = vpack.c.b16 %v1701, %v1699
    %v1822 = vpack.c.b16 %v1702, %v1700
    %v1823 = vpack.c.b16 %v1705, %v1703
    %v1824 = vpack.c.b16 %v1706, %v1704
    %v1825 = vpack.c.b16 %v1709, %v1707
    %v1826 = vpack.c.b16 %v1710, %v1708
    %v1827 = vpack.c.b16 %v1713, %v1711
    %v1828 = vpack.c.b16 %v1714, %v1712
    %v1829 = vpack.c.b16 %v1717, %v1715
    %v1830 = vpack.c.b16 %v1718, %v1716
    %v1831 = vpack.c.b16 %v1721, %v1719
    %v1832 = vpack.c.b16 %v1722, %v1720
    %v1833 = vpack.c.b16 %v1725, %v1723
    %v1834 = vpack.c.b16 %v1726, %v1724
    %v1835 = vpack.c.b16 %v1729, %v1727
    %v1836 = vpack.c.b16 %v1730, %v1728
    %v1837 = vpack.c.b16 %v1733, %v1731
    %v1838 = vpack.c.b16 %v1734, %v1732
    %v1839 = vpack.c.b16 %v1737, %v1735
    %v1840 = vpack.c.b16 %v1738, %v1736
    %v1841 = vpack.c.b16 %v1741, %v1739
    %v1842 = vpack.c.b16 %v1742, %v1740
    %v1843 = vpack.c.b16 %v1745, %v1743
    %v1844 = vpack.c.b16 %v1746, %v1744
    %v1845 = vpack.c.b16 %v1749, %v1747
    %v1846 = vpack.c.b16 %v1750, %v1748
    %v1847 = vpack.c.b16 %v1753, %v1751
    %v1848 = vpack.c.b16 %v1754, %v1752
    %v1849 = vpack.c.b16 %v1757, %v1755
    %v1850 = vpack.c.b16 %v1758, %v1756
    %v1851 = vpack.c.b16 %v1761, %v1759
    %v1852 = vpack.c.b16 %v1762, %v1760
    %v1853 = vpack.c.b16 %v1765, %v1763
    %v1854 = vpack.c.b16 %v1766, %v1764
    %v1855 = vpack.c.b16 %v1769, %v1767
    %v1856 = vpack.c.b16 %v1770, %v1768
    %v1857 = vpack.c.b16 %v1773, %v1771
    %v1858 = vpack.c.b16 %v1774, %v1772
    %v1859 = vpack.c.b16 %v1777, %v1775
    %v1860 = vpack.c.b16 %v1778, %v1776
    %v1861 = vpack.c.b16 %v1781, %v1779
    %v1862 = vpack.c.b16 %v1782, %v1780
    %v1863 = vpack.c.b16 %v1785, %v1783
    %v1864 = vpack.c.b16 %v1786, %v1784
    %v1865 = vpack.c.b16 %v1789, %v1787
    %v1866 = vpack.c.b16 %v1790, %v1788
    %v1867 = vpack.c.b16 %v1793, %v1791
    %v1868 = vpack.c.b16 %v1794, %v1792
    %v1869 = vpack.c.b16 %v1797, %v1795
    %v1870 = vpack.c.b16 %v1798, %v1796
    %v1871 = vpack.c.b16 %v1801, %v1799
    %v1872 = vpack.c.b16 %v1802, %v1800
    %v1873 = vpack.c.b16 %v1805, %v1803
    %v1874 = vpack.c.b16 %v1806, %v1804
    %v1875 = vpack.c.b16 %v1809, %v1807
    %v1876 = vpack.c.b16 %v1810, %v1808
    %v1877 = vpack.c.b16 %v1813, %v1811
    %v1878 = vpack.c.b16 %v1814, %v1812
    %1943 = vmatprep.subr.bf16.mxu0 %v1816
    %1944 = vmatpush1.bf16.msra.mxu0 %v1815
    %1945 = vmatprep.subr.bf16.mxu0 %v1818
    %1946 = vmatpush1.bf16.msra.mxu0 %v1817
    %1947 = vmatprep.subr.bf16.mxu0 %v1820
    %1948 = vmatpush1.bf16.msra.mxu0 %v1819
    %1949 = vmatprep.subr.bf16.mxu0 %v1822
    %1950 = vmatpush1.bf16.msra.mxu0 %v1821
    %1951 = vmatprep.subr.bf16.mxu0 %v1824
    %1952 = vmatpush1.bf16.msra.mxu0 %v1823
    %1953 = vmatprep.subr.bf16.mxu0 %v1826
    %1954 = vmatpush1.bf16.msra.mxu0 %v1825
    %1955 = vmatprep.subr.bf16.mxu0 %v1828
    %1956 = vmatpush1.bf16.msra.mxu0 %v1827
    %1957 = vmatprep.subr.bf16.mxu0 %v1830
    %1958 = vmatpush1.bf16.msra.mxu0 %v1829
    %1959 = vmatprep.subr.bf16.mxu0 %v1832
    %1960 = vmatpush1.bf16.msra.mxu0 %v1831
    %1961 = vmatprep.subr.bf16.mxu0 %v1834
    %1962 = vmatpush1.bf16.msra.mxu0 %v1833
    %1963 = vmatprep.subr.bf16.mxu0 %v1836
    %1964 = vmatpush1.bf16.msra.mxu0 %v1835
    %1965 = vmatprep.subr.bf16.mxu0 %v1838
    %1966 = vmatpush1.bf16.msra.mxu0 %v1837
    %1967 = vmatprep.subr.bf16.mxu0 %v1840
    %1968 = vmatpush1.bf16.msra.mxu0 %v1839
    %1969 = vmatprep.subr.bf16.mxu0 %v1842
    %1970 = vmatpush1.bf16.msra.mxu0 %v1841
    %1971 = vmatprep.subr.bf16.mxu0 %v1844
    %1972 = vmatpush1.bf16.msra.mxu0 %v1843
    %1973 = vmatprep.subr.bf16.mxu0 %v1846
    %1974 = vmatpush1.bf16.msra.mxu0 %v1845
    %1975 = vmatprep.mubr.bf16.mxu0 %v1616
    %1976 = vmatmul.mubr.bf16.gmra.mrb[0].mxu0 %v1615
    %v1977 = vpop.f32.mrb[0].mxu0
    %v1978 = vadd.f32 %v1602, %v1977
    %v1979 = vpop.f32.mrb[0].mxu0
    %v1980 = vadd.f32 %v1606, %v1979
    %v1981 = vpop.f32.mrb[0].mxu0
    %v1982 = vpop.f32.mrb[0].mxu0
    %1983 = vdwg.mxu0
    %1984 = vmatprep.subr.bf16.mxu0 %v1848
    %1985 = vmatpush1.bf16.msra.mxu0 %v1847
    %1986 = vmatprep.subr.bf16.mxu0 %v1850
    %1987 = vmatpush1.bf16.msra.mxu0 %v1849
    %1988 = vmatprep.subr.bf16.mxu0 %v1852
    %1989 = vmatpush1.bf16.msra.mxu0 %v1851
    %1990 = vmatprep.subr.bf16.mxu0 %v1854
    %1991 = vmatpush1.bf16.msra.mxu0 %v1853
    %1992 = vmatprep.subr.bf16.mxu0 %v1856
    %1993 = vmatpush1.bf16.msra.mxu0 %v1855
    %1994 = vmatprep.subr.bf16.mxu0 %v1858
    %1995 = vmatpush1.bf16.msra.mxu0 %v1857
    %1996 = vmatprep.subr.bf16.mxu0 %v1860
    %1997 = vmatpush1.bf16.msra.mxu0 %v1859
    %1998 = vmatprep.subr.bf16.mxu0 %v1862
    %1999 = vmatpush1.bf16.msra.mxu0 %v1861
    %2000 = vmatprep.subr.bf16.mxu0 %v1864
    %2001 = vmatpush1.bf16.msra.mxu0 %v1863
    %2002 = vmatprep.subr.bf16.mxu0 %v1866
    %2003 = vmatpush1.bf16.msra.mxu0 %v1865
    %2004 = vmatprep.subr.bf16.mxu0 %v1868
    %2005 = vmatpush1.bf16.msra.mxu0 %v1867
    %2006 = vmatprep.subr.bf16.mxu0 %v1870
    %2007 = vmatpush1.bf16.msra.mxu0 %v1869
    %2008 = vmatprep.subr.bf16.mxu0 %v1872
    %2009 = vmatpush1.bf16.msra.mxu0 %v1871
    %2010 = vmatprep.subr.bf16.mxu0 %v1874
    %2011 = vmatpush1.bf16.msra.mxu0 %v1873
    %2012 = vmatprep.subr.bf16.mxu0 %v1876
    %2013 = vmatpush1.bf16.msra.mxu0 %v1875
    %2014 = vmatprep.subr.bf16.mxu0 %v1878
    %2015 = vmatpush1.bf16.msra.mxu0 %v1877
    %2016 = vmatprep.mubr.bf16.mxu0 %v1618
    %2017 = vmatmul.mubr.bf16.gmra.mrb[0].mxu0 %v1617
    %v2018 = vpop.f32.mrb[0].mxu0
    %v2019 = vadd.f32 %v1978, %v2018
    %v2020 = vpop.f32.mrb[0].mxu0
    %v2021 = vadd.f32 %v1980, %v2020
    %v2022 = vpop.f32.mrb[0].mxu0
    %v2023 = vpop.f32.mrb[0].mxu0
    %2024 = vdwg.mxu0
    %2025 = vst [vmem:[#allocation8] sm:$0xff] %v2019
    %2026 = vst [vmem:[#allocation8 + $0x8] sm:$0xff] %v2021
    %2027 = vst [vmem:[#allocation9] sm:$0xff] 0.0
    %2028 = vst [vmem:[#allocation9 + $0x8] sm:$0xff] 0.0
    %v2029 = vld [vmem:[%s0] sm:$0xff]
    %v2030 = vld [vmem:[%s0 + $0x8] sm:$0xf]
    %v2031 = vld [vmem:[%s0 + $0xc] sm:$0xff]
    %v2032 = vld [vmem:[%s0 + $0x14] sm:$0xf]
    %v2033 = vld [vmem:[%s0 + $0x18] sm:$0xff]
    %v2034 = vld [vmem:[%s0 + $0x20] sm:$0xf]
    %v2035 = vld [vmem:[%s0 + $0x24] sm:$0xff]
    %v2036 = vld [vmem:[%s0 + $0x2c] sm:$0xf]
    %v2037 = vld [vmem:[%s0 + $0x30] sm:$0xff]
    %v2038 = vld [vmem:[%s0 + $0x38] sm:$0xf]
    %v2039 = vld [vmem:[%s0 + $0x3c] sm:$0xff]
    %v2040 = vld [vmem:[%s0 + $0x44] sm:$0xf]
    %v2041 = vld [vmem:[%s0 + $0x48] sm:$0xff]
    %v2042 = vld [vmem:[%s0 + $0x50] sm:$0xf]
    %v2043 = vld [vmem:[%s0 + $0x54] sm:$0xff]
    %v2044 = vld [vmem:[%s0 + $0x5c] sm:$0xf]
    %v2045 = vld [vmem:[%s10] sm:$0xff]
    %v2046 = vld [vmem:[%s10 + $0x8] sm:$0xff]
    %v2047 = vld [vmem:[%s10 + $0x10] sm:$0xff]
    %v2048 = vld [vmem:[%s10 + $0x18] sm:$0xff]
    %v2049 = vld [vmem:[%s10 + $0x20] sm:$0xff]
    %v2050 = vld [vmem:[%s10 + $0x28] sm:$0xff]
    %v2051 = vld [vmem:[%s10 + $0x30] sm:$0xff]
    %v2052 = vld [vmem:[%s10 + $0x38] sm:$0xff]
    %v2053 = vld [vmem:[%s10 + $0x40] sm:$0xff]
    %v2054 = vld [vmem:[%s10 + $0x48] sm:$0xff]
    %v2055 = vld [vmem:[%s10 + $0x50] sm:$0xff]
    %v2056 = vld [vmem:[%s10 + $0x58] sm:$0xff]
    %v2057 = vld [vmem:[%s10 + $0x60] sm:$0xff]
    %v2058 = vld [vmem:[%s10 + $0x68] sm:$0xff]
    %v2059 = vld [vmem:[%s10 + $0x70] sm:$0xff]
    %v2060 = vld [vmem:[%s10 + $0x78] sm:$0xff]
    %v2061 = vld [vmem:[%s10 + $0x80] sm:$0xff]
    %v2062 = vld [vmem:[%s10 + $0x88] sm:$0xff]
    %v2063 = vld [vmem:[%s10 + $0x90] sm:$0xff]
    %v2064 = vld [vmem:[%s10 + $0x98] sm:$0xff]
    %v2065 = vld [vmem:[%s10 + $0xa0] sm:$0xff]
    %v2066 = vld [vmem:[%s10 + $0xa8] sm:$0xff]
    %v2067 = vld [vmem:[%s10 + $0xb0] sm:$0xff]
    %v2068 = vld [vmem:[%s10 + $0xb8] sm:$0xff]
    %v2069 = vld [vmem:[%s10 + $0xc0] sm:$0xff]
    %v2070 = vld [vmem:[%s10 + $0xc8] sm:$0xff]
    %v2071 = vld [vmem:[%s10 + $0xd0] sm:$0xff]
    %v2072 = vld [vmem:[%s10 + $0xd8] sm:$0xff]
    %v2073 = vld [vmem:[%s10 + $0xe0] sm:$0xff]
    %v2074 = vld [vmem:[%s10 + $0xe8] sm:$0xff]
    %v2075 = vld [vmem:[%s10 + $0xf0] sm:$0xff]
    %v2076 = vld [vmem:[%s10 + $0xf8] sm:$0xff]
    %v2077 = vld [vmem:[%s10 + $0x100] sm:$0xff]
    %v2078 = vld [vmem:[%s10 + $0x108] sm:$0xff]
    %v2079 = vld [vmem:[%s10 + $0x110] sm:$0xff]
    %v2080 = vld [vmem:[%s10 + $0x118] sm:$0xff]
    %v2081 = vld [vmem:[%s10 + $0x120] sm:$0xff]
    %v2082 = vld [vmem:[%s10 + $0x128] sm:$0xff]
    %v2083 = vld [vmem:[%s10 + $0x130] sm:$0xff]
    %v2084 = vld [vmem:[%s10 + $0x138] sm:$0xff]
    %v2085 = vld [vmem:[%s10 + $0x140] sm:$0xff]
    %v2086 = vld [vmem:[%s10 + $0x148] sm:$0xff]
    %v2087 = vld [vmem:[%s10 + $0x150] sm:$0xff]
    %v2088 = vld [vmem:[%s10 + $0x158] sm:$0xff]
    %v2089 = vld [vmem:[%s10 + $0x160] sm:$0xff]
    %v2090 = vld [vmem:[%s10 + $0x168] sm:$0xff]
    %v2091 = vld [vmem:[%s10 + $0x170] sm:$0xff]
    %v2092 = vld [vmem:[%s10 + $0x178] sm:$0xff]
    %v2093 = vld [vmem:[%s10 + $0x180] sm:$0xff]
    %v2094 = vld [vmem:[%s10 + $0x188] sm:$0xff]
    %v2095 = vld [vmem:[%s10 + $0x190] sm:$0xff]
    %v2096 = vld [vmem:[%s10 + $0x198] sm:$0xff]
    %v2097 = vld [vmem:[%s10 + $0x1a0] sm:$0xff]
    %v2098 = vld [vmem:[%s10 + $0x1a8] sm:$0xff]
    %v2099 = vld [vmem:[%s10 + $0x1b0] sm:$0xff]
    %v2100 = vld [vmem:[%s10 + $0x1b8] sm:$0xff]
    %v2101 = vld [vmem:[%s10 + $0x1c0] sm:$0xff]
    %v2102 = vld [vmem:[%s10 + $0x1c8] sm:$0xff]
    %v2103 = vld [vmem:[%s10 + $0x1d0] sm:$0xff]
    %v2104 = vld [vmem:[%s10 + $0x1d8] sm:$0xff]
    %v2105 = vld [vmem:[%s10 + $0x1e0] sm:$0xff]
    %v2106 = vld [vmem:[%s10 + $0x1e8] sm:$0xff]
    %v2107 = vld [vmem:[%s10 + $0x1f0] sm:$0xff]
    %v2108 = vld [vmem:[%s10 + $0x1f8] sm:$0xff]
    %v2109 = vld [vmem:[%s10 + $0x200] sm:$0xff]
    %v2110 = vld [vmem:[%s10 + $0x208] sm:$0xff]
    %v2111 = vld [vmem:[%s10 + $0x210] sm:$0xff]
    %v2112 = vld [vmem:[%s10 + $0x218] sm:$0xff]
    %v2113 = vld [vmem:[%s10 + $0x220] sm:$0xff]
    %v2114 = vld [vmem:[%s10 + $0x228] sm:$0xff]
    %v2115 = vld [vmem:[%s10 + $0x230] sm:$0xff]
    %v2116 = vld [vmem:[%s10 + $0x238] sm:$0xff]
    %v2117 = vld [vmem:[%s10 + $0x240] sm:$0xff]
    %v2118 = vld [vmem:[%s10 + $0x248] sm:$0xff]
    %v2119 = vld [vmem:[%s10 + $0x250] sm:$0xff]
    %v2120 = vld [vmem:[%s10 + $0x258] sm:$0xff]
    %v2121 = vld [vmem:[%s10 + $0x260] sm:$0xff]
    %v2122 = vld [vmem:[%s10 + $0x268] sm:$0xff]
    %v2123 = vld [vmem:[%s10 + $0x270] sm:$0xff]
    %v2124 = vld [vmem:[%s10 + $0x278] sm:$0xff]
    %v2125 = vld [vmem:[%s10 + $0x280] sm:$0xff]
    %v2126 = vld [vmem:[%s10 + $0x288] sm:$0xff]
    %v2127 = vld [vmem:[%s10 + $0x290] sm:$0xff]
    %v2128 = vld [vmem:[%s10 + $0x298] sm:$0xff]
    %v2129 = vld [vmem:[%s10 + $0x2a0] sm:$0xff]
    %v2130 = vld [vmem:[%s10 + $0x2a8] sm:$0xff]
    %v2131 = vld [vmem:[%s10 + $0x2b0] sm:$0xff]
    %v2132 = vld [vmem:[%s10 + $0x2b8] sm:$0xff]
    %v2133 = vld [vmem:[%s10 + $0x2c0] sm:$0xff]
    %v2134 = vld [vmem:[%s10 + $0x2c8] sm:$0xff]
    %v2135 = vld [vmem:[%s10 + $0x2d0] sm:$0xff]
    %v2136 = vld [vmem:[%s10 + $0x2d8] sm:$0xff]
    %v2137 = vld [vmem:[%s10 + $0x2e0] sm:$0xff]
    %v2138 = vld [vmem:[%s10 + $0x2e8] sm:$0xff]
    %v2139 = vld [vmem:[%s10 + $0x2f0] sm:$0xff]
    %v2140 = vld [vmem:[%s10 + $0x2f8] sm:$0xff]
    %v2141 = vld [vmem:[%s10 + $0x300] sm:$0xff]
    %v2142 = vld [vmem:[%s10 + $0x308] sm:$0xff]
    %v2143 = vld [vmem:[%s10 + $0x310] sm:$0xff]
    %v2144 = vld [vmem:[%s10 + $0x318] sm:$0xff]
    %v2145 = vld [vmem:[%s10 + $0x320] sm:$0xff]
    %v2146 = vld [vmem:[%s10 + $0x328] sm:$0xff]
    %v2147 = vld [vmem:[%s10 + $0x330] sm:$0xff]
    %v2148 = vld [vmem:[%s10 + $0x338] sm:$0xff]
    %v2149 = vld [vmem:[%s10 + $0x340] sm:$0xff]
    %v2150 = vld [vmem:[%s10 + $0x348] sm:$0xff]
    %v2151 = vld [vmem:[%s10 + $0x350] sm:$0xff]
    %v2152 = vld [vmem:[%s10 + $0x358] sm:$0xff]
    %v2153 = vld [vmem:[%s10 + $0x360] sm:$0xff]
    %v2154 = vld [vmem:[%s10 + $0x368] sm:$0xff]
    %v2155 = vld [vmem:[%s10 + $0x370] sm:$0xff]
    %v2156 = vld [vmem:[%s10 + $0x378] sm:$0x33]
    %v2157 = vld [vmem:[%s10 + $0x380] sm:$0x33]
    %v2158 = vld [vmem:[%s10 + $0x388] sm:$0x33]
    %v2159 = vld [vmem:[%s11] sm:$0x3f]
    %v2161 = vlaneseq
    %v2162 = vshrl.u32 %v2161, 7
    %v2163 = vsub.s32 0, %v2162
    %v2164 = vrot.slane %v2159, %v2163
    %v2165 = vlaneseq
    %v2166 = vshrl.u32 %v2165, 7
    %v2167 = vsub.s32 1, %v2166
    %v2168 = vrot.slane %v2159, %v2167
    %v2169 = vlaneseq
    %v2170 = vshrl.u32 %v2169, 7
    %v2171 = vsub.s32 2, %v2170
    %v2172 = vrot.slane %v2159, %v2171
    %v2173 = vlaneseq
    %v2174 = vshrl.u32 %v2173, 7
    %v2175 = vsub.s32 3, %v2174
    %v2176 = vrot.slane %v2159, %v2175
    %v2177 = vlaneseq
    %v2178 = vshrl.u32 %v2177, 7
    %v2179 = vsub.s32 4, %v2178
    %v2180 = vrot.slane %v2159, %v2179
    %v2181 = vlaneseq
    %v2182 = vshrl.u32 %v2181, 7
    %v2183 = vsub.s32 5, %v2182
    %v2184 = vrot.slane %v2159, %v2183
    %v2207 = vunpack.c.l.b16 %v2029
    %v2208 = vunpack.c.h.b16 %v2029
    %v2209 = vunpack.c.l.b16 %v2030
    %v2210 = vunpack.c.l.b16 %v2031
    %v2211 = vunpack.c.h.b16 %v2031
    %v2212 = vunpack.c.l.b16 %v2032
    %v2213 = vunpack.c.l.b16 %v2033
    %v2214 = vunpack.c.h.b16 %v2033
    %v2215 = vunpack.c.l.b16 %v2034
    %v2216 = vunpack.c.l.b16 %v2035
    %v2217 = vunpack.c.h.b16 %v2035
    %v2218 = vunpack.c.l.b16 %v2036
    %v2219 = vunpack.c.l.b16 %v2037
    %v2220 = vunpack.c.h.b16 %v2037
    %v2221 = vunpack.c.l.b16 %v2038
    %v2222 = vunpack.c.l.b16 %v2039
    %v2223 = vunpack.c.h.b16 %v2039
    %v2224 = vunpack.c.l.b16 %v2040
    %v2225 = vunpack.c.l.b16 %v2041
    %v2226 = vunpack.c.h.b16 %v2041
    %v2227 = vunpack.c.l.b16 %v2042
    %v2228 = vunpack.c.l.b16 %v2043
    %v2229 = vunpack.c.h.b16 %v2043
    %v2230 = vunpack.c.l.b16 %v2044
    %v2231 = vpack.c.b16 %v2210, %v2207
    %v2232 = vpack.c.b16 %v2211, %v2208
    %v2233 = vpack.c.b16 %v2212, %v2209
    %v2234 = vpack.c.b16 %v2216, %v2213
    %v2235 = vpack.c.b16 %v2217, %v2214
    %v2236 = vpack.c.b16 %v2218, %v2215
    %v2237 = vpack.c.b16 %v2222, %v2219
    %v2238 = vpack.c.b16 %v2223, %v2220
    %v2239 = vpack.c.b16 %v2224, %v2221
    %v2240 = vpack.c.b16 %v2228, %v2225
    %v2241 = vpack.c.b16 %v2229, %v2226
    %v2242 = vpack.c.b16 %v2230, %v2227
    %v2365 = vunpack.c.l.b16 %v2045
    %v2366 = vunpack.c.h.b16 %v2045
    %v2367 = vunpack.c.l.b16 %v2046
    %v2368 = vunpack.c.h.b16 %v2046
    %v2369 = vunpack.c.l.b16 %v2047
    %v2370 = vunpack.c.h.b16 %v2047
    %v2371 = vunpack.c.l.b16 %v2048
    %v2372 = vunpack.c.h.b16 %v2048
    %v2373 = vunpack.c.l.b16 %v2049
    %v2374 = vunpack.c.h.b16 %v2049
    %v2375 = vunpack.c.l.b16 %v2050
    %v2376 = vunpack.c.h.b16 %v2050
    %v2377 = vunpack.c.l.b16 %v2051
    %v2378 = vunpack.c.h.b16 %v2051
    %v2379 = vunpack.c.l.b16 %v2052
    %v2380 = vunpack.c.h.b16 %v2052
    %v2381 = vunpack.c.l.b16 %v2053
    %v2382 = vunpack.c.h.b16 %v2053
    %v2383 = vunpack.c.l.b16 %v2054
    %v2384 = vunpack.c.h.b16 %v2054
    %v2385 = vunpack.c.l.b16 %v2055
    %v2386 = vunpack.c.h.b16 %v2055
    %v2387 = vunpack.c.l.b16 %v2056
    %v2388 = vunpack.c.h.b16 %v2056
    %v2389 = vunpack.c.l.b16 %v2057
    %v2390 = vunpack.c.h.b16 %v2057
    %v2391 = vunpack.c.l.b16 %v2058
    %v2392 = vunpack.c.h.b16 %v2058
    %v2393 = vunpack.c.l.b16 %v2059
    %v2394 = vunpack.c.h.b16 %v2059
    %v2395 = vunpack.c.l.b16 %v2060
    %v2396 = vunpack.c.h.b16 %v2060
    %v2397 = vunpack.c.l.b16 %v2061
    %v2398 = vunpack.c.h.b16 %v2061
    %v2399 = vunpack.c.l.b16 %v2062
    %v2400 = vunpack.c.h.b16 %v2062
    %v2401 = vunpack.c.l.b16 %v2063
    %v2402 = vunpack.c.h.b16 %v2063
    %v2403 = vunpack.c.l.b16 %v2064
    %v2404 = vunpack.c.h.b16 %v2064
    %v2405 = vunpack.c.l.b16 %v2065
    %v2406 = vunpack.c.h.b16 %v2065
    %v2407 = vunpack.c.l.b16 %v2066
    %v2408 = vunpack.c.h.b16 %v2066
    %v2409 = vunpack.c.l.b16 %v2067
    %v2410 = vunpack.c.h.b16 %v2067
    %v2411 = vunpack.c.l.b16 %v2068
    %v2412 = vunpack.c.h.b16 %v2068
    %v2413 = vunpack.c.l.b16 %v2069
    %v2414 = vunpack.c.h.b16 %v2069
    %v2415 = vunpack.c.l.b16 %v2070
    %v2416 = vunpack.c.h.b16 %v2070
    %v2417 = vunpack.c.l.b16 %v2071
    %v2418 = vunpack.c.h.b16 %v2071
    %v2419 = vunpack.c.l.b16 %v2072
    %v2420 = vunpack.c.h.b16 %v2072
    %v2421 = vunpack.c.l.b16 %v2073
    %v2422 = vunpack.c.h.b16 %v2073
    %v2423 = vunpack.c.l.b16 %v2074
    %v2424 = vunpack.c.h.b16 %v2074
    %v2425 = vunpack.c.l.b16 %v2075
    %v2426 = vunpack.c.h.b16 %v2075
    %v2427 = vunpack.c.l.b16 %v2076
    %v2428 = vunpack.c.h.b16 %v2076
    %v2429 = vunpack.c.l.b16 %v2077
    %v2430 = vunpack.c.h.b16 %v2077
    %v2431 = vunpack.c.l.b16 %v2078
    %v2432 = vunpack.c.h.b16 %v2078
    %v2433 = vunpack.c.l.b16 %v2079
    %v2434 = vunpack.c.h.b16 %v2079
    %v2435 = vunpack.c.l.b16 %v2080
    %v2436 = vunpack.c.h.b16 %v2080
    %v2437 = vunpack.c.l.b16 %v2081
    %v2438 = vunpack.c.h.b16 %v2081
    %v2439 = vunpack.c.l.b16 %v2082
    %v2440 = vunpack.c.h.b16 %v2082
    %v2441 = vunpack.c.l.b16 %v2083
    %v2442 = vunpack.c.h.b16 %v2083
    %v2443 = vunpack.c.l.b16 %v2084
    %v2444 = vunpack.c.h.b16 %v2084
    %v2445 = vunpack.c.l.b16 %v2085
    %v2446 = vunpack.c.h.b16 %v2085
    %v2447 = vunpack.c.l.b16 %v2086
    %v2448 = vunpack.c.h.b16 %v2086
    %v2449 = vunpack.c.l.b16 %v2087
    %v2450 = vunpack.c.h.b16 %v2087
    %v2451 = vunpack.c.l.b16 %v2088
    %v2452 = vunpack.c.h.b16 %v2088
    %v2453 = vunpack.c.l.b16 %v2089
    %v2454 = vunpack.c.h.b16 %v2089
    %v2455 = vunpack.c.l.b16 %v2090
    %v2456 = vunpack.c.h.b16 %v2090
    %v2457 = vunpack.c.l.b16 %v2091
    %v2458 = vunpack.c.h.b16 %v2091
    %v2459 = vunpack.c.l.b16 %v2092
    %v2460 = vunpack.c.h.b16 %v2092
    %v2461 = vunpack.c.l.b16 %v2093
    %v2462 = vunpack.c.h.b16 %v2093
    %v2463 = vunpack.c.l.b16 %v2094
    %v2464 = vunpack.c.h.b16 %v2094
    %v2465 = vunpack.c.l.b16 %v2095
    %v2466 = vunpack.c.h.b16 %v2095
    %v2467 = vunpack.c.l.b16 %v2096
    %v2468 = vunpack.c.h.b16 %v2096
    %v2469 = vunpack.c.l.b16 %v2097
    %v2470 = vunpack.c.h.b16 %v2097
    %v2471 = vunpack.c.l.b16 %v2098
    %v2472 = vunpack.c.h.b16 %v2098
    %v2473 = vunpack.c.l.b16 %v2099
    %v2474 = vunpack.c.h.b16 %v2099
    %v2475 = vunpack.c.l.b16 %v2100
    %v2476 = vunpack.c.h.b16 %v2100
    %v2477 = vunpack.c.l.b16 %v2101
    %v2478 = vunpack.c.h.b16 %v2101
    %v2479 = vunpack.c.l.b16 %v2102
    %v2480 = vunpack.c.h.b16 %v2102
    %v2481 = vunpack.c.l.b16 %v2103
    %v2482 = vunpack.c.h.b16 %v2103
    %v2483 = vunpack.c.l.b16 %v2104
    %v2484 = vunpack.c.h.b16 %v2104
    %v2485 = vunpack.c.l.b16 %v2105
    %v2486 = vunpack.c.h.b16 %v2105
    %v2487 = vunpack.c.l.b16 %v2106
    %v2488 = vunpack.c.h.b16 %v2106
    %v2489 = vunpack.c.l.b16 %v2107
    %v2490 = vunpack.c.h.b16 %v2107
    %v2491 = vunpack.c.l.b16 %v2108
    %v2492 = vunpack.c.h.b16 %v2108
    %v2493 = vunpack.c.l.b16 %v2109
    %v2494 = vunpack.c.h.b16 %v2109
    %v2495 = vunpack.c.l.b16 %v2110
    %v2496 = vunpack.c.h.b16 %v2110
    %v2497 = vunpack.c.l.b16 %v2111
    %v2498 = vunpack.c.h.b16 %v2111
    %v2499 = vunpack.c.l.b16 %v2112
    %v2500 = vunpack.c.h.b16 %v2112
    %v2501 = vunpack.c.l.b16 %v2113
    %v2502 = vunpack.c.h.b16 %v2113
    %v2503 = vunpack.c.l.b16 %v2114
    %v2504 = vunpack.c.h.b16 %v2114
    %v2505 = vunpack.c.l.b16 %v2115
    %v2506 = vunpack.c.h.b16 %v2115
    %v2507 = vunpack.c.l.b16 %v2116
    %v2508 = vunpack.c.h.b16 %v2116
    %v2509 = vunpack.c.l.b16 %v2117
    %v2510 = vunpack.c.h.b16 %v2117
    %v2511 = vunpack.c.l.b16 %v2118
    %v2512 = vunpack.c.h.b16 %v2118
    %v2513 = vunpack.c.l.b16 %v2119
    %v2514 = vunpack.c.h.b16 %v2119
    %v2515 = vunpack.c.l.b16 %v2120
    %v2516 = vunpack.c.h.b16 %v2120
    %v2517 = vunpack.c.l.b16 %v2121
    %v2518 = vunpack.c.h.b16 %v2121
    %v2519 = vunpack.c.l.b16 %v2122
    %v2520 = vunpack.c.h.b16 %v2122
    %v2521 = vunpack.c.l.b16 %v2123
    %v2522 = vunpack.c.h.b16 %v2123
    %v2523 = vunpack.c.l.b16 %v2124
    %v2524 = vunpack.c.h.b16 %v2124
    %v2525 = vunpack.c.l.b16 %v2125
    %v2526 = vunpack.c.h.b16 %v2125
    %v2527 = vunpack.c.l.b16 %v2126
    %v2528 = vunpack.c.h.b16 %v2126
    %v2529 = vunpack.c.l.b16 %v2127
    %v2530 = vunpack.c.h.b16 %v2127
    %v2531 = vunpack.c.l.b16 %v2128
    %v2532 = vunpack.c.h.b16 %v2128
    %v2533 = vunpack.c.l.b16 %v2129
    %v2534 = vunpack.c.h.b16 %v2129
    %v2535 = vunpack.c.l.b16 %v2130
    %v2536 = vunpack.c.h.b16 %v2130
    %v2537 = vunpack.c.l.b16 %v2131
    %v2538 = vunpack.c.h.b16 %v2131
    %v2539 = vunpack.c.l.b16 %v2132
    %v2540 = vunpack.c.h.b16 %v2132
    %v2541 = vunpack.c.l.b16 %v2133
    %v2542 = vunpack.c.h.b16 %v2133
    %v2543 = vunpack.c.l.b16 %v2134
    %v2544 = vunpack.c.h.b16 %v2134
    %v2545 = vunpack.c.l.b16 %v2135
    %v2546 = vunpack.c.h.b16 %v2135
    %v2547 = vunpack.c.l.b16 %v2136
    %v2548 = vunpack.c.h.b16 %v2136
    %v2549 = vunpack.c.l.b16 %v2137
    %v2550 = vunpack.c.h.b16 %v2137
    %v2551 = vunpack.c.l.b16 %v2138
    %v2552 = vunpack.c.h.b16 %v2138
    %v2553 = vunpack.c.l.b16 %v2139
    %v2554 = vunpack.c.h.b16 %v2139
    %v2555 = vunpack.c.l.b16 %v2140
    %v2556 = vunpack.c.h.b16 %v2140
    %v2557 = vunpack.c.l.b16 %v2141
    %v2558 = vunpack.c.h.b16 %v2141
    %v2559 = vunpack.c.l.b16 %v2142
    %v2560 = vunpack.c.h.b16 %v2142
    %v2561 = vunpack.c.l.b16 %v2143
    %v2562 = vunpack.c.h.b16 %v2143
    %v2563 = vunpack.c.l.b16 %v2144
    %v2564 = vunpack.c.h.b16 %v2144
    %v2565 = vunpack.c.l.b16 %v2145
    %v2566 = vunpack.c.h.b16 %v2145
    %v2567 = vunpack.c.l.b16 %v2146
    %v2568 = vunpack.c.h.b16 %v2146
    %v2569 = vunpack.c.l.b16 %v2147
    %v2570 = vunpack.c.h.b16 %v2147
    %v2571 = vunpack.c.l.b16 %v2148
    %v2572 = vunpack.c.h.b16 %v2148
    %v2573 = vunpack.c.l.b16 %v2149
    %v2574 = vunpack.c.h.b16 %v2149
    %v2575 = vunpack.c.l.b16 %v2150
    %v2576 = vunpack.c.h.b16 %v2150
    %v2577 = vunpack.c.l.b16 %v2151
    %v2578 = vunpack.c.h.b16 %v2151
    %v2579 = vunpack.c.l.b16 %v2152
    %v2580 = vunpack.c.h.b16 %v2152
    %v2581 = vunpack.c.l.b16 %v2153
    %v2582 = vunpack.c.h.b16 %v2153
    %v2583 = vunpack.c.l.b16 %v2154
    %v2584 = vunpack.c.h.b16 %v2154
    %v2585 = vunpack.c.l.b16 %v2155
    %v2586 = vunpack.c.h.b16 %v2155
    %v2587 = vunpack.c.l.b16 %v2156
    %v2588 = vunpack.c.h.b16 %v2156
    %v2589 = vunpack.c.l.b16 %v2157
    %v2590 = vunpack.c.h.b16 %v2157
    %v2591 = vunpack.c.l.b16 %v2158
    %v2592 = vunpack.c.h.b16 %v2158
    %v2593 = vpack.c.b16 %v2371, %v2365
    %v2594 = vpack.c.b16 %v2372, %v2366
    %v2595 = vpack.c.b16 %v2373, %v2367
    %v2596 = vpack.c.b16 %v2374, %v2368
    %v2597 = vpack.c.b16 %v2375, %v2369
    %v2598 = vpack.c.b16 %v2376, %v2370
    %v2599 = vpack.c.b16 %v2383, %v2377
    %v2600 = vpack.c.b16 %v2384, %v2378
    %v2601 = vpack.c.b16 %v2385, %v2379
    %v2602 = vpack.c.b16 %v2386, %v2380
    %v2603 = vpack.c.b16 %v2387, %v2381
    %v2604 = vpack.c.b16 %v2388, %v2382
    %v2605 = vpack.c.b16 %v2395, %v2389
    %v2606 = vpack.c.b16 %v2396, %v2390
    %v2607 = vpack.c.b16 %v2397, %v2391
    %v2608 = vpack.c.b16 %v2398, %v2392
    %v2609 = vpack.c.b16 %v2399, %v2393
    %v2610 = vpack.c.b16 %v2400, %v2394
    %v2611 = vpack.c.b16 %v2407, %v2401
    %v2612 = vpack.c.b16 %v2408, %v2402
    %v2613 = vpack.c.b16 %v2409, %v2403
    %v2614 = vpack.c.b16 %v2410, %v2404
    %v2615 = vpack.c.b16 %v2411, %v2405
    %v2616 = vpack.c.b16 %v2412, %v2406
    %v2617 = vpack.c.b16 %v2419, %v2413
    %v2618 = vpack.c.b16 %v2420, %v2414
    %v2619 = vpack.c.b16 %v2421, %v2415
    %v2620 = vpack.c.b16 %v2422, %v2416
    %v2621 = vpack.c.b16 %v2423, %v2417
    %v2622 = vpack.c.b16 %v2424, %v2418
    %v2623 = vpack.c.b16 %v2431, %v2425
    %v2624 = vpack.c.b16 %v2432, %v2426
    %v2625 = vpack.c.b16 %v2433, %v2427
    %v2626 = vpack.c.b16 %v2434, %v2428
    %v2627 = vpack.c.b16 %v2435, %v2429
    %v2628 = vpack.c.b16 %v2436, %v2430
    %v2629 = vpack.c.b16 %v2443, %v2437
    %v2630 = vpack.c.b16 %v2444, %v2438
    %v2631 = vpack.c.b16 %v2445, %v2439
    %v2632 = vpack.c.b16 %v2446, %v2440
    %v2633 = vpack.c.b16 %v2447, %v2441
    %v2634 = vpack.c.b16 %v2448, %v2442
    %v2635 = vpack.c.b16 %v2455, %v2449
    %v2636 = vpack.c.b16 %v2456, %v2450
    %v2637 = vpack.c.b16 %v2457, %v2451
    %v2638 = vpack.c.b16 %v2458, %v2452
    %v2639 = vpack.c.b16 %v2459, %v2453
    %v2640 = vpack.c.b16 %v2460, %v2454
    %v2641 = vpack.c.b16 %v2467, %v2461
    %v2642 = vpack.c.b16 %v2468, %v2462
    %v2643 = vpack.c.b16 %v2469, %v2463
    %v2644 = vpack.c.b16 %v2470, %v2464
    %v2645 = vpack.c.b16 %v2471, %v2465
    %v2646 = vpack.c.b16 %v2472, %v2466
    %v2647 = vpack.c.b16 %v2479, %v2473
    %v2648 = vpack.c.b16 %v2480, %v2474
    %v2649 = vpack.c.b16 %v2481, %v2475
    %v2650 = vpack.c.b16 %v2482, %v2476
    %v2651 = vpack.c.b16 %v2483, %v2477
    %v2652 = vpack.c.b16 %v2484, %v2478
    %v2653 = vpack.c.b16 %v2491, %v2485
    %v2654 = vpack.c.b16 %v2492, %v2486
    %v2655 = vpack.c.b16 %v2493, %v2487
    %v2656 = vpack.c.b16 %v2494, %v2488
    %v2657 = vpack.c.b16 %v2495, %v2489
    %v2658 = vpack.c.b16 %v2496, %v2490
    %v2659 = vpack.c.b16 %v2503, %v2497
    %v2660 = vpack.c.b16 %v2504, %v2498
    %v2661 = vpack.c.b16 %v2505, %v2499
    %v2662 = vpack.c.b16 %v2506, %v2500
    %v2663 = vpack.c.b16 %v2507, %v2501
    %v2664 = vpack.c.b16 %v2508, %v2502
    %v2665 = vpack.c.b16 %v2515, %v2509
    %v2666 = vpack.c.b16 %v2516, %v2510
    %v2667 = vpack.c.b16 %v2517, %v2511
    %v2668 = vpack.c.b16 %v2518, %v2512
    %v2669 = vpack.c.b16 %v2519, %v2513
    %v2670 = vpack.c.b16 %v2520, %v2514
    %v2671 = vpack.c.b16 %v2527, %v2521
    %v2672 = vpack.c.b16 %v2528, %v2522
    %v2673 = vpack.c.b16 %v2529, %v2523
    %v2674 = vpack.c.b16 %v2530, %v2524
    %v2675 = vpack.c.b16 %v2531, %v2525
    %v2676 = vpack.c.b16 %v2532, %v2526
    %v2677 = vpack.c.b16 %v2539, %v2533
    %v2678 = vpack.c.b16 %v2540, %v2534
    %v2679 = vpack.c.b16 %v2541, %v2535
    %v2680 = vpack.c.b16 %v2542, %v2536
    %v2681 = vpack.c.b16 %v2543, %v2537
    %v2682 = vpack.c.b16 %v2544, %v2538
    %v2683 = vpack.c.b16 %v2551, %v2545
    %v2684 = vpack.c.b16 %v2552, %v2546
    %v2685 = vpack.c.b16 %v2553, %v2547
    %v2686 = vpack.c.b16 %v2554, %v2548
    %v2687 = vpack.c.b16 %v2555, %v2549
    %v2688 = vpack.c.b16 %v2556, %v2550
    %v2689 = vpack.c.b16 %v2563, %v2557
    %v2690 = vpack.c.b16 %v2564, %v2558
    %v2691 = vpack.c.b16 %v2565, %v2559
    %v2692 = vpack.c.b16 %v2566, %v2560
    %v2693 = vpack.c.b16 %v2567, %v2561
    %v2694 = vpack.c.b16 %v2568, %v2562
    %v2695 = vpack.c.b16 %v2575, %v2569
    %v2696 = vpack.c.b16 %v2576, %v2570
    %v2697 = vpack.c.b16 %v2577, %v2571
    %v2698 = vpack.c.b16 %v2578, %v2572
    %v2699 = vpack.c.b16 %v2579, %v2573
    %v2700 = vpack.c.b16 %v2580, %v2574
    %v2701 = vpack.c.b16 %v2587, %v2581
    %v2702 = vpack.c.b16 %v2588, %v2582
    %v2703 = vpack.c.b16 %v2589, %v2583
    %v2704 = vpack.c.b16 %v2590, %v2584
    %v2705 = vpack.c.b16 %v2591, %v2585
    %v2706 = vpack.c.b16 %v2592, %v2586
    %vm2815 = vcmask 359424
    %v2817 = vsel %vm2815, %v2233, 0
    %v2820 = vsel %vm2815, %v2236, 0
    %v2823 = vsel %vm2815, %v2239, 0
    %v2826 = vsel %vm2815, %v2242, 0
    %vm2828 = vcmask 1045504
    %v2830 = vsel %vm2828, %v2701, 0
    %v2833 = vsel %vm2828, %v2702, 0
    %v2836 = vsel %vm2828, %v2703, 0
    %v2839 = vsel %vm2828, %v2704, 0
    %v2842 = vsel %vm2828, %v2705, 0
    %v2845 = vsel %vm2828, %v2706, 0
    %2847 = vmatprep.subr.bf16.mxu0 %v2594
    %2848 = vmatpush1.bf16.msra.mxu0 %v2593
    %2849 = vmatprep.subr.bf16.mxu0 %v2600
    %2850 = vmatpush1.bf16.msra.mxu0 %v2599
    %2851 = vmatprep.subr.bf16.mxu0 %v2606
    %2852 = vmatpush1.bf16.msra.mxu0 %v2605
    %2853 = vmatprep.subr.bf16.mxu0 %v2612
    %2854 = vmatpush1.bf16.msra.mxu0 %v2611
    %2855 = vmatprep.subr.bf16.mxu0 %v2618
    %2856 = vmatpush1.bf16.msra.mxu0 %v2617
    %2857 = vmatprep.subr.bf16.mxu0 %v2624
    %2858 = vmatpush1.bf16.msra.mxu0 %v2623
    %2859 = vmatprep.subr.bf16.mxu0 %v2630
    %2860 = vmatpush1.bf16.msra.mxu0 %v2629
    %2861 = vmatprep.subr.bf16.mxu0 %v2636
    %2862 = vmatpush1.bf16.msra.mxu0 %v2635
    %2863 = vmatprep.subr.bf16.mxu0 %v2642
    %2864 = vmatpush1.bf16.msra.mxu0 %v2641
    %2865 = vmatprep.subr.bf16.mxu0 %v2648
    %2866 = vmatpush1.bf16.msra.mxu0 %v2647
    %2867 = vmatprep.subr.bf16.mxu0 %v2654
    %2868 = vmatpush1.bf16.msra.mxu0 %v2653
    %2869 = vmatprep.subr.bf16.mxu0 %v2660
    %2870 = vmatpush1.bf16.msra.mxu0 %v2659
    %2871 = vmatprep.subr.bf16.mxu0 %v2666
    %2872 = vmatpush1.bf16.msra.mxu0 %v2665
    %2873 = vmatprep.subr.bf16.mxu0 %v2672
    %2874 = vmatpush1.bf16.msra.mxu0 %v2671
    %2875 = vmatprep.subr.bf16.mxu0 %v2678
    %2876 = vmatpush1.bf16.msra.mxu0 %v2677
    %2877 = vmatprep.subr.bf16.mxu0 %v2684
    %2878 = vmatpush1.bf16.msra.mxu0 %v2683
    %2879 = vmatprep.mubr.bf16.mxu0 %v2232
    %2880 = vmatmul.mubr.bf16.gmra.mrb[0].mxu0 %v2231
    %v2881 = vpop.f32.mrb[0].mxu0
    %v2882 = vadd.f32 %v2164, %v2881
    %v2883 = vpop.f32.mrb[0].mxu0
    %v2884 = vadd.f32 %v2168, %v2883
    %v2885 = vpop.f32.mrb[0].mxu0
    %v2886 = vadd.f32 %v2164, %v2885
    %v2887 = vpop.f32.mrb[0].mxu0
    %v2888 = vadd.f32 %v2168, %v2887
    %2889 = vmatprep.mubr.bf16.mxu0 %v2235
    %2890 = vmatmul.mubr.bf16.gmra.mrb[0].mxu0 %v2234
    %v2891 = vpop.f32.mrb[0].mxu0
    %v2892 = vadd.f32 %v2164, %v2891
    %v2893 = vpop.f32.mrb[0].mxu0
    %v2894 = vadd.f32 %v2168, %v2893
    %v2895 = vpop.f32.mrb[0].mxu0
    %v2896 = vadd.f32 %v2164, %v2895
    %v2897 = vpop.f32.mrb[0].mxu0
    %v2898 = vadd.f32 %v2168, %v2897
    %2899 = vmatprep.mubr.bf16.mxu0 %v2238
    %2900 = vmatmul.mubr.bf16.gmra.mrb[0].mxu0 %v2237
    %v2901 = vpop.f32.mrb[0].mxu0
    %v2902 = vadd.f32 %v2164, %v2901
    %v2903 = vpop.f32.mrb[0].mxu0
    %v2904 = vadd.f32 %v2168, %v2903
    %v2905 = vpop.f32.mrb[0].mxu0
    %v2906 = vadd.f32 %v2164, %v2905
    %v2907 = vpop.f32.mrb[0].mxu0
    %v2908 = vadd.f32 %v2168, %v2907
    %2909 = vmatprep.mubr.bf16.mxu0 %v2241
    %2910 = vmatmul.mubr.bf16.gmra.mrb[0].mxu0 %v2240
    %v2911 = vpop.f32.mrb[0].mxu0
    %v2912 = vadd.f32 %v2164, %v2911
    %v2913 = vpop.f32.mrb[0].mxu0
    %v2914 = vadd.f32 %v2168, %v2913
    %v2915 = vpop.f32.mrb[0].mxu0
    %v2916 = vadd.f32 %v2164, %v2915
    %v2917 = vpop.f32.mrb[0].mxu0
    %v2918 = vadd.f32 %v2168, %v2917
    %2919 = vdwg.mxu0
    %2920 = vmatprep.subr.bf16.mxu0 %v2690
    %2921 = vmatpush1.bf16.msra.mxu0 %v2689
    %2922 = vmatprep.subr.bf16.mxu0 %v2696
    %2923 = vmatpush1.bf16.msra.mxu0 %v2695
    %2924 = vmatprep.subr.bf16.mxu0 %v2833
    %2925 = vmatpush1.bf16.msra.mxu0 %v2830
    %2926 = vmatprep.subr.bf16.mxu0 0
    %2927 = vmatpush1.bf16.msra.mxu0 0
    %2928 = vmatprep.subr.bf16.mxu0 0
    %2929 = vmatpush1.bf16.msra.mxu0 0
    %2930 = vmatprep.subr.bf16.mxu0 0
    %2931 = vmatpush1.bf16.msra.mxu0 0
    %2932 = vmatprep.subr.bf16.mxu0 0
    %2933 = vmatpush1.bf16.msra.mxu0 0
    %2934 = vmatprep.subr.bf16.mxu0 0
    %2935 = vmatpush1.bf16.msra.mxu0 0
    %2936 = vmatprep.subr.bf16.mxu0 0
    %2937 = vmatpush1.bf16.msra.mxu0 0
    %2938 = vmatprep.subr.bf16.mxu0 0
    %2939 = vmatpush1.bf16.msra.mxu0 0
    %2940 = vmatprep.subr.bf16.mxu0 0
    %2941 = vmatpush1.bf16.msra.mxu0 0
    %2942 = vmatprep.subr.bf16.mxu0 0
    %2943 = vmatpush1.bf16.msra.mxu0 0
    %2944 = vmatprep.subr.bf16.mxu0 0
    %2945 = vmatpush1.bf16.msra.mxu0 0
    %2946 = vmatprep.subr.bf16.mxu0 0
    %2947 = vmatpush1.bf16.msra.mxu0 0
    %2948 = vmatprep.subr.bf16.mxu0 0
    %2949 = vmatpush1.bf16.msra.mxu0 0
    %2950 = vmatprep.subr.bf16.mxu0 0
    %2951 = vmatpush1.bf16.msra.mxu0 0
    %2952 = vmatprep.mubr.bf16.mxu0 0
    %2953 = vmatmul.mubr.bf16.gmra.mrb[0].mxu0 %v2817
    %v2954 = vpop.f32.mrb[0].mxu0
    %v2955 = vadd.f32 %v2882, %v2954
    %v2956 = vpop.f32.mrb[0].mxu0
    %v2957 = vadd.f32 %v2884, %v2956
    %v2958 = vpop.f32.mrb[0].mxu0
    %v2959 = vadd.f32 %v2886, %v2958
    %v2960 = vpop.f32.mrb[0].mxu0
    %v2961 = vadd.f32 %v2888, %v2960
    %2962 = vmatprep.mubr.bf16.mxu0 0
    %2963 = vmatmul.mubr.bf16.gmra.mrb[0].mxu0 %v2820
    %v2964 = vpop.f32.mrb[0].mxu0
    %v2965 = vadd.f32 %v2892, %v2964
    %v2966 = vpop.f32.mrb[0].mxu0
    %v2967 = vadd.f32 %v2894, %v2966
    %v2968 = vpop.f32.mrb[0].mxu0
    %v2969 = vadd.f32 %v2896, %v2968
    %v2970 = vpop.f32.mrb[0].mxu0
    %v2971 = vadd.f32 %v2898, %v2970
    %2972 = vmatprep.mubr.bf16.mxu0 0
    %2973 = vmatmul.mubr.bf16.gmra.mrb[0].mxu0 %v2823
    %v2974 = vpop.f32.mrb[0].mxu0
    %v2975 = vadd.f32 %v2902, %v2974
    %v2976 = vpop.f32.mrb[0].mxu0
    %v2977 = vadd.f32 %v2904, %v2976
    %v2978 = vpop.f32.mrb[0].mxu0
    %v2979 = vadd.f32 %v2906, %v2978
    %v2980 = vpop.f32.mrb[0].mxu0
    %v2981 = vadd.f32 %v2908, %v2980
    %2982 = vmatprep.mubr.bf16.mxu0 0
    %2983 = vmatmul.mubr.bf16.gmra.mrb[0].mxu0 %v2826
    %v2984 = vpop.f32.mrb[0].mxu0
    %v2985 = vadd.f32 %v2912, %v2984
    %v2986 = vpop.f32.mrb[0].mxu0
    %v2987 = vadd.f32 %v2914, %v2986
    %v2988 = vpop.f32.mrb[0].mxu0
    %v2989 = vadd.f32 %v2916, %v2988
    %v2990 = vpop.f32.mrb[0].mxu0
    %v2991 = vadd.f32 %v2918, %v2990
    %2992 = vdwg.mxu0
    %2993 = vmatprep.subr.bf16.mxu0 %v2596
    %2994 = vmatpush1.bf16.msra.mxu0 %v2595
    %2995 = vmatprep.subr.bf16.mxu0 %v2602
    %2996 = vmatpush1.bf16.msra.mxu0 %v2601
    %2997 = vmatprep.subr.bf16.mxu0 %v2608
    %2998 = vmatpush1.bf16.msra.mxu0 %v2607
    %2999 = vmatprep.subr.bf16.mxu0 %v2614
    %3000 = vmatpush1.bf16.msra.mxu0 %v2613
    %3001 = vmatprep.subr.bf16.mxu0 %v2620
    %3002 = vmatpush1.bf16.msra.mxu0 %v2619
    %3003 = vmatprep.subr.bf16.mxu0 %v2626
    %3004 = vmatpush1.bf16.msra.mxu0 %v2625
    %3005 = vmatprep.subr.bf16.mxu0 %v2632
    %3006 = vmatpush1.bf16.msra.mxu0 %v2631
    %3007 = vmatprep.subr.bf16.mxu0 %v2638
    %3008 = vmatpush1.bf16.msra.mxu0 %v2637
    %3009 = vmatprep.subr.bf16.mxu0 %v2644
    %3010 = vmatpush1.bf16.msra.mxu0 %v2643
    %3011 = vmatprep.subr.bf16.mxu0 %v2650
    %3012 = vmatpush1.bf16.msra.mxu0 %v2649
    %3013 = vmatprep.subr.bf16.mxu0 %v2656
    %3014 = vmatpush1.bf16.msra.mxu0 %v2655
    %3015 = vmatprep.subr.bf16.mxu0 %v2662
    %3016 = vmatpush1.bf16.msra.mxu0 %v2661
    %3017 = vmatprep.subr.bf16.mxu0 %v2668
    %3018 = vmatpush1.bf16.msra.mxu0 %v2667
    %3019 = vmatprep.subr.bf16.mxu0 %v2674
    %3020 = vmatpush1.bf16.msra.mxu0 %v2673
    %3021 = vmatprep.subr.bf16.mxu0 %v2680
    %3022 = vmatpush1.bf16.msra.mxu0 %v2679
    %3023 = vmatprep.subr.bf16.mxu0 %v2686
    %3024 = vmatpush1.bf16.msra.mxu0 %v2685
    %3025 = vmatprep.mubr.bf16.mxu0 %v2232
    %3026 = vmatmul.mubr.bf16.gmra.mrb[0].mxu0 %v2231
    %v3027 = vpop.f32.mrb[0].mxu0
    %v3028 = vadd.f32 %v2172, %v3027
    %v3029 = vpop.f32.mrb[0].mxu0
    %v3030 = vadd.f32 %v2176, %v3029
    %v3031 = vpop.f32.mrb[0].mxu0
    %v3032 = vadd.f32 %v2172, %v3031
    %v3033 = vpop.f32.mrb[0].mxu0
    %v3034 = vadd.f32 %v2176, %v3033
    %3035 = vmatprep.mubr.bf16.mxu0 %v2235
    %3036 = vmatmul.mubr.bf16.gmra.mrb[0].mxu0 %v2234
    %v3037 = vpop.f32.mrb[0].mxu0
    %v3038 = vadd.f32 %v2172, %v3037
    %v3039 = vpop.f32.mrb[0].mxu0
    %v3040 = vadd.f32 %v2176, %v3039
    %v3041 = vpop.f32.mrb[0].mxu0
    %v3042 = vadd.f32 %v2172, %v3041
    %v3043 = vpop.f32.mrb[0].mxu0
    %v3044 = vadd.f32 %v2176, %v3043
    %3045 = vmatprep.mubr.bf16.mxu0 %v2238
    %3046 = vmatmul.mubr.bf16.gmra.mrb[0].mxu0 %v2237
    %v3047 = vpop.f32.mrb[0].mxu0
    %v3048 = vadd.f32 %v2172, %v3047
    %v3049 = vpop.f32.mrb[0].mxu0
    %v3050 = vadd.f32 %v2176, %v3049
    %v3051 = vpop.f32.mrb[0].mxu0
    %v3052 = vadd.f32 %v2172, %v3051
    %v3053 = vpop.f32.mrb[0].mxu0
    %v3054 = vadd.f32 %v2176, %v3053
    %3055 = vmatprep.mubr.bf16.mxu0 %v2241
    %3056 = vmatmul.mubr.bf16.gmra.mrb[0].mxu0 %v2240
    %v3057 = vpop.f32.mrb[0].mxu0
    %v3058 = vadd.f32 %v2172, %v3057
    %v3059 = vpop.f32.mrb[0].mxu0
    %v3060 = vadd.f32 %v2176, %v3059
    %v3061 = vpop.f32.mrb[0].mxu0
    %v3062 = vadd.f32 %v2172, %v3061
    %v3063 = vpop.f32.mrb[0].mxu0
    %v3064 = vadd.f32 %v2176, %v3063
    %3065 = vdwg.mxu0
    %3066 = vmatprep.subr.bf16.mxu0 %v2692
    %3067 = vmatpush1.bf16.msra.mxu0 %v2691
    %3068 = vmatprep.subr.bf16.mxu0 %v2698
    %3069 = vmatpush1.bf16.msra.mxu0 %v2697
    %3070 = vmatprep.subr.bf16.mxu0 %v2839
    %3071 = vmatpush1.bf16.msra.mxu0 %v2836
    %3072 = vmatprep.subr.bf16.mxu0 0
    %3073 = vmatpush1.bf16.msra.mxu0 0
    %3074 = vmatprep.subr.bf16.mxu0 0
    %3075 = vmatpush1.bf16.msra.mxu0 0
    %3076 = vmatprep.subr.bf16.mxu0 0
    %3077 = vmatpush1.bf16.msra.mxu0 0
    %3078 = vmatprep.subr.bf16.mxu0 0
    %3079 = vmatpush1.bf16.msra.mxu0 0
    %3080 = vmatprep.subr.bf16.mxu0 0
    %3081 = vmatpush1.bf16.msra.mxu0 0
    %3082 = vmatprep.subr.bf16.mxu0 0
    %3083 = vmatpush1.bf16.msra.mxu0 0
    %3084 = vmatprep.subr.bf16.mxu0 0
    %3085 = vmatpush1.bf16.msra.mxu0 0
    %3086 = vmatprep.subr.bf16.mxu0 0
    %3087 = vmatpush1.bf16.msra.mxu0 0
    %3088 = vmatprep.subr.bf16.mxu0 0
    %3089 = vmatpush1.bf16.msra.mxu0 0
    %3090 = vmatprep.subr.bf16.mxu0 0
    %3091 = vmatpush1.bf16.msra.mxu0 0
    %3092 = vmatprep.subr.bf16.mxu0 0
    %3093 = vmatpush1.bf16.msra.mxu0 0
    %3094 = vmatprep.subr.bf16.mxu0 0
    %3095 = vmatpush1.bf16.msra.mxu0 0
    %3096 = vmatprep.subr.bf16.mxu0 0
    %3097 = vmatpush1.bf16.msra.mxu0 0
    %3098 = vmatprep.mubr.bf16.mxu0 0
    %3099 = vmatmul.mubr.bf16.gmra.mrb[0].mxu0 %v2817
    %v3100 = vpop.f32.mrb[0].mxu0
    %v3101 = vadd.f32 %v3028, %v3100
    %v3102 = vpop.f32.mrb[0].mxu0
    %v3103 = vadd.f32 %v3030, %v3102
    %v3104 = vpop.f32.mrb[0].mxu0
    %v3105 = vadd.f32 %v3032, %v3104
    %v3106 = vpop.f32.mrb[0].mxu0
    %v3107 = vadd.f32 %v3034, %v3106
    %3108 = vmatprep.mubr.bf16.mxu0 0
    %3109 = vmatmul.mubr.bf16.gmra.mrb[0].mxu0 %v2820
    %v3110 = vpop.f32.mrb[0].mxu0
    %v3111 = vadd.f32 %v3038, %v3110
    %v3112 = vpop.f32.mrb[0].mxu0
    %v3113 = vadd.f32 %v3040, %v3112
    %v3114 = vpop.f32.mrb[0].mxu0
    %v3115 = vadd.f32 %v3042, %v3114
    %v3116 = vpop.f32.mrb[0].mxu0
    %v3117 = vadd.f32 %v3044, %v3116
    %3118 = vmatprep.mubr.bf16.mxu0 0
    %3119 = vmatmul.mubr.bf16.gmra.mrb[0].mxu0 %v2823
    %v3120 = vpop.f32.mrb[0].mxu0
    %v3121 = vadd.f32 %v3048, %v3120
    %v3122 = vpop.f32.mrb[0].mxu0
    %v3123 = vadd.f32 %v3050, %v3122
    %v3124 = vpop.f32.mrb[0].mxu0
    %v3125 = vadd.f32 %v3052, %v3124
    %v3126 = vpop.f32.mrb[0].mxu0
    %v3127 = vadd.f32 %v3054, %v3126
    %3128 = vmatprep.mubr.bf16.mxu0 0
    %3129 = vmatmul.mubr.bf16.gmra.mrb[0].mxu0 %v2826
    %v3130 = vpop.f32.mrb[0].mxu0
    %v3131 = vadd.f32 %v3058, %v3130
    %v3132 = vpop.f32.mrb[0].mxu0
    %v3133 = vadd.f32 %v3060, %v3132
    %v3134 = vpop.f32.mrb[0].mxu0
    %v3135 = vadd.f32 %v3062, %v3134
    %v3136 = vpop.f32.mrb[0].mxu0
    %v3137 = vadd.f32 %v3064, %v3136
    %3138 = vdwg.mxu0
    %3139 = vmatprep.subr.bf16.mxu0 %v2598
    %3140 = vmatpush1.bf16.msra.mxu0 %v2597
    %3141 = vmatprep.subr.bf16.mxu0 %v2604
    %3142 = vmatpush1.bf16.msra.mxu0 %v2603
    %3143 = vmatprep.subr.bf16.mxu0 %v2610
    %3144 = vmatpush1.bf16.msra.mxu0 %v2609
    %3145 = vmatprep.subr.bf16.mxu0 %v2616
    %3146 = vmatpush1.bf16.msra.mxu0 %v2615
    %3147 = vmatprep.subr.bf16.mxu0 %v2622
    %3148 = vmatpush1.bf16.msra.mxu0 %v2621
    %3149 = vmatprep.subr.bf16.mxu0 %v2628
    %3150 = vmatpush1.bf16.msra.mxu0 %v2627
    %3151 = vmatprep.subr.bf16.mxu0 %v2634
    %3152 = vmatpush1.bf16.msra.mxu0 %v2633
    %3153 = vmatprep.subr.bf16.mxu0 %v2640
    %3154 = vmatpush1.bf16.msra.mxu0 %v2639
    %3155 = vmatprep.subr.bf16.mxu0 %v2646
    %3156 = vmatpush1.bf16.msra.mxu0 %v2645
    %3157 = vmatprep.subr.bf16.mxu0 %v2652
    %3158 = vmatpush1.bf16.msra.mxu0 %v2651
    %3159 = vmatprep.subr.bf16.mxu0 %v2658
    %3160 = vmatpush1.bf16.msra.mxu0 %v2657
    %3161 = vmatprep.subr.bf16.mxu0 %v2664
    %3162 = vmatpush1.bf16.msra.mxu0 %v2663
    %3163 = vmatprep.subr.bf16.mxu0 %v2670
    %3164 = vmatpush1.bf16.msra.mxu0 %v2669
    %3165 = vmatprep.subr.bf16.mxu0 %v2676
    %3166 = vmatpush1.bf16.msra.mxu0 %v2675
    %3167 = vmatprep.subr.bf16.mxu0 %v2682
    %3168 = vmatpush1.bf16.msra.mxu0 %v2681
    %3169 = vmatprep.subr.bf16.mxu0 %v2688
    %3170 = vmatpush1.bf16.msra.mxu0 %v2687
    %3171 = vmatprep.mubr.bf16.mxu0 %v2232
    %3172 = vmatmul.mubr.bf16.gmra.mrb[0].mxu0 %v2231
    %v3173 = vpop.f32.mrb[0].mxu0
    %v3174 = vadd.f32 %v2180, %v3173
    %v3175 = vpop.f32.mrb[0].mxu0
    %v3176 = vadd.f32 %v2184, %v3175
    %v3177 = vpop.f32.mrb[0].mxu0
    %v3178 = vadd.f32 %v2180, %v3177
    %v3179 = vpop.f32.mrb[0].mxu0
    %v3180 = vadd.f32 %v2184, %v3179
    %3181 = vmatprep.mubr.bf16.mxu0 %v2235
    %3182 = vmatmul.mubr.bf16.gmra.mrb[0].mxu0 %v2234
    %v3183 = vpop.f32.mrb[0].mxu0
    %v3184 = vadd.f32 %v2180, %v3183
    %v3185 = vpop.f32.mrb[0].mxu0
    %v3186 = vadd.f32 %v2184, %v3185
    %v3187 = vpop.f32.mrb[0].mxu0
    %v3188 = vadd.f32 %v2180, %v3187
    %v3189 = vpop.f32.mrb[0].mxu0
    %v3190 = vadd.f32 %v2184, %v3189
    %3191 = vmatprep.mubr.bf16.mxu0 %v2238
    %3192 = vmatmul.mubr.bf16.gmra.mrb[0].mxu0 %v2237
    %v3193 = vpop.f32.mrb[0].mxu0
    %v3194 = vadd.f32 %v2180, %v3193
    %v3195 = vpop.f32.mrb[0].mxu0
    %v3196 = vadd.f32 %v2184, %v3195
    %v3197 = vpop.f32.mrb[0].mxu0
    %v3198 = vadd.f32 %v2180, %v3197
    %v3199 = vpop.f32.mrb[0].mxu0
    %v3200 = vadd.f32 %v2184, %v3199
    %3201 = vmatprep.mubr.bf16.mxu0 %v2241
    %3202 = vmatmul.mubr.bf16.gmra.mrb[0].mxu0 %v2240
    %v3203 = vpop.f32.mrb[0].mxu0
    %v3204 = vadd.f32 %v2180, %v3203
    %v3205 = vpop.f32.mrb[0].mxu0
    %v3206 = vadd.f32 %v2184, %v3205
    %v3207 = vpop.f32.mrb[0].mxu0
    %v3208 = vadd.f32 %v2180, %v3207
    %v3209 = vpop.f32.mrb[0].mxu0
    %v3210 = vadd.f32 %v2184, %v3209
    %3211 = vdwg.mxu0
    %3212 = vmatprep.subr.bf16.mxu0 %v2694
    %3213 = vmatpush1.bf16.msra.mxu0 %v2693
    %3214 = vmatprep.subr.bf16.mxu0 %v2700
    %3215 = vmatpush1.bf16.msra.mxu0 %v2699
    %3216 = vmatprep.subr.bf16.mxu0 %v2845
    %3217 = vmatpush1.bf16.msra.mxu0 %v2842
    %3218 = vmatprep.subr.bf16.mxu0 0
    %3219 = vmatpush1.bf16.msra.mxu0 0
    %3220 = vmatprep.subr.bf16.mxu0 0
    %3221 = vmatpush1.bf16.msra.mxu0 0
    %3222 = vmatprep.subr.bf16.mxu0 0
    %3223 = vmatpush1.bf16.msra.mxu0 0
    %3224 = vmatprep.subr.bf16.mxu0 0
    %3225 = vmatpush1.bf16.msra.mxu0 0
    %3226 = vmatprep.subr.bf16.mxu0 0
    %3227 = vmatpush1.bf16.msra.mxu0 0
    %3228 = vmatprep.subr.bf16.mxu0 0
    %3229 = vmatpush1.bf16.msra.mxu0 0
    %3230 = vmatprep.subr.bf16.mxu0 0
    %3231 = vmatpush1.bf16.msra.mxu0 0
    %3232 = vmatprep.subr.bf16.mxu0 0
    %3233 = vmatpush1.bf16.msra.mxu0 0
    %3234 = vmatprep.subr.bf16.mxu0 0
    %3235 = vmatpush1.bf16.msra.mxu0 0
    %3236 = vmatprep.subr.bf16.mxu0 0
    %3237 = vmatpush1.bf16.msra.mxu0 0
    %3238 = vmatprep.subr.bf16.mxu0 0
    %3239 = vmatpush1.bf16.msra.mxu0 0
    %3240 = vmatprep.subr.bf16.mxu0 0
    %3241 = vmatpush1.bf16.msra.mxu0 0
    %3242 = vmatprep.subr.bf16.mxu0 0
    %3243 = vmatpush1.bf16.msra.mxu0 0
    %3244 = vmatprep.mubr.bf16.mxu0 0
    %3245 = vmatmul.mubr.bf16.gmra.mrb[0].mxu0 %v2817
    %v3246 = vpop.f32.mrb[0].mxu0
    %v3247 = vadd.f32 %v3174, %v3246
    %v3248 = vpop.f32.mrb[0].mxu0
    %v3249 = vadd.f32 %v3176, %v3248
    %v3250 = vpop.f32.mrb[0].mxu0
    %v3251 = vadd.f32 %v3178, %v3250
    %v3252 = vpop.f32.mrb[0].mxu0
    %v3253 = vadd.f32 %v3180, %v3252
    %3254 = vmatprep.mubr.bf16.mxu0 0
    %3255 = vmatmul.mubr.bf16.gmra.mrb[0].mxu0 %v2820
    %v3256 = vpop.f32.mrb[0].mxu0
    %v3257 = vadd.f32 %v3184, %v3256
    %v3258 = vpop.f32.mrb[0].mxu0
    %v3259 = vadd.f32 %v3186, %v3258
    %v3260 = vpop.f32.mrb[0].mxu0
    %v3261 = vadd.f32 %v3188, %v3260
    %v3262 = vpop.f32.mrb[0].mxu0
    %v3263 = vadd.f32 %v3190, %v3262
    %3264 = vmatprep.mubr.bf16.mxu0 0
    %3265 = vmatmul.mubr.bf16.gmra.mrb[0].mxu0 %v2823
    %v3266 = vpop.f32.mrb[0].mxu0
    %v3267 = vadd.f32 %v3194, %v3266
    %v3268 = vpop.f32.mrb[0].mxu0
    %v3269 = vadd.f32 %v3196, %v3268
    %v3270 = vpop.f32.mrb[0].mxu0
    %v3271 = vadd.f32 %v3198, %v3270
    %v3272 = vpop.f32.mrb[0].mxu0
    %v3273 = vadd.f32 %v3200, %v3272
    %3274 = vmatprep.mubr.bf16.mxu0 0
    %3275 = vmatmul.mubr.bf16.gmra.mrb[0].mxu0 %v2826
    %v3276 = vpop.f32.mrb[0].mxu0
    %v3277 = vadd.f32 %v3204, %v3276
    %v3278 = vpop.f32.mrb[0].mxu0
    %v3279 = vadd.f32 %v3206, %v3278
    %v3280 = vpop.f32.mrb[0].mxu0
    %v3281 = vadd.f32 %v3208, %v3280
    %v3282 = vpop.f32.mrb[0].mxu0
    %v3283 = vadd.f32 %v3210, %v3282
    %3284 = vdwg.mxu0
    %3285 = vst [vmem:[#allocation7] sm:$0xff] %v2955
    %3286 = vst [vmem:[#allocation7 + $0x8] sm:$0xff] %v2957
    %3287 = vst [vmem:[#allocation7 + $0x10] sm:$0xff] %v3101
    %3288 = vst [vmem:[#allocation7 + $0x18] sm:$0xff] %v3103
    %3289 = vst [vmem:[#allocation7 + $0x20] sm:$0xff] %v3247
    %3290 = vst [vmem:[#allocation7 + $0x28] sm:$0xff] %v3249
    %3291 = vst [vmem:[#allocation7 + $0x30] sm:$0xff] %v2959
    %3292 = vst [vmem:[#allocation7 + $0x38] sm:$0xff] %v2961
    %3293 = vst [vmem:[#allocation7 + $0x40] sm:$0xff] %v3105
    %3294 = vst [vmem:[#allocation7 + $0x48] sm:$0xff] %v3107
    %3295 = vst [vmem:[#allocation7 + $0x50] sm:$0xff] %v3251
    %3296 = vst [vmem:[#allocation7 + $0x58] sm:$0xff] %v3253
    %3297 = vst [vmem:[#allocation7 + $0x60] sm:$0xff] %v2965
    %3298 = vst [vmem:[#allocation7 + $0x68] sm:$0xff] %v2967
    %3299 = vst [vmem:[#allocation7 + $0x70] sm:$0xff] %v3111
    %3300 = vst [vmem:[#allocation7 + $0x78] sm:$0xff] %v3113
    %3301 = vst [vmem:[#allocation7 + $0x80] sm:$0xff] %v3257
    %3302 = vst [vmem:[#allocation7 + $0x88] sm:$0xff] %v3259
    %3303 = vst [vmem:[#allocation7 + $0x90] sm:$0xff] %v2969
    %3304 = vst [vmem:[#allocation7 + $0x98] sm:$0xff] %v2971
    %3305 = vst [vmem:[#allocation7 + $0xa0] sm:$0xff] %v3115
    %3306 = vst [vmem:[#allocation7 + $0xa8] sm:$0xff] %v3117
    %3307 = vst [vmem:[#allocation7 + $0xb0] sm:$0xff] %v3261
    %3308 = vst [vmem:[#allocation7 + $0xb8] sm:$0xff] %v3263
    %3309 = vst [vmem:[#allocation7 + $0xc0] sm:$0xff] %v2975
    %3310 = vst [vmem:[#allocation7 + $0xc8] sm:$0xff] %v2977
    %3311 = vst [vmem:[#allocation7 + $0xd0] sm:$0xff] %v3121
    %3312 = vst [vmem:[#allocation7 + $0xd8] sm:$0xff] %v3123
    %3313 = vst [vmem:[#allocation7 + $0xe0] sm:$0xff] %v3267
    %3314 = vst [vmem:[#allocation7 + $0xe8] sm:$0xff] %v3269
    %3315 = vst [vmem:[#allocation7 + $0xf0] sm:$0xff] %v2979
    %3316 = vst [vmem:[#allocation7 + $0xf8] sm:$0xff] %v2981
    %3317 = vst [vmem:[#allocation7 + $0x100] sm:$0xff] %v3125
    %3318 = vst [vmem:[#allocation7 + $0x108] sm:$0xff] %v3127
    %3319 = vst [vmem:[#allocation7 + $0x110] sm:$0xff] %v3271
    %3320 = vst [vmem:[#allocation7 + $0x118] sm:$0xff] %v3273
    %3321 = vst [vmem:[#allocation7 + $0x120] sm:$0xff] %v2985
    %3322 = vst [vmem:[#allocation7 + $0x128] sm:$0xff] %v2987
    %3323 = vst [vmem:[#allocation7 + $0x130] sm:$0xff] %v3131
    %3324 = vst [vmem:[#allocation7 + $0x138] sm:$0xff] %v3133
    %3325 = vst [vmem:[#allocation7 + $0x140] sm:$0xff] %v3277
    %3326 = vst [vmem:[#allocation7 + $0x148] sm:$0xff] %v3279
    %3327 = vst [vmem:[#allocation7 + $0x150] sm:$0xff] %v2989
    %3328 = vst [vmem:[#allocation7 + $0x158] sm:$0xff] %v2991
    %3329 = vst [vmem:[#allocation7 + $0x160] sm:$0xff] %v3135
    %3330 = vst [vmem:[#allocation7 + $0x168] sm:$0xff] %v3137
    %3331 = vst [vmem:[#allocation7 + $0x170] sm:$0xff] %v3281
    %3332 = vst [vmem:[#allocation7 + $0x178] sm:$0xff] %v3283
    %v3333 = vld [vmem:[%s13] sm:$0x3]
    %p3334 = scmp.gt.s32.totalorder %s1530, 0
    // Predicated region
    $region196: #{network_forward.1} parent=1 // pred_check
      %p3335 = pneg %p3334
    $region197: #{network_forward.1} parent=1 // pred_check_branch
      %3337 = sbr.rel (%p3335) target = $region199
    $region198: #{network_forward.1} parent=1 // pred_region
      %v3338 = vld [vmem:[#allocation8] sm:$0xff]
      %v3339 = vld [vmem:[#allocation8 + $0x8] sm:$0xff]
      %v3340 = vld [vmem:[#allocation7] sm:$0xff]
      %v3341 = vld [vmem:[#allocation7 + $0x8] sm:$0xff]
      %v3342 = vld [vmem:[#allocation7 + $0x10] sm:$0xff]
      %v3343 = vld [vmem:[#allocation7 + $0x18] sm:$0xff]
      %v3344 = vld [vmem:[#allocation7 + $0x20] sm:$0xff]
      %v3345 = vld [vmem:[#allocation7 + $0x28] sm:$0xff]
      %v3346 = vpack.c.bf16 %v3338, %v3338
      %v3347 = vpack.c.bf16 %v3339, %v3339
      %v3348 = vld [vmem:[%s12] sm:$0xff]
      %v3349 = vld [vmem:[%s12 + $0x8] sm:$0xff]
      %v3350 = vld [vmem:[%s12 + $0x10] sm:$0xff]
      %v3351 = vld [vmem:[%s12 + $0x18] sm:$0xff]
      %v3352 = vld [vmem:[%s12 + $0x20] sm:$0xff]
      %v3353 = vld [vmem:[%s12 + $0x28] sm:$0xff]
      %v3354 = vld [vmem:[%s12 + $0x30] sm:$0xff]
      %v3355 = vld [vmem:[%s12 + $0x38] sm:$0xff]
      %v3356 = vld [vmem:[%s12 + $0x40] sm:$0xff]
      %v3357 = vld [vmem:[%s12 + $0x48] sm:$0xff]
      %v3358 = vld [vmem:[%s12 + $0x50] sm:$0xff]
      %v3359 = vld [vmem:[%s12 + $0x58] sm:$0xff]
      %v3360 = vld [vmem:[%s12 + $0x60] sm:$0xff]
      %v3361 = vld [vmem:[%s12 + $0x68] sm:$0xff]
      %v3362 = vld [vmem:[%s12 + $0x70] sm:$0xff]
      %v3363 = vld [vmem:[%s12 + $0x78] sm:$0xff]
      %v3364 = vld [vmem:[%s12 + $0x80] sm:$0xff]
      %v3365 = vld [vmem:[%s12 + $0x88] sm:$0xff]
      %v3366 = vld [vmem:[%s12 + $0x90] sm:$0xff]
      %v3367 = vld [vmem:[%s12 + $0x98] sm:$0xff]
      %v3368 = vld [vmem:[%s12 + $0xa0] sm:$0xff]
      %v3369 = vld [vmem:[%s12 + $0xa8] sm:$0xff]
      %v3370 = vld [vmem:[%s12 + $0xb0] sm:$0xff]
      %v3371 = vld [vmem:[%s12 + $0xb8] sm:$0xff]
      %v3372 = vld [vmem:[%s12 + $0xc0] sm:$0xff]
      %v3373 = vld [vmem:[%s12 + $0xc8] sm:$0xff]
      %v3374 = vld [vmem:[%s12 + $0xd0] sm:$0xff]
      %v3375 = vld [vmem:[%s12 + $0xd8] sm:$0xff]
      %v3376 = vld [vmem:[%s12 + $0xe0] sm:$0xff]
      %v3377 = vld [vmem:[%s12 + $0xe8] sm:$0xff]
      %v3378 = vld [vmem:[%s12 + $0xf0] sm:$0xff]
      %v3379 = vld [vmem:[%s12 + $0xf8] sm:$0xff]
      %v3380 = vld [vmem:[%s12 + $0x100] sm:$0xff]
      %v3381 = vld [vmem:[%s12 + $0x108] sm:$0xff]
      %v3382 = vld [vmem:[%s12 + $0x110] sm:$0xff]
      %v3383 = vld [vmem:[%s12 + $0x118] sm:$0xff]
      %v3384 = vld [vmem:[%s12 + $0x120] sm:$0xff]
      %v3385 = vld [vmem:[%s12 + $0x128] sm:$0xff]
      %v3386 = vld [vmem:[%s12 + $0x130] sm:$0xff]
      %v3387 = vld [vmem:[%s12 + $0x138] sm:$0xff]
      %v3388 = vld [vmem:[%s12 + $0x140] sm:$0xff]
      %v3389 = vld [vmem:[%s12 + $0x148] sm:$0xff]
      %v3390 = vld [vmem:[%s12 + $0x150] sm:$0xff]
      %v3391 = vld [vmem:[%s12 + $0x158] sm:$0xff]
      %v3392 = vld [vmem:[%s12 + $0x160] sm:$0xff]
      %v3393 = vld [vmem:[%s12 + $0x168] sm:$0xff]
      %v3394 = vld [vmem:[%s12 + $0x170] sm:$0xff]
      %v3395 = vld [vmem:[%s12 + $0x178] sm:$0xff]
      %v3396 = vld [vmem:[%s12 + $0x180] sm:$0xff]
      %v3397 = vld [vmem:[%s12 + $0x188] sm:$0xff]
      %v3398 = vld [vmem:[%s12 + $0x190] sm:$0xff]
      %v3399 = vld [vmem:[%s12 + $0x198] sm:$0xff]
      %v3400 = vld [vmem:[%s12 + $0x1a0] sm:$0xff]
      %v3401 = vld [vmem:[%s12 + $0x1a8] sm:$0xff]
      %v3402 = vld [vmem:[%s12 + $0x1b0] sm:$0xff]
      %v3403 = vld [vmem:[%s12 + $0x1b8] sm:$0xff]
      %v3404 = vld [vmem:[%s12 + $0x1c0] sm:$0xff]
      %v3405 = vld [vmem:[%s12 + $0x1c8] sm:$0xff]
      %v3406 = vld [vmem:[%s12 + $0x1d0] sm:$0xff]
      %v3407 = vld [vmem:[%s12 + $0x1d8] sm:$0xff]
      %v3408 = vld [vmem:[%s12 + $0x1e0] sm:$0xff]
      %v3409 = vld [vmem:[%s12 + $0x1e8] sm:$0xff]
      %v3410 = vld [vmem:[%s12 + $0x1f0] sm:$0xff]
      %v3411 = vld [vmem:[%s12 + $0x1f8] sm:$0xff]
      %v3412 = vld [vmem:[%s12 + $0x200] sm:$0xff]
      %v3413 = vld [vmem:[%s12 + $0x208] sm:$0xff]
      %v3414 = vld [vmem:[%s12 + $0x210] sm:$0xff]
      %v3415 = vld [vmem:[%s12 + $0x218] sm:$0xff]
      %v3416 = vld [vmem:[%s12 + $0x220] sm:$0xff]
      %v3417 = vld [vmem:[%s12 + $0x228] sm:$0xff]
      %v3418 = vld [vmem:[%s12 + $0x230] sm:$0xff]
      %v3419 = vld [vmem:[%s12 + $0x238] sm:$0xff]
      %v3420 = vld [vmem:[%s12 + $0x240] sm:$0xff]
      %v3421 = vld [vmem:[%s12 + $0x248] sm:$0xff]
      %v3422 = vld [vmem:[%s12 + $0x250] sm:$0xff]
      %v3423 = vld [vmem:[%s12 + $0x258] sm:$0xff]
      %v3424 = vld [vmem:[%s12 + $0x260] sm:$0xff]
      %v3425 = vld [vmem:[%s12 + $0x268] sm:$0xff]
      %v3426 = vld [vmem:[%s12 + $0x270] sm:$0xff]
      %v3427 = vld [vmem:[%s12 + $0x278] sm:$0xff]
      %v3428 = vld [vmem:[%s12 + $0x280] sm:$0xff]
      %v3429 = vld [vmem:[%s12 + $0x288] sm:$0xff]
      %v3430 = vld [vmem:[%s12 + $0x290] sm:$0xff]
      %v3431 = vld [vmem:[%s12 + $0x298] sm:$0xff]
      %v3432 = vld [vmem:[%s12 + $0x2a0] sm:$0xff]
      %v3433 = vld [vmem:[%s12 + $0x2a8] sm:$0xff]
      %v3434 = vld [vmem:[%s12 + $0x2b0] sm:$0xff]
      %v3435 = vld [vmem:[%s12 + $0x2b8] sm:$0xff]
      %v3436 = vld [vmem:[%s12 + $0x2c0] sm:$0xff]
      %v3437 = vld [vmem:[%s12 + $0x2c8] sm:$0xff]
      %v3438 = vld [vmem:[%s12 + $0x2d0] sm:$0xff]
      %v3439 = vld [vmem:[%s12 + $0x2d8] sm:$0xff]
      %v3440 = vld [vmem:[%s12 + $0x2e0] sm:$0xff]
      %v3441 = vld [vmem:[%s12 + $0x2e8] sm:$0xff]
      %v3442 = vld [vmem:[%s12 + $0x2f0] sm:$0xff]
      %v3443 = vld [vmem:[%s12 + $0x2f8] sm:$0xff]
      %v3540 = vunpack.c.l.b16 %v3348
      %v3541 = vunpack.c.h.b16 %v3348
      %v3542 = vunpack.c.l.b16 %v3349
      %v3543 = vunpack.c.h.b16 %v3349
      %v3544 = vunpack.c.l.b16 %v3350
      %v3545 = vunpack.c.h.b16 %v3350
      %v3546 = vunpack.c.l.b16 %v3351
      %v3547 = vunpack.c.h.b16 %v3351
      %v3548 = vunpack.c.l.b16 %v3352
      %v3549 = vunpack.c.h.b16 %v3352
      %v3550 = vunpack.c.l.b16 %v3353
      %v3551 = vunpack.c.h.b16 %v3353
      %v3552 = vunpack.c.l.b16 %v3354
      %v3553 = vunpack.c.h.b16 %v3354
      %v3554 = vunpack.c.l.b16 %v3355
      %v3555 = vunpack.c.h.b16 %v3355
      %v3556 = vunpack.c.l.b16 %v3356
      %v3557 = vunpack.c.h.b16 %v3356
      %v3558 = vunpack.c.l.b16 %v3357
      %v3559 = vunpack.c.h.b16 %v3357
      %v3560 = vunpack.c.l.b16 %v3358
      %v3561 = vunpack.c.h.b16 %v3358
      %v3562 = vunpack.c.l.b16 %v3359
      %v3563 = vunpack.c.h.b16 %v3359
      %v3564 = vunpack.c.l.b16 %v3360
      %v3565 = vunpack.c.h.b16 %v3360
      %v3566 = vunpack.c.l.b16 %v3361
      %v3567 = vunpack.c.h.b16 %v3361
      %v3568 = vunpack.c.l.b16 %v3362
      %v3569 = vunpack.c.h.b16 %v3362
      %v3570 = vunpack.c.l.b16 %v3363
      %v3571 = vunpack.c.h.b16 %v3363
      %v3572 = vunpack.c.l.b16 %v3364
      %v3573 = vunpack.c.h.b16 %v3364
      %v3574 = vunpack.c.l.b16 %v3365
      %v3575 = vunpack.c.h.b16 %v3365
      %v3576 = vunpack.c.l.b16 %v3366
      %v3577 = vunpack.c.h.b16 %v3366
      %v3578 = vunpack.c.l.b16 %v3367
      %v3579 = vunpack.c.h.b16 %v3367
      %v3580 = vunpack.c.l.b16 %v3368
      %v3581 = vunpack.c.h.b16 %v3368
      %v3582 = vunpack.c.l.b16 %v3369
      %v3583 = vunpack.c.h.b16 %v3369
      %v3584 = vunpack.c.l.b16 %v3370
      %v3585 = vunpack.c.h.b16 %v3370
      %v3586 = vunpack.c.l.b16 %v3371
      %v3587 = vunpack.c.h.b16 %v3371
      %v3588 = vunpack.c.l.b16 %v3372
      %v3589 = vunpack.c.h.b16 %v3372
      %v3590 = vunpack.c.l.b16 %v3373
      %v3591 = vunpack.c.h.b16 %v3373
      %v3592 = vunpack.c.l.b16 %v3374
      %v3593 = vunpack.c.h.b16 %v3374
      %v3594 = vunpack.c.l.b16 %v3375
      %v3595 = vunpack.c.h.b16 %v3375
      %v3596 = vunpack.c.l.b16 %v3376
      %v3597 = vunpack.c.h.b16 %v3376
      %v3598 = vunpack.c.l.b16 %v3377
      %v3599 = vunpack.c.h.b16 %v3377
      %v3600 = vunpack.c.l.b16 %v3378
      %v3601 = vunpack.c.h.b16 %v3378
      %v3602 = vunpack.c.l.b16 %v3379
      %v3603 = vunpack.c.h.b16 %v3379
      %v3604 = vunpack.c.l.b16 %v3380
      %v3605 = vunpack.c.h.b16 %v3380
      %v3606 = vunpack.c.l.b16 %v3381
      %v3607 = vunpack.c.h.b16 %v3381
      %v3608 = vunpack.c.l.b16 %v3382
      %v3609 = vunpack.c.h.b16 %v3382
      %v3610 = vunpack.c.l.b16 %v3383
      %v3611 = vunpack.c.h.b16 %v3383
      %v3612 = vunpack.c.l.b16 %v3384
      %v3613 = vunpack.c.h.b16 %v3384
      %v3614 = vunpack.c.l.b16 %v3385
      %v3615 = vunpack.c.h.b16 %v3385
      %v3616 = vunpack.c.l.b16 %v3386
      %v3617 = vunpack.c.h.b16 %v3386
      %v3618 = vunpack.c.l.b16 %v3387
      %v3619 = vunpack.c.h.b16 %v3387
      %v3620 = vunpack.c.l.b16 %v3388
      %v3621 = vunpack.c.h.b16 %v3388
      %v3622 = vunpack.c.l.b16 %v3389
      %v3623 = vunpack.c.h.b16 %v3389
      %v3624 = vunpack.c.l.b16 %v3390
      %v3625 = vunpack.c.h.b16 %v3390
      %v3626 = vunpack.c.l.b16 %v3391
      %v3627 = vunpack.c.h.b16 %v3391
      %v3628 = vunpack.c.l.b16 %v3392
      %v3629 = vunpack.c.h.b16 %v3392
      %v3630 = vunpack.c.l.b16 %v3393
      %v3631 = vunpack.c.h.b16 %v3393
      %v3632 = vunpack.c.l.b16 %v3394
      %v3633 = vunpack.c.h.b16 %v3394
      %v3634 = vunpack.c.l.b16 %v3395
      %v3635 = vunpack.c.h.b16 %v3395
      %v3636 = vunpack.c.l.b16 %v3396
      %v3637 = vunpack.c.h.b16 %v3396
      %v3638 = vunpack.c.l.b16 %v3397
      %v3639 = vunpack.c.h.b16 %v3397
      %v3640 = vunpack.c.l.b16 %v3398
      %v3641 = vunpack.c.h.b16 %v3398
      %v3642 = vunpack.c.l.b16 %v3399
      %v3643 = vunpack.c.h.b16 %v3399
      %v3644 = vunpack.c.l.b16 %v3400
      %v3645 = vunpack.c.h.b16 %v3400
      %v3646 = vunpack.c.l.b16 %v3401
      %v3647 = vunpack.c.h.b16 %v3401
      %v3648 = vunpack.c.l.b16 %v3402
      %v3649 = vunpack.c.h.b16 %v3402
      %v3650 = vunpack.c.l.b16 %v3403
      %v3651 = vunpack.c.h.b16 %v3403
      %v3652 = vunpack.c.l.b16 %v3404
      %v3653 = vunpack.c.h.b16 %v3404
      %v3654 = vunpack.c.l.b16 %v3405
      %v3655 = vunpack.c.h.b16 %v3405
      %v3656 = vunpack.c.l.b16 %v3406
      %v3657 = vunpack.c.h.b16 %v3406
      %v3658 = vunpack.c.l.b16 %v3407
      %v3659 = vunpack.c.h.b16 %v3407
      %v3660 = vunpack.c.l.b16 %v3408
      %v3661 = vunpack.c.h.b16 %v3408
      %v3662 = vunpack.c.l.b16 %v3409
      %v3663 = vunpack.c.h.b16 %v3409
      %v3664 = vunpack.c.l.b16 %v3410
      %v3665 = vunpack.c.h.b16 %v3410
      %v3666 = vunpack.c.l.b16 %v3411
      %v3667 = vunpack.c.h.b16 %v3411
      %v3668 = vunpack.c.l.b16 %v3412
      %v3669 = vunpack.c.h.b16 %v3412
      %v3670 = vunpack.c.l.b16 %v3413
      %v3671 = vunpack.c.h.b16 %v3413
      %v3672 = vunpack.c.l.b16 %v3414
      %v3673 = vunpack.c.h.b16 %v3414
      %v3674 = vunpack.c.l.b16 %v3415
      %v3675 = vunpack.c.h.b16 %v3415
      %v3676 = vunpack.c.l.b16 %v3416
      %v3677 = vunpack.c.h.b16 %v3416
      %v3678 = vunpack.c.l.b16 %v3417
      %v3679 = vunpack.c.h.b16 %v3417
      %v3680 = vunpack.c.l.b16 %v3418
      %v3681 = vunpack.c.h.b16 %v3418
      %v3682 = vunpack.c.l.b16 %v3419
      %v3683 = vunpack.c.h.b16 %v3419
      %v3684 = vunpack.c.l.b16 %v3420
      %v3685 = vunpack.c.h.b16 %v3420
      %v3686 = vunpack.c.l.b16 %v3421
      %v3687 = vunpack.c.h.b16 %v3421
      %v3688 = vunpack.c.l.b16 %v3422
      %v3689 = vunpack.c.h.b16 %v3422
      %v3690 = vunpack.c.l.b16 %v3423
      %v3691 = vunpack.c.h.b16 %v3423
      %v3692 = vunpack.c.l.b16 %v3424
      %v3693 = vunpack.c.h.b16 %v3424
      %v3694 = vunpack.c.l.b16 %v3425
      %v3695 = vunpack.c.h.b16 %v3425
      %v3696 = vunpack.c.l.b16 %v3426
      %v3697 = vunpack.c.h.b16 %v3426
      %v3698 = vunpack.c.l.b16 %v3427
      %v3699 = vunpack.c.h.b16 %v3427
      %v3700 = vunpack.c.l.b16 %v3428
      %v3701 = vunpack.c.h.b16 %v3428
      %v3702 = vunpack.c.l.b16 %v3429
      %v3703 = vunpack.c.h.b16 %v3429
      %v3704 = vunpack.c.l.b16 %v3430
      %v3705 = vunpack.c.h.b16 %v3430
      %v3706 = vunpack.c.l.b16 %v3431
      %v3707 = vunpack.c.h.b16 %v3431
      %v3708 = vunpack.c.l.b16 %v3432
      %v3709 = vunpack.c.h.b16 %v3432
      %v3710 = vunpack.c.l.b16 %v3433
      %v3711 = vunpack.c.h.b16 %v3433
      %v3712 = vunpack.c.l.b16 %v3434
      %v3713 = vunpack.c.h.b16 %v3434
      %v3714 = vunpack.c.l.b16 %v3435
      %v3715 = vunpack.c.h.b16 %v3435
      %v3716 = vunpack.c.l.b16 %v3436
      %v3717 = vunpack.c.h.b16 %v3436
      %v3718 = vunpack.c.l.b16 %v3437
      %v3719 = vunpack.c.h.b16 %v3437
      %v3720 = vunpack.c.l.b16 %v3438
      %v3721 = vunpack.c.h.b16 %v3438
      %v3722 = vunpack.c.l.b16 %v3439
      %v3723 = vunpack.c.h.b16 %v3439
      %v3724 = vunpack.c.l.b16 %v3440
      %v3725 = vunpack.c.h.b16 %v3440
      %v3726 = vunpack.c.l.b16 %v3441
      %v3727 = vunpack.c.h.b16 %v3441
      %v3728 = vunpack.c.l.b16 %v3442
      %v3729 = vunpack.c.h.b16 %v3442
      %v3730 = vunpack.c.l.b16 %v3443
      %v3731 = vunpack.c.h.b16 %v3443
      %v3732 = vpack.c.b16 %v3546, %v3540
      %v3733 = vpack.c.b16 %v3547, %v3541
      %v3734 = vpack.c.b16 %v3548, %v3542
      %v3735 = vpack.c.b16 %v3549, %v3543
      %v3736 = vpack.c.b16 %v3550, %v3544
      %v3737 = vpack.c.b16 %v3551, %v3545
      %v3738 = vpack.c.b16 %v3558, %v3552
      %v3739 = vpack.c.b16 %v3559, %v3553
      %v3740 = vpack.c.b16 %v3560, %v3554
      %v3741 = vpack.c.b16 %v3561, %v3555
      %v3742 = vpack.c.b16 %v3562, %v3556
      %v3743 = vpack.c.b16 %v3563, %v3557
      %v3744 = vpack.c.b16 %v3570, %v3564
      %v3745 = vpack.c.b16 %v3571, %v3565
      %v3746 = vpack.c.b16 %v3572, %v3566
      %v3747 = vpack.c.b16 %v3573, %v3567
      %v3748 = vpack.c.b16 %v3574, %v3568
      %v3749 = vpack.c.b16 %v3575, %v3569
      %v3750 = vpack.c.b16 %v3582, %v3576
      %v3751 = vpack.c.b16 %v3583, %v3577
      %v3752 = vpack.c.b16 %v3584, %v3578
      %v3753 = vpack.c.b16 %v3585, %v3579
      %v3754 = vpack.c.b16 %v3586, %v3580
      %v3755 = vpack.c.b16 %v3587, %v3581
      %v3756 = vpack.c.b16 %v3594, %v3588
      %v3757 = vpack.c.b16 %v3595, %v3589
      %v3758 = vpack.c.b16 %v3596, %v3590
      %v3759 = vpack.c.b16 %v3597, %v3591
      %v3760 = vpack.c.b16 %v3598, %v3592
      %v3761 = vpack.c.b16 %v3599, %v3593
      %v3762 = vpack.c.b16 %v3606, %v3600
      %v3763 = vpack.c.b16 %v3607, %v3601
      %v3764 = vpack.c.b16 %v3608, %v3602
      %v3765 = vpack.c.b16 %v3609, %v3603
      %v3766 = vpack.c.b16 %v3610, %v3604
      %v3767 = vpack.c.b16 %v3611, %v3605
      %v3768 = vpack.c.b16 %v3618, %v3612
      %v3769 = vpack.c.b16 %v3619, %v3613
      %v3770 = vpack.c.b16 %v3620, %v3614
      %v3771 = vpack.c.b16 %v3621, %v3615
      %v3772 = vpack.c.b16 %v3622, %v3616
      %v3773 = vpack.c.b16 %v3623, %v3617
      %v3774 = vpack.c.b16 %v3630, %v3624
      %v3775 = vpack.c.b16 %v3631, %v3625
      %v3776 = vpack.c.b16 %v3632, %v3626
      %v3777 = vpack.c.b16 %v3633, %v3627
      %v3778 = vpack.c.b16 %v3634, %v3628
      %v3779 = vpack.c.b16 %v3635, %v3629
      %v3780 = vpack.c.b16 %v3642, %v3636
      %v3781 = vpack.c.b16 %v3643, %v3637
      %v3782 = vpack.c.b16 %v3644, %v3638
      %v3783 = vpack.c.b16 %v3645, %v3639
      %v3784 = vpack.c.b16 %v3646, %v3640
      %v3785 = vpack.c.b16 %v3647, %v3641
      %v3786 = vpack.c.b16 %v3654, %v3648
      %v3787 = vpack.c.b16 %v3655, %v3649
      %v3788 = vpack.c.b16 %v3656, %v3650
      %v3789 = vpack.c.b16 %v3657, %v3651
      %v3790 = vpack.c.b16 %v3658, %v3652
      %v3791 = vpack.c.b16 %v3659, %v3653
      %v3792 = vpack.c.b16 %v3666, %v3660
      %v3793 = vpack.c.b16 %v3667, %v3661
      %v3794 = vpack.c.b16 %v3668, %v3662
      %v3795 = vpack.c.b16 %v3669, %v3663
      %v3796 = vpack.c.b16 %v3670, %v3664
      %v3797 = vpack.c.b16 %v3671, %v3665
      %v3798 = vpack.c.b16 %v3678, %v3672
      %v3799 = vpack.c.b16 %v3679, %v3673
      %v3800 = vpack.c.b16 %v3680, %v3674
      %v3801 = vpack.c.b16 %v3681, %v3675
      %v3802 = vpack.c.b16 %v3682, %v3676
      %v3803 = vpack.c.b16 %v3683, %v3677
      %v3804 = vpack.c.b16 %v3690, %v3684
      %v3805 = vpack.c.b16 %v3691, %v3685
      %v3806 = vpack.c.b16 %v3692, %v3686
      %v3807 = vpack.c.b16 %v3693, %v3687
      %v3808 = vpack.c.b16 %v3694, %v3688
      %v3809 = vpack.c.b16 %v3695, %v3689
      %v3810 = vpack.c.b16 %v3702, %v3696
      %v3811 = vpack.c.b16 %v3703, %v3697
      %v3812 = vpack.c.b16 %v3704, %v3698
      %v3813 = vpack.c.b16 %v3705, %v3699
      %v3814 = vpack.c.b16 %v3706, %v3700
      %v3815 = vpack.c.b16 %v3707, %v3701
      %v3816 = vpack.c.b16 %v3714, %v3708
      %v3817 = vpack.c.b16 %v3715, %v3709
      %v3818 = vpack.c.b16 %v3716, %v3710
      %v3819 = vpack.c.b16 %v3717, %v3711
      %v3820 = vpack.c.b16 %v3718, %v3712
      %v3821 = vpack.c.b16 %v3719, %v3713
      %v3822 = vpack.c.b16 %v3726, %v3720
      %v3823 = vpack.c.b16 %v3727, %v3721
      %v3824 = vpack.c.b16 %v3728, %v3722
      %v3825 = vpack.c.b16 %v3729, %v3723
      %v3826 = vpack.c.b16 %v3730, %v3724
      %v3827 = vpack.c.b16 %v3731, %v3725
      %3924 = vmatprep.subr.bf16.mxu0 %v3733
      %3925 = vmatpush1.bf16.msra.mxu0 %v3732
      %3926 = vmatprep.subr.bf16.mxu0 %v3739
      %3927 = vmatpush1.bf16.msra.mxu0 %v3738
      %3928 = vmatprep.subr.bf16.mxu0 %v3745
      %3929 = vmatpush1.bf16.msra.mxu0 %v3744
      %3930 = vmatprep.subr.bf16.mxu0 %v3751
      %3931 = vmatpush1.bf16.msra.mxu0 %v3750
      %3932 = vmatprep.subr.bf16.mxu0 %v3757
      %3933 = vmatpush1.bf16.msra.mxu0 %v3756
      %3934 = vmatprep.subr.bf16.mxu0 %v3763
      %3935 = vmatpush1.bf16.msra.mxu0 %v3762
      %3936 = vmatprep.subr.bf16.mxu0 %v3769
      %3937 = vmatpush1.bf16.msra.mxu0 %v3768
      %3938 = vmatprep.subr.bf16.mxu0 %v3775
      %3939 = vmatpush1.bf16.msra.mxu0 %v3774
      %3940 = vmatprep.subr.bf16.mxu0 %v3781
      %3941 = vmatpush1.bf16.msra.mxu0 %v3780
      %3942 = vmatprep.subr.bf16.mxu0 %v3787
      %3943 = vmatpush1.bf16.msra.mxu0 %v3786
      %3944 = vmatprep.subr.bf16.mxu0 %v3793
      %3945 = vmatpush1.bf16.msra.mxu0 %v3792
      %3946 = vmatprep.subr.bf16.mxu0 %v3799
      %3947 = vmatpush1.bf16.msra.mxu0 %v3798
      %3948 = vmatprep.subr.bf16.mxu0 %v3805
      %3949 = vmatpush1.bf16.msra.mxu0 %v3804
      %3950 = vmatprep.subr.bf16.mxu0 %v3811
      %3951 = vmatpush1.bf16.msra.mxu0 %v3810
      %3952 = vmatprep.subr.bf16.mxu0 %v3817
      %3953 = vmatpush1.bf16.msra.mxu0 %v3816
      %3954 = vmatprep.subr.bf16.mxu0 %v3823
      %3955 = vmatpush1.bf16.msra.mxu0 %v3822
      %3956 = vmatprep.mubr.bf16.mxu0 %v3347
      %3957 = vmatmul.mubr.bf16.gmra.mrb[0].mxu0 %v3346
      %v3958 = vpop.f32.mrb[0].mxu0
      %v3959 = vadd.f32 0.0, %v3958
      %v3960 = vpop.f32.mrb[0].mxu0
      %v3961 = vadd.f32 0.0, %v3960
      %v3962 = vpop.f32.mrb[0].mxu0
      %v3963 = vpop.f32.mrb[0].mxu0
      %3964 = vdwg.mxu0
      %3965 = vmatprep.subr.bf16.mxu0 %v3735
      %3966 = vmatpush1.bf16.msra.mxu0 %v3734
      %3967 = vmatprep.subr.bf16.mxu0 %v3741
      %3968 = vmatpush1.bf16.msra.mxu0 %v3740
      %3969 = vmatprep.subr.bf16.mxu0 %v3747
      %3970 = vmatpush1.bf16.msra.mxu0 %v3746
      %3971 = vmatprep.subr.bf16.mxu0 %v3753
      %3972 = vmatpush1.bf16.msra.mxu0 %v3752
      %3973 = vmatprep.subr.bf16.mxu0 %v3759
      %3974 = vmatpush1.bf16.msra.mxu0 %v3758
      %3975 = vmatprep.subr.bf16.mxu0 %v3765
      %3976 = vmatpush1.bf16.msra.mxu0 %v3764
      %3977 = vmatprep.subr.bf16.mxu0 %v3771
      %3978 = vmatpush1.bf16.msra.mxu0 %v3770
      %3979 = vmatprep.subr.bf16.mxu0 %v3777
      %3980 = vmatpush1.bf16.msra.mxu0 %v3776
      %3981 = vmatprep.subr.bf16.mxu0 %v3783
      %3982 = vmatpush1.bf16.msra.mxu0 %v3782
      %3983 = vmatprep.subr.bf16.mxu0 %v3789
      %3984 = vmatpush1.bf16.msra.mxu0 %v3788
      %3985 = vmatprep.subr.bf16.mxu0 %v3795
      %3986 = vmatpush1.bf16.msra.mxu0 %v3794
      %3987 = vmatprep.subr.bf16.mxu0 %v3801
      %3988 = vmatpush1.bf16.msra.mxu0 %v3800
      %3989 = vmatprep.subr.bf16.mxu0 %v3807
      %3990 = vmatpush1.bf16.msra.mxu0 %v3806
      %3991 = vmatprep.subr.bf16.mxu0 %v3813
      %3992 = vmatpush1.bf16.msra.mxu0 %v3812
      %3993 = vmatprep.subr.bf16.mxu0 %v3819
      %3994 = vmatpush1.bf16.msra.mxu0 %v3818
      %3995 = vmatprep.subr.bf16.mxu0 %v3825
      %3996 = vmatpush1.bf16.msra.mxu0 %v3824
      %3997 = vmatprep.mubr.bf16.mxu0 %v3347
      %3998 = vmatmul.mubr.bf16.gmra.mrb[0].mxu0 %v3346
      %v3999 = vpop.f32.mrb[0].mxu0
      %v4000 = vadd.f32 0.0, %v3999
      %v4001 = vpop.f32.mrb[0].mxu0
      %v4002 = vadd.f32 0.0, %v4001
      %v4003 = vpop.f32.mrb[0].mxu0
      %v4004 = vpop.f32.mrb[0].mxu0
      %4005 = vdwg.mxu0
      %4006 = vmatprep.subr.bf16.mxu0 %v3737
      %4007 = vmatpush1.bf16.msra.mxu0 %v3736
      %4008 = vmatprep.subr.bf16.mxu0 %v3743
      %4009 = vmatpush1.bf16.msra.mxu0 %v3742
      %4010 = vmatprep.subr.bf16.mxu0 %v3749
      %4011 = vmatpush1.bf16.msra.mxu0 %v3748
      %4012 = vmatprep.subr.bf16.mxu0 %v3755
      %4013 = vmatpush1.bf16.msra.mxu0 %v3754
      %4014 = vmatprep.subr.bf16.mxu0 %v3761
      %4015 = vmatpush1.bf16.msra.mxu0 %v3760
      %4016 = vmatprep.subr.bf16.mxu0 %v3767
      %4017 = vmatpush1.bf16.msra.mxu0 %v3766
      %4018 = vmatprep.subr.bf16.mxu0 %v3773
      %4019 = vmatpush1.bf16.msra.mxu0 %v3772
      %4020 = vmatprep.subr.bf16.mxu0 %v3779
      %4021 = vmatpush1.bf16.msra.mxu0 %v3778
      %4022 = vmatprep.subr.bf16.mxu0 %v3785
      %4023 = vmatpush1.bf16.msra.mxu0 %v3784
      %4024 = vmatprep.subr.bf16.mxu0 %v3791
      %4025 = vmatpush1.bf16.msra.mxu0 %v3790
      %4026 = vmatprep.subr.bf16.mxu0 %v3797
      %4027 = vmatpush1.bf16.msra.mxu0 %v3796
      %4028 = vmatprep.subr.bf16.mxu0 %v3803
      %4029 = vmatpush1.bf16.msra.mxu0 %v3802
      %4030 = vmatprep.subr.bf16.mxu0 %v3809
      %4031 = vmatpush1.bf16.msra.mxu0 %v3808
      %4032 = vmatprep.subr.bf16.mxu0 %v3815
      %4033 = vmatpush1.bf16.msra.mxu0 %v3814
      %4034 = vmatprep.subr.bf16.mxu0 %v3821
      %4035 = vmatpush1.bf16.msra.mxu0 %v3820
      %4036 = vmatprep.subr.bf16.mxu0 %v3827
      %4037 = vmatpush1.bf16.msra.mxu0 %v3826
      %4038 = vmatprep.mubr.bf16.mxu0 %v3347
      %4039 = vmatmul.mubr.bf16.gmra.mrb[0].mxu0 %v3346
      %v4040 = vpop.f32.mrb[0].mxu0
      %v4041 = vadd.f32 0.0, %v4040
      %v4042 = vpop.f32.mrb[0].mxu0
      %v4043 = vadd.f32 0.0, %v4042
      %v4044 = vpop.f32.mrb[0].mxu0
      %v4045 = vpop.f32.mrb[0].mxu0
      %4046 = vdwg.mxu0
      %v4047 = vadd.f32 %v3340, %v3959
      %v4048 = vadd.f32 %v3341, %v3961
      %v4049 = vxor.u32 %v4047, 2147483648
      %v4050 = vxor.u32 %v4048, 2147483648
      %v4051 = vmul.f32 %v4049, 1.442695
      %v4052 = vpow.pop %v4051
      %v4053 = vmul.f32 %v4050, 1.442695
      %v4054 = vpow.pop %v4053
      %v4055 = vadd.f32 %v4052, 1.0
      %v4056 = vadd.f32 %v4054, 1.0
      %v4057 = vrcp.pop %v4055
      %v4058 = vmul.f32 1.0, %v4057
      %v4059 = vrcp.pop %v4056
      %v4060 = vmul.f32 1.0, %v4059
      %v4061 = vadd.f32 %v3342, %v4000
      %v4062 = vadd.f32 %v3343, %v4002
      %v4063 = vxor.u32 %v4061, 2147483648
      %v4064 = vxor.u32 %v4062, 2147483648
      %v4065 = vmul.f32 %v4063, 1.442695
      %v4066 = vpow.pop %v4065
      %v4067 = vmul.f32 %v4064, 1.442695
      %v4068 = vpow.pop %v4067
      %v4069 = vadd.f32 %v4066, 1.0
      %v4070 = vadd.f32 %v4068, 1.0
      %v4071 = vrcp.pop %v4069
      %v4072 = vmul.f32 1.0, %v4071
      %v4073 = vrcp.pop %v4070
      %v4074 = vmul.f32 1.0, %v4073
      %v4076 = vlaneseq
      %v4077 = vshrl.u32 %v4076, 7
      %v4078 = vsub.s32 0, %v4077
      %v4079 = vrot.slane %v3333, %v4078
      %v4080 = vlaneseq
      %v4081 = vshrl.u32 %v4080, 7
      %v4082 = vsub.s32 1, %v4081
      %v4083 = vrot.slane %v3333, %v4082
      %v4086 = vadd.f32 %v4041, %v4079
      %v4087 = vadd.f32 %v4043, %v4083
      %v4088 = vmul.f32 %v4058, %v4086
      %v4089 = vmul.f32 %v4060, %v4087
      %v4090 = vadd.f32 %v3344, %v4088
      %v4091 = vadd.f32 %v3345, %v4089
      %v4092 = vtanh.pop %v4090
      %v4093 = vtanh.pop %v4091
      %v4094 = vsub.f32 %v3338, %v4092
      %v4095 = vsub.f32 %v3339, %v4093
      %v4096 = vmul.f32 %v4072, %v4094
      %v4097 = vmul.f32 %v4074, %v4095
      %v4098 = vadd.f32 %v4092, %v4096
      %v4099 = vadd.f32 %v4093, %v4097
      %4100 = vst [vmem:[#allocation8] sm:$0xff] %v4098
      %4101 = vst [vmem:[#allocation8 + $0x8] sm:$0xff] %v4099
    $region199: #{network_forward.1} parent=1 // pred_fallthru
      _
    %p4102 = scmp.eq.s32.totalorder %s1530, 1
    // Predicated region
    $region200: #{network_forward.1} parent=1 // pred_check
      %p4103 = pneg %p4102
    $region201: #{network_forward.1} parent=1 // pred_check_branch
      %4105 = sbr.rel (%p4103) target = $region203
    $region202: #{network_forward.1} parent=1 // pred_region
      %v4106 = vld [vmem:[#allocation8] sm:$0xff]
      %v4107 = vld [vmem:[#allocation8 + $0x8] sm:$0xff]
      %4108 = vst [vmem:[#allocation9] sm:$0xff] %v4106
      %4109 = vst [vmem:[#allocation9 + $0x8] sm:$0xff] %v4107
    $region203: #{network_forward.1} parent=1 // pred_fallthru
      _
    %p4110 = scmp.gt.s32.totalorder %s1530, 1
    // Predicated region
    $region204: #{network_forward.1} parent=1 // pred_check
      %p4111 = pneg %p4110
    $region205: #{network_forward.1} parent=1 // pred_check_branch
      %4113 = sbr.rel (%p4111) target = $region207
    $region206: #{network_forward.1} parent=1 // pred_region
      %v4114 = vld [vmem:[#allocation8] sm:$0xff]
      %v4115 = vld [vmem:[#allocation8 + $0x8] sm:$0xff]
      %v4116 = vld [vmem:[#allocation7 + $0x30] sm:$0xff]
      %v4117 = vld [vmem:[#allocation7 + $0x38] sm:$0xff]
      %v4118 = vld [vmem:[#allocation7 + $0x40] sm:$0xff]
      %v4119 = vld [vmem:[#allocation7 + $0x48] sm:$0xff]
      %v4120 = vld [vmem:[#allocation7 + $0x50] sm:$0xff]
      %v4121 = vld [vmem:[#allocation7 + $0x58] sm:$0xff]
      %v4122 = vpack.c.bf16 %v4114, %v4114
      %v4123 = vpack.c.bf16 %v4115, %v4115
      %v4124 = vld [vmem:[%s12] sm:$0xff]
      %v4125 = vld [vmem:[%s12 + $0x8] sm:$0xff]
      %v4126 = vld [vmem:[%s12 + $0x10] sm:$0xff]
      %v4127 = vld [vmem:[%s12 + $0x18] sm:$0xff]
      %v4128 = vld [vmem:[%s12 + $0x20] sm:$0xff]
      %v4129 = vld [vmem:[%s12 + $0x28] sm:$0xff]
      %v4130 = vld [vmem:[%s12 + $0x30] sm:$0xff]
      %v4131 = vld [vmem:[%s12 + $0x38] sm:$0xff]
      %v4132 = vld [vmem:[%s12 + $0x40] sm:$0xff]
      %v4133 = vld [vmem:[%s12 + $0x48] sm:$0xff]
      %v4134 = vld [vmem:[%s12 + $0x50] sm:$0xff]
      %v4135 = vld [vmem:[%s12 + $0x58] sm:$0xff]
      %v4136 = vld [vmem:[%s12 + $0x60] sm:$0xff]
      %v4137 = vld [vmem:[%s12 + $0x68] sm:$0xff]
      %v4138 = vld [vmem:[%s12 + $0x70] sm:$0xff]
      %v4139 = vld [vmem:[%s12 + $0x78] sm:$0xff]
      %v4140 = vld [vmem:[%s12 + $0x80] sm:$0xff]
      %v4141 = vld [vmem:[%s12 + $0x88] sm:$0xff]
      %v4142 = vld [vmem:[%s12 + $0x90] sm:$0xff]
      %v4143 = vld [vmem:[%s12 + $0x98] sm:$0xff]
      %v4144 = vld [vmem:[%s12 + $0xa0] sm:$0xff]
      %v4145 = vld [vmem:[%s12 + $0xa8] sm:$0xff]
      %v4146 = vld [vmem:[%s12 + $0xb0] sm:$0xff]
      %v4147 = vld [vmem:[%s12 + $0xb8] sm:$0xff]
      %v4148 = vld [vmem:[%s12 + $0xc0] sm:$0xff]
      %v4149 = vld [vmem:[%s12 + $0xc8] sm:$0xff]
      %v4150 = vld [vmem:[%s12 + $0xd0] sm:$0xff]
      %v4151 = vld [vmem:[%s12 + $0xd8] sm:$0xff]
      %v4152 = vld [vmem:[%s12 + $0xe0] sm:$0xff]
      %v4153 = vld [vmem:[%s12 + $0xe8] sm:$0xff]
      %v4154 = vld [vmem:[%s12 + $0xf0] sm:$0xff]
      %v4155 = vld [vmem:[%s12 + $0xf8] sm:$0xff]
      %v4156 = vld [vmem:[%s12 + $0x100] sm:$0xff]
      %v4157 = vld [vmem:[%s12 + $0x108] sm:$0xff]
      %v4158 = vld [vmem:[%s12 + $0x110] sm:$0xff]
      %v4159 = vld [vmem:[%s12 + $0x118] sm:$0xff]
      %v4160 = vld [vmem:[%s12 + $0x120] sm:$0xff]
      %v4161 = vld [vmem:[%s12 + $0x128] sm:$0xff]
      %v4162 = vld [vmem:[%s12 + $0x130] sm:$0xff]
      %v4163 = vld [vmem:[%s12 + $0x138] sm:$0xff]
      %v4164 = vld [vmem:[%s12 + $0x140] sm:$0xff]
      %v4165 = vld [vmem:[%s12 + $0x148] sm:$0xff]
      %v4166 = vld [vmem:[%s12 + $0x150] sm:$0xff]
      %v4167 = vld [vmem:[%s12 + $0x158] sm:$0xff]
      %v4168 = vld [vmem:[%s12 + $0x160] sm:$0xff]
      %v4169 = vld [vmem:[%s12 + $0x168] sm:$0xff]
      %v4170 = vld [vmem:[%s12 + $0x170] sm:$0xff]
      %v4171 = vld [vmem:[%s12 + $0x178] sm:$0xff]
      %v4172 = vld [vmem:[%s12 + $0x180] sm:$0xff]
      %v4173 = vld [vmem:[%s12 + $0x188] sm:$0xff]
      %v4174 = vld [vmem:[%s12 + $0x190] sm:$0xff]
      %v4175 = vld [vmem:[%s12 + $0x198] sm:$0xff]
      %v4176 = vld [vmem:[%s12 + $0x1a0] sm:$0xff]
      %v4177 = vld [vmem:[%s12 + $0x1a8] sm:$0xff]
      %v4178 = vld [vmem:[%s12 + $0x1b0] sm:$0xff]
      %v4179 = vld [vmem:[%s12 + $0x1b8] sm:$0xff]
      %v4180 = vld [vmem:[%s12 + $0x1c0] sm:$0xff]
      %v4181 = vld [vmem:[%s12 + $0x1c8] sm:$0xff]
      %v4182 = vld [vmem:[%s12 + $0x1d0] sm:$0xff]
      %v4183 = vld [vmem:[%s12 + $0x1d8] sm:$0xff]
      %v4184 = vld [vmem:[%s12 + $0x1e0] sm:$0xff]
      %v4185 = vld [vmem:[%s12 + $0x1e8] sm:$0xff]
      %v4186 = vld [vmem:[%s12 + $0x1f0] sm:$0xff]
      %v4187 = vld [vmem:[%s12 + $0x1f8] sm:$0xff]
      %v4188 = vld [vmem:[%s12 + $0x200] sm:$0xff]
      %v4189 = vld [vmem:[%s12 + $0x208] sm:$0xff]
      %v4190 = vld [vmem:[%s12 + $0x210] sm:$0xff]
      %v4191 = vld [vmem:[%s12 + $0x218] sm:$0xff]
      %v4192 = vld [vmem:[%s12 + $0x220] sm:$0xff]
      %v4193 = vld [vmem:[%s12 + $0x228] sm:$0xff]
      %v4194 = vld [vmem:[%s12 + $0x230] sm:$0xff]
      %v4195 = vld [vmem:[%s12 + $0x238] sm:$0xff]
      %v4196 = vld [vmem:[%s12 + $0x240] sm:$0xff]
      %v4197 = vld [vmem:[%s12 + $0x248] sm:$0xff]
      %v4198 = vld [vmem:[%s12 + $0x250] sm:$0xff]
      %v4199 = vld [vmem:[%s12 + $0x258] sm:$0xff]
      %v4200 = vld [vmem:[%s12 + $0x260] sm:$0xff]
      %v4201 = vld [vmem:[%s12 + $0x268] sm:$0xff]
      %v4202 = vld [vmem:[%s12 + $0x270] sm:$0xff]
      %v4203 = vld [vmem:[%s12 + $0x278] sm:$0xff]
      %v4204 = vld [vmem:[%s12 + $0x280] sm:$0xff]
      %v4205 = vld [vmem:[%s12 + $0x288] sm:$0xff]
      %v4206 = vld [vmem:[%s12 + $0x290] sm:$0xff]
      %v4207 = vld [vmem:[%s12 + $0x298] sm:$0xff]
      %v4208 = vld [vmem:[%s12 + $0x2a0] sm:$0xff]
      %v4209 = vld [vmem:[%s12 + $0x2a8] sm:$0xff]
      %v4210 = vld [vmem:[%s12 + $0x2b0] sm:$0xff]
      %v4211 = vld [vmem:[%s12 + $0x2b8] sm:$0xff]
      %v4212 = vld [vmem:[%s12 + $0x2c0] sm:$0xff]
      %v4213 = vld [vmem:[%s12 + $0x2c8] sm:$0xff]
      %v4214 = vld [vmem:[%s12 + $0x2d0] sm:$0xff]
      %v4215 = vld [vmem:[%s12 + $0x2d8] sm:$0xff]
      %v4216 = vld [vmem:[%s12 + $0x2e0] sm:$0xff]
      %v4217 = vld [vmem:[%s12 + $0x2e8] sm:$0xff]
      %v4218 = vld [vmem:[%s12 + $0x2f0] sm:$0xff]
      %v4219 = vld [vmem:[%s12 + $0x2f8] sm:$0xff]
      %v4316 = vunpack.c.l.b16 %v4124
      %v4317 = vunpack.c.h.b16 %v4124
      %v4318 = vunpack.c.l.b16 %v4125
      %v4319 = vunpack.c.h.b16 %v4125
      %v4320 = vunpack.c.l.b16 %v4126
      %v4321 = vunpack.c.h.b16 %v4126
      %v4322 = vunpack.c.l.b16 %v4127
      %v4323 = vunpack.c.h.b16 %v4127
      %v4324 = vunpack.c.l.b16 %v4128
      %v4325 = vunpack.c.h.b16 %v4128
      %v4326 = vunpack.c.l.b16 %v4129
      %v4327 = vunpack.c.h.b16 %v4129
      %v4328 = vunpack.c.l.b16 %v4130
      %v4329 = vunpack.c.h.b16 %v4130
      %v4330 = vunpack.c.l.b16 %v4131
      %v4331 = vunpack.c.h.b16 %v4131
      %v4332 = vunpack.c.l.b16 %v4132
      %v4333 = vunpack.c.h.b16 %v4132
      %v4334 = vunpack.c.l.b16 %v4133
      %v4335 = vunpack.c.h.b16 %v4133
      %v4336 = vunpack.c.l.b16 %v4134
      %v4337 = vunpack.c.h.b16 %v4134
      %v4338 = vunpack.c.l.b16 %v4135
      %v4339 = vunpack.c.h.b16 %v4135
      %v4340 = vunpack.c.l.b16 %v4136
      %v4341 = vunpack.c.h.b16 %v4136
      %v4342 = vunpack.c.l.b16 %v4137
      %v4343 = vunpack.c.h.b16 %v4137
      %v4344 = vunpack.c.l.b16 %v4138
      %v4345 = vunpack.c.h.b16 %v4138
      %v4346 = vunpack.c.l.b16 %v4139
      %v4347 = vunpack.c.h.b16 %v4139
      %v4348 = vunpack.c.l.b16 %v4140
      %v4349 = vunpack.c.h.b16 %v4140
      %v4350 = vunpack.c.l.b16 %v4141
      %v4351 = vunpack.c.h.b16 %v4141
      %v4352 = vunpack.c.l.b16 %v4142
      %v4353 = vunpack.c.h.b16 %v4142
      %v4354 = vunpack.c.l.b16 %v4143
      %v4355 = vunpack.c.h.b16 %v4143
      %v4356 = vunpack.c.l.b16 %v4144
      %v4357 = vunpack.c.h.b16 %v4144
      %v4358 = vunpack.c.l.b16 %v4145
      %v4359 = vunpack.c.h.b16 %v4145
      %v4360 = vunpack.c.l.b16 %v4146
      %v4361 = vunpack.c.h.b16 %v4146
      %v4362 = vunpack.c.l.b16 %v4147
      %v4363 = vunpack.c.h.b16 %v4147
      %v4364 = vunpack.c.l.b16 %v4148
      %v4365 = vunpack.c.h.b16 %v4148
      %v4366 = vunpack.c.l.b16 %v4149
      %v4367 = vunpack.c.h.b16 %v4149
      %v4368 = vunpack.c.l.b16 %v4150
      %v4369 = vunpack.c.h.b16 %v4150
      %v4370 = vunpack.c.l.b16 %v4151
      %v4371 = vunpack.c.h.b16 %v4151
      %v4372 = vunpack.c.l.b16 %v4152
      %v4373 = vunpack.c.h.b16 %v4152
      %v4374 = vunpack.c.l.b16 %v4153
      %v4375 = vunpack.c.h.b16 %v4153
      %v4376 = vunpack.c.l.b16 %v4154
      %v4377 = vunpack.c.h.b16 %v4154
      %v4378 = vunpack.c.l.b16 %v4155
      %v4379 = vunpack.c.h.b16 %v4155
      %v4380 = vunpack.c.l.b16 %v4156
      %v4381 = vunpack.c.h.b16 %v4156
      %v4382 = vunpack.c.l.b16 %v4157
      %v4383 = vunpack.c.h.b16 %v4157
      %v4384 = vunpack.c.l.b16 %v4158
      %v4385 = vunpack.c.h.b16 %v4158
      %v4386 = vunpack.c.l.b16 %v4159
      %v4387 = vunpack.c.h.b16 %v4159
      %v4388 = vunpack.c.l.b16 %v4160
      %v4389 = vunpack.c.h.b16 %v4160
      %v4390 = vunpack.c.l.b16 %v4161
      %v4391 = vunpack.c.h.b16 %v4161
      %v4392 = vunpack.c.l.b16 %v4162
      %v4393 = vunpack.c.h.b16 %v4162
      %v4394 = vunpack.c.l.b16 %v4163
      %v4395 = vunpack.c.h.b16 %v4163
      %v4396 = vunpack.c.l.b16 %v4164
      %v4397 = vunpack.c.h.b16 %v4164
      %v4398 = vunpack.c.l.b16 %v4165
      %v4399 = vunpack.c.h.b16 %v4165
      %v4400 = vunpack.c.l.b16 %v4166
      %v4401 = vunpack.c.h.b16 %v4166
      %v4402 = vunpack.c.l.b16 %v4167
      %v4403 = vunpack.c.h.b16 %v4167
      %v4404 = vunpack.c.l.b16 %v4168
      %v4405 = vunpack.c.h.b16 %v4168
      %v4406 = vunpack.c.l.b16 %v4169
      %v4407 = vunpack.c.h.b16 %v4169
      %v4408 = vunpack.c.l.b16 %v4170
      %v4409 = vunpack.c.h.b16 %v4170
      %v4410 = vunpack.c.l.b16 %v4171
      %v4411 = vunpack.c.h.b16 %v4171
      %v4412 = vunpack.c.l.b16 %v4172
      %v4413 = vunpack.c.h.b16 %v4172
      %v4414 = vunpack.c.l.b16 %v4173
      %v4415 = vunpack.c.h.b16 %v4173
      %v4416 = vunpack.c.l.b16 %v4174
      %v4417 = vunpack.c.h.b16 %v4174
      %v4418 = vunpack.c.l.b16 %v4175
      %v4419 = vunpack.c.h.b16 %v4175
      %v4420 = vunpack.c.l.b16 %v4176
      %v4421 = vunpack.c.h.b16 %v4176
      %v4422 = vunpack.c.l.b16 %v4177
      %v4423 = vunpack.c.h.b16 %v4177
      %v4424 = vunpack.c.l.b16 %v4178
      %v4425 = vunpack.c.h.b16 %v4178
      %v4426 = vunpack.c.l.b16 %v4179
      %v4427 = vunpack.c.h.b16 %v4179
      %v4428 = vunpack.c.l.b16 %v4180
      %v4429 = vunpack.c.h.b16 %v4180
      %v4430 = vunpack.c.l.b16 %v4181
      %v4431 = vunpack.c.h.b16 %v4181
      %v4432 = vunpack.c.l.b16 %v4182
      %v4433 = vunpack.c.h.b16 %v4182
      %v4434 = vunpack.c.l.b16 %v4183
      %v4435 = vunpack.c.h.b16 %v4183
      %v4436 = vunpack.c.l.b16 %v4184
      %v4437 = vunpack.c.h.b16 %v4184
      %v4438 = vunpack.c.l.b16 %v4185
      %v4439 = vunpack.c.h.b16 %v4185
      %v4440 = vunpack.c.l.b16 %v4186
      %v4441 = vunpack.c.h.b16 %v4186
      %v4442 = vunpack.c.l.b16 %v4187
      %v4443 = vunpack.c.h.b16 %v4187
      %v4444 = vunpack.c.l.b16 %v4188
      %v4445 = vunpack.c.h.b16 %v4188
      %v4446 = vunpack.c.l.b16 %v4189
      %v4447 = vunpack.c.h.b16 %v4189
      %v4448 = vunpack.c.l.b16 %v4190
      %v4449 = vunpack.c.h.b16 %v4190
      %v4450 = vunpack.c.l.b16 %v4191
      %v4451 = vunpack.c.h.b16 %v4191
      %v4452 = vunpack.c.l.b16 %v4192
      %v4453 = vunpack.c.h.b16 %v4192
      %v4454 = vunpack.c.l.b16 %v4193
      %v4455 = vunpack.c.h.b16 %v4193
      %v4456 = vunpack.c.l.b16 %v4194
      %v4457 = vunpack.c.h.b16 %v4194
      %v4458 = vunpack.c.l.b16 %v4195
      %v4459 = vunpack.c.h.b16 %v4195
      %v4460 = vunpack.c.l.b16 %v4196
      %v4461 = vunpack.c.h.b16 %v4196
      %v4462 = vunpack.c.l.b16 %v4197
      %v4463 = vunpack.c.h.b16 %v4197
      %v4464 = vunpack.c.l.b16 %v4198
      %v4465 = vunpack.c.h.b16 %v4198
      %v4466 = vunpack.c.l.b16 %v4199
      %v4467 = vunpack.c.h.b16 %v4199
      %v4468 = vunpack.c.l.b16 %v4200
      %v4469 = vunpack.c.h.b16 %v4200
      %v4470 = vunpack.c.l.b16 %v4201
      %v4471 = vunpack.c.h.b16 %v4201
      %v4472 = vunpack.c.l.b16 %v4202
      %v4473 = vunpack.c.h.b16 %v4202
      %v4474 = vunpack.c.l.b16 %v4203
      %v4475 = vunpack.c.h.b16 %v4203
      %v4476 = vunpack.c.l.b16 %v4204
      %v4477 = vunpack.c.h.b16 %v4204
      %v4478 = vunpack.c.l.b16 %v4205
      %v4479 = vunpack.c.h.b16 %v4205
      %v4480 = vunpack.c.l.b16 %v4206
      %v4481 = vunpack.c.h.b16 %v4206
      %v4482 = vunpack.c.l.b16 %v4207
      %v4483 = vunpack.c.h.b16 %v4207
      %v4484 = vunpack.c.l.b16 %v4208
      %v4485 = vunpack.c.h.b16 %v4208
      %v4486 = vunpack.c.l.b16 %v4209
      %v4487 = vunpack.c.h.b16 %v4209
      %v4488 = vunpack.c.l.b16 %v4210
      %v4489 = vunpack.c.h.b16 %v4210
      %v4490 = vunpack.c.l.b16 %v4211
      %v4491 = vunpack.c.h.b16 %v4211
      %v4492 = vunpack.c.l.b16 %v4212
      %v4493 = vunpack.c.h.b16 %v4212
      %v4494 = vunpack.c.l.b16 %v4213
      %v4495 = vunpack.c.h.b16 %v4213
      %v4496 = vunpack.c.l.b16 %v4214
      %v4497 = vunpack.c.h.b16 %v4214
      %v4498 = vunpack.c.l.b16 %v4215
      %v4499 = vunpack.c.h.b16 %v4215
      %v4500 = vunpack.c.l.b16 %v4216
      %v4501 = vunpack.c.h.b16 %v4216
      %v4502 = vunpack.c.l.b16 %v4217
      %v4503 = vunpack.c.h.b16 %v4217
      %v4504 = vunpack.c.l.b16 %v4218
      %v4505 = vunpack.c.h.b16 %v4218
      %v4506 = vunpack.c.l.b16 %v4219
      %v4507 = vunpack.c.h.b16 %v4219
      %v4508 = vpack.c.b16 %v4322, %v4316
      %v4509 = vpack.c.b16 %v4323, %v4317
      %v4510 = vpack.c.b16 %v4324, %v4318
      %v4511 = vpack.c.b16 %v4325, %v4319
      %v4512 = vpack.c.b16 %v4326, %v4320
      %v4513 = vpack.c.b16 %v4327, %v4321
      %v4514 = vpack.c.b16 %v4334, %v4328
      %v4515 = vpack.c.b16 %v4335, %v4329
      %v4516 = vpack.c.b16 %v4336, %v4330
      %v4517 = vpack.c.b16 %v4337, %v4331
      %v4518 = vpack.c.b16 %v4338, %v4332
      %v4519 = vpack.c.b16 %v4339, %v4333
      %v4520 = vpack.c.b16 %v4346, %v4340
      %v4521 = vpack.c.b16 %v4347, %v4341
      %v4522 = vpack.c.b16 %v4348, %v4342
      %v4523 = vpack.c.b16 %v4349, %v4343
      %v4524 = vpack.c.b16 %v4350, %v4344
      %v4525 = vpack.c.b16 %v4351, %v4345
      %v4526 = vpack.c.b16 %v4358, %v4352
      %v4527 = vpack.c.b16 %v4359, %v4353
      %v4528 = vpack.c.b16 %v4360, %v4354
      %v4529 = vpack.c.b16 %v4361, %v4355
      %v4530 = vpack.c.b16 %v4362, %v4356
      %v4531 = vpack.c.b16 %v4363, %v4357
      %v4532 = vpack.c.b16 %v4370, %v4364
      %v4533 = vpack.c.b16 %v4371, %v4365
      %v4534 = vpack.c.b16 %v4372, %v4366
      %v4535 = vpack.c.b16 %v4373, %v4367
      %v4536 = vpack.c.b16 %v4374, %v4368
      %v4537 = vpack.c.b16 %v4375, %v4369
      %v4538 = vpack.c.b16 %v4382, %v4376
      %v4539 = vpack.c.b16 %v4383, %v4377
      %v4540 = vpack.c.b16 %v4384, %v4378
      %v4541 = vpack.c.b16 %v4385, %v4379
      %v4542 = vpack.c.b16 %v4386, %v4380
      %v4543 = vpack.c.b16 %v4387, %v4381
      %v4544 = vpack.c.b16 %v4394, %v4388
      %v4545 = vpack.c.b16 %v4395, %v4389
      %v4546 = vpack.c.b16 %v4396, %v4390
      %v4547 = vpack.c.b16 %v4397, %v4391
      %v4548 = vpack.c.b16 %v4398, %v4392
      %v4549 = vpack.c.b16 %v4399, %v4393
      %v4550 = vpack.c.b16 %v4406, %v4400
      %v4551 = vpack.c.b16 %v4407, %v4401
      %v4552 = vpack.c.b16 %v4408, %v4402
      %v4553 = vpack.c.b16 %v4409, %v4403
      %v4554 = vpack.c.b16 %v4410, %v4404
      %v4555 = vpack.c.b16 %v4411, %v4405
      %v4556 = vpack.c.b16 %v4418, %v4412
      %v4557 = vpack.c.b16 %v4419, %v4413
      %v4558 = vpack.c.b16 %v4420, %v4414
      %v4559 = vpack.c.b16 %v4421, %v4415
      %v4560 = vpack.c.b16 %v4422, %v4416
      %v4561 = vpack.c.b16 %v4423, %v4417
      %v4562 = vpack.c.b16 %v4430, %v4424
      %v4563 = vpack.c.b16 %v4431, %v4425
      %v4564 = vpack.c.b16 %v4432, %v4426
      %v4565 = vpack.c.b16 %v4433, %v4427
      %v4566 = vpack.c.b16 %v4434, %v4428
      %v4567 = vpack.c.b16 %v4435, %v4429
      %v4568 = vpack.c.b16 %v4442, %v4436
      %v4569 = vpack.c.b16 %v4443, %v4437
      %v4570 = vpack.c.b16 %v4444, %v4438
      %v4571 = vpack.c.b16 %v4445, %v4439
      %v4572 = vpack.c.b16 %v4446, %v4440
      %v4573 = vpack.c.b16 %v4447, %v4441
      %v4574 = vpack.c.b16 %v4454, %v4448
      %v4575 = vpack.c.b16 %v4455, %v4449
      %v4576 = vpack.c.b16 %v4456, %v4450
      %v4577 = vpack.c.b16 %v4457, %v4451
      %v4578 = vpack.c.b16 %v4458, %v4452
      %v4579 = vpack.c.b16 %v4459, %v4453
      %v4580 = vpack.c.b16 %v4466, %v4460
      %v4581 = vpack.c.b16 %v4467, %v4461
      %v4582 = vpack.c.b16 %v4468, %v4462
      %v4583 = vpack.c.b16 %v4469, %v4463
      %v4584 = vpack.c.b16 %v4470, %v4464
      %v4585 = vpack.c.b16 %v4471, %v4465
      %v4586 = vpack.c.b16 %v4478, %v4472
      %v4587 = vpack.c.b16 %v4479, %v4473
      %v4588 = vpack.c.b16 %v4480, %v4474
      %v4589 = vpack.c.b16 %v4481, %v4475
      %v4590 = vpack.c.b16 %v4482, %v4476
      %v4591 = vpack.c.b16 %v4483, %v4477
      %v4592 = vpack.c.b16 %v4490, %v4484
      %v4593 = vpack.c.b16 %v4491, %v4485
      %v4594 = vpack.c.b16 %v4492, %v4486
      %v4595 = vpack.c.b16 %v4493, %v4487
      %v4596 = vpack.c.b16 %v4494, %v4488
      %v4597 = vpack.c.b16 %v4495, %v4489
      %v4598 = vpack.c.b16 %v4502, %v4496
      %v4599 = vpack.c.b16 %v4503, %v4497
      %v4600 = vpack.c.b16 %v4504, %v4498
      %v4601 = vpack.c.b16 %v4505, %v4499
      %v4602 = vpack.c.b16 %v4506, %v4500
      %v4603 = vpack.c.b16 %v4507, %v4501
      %4700 = vmatprep.subr.bf16.mxu0 %v4509
      %4701 = vmatpush1.bf16.msra.mxu0 %v4508
      %4702 = vmatprep.subr.bf16.mxu0 %v4515
      %4703 = vmatpush1.bf16.msra.mxu0 %v4514
      %4704 = vmatprep.subr.bf16.mxu0 %v4521
      %4705 = vmatpush1.bf16.msra.mxu0 %v4520
      %4706 = vmatprep.subr.bf16.mxu0 %v4527
      %4707 = vmatpush1.bf16.msra.mxu0 %v4526
      %4708 = vmatprep.subr.bf16.mxu0 %v4533
      %4709 = vmatpush1.bf16.msra.mxu0 %v4532
      %4710 = vmatprep.subr.bf16.mxu0 %v4539
      %4711 = vmatpush1.bf16.msra.mxu0 %v4538
      %4712 = vmatprep.subr.bf16.mxu0 %v4545
      %4713 = vmatpush1.bf16.msra.mxu0 %v4544
      %4714 = vmatprep.subr.bf16.mxu0 %v4551
      %4715 = vmatpush1.bf16.msra.mxu0 %v4550
      %4716 = vmatprep.subr.bf16.mxu0 %v4557
      %4717 = vmatpush1.bf16.msra.mxu0 %v4556
      %4718 = vmatprep.subr.bf16.mxu0 %v4563
      %4719 = vmatpush1.bf16.msra.mxu0 %v4562
      %4720 = vmatprep.subr.bf16.mxu0 %v4569
      %4721 = vmatpush1.bf16.msra.mxu0 %v4568
      %4722 = vmatprep.subr.bf16.mxu0 %v4575
      %4723 = vmatpush1.bf16.msra.mxu0 %v4574
      %4724 = vmatprep.subr.bf16.mxu0 %v4581
      %4725 = vmatpush1.bf16.msra.mxu0 %v4580
      %4726 = vmatprep.subr.bf16.mxu0 %v4587
      %4727 = vmatpush1.bf16.msra.mxu0 %v4586
      %4728 = vmatprep.subr.bf16.mxu0 %v4593
      %4729 = vmatpush1.bf16.msra.mxu0 %v4592
      %4730 = vmatprep.subr.bf16.mxu0 %v4599
      %4731 = vmatpush1.bf16.msra.mxu0 %v4598
      %4732 = vmatprep.mubr.bf16.mxu0 %v4123
      %4733 = vmatmul.mubr.bf16.gmra.mrb[0].mxu0 %v4122
      %v4734 = vpop.f32.mrb[0].mxu0
      %v4735 = vadd.f32 0.0, %v4734
      %v4736 = vpop.f32.mrb[0].mxu0
      %v4737 = vadd.f32 0.0, %v4736
      %v4738 = vpop.f32.mrb[0].mxu0
      %v4739 = vpop.f32.mrb[0].mxu0
      %4740 = vdwg.mxu0
      %4741 = vmatprep.subr.bf16.mxu0 %v4511
      %4742 = vmatpush1.bf16.msra.mxu0 %v4510
      %4743 = vmatprep.subr.bf16.mxu0 %v4517
      %4744 = vmatpush1.bf16.msra.mxu0 %v4516
      %4745 = vmatprep.subr.bf16.mxu0 %v4523
      %4746 = vmatpush1.bf16.msra.mxu0 %v4522
      %4747 = vmatprep.subr.bf16.mxu0 %v4529
      %4748 = vmatpush1.bf16.msra.mxu0 %v4528
      %4749 = vmatprep.subr.bf16.mxu0 %v4535
      %4750 = vmatpush1.bf16.msra.mxu0 %v4534
      %4751 = vmatprep.subr.bf16.mxu0 %v4541
      %4752 = vmatpush1.bf16.msra.mxu0 %v4540
      %4753 = vmatprep.subr.bf16.mxu0 %v4547
      %4754 = vmatpush1.bf16.msra.mxu0 %v4546
      %4755 = vmatprep.subr.bf16.mxu0 %v4553
      %4756 = vmatpush1.bf16.msra.mxu0 %v4552
      %4757 = vmatprep.subr.bf16.mxu0 %v4559
      %4758 = vmatpush1.bf16.msra.mxu0 %v4558
      %4759 = vmatprep.subr.bf16.mxu0 %v4565
      %4760 = vmatpush1.bf16.msra.mxu0 %v4564
      %4761 = vmatprep.subr.bf16.mxu0 %v4571
      %4762 = vmatpush1.bf16.msra.mxu0 %v4570
      %4763 = vmatprep.subr.bf16.mxu0 %v4577
      %4764 = vmatpush1.bf16.msra.mxu0 %v4576
      %4765 = vmatprep.subr.bf16.mxu0 %v4583
      %4766 = vmatpush1.bf16.msra.mxu0 %v4582
      %4767 = vmatprep.subr.bf16.mxu0 %v4589
      %4768 = vmatpush1.bf16.msra.mxu0 %v4588
      %4769 = vmatprep.subr.bf16.mxu0 %v4595
      %4770 = vmatpush1.bf16.msra.mxu0 %v4594
      %4771 = vmatprep.subr.bf16.mxu0 %v4601
      %4772 = vmatpush1.bf16.msra.mxu0 %v4600
      %4773 = vmatprep.mubr.bf16.mxu0 %v4123
      %4774 = vmatmul.mubr.bf16.gmra.mrb[0].mxu0 %v4122
      %v4775 = vpop.f32.mrb[0].mxu0
      %v4776 = vadd.f32 0.0, %v4775
      %v4777 = vpop.f32.mrb[0].mxu0
      %v4778 = vadd.f32 0.0, %v4777
      %v4779 = vpop.f32.mrb[0].mxu0
      %v4780 = vpop.f32.mrb[0].mxu0
      %4781 = vdwg.mxu0
      %4782 = vmatprep.subr.bf16.mxu0 %v4513
      %4783 = vmatpush1.bf16.msra.mxu0 %v4512
      %4784 = vmatprep.subr.bf16.mxu0 %v4519
      %4785 = vmatpush1.bf16.msra.mxu0 %v4518
      %4786 = vmatprep.subr.bf16.mxu0 %v4525
      %4787 = vmatpush1.bf16.msra.mxu0 %v4524
      %4788 = vmatprep.subr.bf16.mxu0 %v4531
      %4789 = vmatpush1.bf16.msra.mxu0 %v4530
      %4790 = vmatprep.subr.bf16.mxu0 %v4537
      %4791 = vmatpush1.bf16.msra.mxu0 %v4536
      %4792 = vmatprep.subr.bf16.mxu0 %v4543
      %4793 = vmatpush1.bf16.msra.mxu0 %v4542
      %4794 = vmatprep.subr.bf16.mxu0 %v4549
      %4795 = vmatpush1.bf16.msra.mxu0 %v4548
      %4796 = vmatprep.subr.bf16.mxu0 %v4555
      %4797 = vmatpush1.bf16.msra.mxu0 %v4554
      %4798 = vmatprep.subr.bf16.mxu0 %v4561
      %4799 = vmatpush1.bf16.msra.mxu0 %v4560
      %4800 = vmatprep.subr.bf16.mxu0 %v4567
      %4801 = vmatpush1.bf16.msra.mxu0 %v4566
      %4802 = vmatprep.subr.bf16.mxu0 %v4573
      %4803 = vmatpush1.bf16.msra.mxu0 %v4572
      %4804 = vmatprep.subr.bf16.mxu0 %v4579
      %4805 = vmatpush1.bf16.msra.mxu0 %v4578
      %4806 = vmatprep.subr.bf16.mxu0 %v4585
      %4807 = vmatpush1.bf16.msra.mxu0 %v4584
      %4808 = vmatprep.subr.bf16.mxu0 %v4591
      %4809 = vmatpush1.bf16.msra.mxu0 %v4590
      %4810 = vmatprep.subr.bf16.mxu0 %v4597
      %4811 = vmatpush1.bf16.msra.mxu0 %v4596
      %4812 = vmatprep.subr.bf16.mxu0 %v4603
      %4813 = vmatpush1.bf16.msra.mxu0 %v4602
      %4814 = vmatprep.mubr.bf16.mxu0 %v4123
      %4815 = vmatmul.mubr.bf16.gmra.mrb[0].mxu0 %v4122
      %v4816 = vpop.f32.mrb[0].mxu0
      %v4817 = vadd.f32 0.0, %v4816
      %v4818 = vpop.f32.mrb[0].mxu0
      %v4819 = vadd.f32 0.0, %v4818
      %v4820 = vpop.f32.mrb[0].mxu0
      %v4821 = vpop.f32.mrb[0].mxu0
      %4822 = vdwg.mxu0
      %v4823 = vadd.f32 %v4116, %v4735
      %v4824 = vadd.f32 %v4117, %v4737
      %v4825 = vxor.u32 %v4823, 2147483648
      %v4826 = vxor.u32 %v4824, 2147483648
      %v4827 = vmul.f32 %v4825, 1.442695
      %v4828 = vpow.pop %v4827
      %v4829 = vmul.f32 %v4826, 1.442695
      %v4830 = vpow.pop %v4829
      %v4831 = vadd.f32 %v4828, 1.0
      %v4832 = vadd.f32 %v4830, 1.0
      %v4833 = vrcp.pop %v4831
      %v4834 = vmul.f32 1.0, %v4833
      %v4835 = vrcp.pop %v4832
      %v4836 = vmul.f32 1.0, %v4835
      %v4837 = vadd.f32 %v4118, %v4776
      %v4838 = vadd.f32 %v4119, %v4778
      %v4839 = vxor.u32 %v4837, 2147483648
      %v4840 = vxor.u32 %v4838, 2147483648
      %v4841 = vmul.f32 %v4839, 1.442695
      %v4842 = vpow.pop %v4841
      %v4843 = vmul.f32 %v4840, 1.442695
      %v4844 = vpow.pop %v4843
      %v4845 = vadd.f32 %v4842, 1.0
      %v4846 = vadd.f32 %v4844, 1.0
      %v4847 = vrcp.pop %v4845
      %v4848 = vmul.f32 1.0, %v4847
      %v4849 = vrcp.pop %v4846
      %v4850 = vmul.f32 1.0, %v4849
      %v4852 = vlaneseq
      %v4853 = vshrl.u32 %v4852, 7
      %v4854 = vsub.s32 0, %v4853
      %v4855 = vrot.slane %v3333, %v4854
      %v4856 = vlaneseq
      %v4857 = vshrl.u32 %v4856, 7
      %v4858 = vsub.s32 1, %v4857
      %v4859 = vrot.slane %v3333, %v4858
      %v4862 = vadd.f32 %v4817, %v4855
      %v4863 = vadd.f32 %v4819, %v4859
      %v4864 = vmul.f32 %v4834, %v4862
      %v4865 = vmul.f32 %v4836, %v4863
      %v4866 = vadd.f32 %v4120, %v4864
      %v4867 = vadd.f32 %v4121, %v4865
      %v4868 = vtanh.pop %v4866
      %v4869 = vtanh.pop %v4867
      %v4870 = vsub.f32 %v4114, %v4868
      %v4871 = vsub.f32 %v4115, %v4869
      %v4872 = vmul.f32 %v4848, %v4870
      %v4873 = vmul.f32 %v4850, %v4871
      %v4874 = vadd.f32 %v4868, %v4872
      %v4875 = vadd.f32 %v4869, %v4873
      %4876 = vst [vmem:[#allocation8] sm:$0xff] %v4874
      %4877 = vst [vmem:[#allocation8 + $0x8] sm:$0xff] %v4875
    $region207: #{network_forward.1} parent=1 // pred_fallthru
      _
    %p4878 = scmp.eq.s32.totalorder %s1530, 2
    // Predicated region
    $region208: #{network_forward.1} parent=1 // pred_check
      %p4879 = pneg %p4878
    $region209: #{network_forward.1} parent=1 // pred_check_branch
      %4881 = sbr.rel (%p4879) target = $region211
    $region210: #{network_forward.1} parent=1 // pred_region
      %v4882 = vld [vmem:[#allocation8] sm:$0xff]
      %v4883 = vld [vmem:[#allocation8 + $0x8] sm:$0xff]
      %4884 = vst [vmem:[#allocation9] sm:$0xff] %v4882
      %4885 = vst [vmem:[#allocation9 + $0x8] sm:$0xff] %v4883
    $region211: #{network_forward.1} parent=1 // pred_fallthru
      _
    %p4886 = scmp.gt.s32.totalorder %s1530, 2
    // Predicated region
    $region212: #{network_forward.1} parent=1 // pred_check
      %p4887 = pneg %p4886
    $region213: #{network_forward.1} parent=1 // pred_check_branch
      %4889 = sbr.rel (%p4887) target = $region215
    $region214: #{network_forward.1} parent=1 // pred_region
      %v4890 = vld [vmem:[#allocation8] sm:$0xff]
      %v4891 = vld [vmem:[#allocation8 + $0x8] sm:$0xff]
      %v4892 = vld [vmem:[#allocation7 + $0x60] sm:$0xff]
      %v4893 = vld [vmem:[#allocation7 + $0x68] sm:$0xff]
      %v4894 = vld [vmem:[#allocation7 + $0x70] sm:$0xff]
      %v4895 = vld [vmem:[#allocation7 + $0x78] sm:$0xff]
      %v4896 = vld [vmem:[#allocation7 + $0x80] sm:$0xff]
      %v4897 = vld [vmem:[#allocation7 + $0x88] sm:$0xff]
      %v4898 = vpack.c.bf16 %v4890, %v4890
      %v4899 = vpack.c.bf16 %v4891, %v4891
      %v4900 = vld [vmem:[%s12] sm:$0xff]
      %v4901 = vld [vmem:[%s12 + $0x8] sm:$0xff]
      %v4902 = vld [vmem:[%s12 + $0x10] sm:$0xff]
      %v4903 = vld [vmem:[%s12 + $0x18] sm:$0xff]
      %v4904 = vld [vmem:[%s12 + $0x20] sm:$0xff]
      %v4905 = vld [vmem:[%s12 + $0x28] sm:$0xff]
      %v4906 = vld [vmem:[%s12 + $0x30] sm:$0xff]
      %v4907 = vld [vmem:[%s12 + $0x38] sm:$0xff]
      %v4908 = vld [vmem:[%s12 + $0x40] sm:$0xff]
      %v4909 = vld [vmem:[%s12 + $0x48] sm:$0xff]
      %v4910 = vld [vmem:[%s12 + $0x50] sm:$0xff]
      %v4911 = vld [vmem:[%s12 + $0x58] sm:$0xff]
      %v4912 = vld [vmem:[%s12 + $0x60] sm:$0xff]
      %v4913 = vld [vmem:[%s12 + $0x68] sm:$0xff]
      %v4914 = vld [vmem:[%s12 + $0x70] sm:$0xff]
      %v4915 = vld [vmem:[%s12 + $0x78] sm:$0xff]
      %v4916 = vld [vmem:[%s12 + $0x80] sm:$0xff]
      %v4917 = vld [vmem:[%s12 + $0x88] sm:$0xff]
      %v4918 = vld [vmem:[%s12 + $0x90] sm:$0xff]
      %v4919 = vld [vmem:[%s12 + $0x98] sm:$0xff]
      %v4920 = vld [vmem:[%s12 + $0xa0] sm:$0xff]
      %v4921 = vld [vmem:[%s12 + $0xa8] sm:$0xff]
      %v4922 = vld [vmem:[%s12 + $0xb0] sm:$0xff]
      %v4923 = vld [vmem:[%s12 + $0xb8] sm:$0xff]
      %v4924 = vld [vmem:[%s12 + $0xc0] sm:$0xff]
      %v4925 = vld [vmem:[%s12 + $0xc8] sm:$0xff]
      %v4926 = vld [vmem:[%s12 + $0xd0] sm:$0xff]
      %v4927 = vld [vmem:[%s12 + $0xd8] sm:$0xff]
      %v4928 = vld [vmem:[%s12 + $0xe0] sm:$0xff]
      %v4929 = vld [vmem:[%s12 + $0xe8] sm:$0xff]
      %v4930 = vld [vmem:[%s12 + $0xf0] sm:$0xff]
      %v4931 = vld [vmem:[%s12 + $0xf8] sm:$0xff]
      %v4932 = vld [vmem:[%s12 + $0x100] sm:$0xff]
      %v4933 = vld [vmem:[%s12 + $0x108] sm:$0xff]
      %v4934 = vld [vmem:[%s12 + $0x110] sm:$0xff]
      %v4935 = vld [vmem:[%s12 + $0x118] sm:$0xff]
      %v4936 = vld [vmem:[%s12 + $0x120] sm:$0xff]
      %v4937 = vld [vmem:[%s12 + $0x128] sm:$0xff]
      %v4938 = vld [vmem:[%s12 + $0x130] sm:$0xff]
      %v4939 = vld [vmem:[%s12 + $0x138] sm:$0xff]
      %v4940 = vld [vmem:[%s12 + $0x140] sm:$0xff]
      %v4941 = vld [vmem:[%s12 + $0x148] sm:$0xff]
      %v4942 = vld [vmem:[%s12 + $0x150] sm:$0xff]
      %v4943 = vld [vmem:[%s12 + $0x158] sm:$0xff]
      %v4944 = vld [vmem:[%s12 + $0x160] sm:$0xff]
      %v4945 = vld [vmem:[%s12 + $0x168] sm:$0xff]
      %v4946 = vld [vmem:[%s12 + $0x170] sm:$0xff]
      %v4947 = vld [vmem:[%s12 + $0x178] sm:$0xff]
      %v4948 = vld [vmem:[%s12 + $0x180] sm:$0xff]
      %v4949 = vld [vmem:[%s12 + $0x188] sm:$0xff]
      %v4950 = vld [vmem:[%s12 + $0x190] sm:$0xff]
      %v4951 = vld [vmem:[%s12 + $0x198] sm:$0xff]
      %v4952 = vld [vmem:[%s12 + $0x1a0] sm:$0xff]
      %v4953 = vld [vmem:[%s12 + $0x1a8] sm:$0xff]
      %v4954 = vld [vmem:[%s12 + $0x1b0] sm:$0xff]
      %v4955 = vld [vmem:[%s12 + $0x1b8] sm:$0xff]
      %v4956 = vld [vmem:[%s12 + $0x1c0] sm:$0xff]
      %v4957 = vld [vmem:[%s12 + $0x1c8] sm:$0xff]
      %v4958 = vld [vmem:[%s12 + $0x1d0] sm:$0xff]
      %v4959 = vld [vmem:[%s12 + $0x1d8] sm:$0xff]
      %v4960 = vld [vmem:[%s12 + $0x1e0] sm:$0xff]
      %v4961 = vld [vmem:[%s12 + $0x1e8] sm:$0xff]
      %v4962 = vld [vmem:[%s12 + $0x1f0] sm:$0xff]
      %v4963 = vld [vmem:[%s12 + $0x1f8] sm:$0xff]
      %v4964 = vld [vmem:[%s12 + $0x200] sm:$0xff]
      %v4965 = vld [vmem:[%s12 + $0x208] sm:$0xff]
      %v4966 = vld [vmem:[%s12 + $0x210] sm:$0xff]
      %v4967 = vld [vmem:[%s12 + $0x218] sm:$0xff]
      %v4968 = vld [vmem:[%s12 + $0x220] sm:$0xff]
      %v4969 = vld [vmem:[%s12 + $0x228] sm:$0xff]
      %v4970 = vld [vmem:[%s12 + $0x230] sm:$0xff]
      %v4971 = vld [vmem:[%s12 + $0x238] sm:$0xff]
      %v4972 = vld [vmem:[%s12 + $0x240] sm:$0xff]
      %v4973 = vld [vmem:[%s12 + $0x248] sm:$0xff]
      %v4974 = vld [vmem:[%s12 + $0x250] sm:$0xff]
      %v4975 = vld [vmem:[%s12 + $0x258] sm:$0xff]
      %v4976 = vld [vmem:[%s12 + $0x260] sm:$0xff]
      %v4977 = vld [vmem:[%s12 + $0x268] sm:$0xff]
      %v4978 = vld [vmem:[%s12 + $0x270] sm:$0xff]
      %v4979 = vld [vmem:[%s12 + $0x278] sm:$0xff]
      %v4980 = vld [vmem:[%s12 + $0x280] sm:$0xff]
      %v4981 = vld [vmem:[%s12 + $0x288] sm:$0xff]
      %v4982 = vld [vmem:[%s12 + $0x290] sm:$0xff]
      %v4983 = vld [vmem:[%s12 + $0x298] sm:$0xff]
      %v4984 = vld [vmem:[%s12 + $0x2a0] sm:$0xff]
      %v4985 = vld [vmem:[%s12 + $0x2a8] sm:$0xff]
      %v4986 = vld [vmem:[%s12 + $0x2b0] sm:$0xff]
      %v4987 = vld [vmem:[%s12 + $0x2b8] sm:$0xff]
      %v4988 = vld [vmem:[%s12 + $0x2c0] sm:$0xff]
      %v4989 = vld [vmem:[%s12 + $0x2c8] sm:$0xff]
      %v4990 = vld [vmem:[%s12 + $0x2d0] sm:$0xff]
      %v4991 = vld [vmem:[%s12 + $0x2d8] sm:$0xff]
      %v4992 = vld [vmem:[%s12 + $0x2e0] sm:$0xff]
      %v4993 = vld [vmem:[%s12 + $0x2e8] sm:$0xff]
      %v4994 = vld [vmem:[%s12 + $0x2f0] sm:$0xff]
      %v4995 = vld [vmem:[%s12 + $0x2f8] sm:$0xff]
      %v5092 = vunpack.c.l.b16 %v4900
      %v5093 = vunpack.c.h.b16 %v4900
      %v5094 = vunpack.c.l.b16 %v4901
      %v5095 = vunpack.c.h.b16 %v4901
      %v5096 = vunpack.c.l.b16 %v4902
      %v5097 = vunpack.c.h.b16 %v4902
      %v5098 = vunpack.c.l.b16 %v4903
      %v5099 = vunpack.c.h.b16 %v4903
      %v5100 = vunpack.c.l.b16 %v4904
      %v5101 = vunpack.c.h.b16 %v4904
      %v5102 = vunpack.c.l.b16 %v4905
      %v5103 = vunpack.c.h.b16 %v4905
      %v5104 = vunpack.c.l.b16 %v4906
      %v5105 = vunpack.c.h.b16 %v4906
      %v5106 = vunpack.c.l.b16 %v4907
      %v5107 = vunpack.c.h.b16 %v4907
      %v5108 = vunpack.c.l.b16 %v4908
      %v5109 = vunpack.c.h.b16 %v4908
      %v5110 = vunpack.c.l.b16 %v4909
      %v5111 = vunpack.c.h.b16 %v4909
      %v5112 = vunpack.c.l.b16 %v4910
      %v5113 = vunpack.c.h.b16 %v4910
      %v5114 = vunpack.c.l.b16 %v4911
      %v5115 = vunpack.c.h.b16 %v4911
      %v5116 = vunpack.c.l.b16 %v4912
      %v5117 = vunpack.c.h.b16 %v4912
      %v5118 = vunpack.c.l.b16 %v4913
      %v5119 = vunpack.c.h.b16 %v4913
      %v5120 = vunpack.c.l.b16 %v4914
      %v5121 = vunpack.c.h.b16 %v4914
      %v5122 = vunpack.c.l.b16 %v4915
      %v5123 = vunpack.c.h.b16 %v4915
      %v5124 = vunpack.c.l.b16 %v4916
      %v5125 = vunpack.c.h.b16 %v4916
      %v5126 = vunpack.c.l.b16 %v4917
      %v5127 = vunpack.c.h.b16 %v4917
      %v5128 = vunpack.c.l.b16 %v4918
      %v5129 = vunpack.c.h.b16 %v4918
      %v5130 = vunpack.c.l.b16 %v4919
      %v5131 = vunpack.c.h.b16 %v4919
      %v5132 = vunpack.c.l.b16 %v4920
      %v5133 = vunpack.c.h.b16 %v4920
      %v5134 = vunpack.c.l.b16 %v4921
      %v5135 = vunpack.c.h.b16 %v4921
      %v5136 = vunpack.c.l.b16 %v4922
      %v5137 = vunpack.c.h.b16 %v4922
      %v5138 = vunpack.c.l.b16 %v4923
      %v5139 = vunpack.c.h.b16 %v4923
      %v5140 = vunpack.c.l.b16 %v4924
      %v5141 = vunpack.c.h.b16 %v4924
      %v5142 = vunpack.c.l.b16 %v4925
      %v5143 = vunpack.c.h.b16 %v4925
      %v5144 = vunpack.c.l.b16 %v4926
      %v5145 = vunpack.c.h.b16 %v4926
      %v5146 = vunpack.c.l.b16 %v4927
      %v5147 = vunpack.c.h.b16 %v4927
      %v5148 = vunpack.c.l.b16 %v4928
      %v5149 = vunpack.c.h.b16 %v4928
      %v5150 = vunpack.c.l.b16 %v4929
      %v5151 = vunpack.c.h.b16 %v4929
      %v5152 = vunpack.c.l.b16 %v4930
      %v5153 = vunpack.c.h.b16 %v4930
      %v5154 = vunpack.c.l.b16 %v4931
      %v5155 = vunpack.c.h.b16 %v4931
      %v5156 = vunpack.c.l.b16 %v4932
      %v5157 = vunpack.c.h.b16 %v4932
      %v5158 = vunpack.c.l.b16 %v4933
      %v5159 = vunpack.c.h.b16 %v4933
      %v5160 = vunpack.c.l.b16 %v4934
      %v5161 = vunpack.c.h.b16 %v4934
      %v5162 = vunpack.c.l.b16 %v4935
      %v5163 = vunpack.c.h.b16 %v4935
      %v5164 = vunpack.c.l.b16 %v4936
      %v5165 = vunpack.c.h.b16 %v4936
      %v5166 = vunpack.c.l.b16 %v4937
      %v5167 = vunpack.c.h.b16 %v4937
      %v5168 = vunpack.c.l.b16 %v4938
      %v5169 = vunpack.c.h.b16 %v4938
      %v5170 = vunpack.c.l.b16 %v4939
      %v5171 = vunpack.c.h.b16 %v4939
      %v5172 = vunpack.c.l.b16 %v4940
      %v5173 = vunpack.c.h.b16 %v4940
      %v5174 = vunpack.c.l.b16 %v4941
      %v5175 = vunpack.c.h.b16 %v4941
      %v5176 = vunpack.c.l.b16 %v4942
      %v5177 = vunpack.c.h.b16 %v4942
      %v5178 = vunpack.c.l.b16 %v4943
      %v5179 = vunpack.c.h.b16 %v4943
      %v5180 = vunpack.c.l.b16 %v4944
      %v5181 = vunpack.c.h.b16 %v4944
      %v5182 = vunpack.c.l.b16 %v4945
      %v5183 = vunpack.c.h.b16 %v4945
      %v5184 = vunpack.c.l.b16 %v4946
      %v5185 = vunpack.c.h.b16 %v4946
      %v5186 = vunpack.c.l.b16 %v4947
      %v5187 = vunpack.c.h.b16 %v4947
      %v5188 = vunpack.c.l.b16 %v4948
      %v5189 = vunpack.c.h.b16 %v4948
      %v5190 = vunpack.c.l.b16 %v4949
      %v5191 = vunpack.c.h.b16 %v4949
      %v5192 = vunpack.c.l.b16 %v4950
      %v5193 = vunpack.c.h.b16 %v4950
      %v5194 = vunpack.c.l.b16 %v4951
      %v5195 = vunpack.c.h.b16 %v4951
      %v5196 = vunpack.c.l.b16 %v4952
      %v5197 = vunpack.c.h.b16 %v4952
      %v5198 = vunpack.c.l.b16 %v4953
      %v5199 = vunpack.c.h.b16 %v4953
      %v5200 = vunpack.c.l.b16 %v4954
      %v5201 = vunpack.c.h.b16 %v4954
      %v5202 = vunpack.c.l.b16 %v4955
      %v5203 = vunpack.c.h.b16 %v4955
      %v5204 = vunpack.c.l.b16 %v4956
      %v5205 = vunpack.c.h.b16 %v4956
      %v5206 = vunpack.c.l.b16 %v4957
      %v5207 = vunpack.c.h.b16 %v4957
      %v5208 = vunpack.c.l.b16 %v4958
      %v5209 = vunpack.c.h.b16 %v4958
      %v5210 = vunpack.c.l.b16 %v4959
      %v5211 = vunpack.c.h.b16 %v4959
      %v5212 = vunpack.c.l.b16 %v4960
      %v5213 = vunpack.c.h.b16 %v4960
      %v5214 = vunpack.c.l.b16 %v4961
      %v5215 = vunpack.c.h.b16 %v4961
      %v5216 = vunpack.c.l.b16 %v4962
      %v5217 = vunpack.c.h.b16 %v4962
      %v5218 = vunpack.c.l.b16 %v4963
      %v5219 = vunpack.c.h.b16 %v4963
      %v5220 = vunpack.c.l.b16 %v4964
      %v5221 = vunpack.c.h.b16 %v4964
      %v5222 = vunpack.c.l.b16 %v4965
      %v5223 = vunpack.c.h.b16 %v4965
      %v5224 = vunpack.c.l.b16 %v4966
      %v5225 = vunpack.c.h.b16 %v4966
      %v5226 = vunpack.c.l.b16 %v4967
      %v5227 = vunpack.c.h.b16 %v4967
      %v5228 = vunpack.c.l.b16 %v4968
      %v5229 = vunpack.c.h.b16 %v4968
      %v5230 = vunpack.c.l.b16 %v4969
      %v5231 = vunpack.c.h.b16 %v4969
      %v5232 = vunpack.c.l.b16 %v4970
      %v5233 = vunpack.c.h.b16 %v4970
      %v5234 = vunpack.c.l.b16 %v4971
      %v5235 = vunpack.c.h.b16 %v4971
      %v5236 = vunpack.c.l.b16 %v4972
      %v5237 = vunpack.c.h.b16 %v4972
      %v5238 = vunpack.c.l.b16 %v4973
      %v5239 = vunpack.c.h.b16 %v4973
      %v5240 = vunpack.c.l.b16 %v4974
      %v5241 = vunpack.c.h.b16 %v4974
      %v5242 = vunpack.c.l.b16 %v4975
      %v5243 = vunpack.c.h.b16 %v4975
      %v5244 = vunpack.c.l.b16 %v4976
      %v5245 = vunpack.c.h.b16 %v4976
      %v5246 = vunpack.c.l.b16 %v4977
      %v5247 = vunpack.c.h.b16 %v4977
      %v5248 = vunpack.c.l.b16 %v4978
      %v5249 = vunpack.c.h.b16 %v4978
      %v5250 = vunpack.c.l.b16 %v4979
      %v5251 = vunpack.c.h.b16 %v4979
      %v5252 = vunpack.c.l.b16 %v4980
      %v5253 = vunpack.c.h.b16 %v4980
      %v5254 = vunpack.c.l.b16 %v4981
      %v5255 = vunpack.c.h.b16 %v4981
      %v5256 = vunpack.c.l.b16 %v4982
      %v5257 = vunpack.c.h.b16 %v4982
      %v5258 = vunpack.c.l.b16 %v4983
      %v5259 = vunpack.c.h.b16 %v4983
      %v5260 = vunpack.c.l.b16 %v4984
      %v5261 = vunpack.c.h.b16 %v4984
      %v5262 = vunpack.c.l.b16 %v4985
      %v5263 = vunpack.c.h.b16 %v4985
      %v5264 = vunpack.c.l.b16 %v4986
      %v5265 = vunpack.c.h.b16 %v4986
      %v5266 = vunpack.c.l.b16 %v4987
      %v5267 = vunpack.c.h.b16 %v4987
      %v5268 = vunpack.c.l.b16 %v4988
      %v5269 = vunpack.c.h.b16 %v4988
      %v5270 = vunpack.c.l.b16 %v4989
      %v5271 = vunpack.c.h.b16 %v4989
      %v5272 = vunpack.c.l.b16 %v4990
      %v5273 = vunpack.c.h.b16 %v4990
      %v5274 = vunpack.c.l.b16 %v4991
      %v5275 = vunpack.c.h.b16 %v4991
      %v5276 = vunpack.c.l.b16 %v4992
      %v5277 = vunpack.c.h.b16 %v4992
      %v5278 = vunpack.c.l.b16 %v4993
      %v5279 = vunpack.c.h.b16 %v4993
      %v5280 = vunpack.c.l.b16 %v4994
      %v5281 = vunpack.c.h.b16 %v4994
      %v5282 = vunpack.c.l.b16 %v4995
      %v5283 = vunpack.c.h.b16 %v4995
      %v5284 = vpack.c.b16 %v5098, %v5092
      %v5285 = vpack.c.b16 %v5099, %v5093
      %v5286 = vpack.c.b16 %v5100, %v5094
      %v5287 = vpack.c.b16 %v5101, %v5095
      %v5288 = vpack.c.b16 %v5102, %v5096
      %v5289 = vpack.c.b16 %v5103, %v5097
      %v5290 = vpack.c.b16 %v5110, %v5104
      %v5291 = vpack.c.b16 %v5111, %v5105
      %v5292 = vpack.c.b16 %v5112, %v5106
      %v5293 = vpack.c.b16 %v5113, %v5107
      %v5294 = vpack.c.b16 %v5114, %v5108
      %v5295 = vpack.c.b16 %v5115, %v5109
      %v5296 = vpack.c.b16 %v5122, %v5116
      %v5297 = vpack.c.b16 %v5123, %v5117
      %v5298 = vpack.c.b16 %v5124, %v5118
      %v5299 = vpack.c.b16 %v5125, %v5119
      %v5300 = vpack.c.b16 %v5126, %v5120
      %v5301 = vpack.c.b16 %v5127, %v5121
      %v5302 = vpack.c.b16 %v5134, %v5128
      %v5303 = vpack.c.b16 %v5135, %v5129
      %v5304 = vpack.c.b16 %v5136, %v5130
      %v5305 = vpack.c.b16 %v5137, %v5131
      %v5306 = vpack.c.b16 %v5138, %v5132
      %v5307 = vpack.c.b16 %v5139, %v5133
      %v5308 = vpack.c.b16 %v5146, %v5140
      %v5309 = vpack.c.b16 %v5147, %v5141
      %v5310 = vpack.c.b16 %v5148, %v5142
      %v5311 = vpack.c.b16 %v5149, %v5143
      %v5312 = vpack.c.b16 %v5150, %v5144
      %v5313 = vpack.c.b16 %v5151, %v5145
      %v5314 = vpack.c.b16 %v5158, %v5152
      %v5315 = vpack.c.b16 %v5159, %v5153
      %v5316 = vpack.c.b16 %v5160, %v5154
      %v5317 = vpack.c.b16 %v5161, %v5155
      %v5318 = vpack.c.b16 %v5162, %v5156
      %v5319 = vpack.c.b16 %v5163, %v5157
      %v5320 = vpack.c.b16 %v5170, %v5164
      %v5321 = vpack.c.b16 %v5171, %v5165
      %v5322 = vpack.c.b16 %v5172, %v5166
      %v5323 = vpack.c.b16 %v5173, %v5167
      %v5324 = vpack.c.b16 %v5174, %v5168
      %v5325 = vpack.c.b16 %v5175, %v5169
      %v5326 = vpack.c.b16 %v5182, %v5176
      %v5327 = vpack.c.b16 %v5183, %v5177
      %v5328 = vpack.c.b16 %v5184, %v5178
      %v5329 = vpack.c.b16 %v5185, %v5179
      %v5330 = vpack.c.b16 %v5186, %v5180
      %v5331 = vpack.c.b16 %v5187, %v5181
      %v5332 = vpack.c.b16 %v5194, %v5188
      %v5333 = vpack.c.b16 %v5195, %v5189
      %v5334 = vpack.c.b16 %v5196, %v5190
      %v5335 = vpack.c.b16 %v5197, %v5191
      %v5336 = vpack.c.b16 %v5198, %v5192
      %v5337 = vpack.c.b16 %v5199, %v5193
      %v5338 = vpack.c.b16 %v5206, %v5200
      %v5339 = vpack.c.b16 %v5207, %v5201
      %v5340 = vpack.c.b16 %v5208, %v5202
      %v5341 = vpack.c.b16 %v5209, %v5203
      %v5342 = vpack.c.b16 %v5210, %v5204
      %v5343 = vpack.c.b16 %v5211, %v5205
      %v5344 = vpack.c.b16 %v5218, %v5212
      %v5345 = vpack.c.b16 %v5219, %v5213
      %v5346 = vpack.c.b16 %v5220, %v5214
      %v5347 = vpack.c.b16 %v5221, %v5215
      %v5348 = vpack.c.b16 %v5222, %v5216
      %v5349 = vpack.c.b16 %v5223, %v5217
      %v5350 = vpack.c.b16 %v5230, %v5224
      %v5351 = vpack.c.b16 %v5231, %v5225
      %v5352 = vpack.c.b16 %v5232, %v5226
      %v5353 = vpack.c.b16 %v5233, %v5227
      %v5354 = vpack.c.b16 %v5234, %v5228
      %v5355 = vpack.c.b16 %v5235, %v5229
      %v5356 = vpack.c.b16 %v5242, %v5236
      %v5357 = vpack.c.b16 %v5243, %v5237
      %v5358 = vpack.c.b16 %v5244, %v5238
      %v5359 = vpack.c.b16 %v5245, %v5239
      %v5360 = vpack.c.b16 %v5246, %v5240
      %v5361 = vpack.c.b16 %v5247, %v5241
      %v5362 = vpack.c.b16 %v5254, %v5248
      %v5363 = vpack.c.b16 %v5255, %v5249
      %v5364 = vpack.c.b16 %v5256, %v5250
      %v5365 = vpack.c.b16 %v5257, %v5251
      %v5366 = vpack.c.b16 %v5258, %v5252
      %v5367 = vpack.c.b16 %v5259, %v5253
      %v5368 = vpack.c.b16 %v5266, %v5260
      %v5369 = vpack.c.b16 %v5267, %v5261
      %v5370 = vpack.c.b16 %v5268, %v5262
      %v5371 = vpack.c.b16 %v5269, %v5263
      %v5372 = vpack.c.b16 %v5270, %v5264
      %v5373 = vpack.c.b16 %v5271, %v5265
      %v5374 = vpack.c.b16 %v5278, %v5272
      %v5375 = vpack.c.b16 %v5279, %v5273
      %v5376 = vpack.c.b16 %v5280, %v5274
      %v5377 = vpack.c.b16 %v5281, %v5275
      %v5378 = vpack.c.b16 %v5282, %v5276
      %v5379 = vpack.c.b16 %v5283, %v5277
      %5476 = vmatprep.subr.bf16.mxu0 %v5285
      %5477 = vmatpush1.bf16.msra.mxu0 %v5284
      %5478 = vmatprep.subr.bf16.mxu0 %v5291
      %5479 = vmatpush1.bf16.msra.mxu0 %v5290
      %5480 = vmatprep.subr.bf16.mxu0 %v5297
      %5481 = vmatpush1.bf16.msra.mxu0 %v5296
      %5482 = vmatprep.subr.bf16.mxu0 %v5303
      %5483 = vmatpush1.bf16.msra.mxu0 %v5302
      %5484 = vmatprep.subr.bf16.mxu0 %v5309
      %5485 = vmatpush1.bf16.msra.mxu0 %v5308
      %5486 = vmatprep.subr.bf16.mxu0 %v5315
      %5487 = vmatpush1.bf16.msra.mxu0 %v5314
      %5488 = vmatprep.subr.bf16.mxu0 %v5321
      %5489 = vmatpush1.bf16.msra.mxu0 %v5320
      %5490 = vmatprep.subr.bf16.mxu0 %v5327
      %5491 = vmatpush1.bf16.msra.mxu0 %v5326
      %5492 = vmatprep.subr.bf16.mxu0 %v5333
      %5493 = vmatpush1.bf16.msra.mxu0 %v5332
      %5494 = vmatprep.subr.bf16.mxu0 %v5339
      %5495 = vmatpush1.bf16.msra.mxu0 %v5338
      %5496 = vmatprep.subr.bf16.mxu0 %v5345
      %5497 = vmatpush1.bf16.msra.mxu0 %v5344
      %5498 = vmatprep.subr.bf16.mxu0 %v5351
      %5499 = vmatpush1.bf16.msra.mxu0 %v5350
      %5500 = vmatprep.subr.bf16.mxu0 %v5357
      %5501 = vmatpush1.bf16.msra.mxu0 %v5356
      %5502 = vmatprep.subr.bf16.mxu0 %v5363
      %5503 = vmatpush1.bf16.msra.mxu0 %v5362
      %5504 = vmatprep.subr.bf16.mxu0 %v5369
      %5505 = vmatpush1.bf16.msra.mxu0 %v5368
      %5506 = vmatprep.subr.bf16.mxu0 %v5375
      %5507 = vmatpush1.bf16.msra.mxu0 %v5374
      %5508 = vmatprep.mubr.bf16.mxu0 %v4899
      %5509 = vmatmul.mubr.bf16.gmra.mrb[0].mxu0 %v4898
      %v5510 = vpop.f32.mrb[0].mxu0
      %v5511 = vadd.f32 0.0, %v5510
      %v5512 = vpop.f32.mrb[0].mxu0
      %v5513 = vadd.f32 0.0, %v5512
      %v5514 = vpop.f32.mrb[0].mxu0
      %v5515 = vpop.f32.mrb[0].mxu0
      %5516 = vdwg.mxu0
      %5517 = vmatprep.subr.bf16.mxu0 %v5287
      %5518 = vmatpush1.bf16.msra.mxu0 %v5286
      %5519 = vmatprep.subr.bf16.mxu0 %v5293
      %5520 = vmatpush1.bf16.msra.mxu0 %v5292
      %5521 = vmatprep.subr.bf16.mxu0 %v5299
      %5522 = vmatpush1.bf16.msra.mxu0 %v5298
      %5523 = vmatprep.subr.bf16.mxu0 %v5305
      %5524 = vmatpush1.bf16.msra.mxu0 %v5304
      %5525 = vmatprep.subr.bf16.mxu0 %v5311
      %5526 = vmatpush1.bf16.msra.mxu0 %v5310
      %5527 = vmatprep.subr.bf16.mxu0 %v5317
      %5528 = vmatpush1.bf16.msra.mxu0 %v5316
      %5529 = vmatprep.subr.bf16.mxu0 %v5323
      %5530 = vmatpush1.bf16.msra.mxu0 %v5322
      %5531 = vmatprep.subr.bf16.mxu0 %v5329
      %5532 = vmatpush1.bf16.msra.mxu0 %v5328
      %5533 = vmatprep.subr.bf16.mxu0 %v5335
      %5534 = vmatpush1.bf16.msra.mxu0 %v5334
      %5535 = vmatprep.subr.bf16.mxu0 %v5341
      %5536 = vmatpush1.bf16.msra.mxu0 %v5340
      %5537 = vmatprep.subr.bf16.mxu0 %v5347
      %5538 = vmatpush1.bf16.msra.mxu0 %v5346
      %5539 = vmatprep.subr.bf16.mxu0 %v5353
      %5540 = vmatpush1.bf16.msra.mxu0 %v5352
      %5541 = vmatprep.subr.bf16.mxu0 %v5359
      %5542 = vmatpush1.bf16.msra.mxu0 %v5358
      %5543 = vmatprep.subr.bf16.mxu0 %v5365
      %5544 = vmatpush1.bf16.msra.mxu0 %v5364
      %5545 = vmatprep.subr.bf16.mxu0 %v5371
      %5546 = vmatpush1.bf16.msra.mxu0 %v5370
      %5547 = vmatprep.subr.bf16.mxu0 %v5377
      %5548 = vmatpush1.bf16.msra.mxu0 %v5376
      %5549 = vmatprep.mubr.bf16.mxu0 %v4899
      %5550 = vmatmul.mubr.bf16.gmra.mrb[0].mxu0 %v4898
      %v5551 = vpop.f32.mrb[0].mxu0
      %v5552 = vadd.f32 0.0, %v5551
      %v5553 = vpop.f32.mrb[0].mxu0
      %v5554 = vadd.f32 0.0, %v5553
      %v5555 = vpop.f32.mrb[0].mxu0
      %v5556 = vpop.f32.mrb[0].mxu0
      %5557 = vdwg.mxu0
      %5558 = vmatprep.subr.bf16.mxu0 %v5289
      %5559 = vmatpush1.bf16.msra.mxu0 %v5288
      %5560 = vmatprep.subr.bf16.mxu0 %v5295
      %5561 = vmatpush1.bf16.msra.mxu0 %v5294
      %5562 = vmatprep.subr.bf16.mxu0 %v5301
      %5563 = vmatpush1.bf16.msra.mxu0 %v5300
      %5564 = vmatprep.subr.bf16.mxu0 %v5307
      %5565 = vmatpush1.bf16.msra.mxu0 %v5306
      %5566 = vmatprep.subr.bf16.mxu0 %v5313
      %5567 = vmatpush1.bf16.msra.mxu0 %v5312
      %5568 = vmatprep.subr.bf16.mxu0 %v5319
      %5569 = vmatpush1.bf16.msra.mxu0 %v5318
      %5570 = vmatprep.subr.bf16.mxu0 %v5325
      %5571 = vmatpush1.bf16.msra.mxu0 %v5324
      %5572 = vmatprep.subr.bf16.mxu0 %v5331
      %5573 = vmatpush1.bf16.msra.mxu0 %v5330
      %5574 = vmatprep.subr.bf16.mxu0 %v5337
      %5575 = vmatpush1.bf16.msra.mxu0 %v5336
      %5576 = vmatprep.subr.bf16.mxu0 %v5343
      %5577 = vmatpush1.bf16.msra.mxu0 %v5342
      %5578 = vmatprep.subr.bf16.mxu0 %v5349
      %5579 = vmatpush1.bf16.msra.mxu0 %v5348
      %5580 = vmatprep.subr.bf16.mxu0 %v5355
      %5581 = vmatpush1.bf16.msra.mxu0 %v5354
      %5582 = vmatprep.subr.bf16.mxu0 %v5361
      %5583 = vmatpush1.bf16.msra.mxu0 %v5360
      %5584 = vmatprep.subr.bf16.mxu0 %v5367
      %5585 = vmatpush1.bf16.msra.mxu0 %v5366
      %5586 = vmatprep.subr.bf16.mxu0 %v5373
      %5587 = vmatpush1.bf16.msra.mxu0 %v5372
      %5588 = vmatprep.subr.bf16.mxu0 %v5379
      %5589 = vmatpush1.bf16.msra.mxu0 %v5378
      %5590 = vmatprep.mubr.bf16.mxu0 %v4899
      %5591 = vmatmul.mubr.bf16.gmra.mrb[0].mxu0 %v4898
      %v5592 = vpop.f32.mrb[0].mxu0
      %v5593 = vadd.f32 0.0, %v5592
      %v5594 = vpop.f32.mrb[0].mxu0
      %v5595 = vadd.f32 0.0, %v5594
      %v5596 = vpop.f32.mrb[0].mxu0
      %v5597 = vpop.f32.mrb[0].mxu0
      %5598 = vdwg.mxu0
      %v5599 = vadd.f32 %v4892, %v5511
      %v5600 = vadd.f32 %v4893, %v5513
      %v5601 = vxor.u32 %v5599, 2147483648
      %v5602 = vxor.u32 %v5600, 2147483648
      %v5603 = vmul.f32 %v5601, 1.442695
      %v5604 = vpow.pop %v5603
      %v5605 = vmul.f32 %v5602, 1.442695
      %v5606 = vpow.pop %v5605
      %v5607 = vadd.f32 %v5604, 1.0
      %v5608 = vadd.f32 %v5606, 1.0
      %v5609 = vrcp.pop %v5607
      %v5610 = vmul.f32 1.0, %v5609
      %v5611 = vrcp.pop %v5608
      %v5612 = vmul.f32 1.0, %v5611
      %v5613 = vadd.f32 %v4894, %v5552
      %v5614 = vadd.f32 %v4895, %v5554
      %v5615 = vxor.u32 %v5613, 2147483648
      %v5616 = vxor.u32 %v5614, 2147483648
      %v5617 = vmul.f32 %v5615, 1.442695
      %v5618 = vpow.pop %v5617
      %v5619 = vmul.f32 %v5616, 1.442695
      %v5620 = vpow.pop %v5619
      %v5621 = vadd.f32 %v5618, 1.0
      %v5622 = vadd.f32 %v5620, 1.0
      %v5623 = vrcp.pop %v5621
      %v5624 = vmul.f32 1.0, %v5623
      %v5625 = vrcp.pop %v5622
      %v5626 = vmul.f32 1.0, %v5625
      %v5628 = vlaneseq
      %v5629 = vshrl.u32 %v5628, 7
      %v5630 = vsub.s32 0, %v5629
      %v5631 = vrot.slane %v3333, %v5630
      %v5632 = vlaneseq
      %v5633 = vshrl.u32 %v5632, 7
      %v5634 = vsub.s32 1, %v5633
      %v5635 = vrot.slane %v3333, %v5634
      %v5638 = vadd.f32 %v5593, %v5631
      %v5639 = vadd.f32 %v5595, %v5635
      %v5640 = vmul.f32 %v5610, %v5638
      %v5641 = vmul.f32 %v5612, %v5639
      %v5642 = vadd.f32 %v4896, %v5640
      %v5643 = vadd.f32 %v4897, %v5641
      %v5644 = vtanh.pop %v5642
      %v5645 = vtanh.pop %v5643
      %v5646 = vsub.f32 %v4890, %v5644
      %v5647 = vsub.f32 %v4891, %v5645
      %v5648 = vmul.f32 %v5624, %v5646
      %v5649 = vmul.f32 %v5626, %v5647
      %v5650 = vadd.f32 %v5644, %v5648
      %v5651 = vadd.f32 %v5645, %v5649
      %5652 = vst [vmem:[#allocation8] sm:$0xff] %v5650
      %5653 = vst [vmem:[#allocation8 + $0x8] sm:$0xff] %v5651
    $region215: #{network_forward.1} parent=1 // pred_fallthru
      _
    %p5654 = scmp.eq.s32.totalorder %s1530, 3
    // Predicated region
    $region216: #{network_forward.1} parent=1 // pred_check
      %p5655 = pneg %p5654
    $region217: #{network_forward.1} parent=1 // pred_check_branch
      %5657 = sbr.rel (%p5655) target = $region219
    $region218: #{network_forward.1} parent=1 // pred_region
      %v5658 = vld [vmem:[#allocation8] sm:$0xff]
      %v5659 = vld [vmem:[#allocation8 + $0x8] sm:$0xff]
      %5660 = vst [vmem:[#allocation9] sm:$0xff] %v5658
      %5661 = vst [vmem:[#allocation9 + $0x8] sm:$0xff] %v5659
    $region219: #{network_forward.1} parent=1 // pred_fallthru
      _
    %p5662 = scmp.gt.s32.totalorder %s1530, 3
    // Predicated region
    $region220: #{network_forward.1} parent=1 // pred_check
      %p5663 = pneg %p5662
    $region221: #{network_forward.1} parent=1 // pred_check_branch
      %5665 = sbr.rel (%p5663) target = $region223
    $region222: #{network_forward.1} parent=1 // pred_region
      %v5666 = vld [vmem:[#allocation8] sm:$0xff]
      %v5667 = vld [vmem:[#allocation8 + $0x8] sm:$0xff]
      %v5668 = vld [vmem:[#allocation7 + $0x90] sm:$0xff]
      %v5669 = vld [vmem:[#allocation7 + $0x98] sm:$0xff]
      %v5670 = vld [vmem:[#allocation7 + $0xa0] sm:$0xff]
      %v5671 = vld [vmem:[#allocation7 + $0xa8] sm:$0xff]
      %v5672 = vld [vmem:[#allocation7 + $0xb0] sm:$0xff]
      %v5673 = vld [vmem:[#allocation7 + $0xb8] sm:$0xff]
      %v5674 = vpack.c.bf16 %v5666, %v5666
      %v5675 = vpack.c.bf16 %v5667, %v5667
      %v5676 = vld [vmem:[%s12] sm:$0xff]
      %v5677 = vld [vmem:[%s12 + $0x8] sm:$0xff]
      %v5678 = vld [vmem:[%s12 + $0x10] sm:$0xff]
      %v5679 = vld [vmem:[%s12 + $0x18] sm:$0xff]
      %v5680 = vld [vmem:[%s12 + $0x20] sm:$0xff]
      %v5681 = vld [vmem:[%s12 + $0x28] sm:$0xff]
      %v5682 = vld [vmem:[%s12 + $0x30] sm:$0xff]
      %v5683 = vld [vmem:[%s12 + $0x38] sm:$0xff]
      %v5684 = vld [vmem:[%s12 + $0x40] sm:$0xff]
      %v5685 = vld [vmem:[%s12 + $0x48] sm:$0xff]
      %v5686 = vld [vmem:[%s12 + $0x50] sm:$0xff]
      %v5687 = vld [vmem:[%s12 + $0x58] sm:$0xff]
      %v5688 = vld [vmem:[%s12 + $0x60] sm:$0xff]
      %v5689 = vld [vmem:[%s12 + $0x68] sm:$0xff]
      %v5690 = vld [vmem:[%s12 + $0x70] sm:$0xff]
      %v5691 = vld [vmem:[%s12 + $0x78] sm:$0xff]
      %v5692 = vld [vmem:[%s12 + $0x80] sm:$0xff]
      %v5693 = vld [vmem:[%s12 + $0x88] sm:$0xff]
      %v5694 = vld [vmem:[%s12 + $0x90] sm:$0xff]
      %v5695 = vld [vmem:[%s12 + $0x98] sm:$0xff]
      %v5696 = vld [vmem:[%s12 + $0xa0] sm:$0xff]
      %v5697 = vld [vmem:[%s12 + $0xa8] sm:$0xff]
      %v5698 = vld [vmem:[%s12 + $0xb0] sm:$0xff]
      %v5699 = vld [vmem:[%s12 + $0xb8] sm:$0xff]
      %v5700 = vld [vmem:[%s12 + $0xc0] sm:$0xff]
      %v5701 = vld [vmem:[%s12 + $0xc8] sm:$0xff]
      %v5702 = vld [vmem:[%s12 + $0xd0] sm:$0xff]
      %v5703 = vld [vmem:[%s12 + $0xd8] sm:$0xff]
      %v5704 = vld [vmem:[%s12 + $0xe0] sm:$0xff]
      %v5705 = vld [vmem:[%s12 + $0xe8] sm:$0xff]
      %v5706 = vld [vmem:[%s12 + $0xf0] sm:$0xff]
      %v5707 = vld [vmem:[%s12 + $0xf8] sm:$0xff]
      %v5708 = vld [vmem:[%s12 + $0x100] sm:$0xff]
      %v5709 = vld [vmem:[%s12 + $0x108] sm:$0xff]
      %v5710 = vld [vmem:[%s12 + $0x110] sm:$0xff]
      %v5711 = vld [vmem:[%s12 + $0x118] sm:$0xff]
      %v5712 = vld [vmem:[%s12 + $0x120] sm:$0xff]
      %v5713 = vld [vmem:[%s12 + $0x128] sm:$0xff]
      %v5714 = vld [vmem:[%s12 + $0x130] sm:$0xff]
      %v5715 = vld [vmem:[%s12 + $0x138] sm:$0xff]
      %v5716 = vld [vmem:[%s12 + $0x140] sm:$0xff]
      %v5717 = vld [vmem:[%s12 + $0x148] sm:$0xff]
      %v5718 = vld [vmem:[%s12 + $0x150] sm:$0xff]
      %v5719 = vld [vmem:[%s12 + $0x158] sm:$0xff]
      %v5720 = vld [vmem:[%s12 + $0x160] sm:$0xff]
      %v5721 = vld [vmem:[%s12 + $0x168] sm:$0xff]
      %v5722 = vld [vmem:[%s12 + $0x170] sm:$0xff]
      %v5723 = vld [vmem:[%s12 + $0x178] sm:$0xff]
      %v5724 = vld [vmem:[%s12 + $0x180] sm:$0xff]
      %v5725 = vld [vmem:[%s12 + $0x188] sm:$0xff]
      %v5726 = vld [vmem:[%s12 + $0x190] sm:$0xff]
      %v5727 = vld [vmem:[%s12 + $0x198] sm:$0xff]
      %v5728 = vld [vmem:[%s12 + $0x1a0] sm:$0xff]
      %v5729 = vld [vmem:[%s12 + $0x1a8] sm:$0xff]
      %v5730 = vld [vmem:[%s12 + $0x1b0] sm:$0xff]
      %v5731 = vld [vmem:[%s12 + $0x1b8] sm:$0xff]
      %v5732 = vld [vmem:[%s12 + $0x1c0] sm:$0xff]
      %v5733 = vld [vmem:[%s12 + $0x1c8] sm:$0xff]
      %v5734 = vld [vmem:[%s12 + $0x1d0] sm:$0xff]
      %v5735 = vld [vmem:[%s12 + $0x1d8] sm:$0xff]
      %v5736 = vld [vmem:[%s12 + $0x1e0] sm:$0xff]
      %v5737 = vld [vmem:[%s12 + $0x1e8] sm:$0xff]
      %v5738 = vld [vmem:[%s12 + $0x1f0] sm:$0xff]
      %v5739 = vld [vmem:[%s12 + $0x1f8] sm:$0xff]
      %v5740 = vld [vmem:[%s12 + $0x200] sm:$0xff]
      %v5741 = vld [vmem:[%s12 + $0x208] sm:$0xff]
      %v5742 = vld [vmem:[%s12 + $0x210] sm:$0xff]
      %v5743 = vld [vmem:[%s12 + $0x218] sm:$0xff]
      %v5744 = vld [vmem:[%s12 + $0x220] sm:$0xff]
      %v5745 = vld [vmem:[%s12 + $0x228] sm:$0xff]
      %v5746 = vld [vmem:[%s12 + $0x230] sm:$0xff]
      %v5747 = vld [vmem:[%s12 + $0x238] sm:$0xff]
      %v5748 = vld [vmem:[%s12 + $0x240] sm:$0xff]
      %v5749 = vld [vmem:[%s12 + $0x248] sm:$0xff]
      %v5750 = vld [vmem:[%s12 + $0x250] sm:$0xff]
      %v5751 = vld [vmem:[%s12 + $0x258] sm:$0xff]
      %v5752 = vld [vmem:[%s12 + $0x260] sm:$0xff]
      %v5753 = vld [vmem:[%s12 + $0x268] sm:$0xff]
      %v5754 = vld [vmem:[%s12 + $0x270] sm:$0xff]
      %v5755 = vld [vmem:[%s12 + $0x278] sm:$0xff]
      %v5756 = vld [vmem:[%s12 + $0x280] sm:$0xff]
      %v5757 = vld [vmem:[%s12 + $0x288] sm:$0xff]
      %v5758 = vld [vmem:[%s12 + $0x290] sm:$0xff]
      %v5759 = vld [vmem:[%s12 + $0x298] sm:$0xff]
      %v5760 = vld [vmem:[%s12 + $0x2a0] sm:$0xff]
      %v5761 = vld [vmem:[%s12 + $0x2a8] sm:$0xff]
      %v5762 = vld [vmem:[%s12 + $0x2b0] sm:$0xff]
      %v5763 = vld [vmem:[%s12 + $0x2b8] sm:$0xff]
      %v5764 = vld [vmem:[%s12 + $0x2c0] sm:$0xff]
      %v5765 = vld [vmem:[%s12 + $0x2c8] sm:$0xff]
      %v5766 = vld [vmem:[%s12 + $0x2d0] sm:$0xff]
      %v5767 = vld [vmem:[%s12 + $0x2d8] sm:$0xff]
      %v5768 = vld [vmem:[%s12 + $0x2e0] sm:$0xff]
      %v5769 = vld [vmem:[%s12 + $0x2e8] sm:$0xff]
      %v5770 = vld [vmem:[%s12 + $0x2f0] sm:$0xff]
      %v5771 = vld [vmem:[%s12 + $0x2f8] sm:$0xff]
      %v5868 = vunpack.c.l.b16 %v5676
      %v5869 = vunpack.c.h.b16 %v5676
      %v5870 = vunpack.c.l.b16 %v5677
      %v5871 = vunpack.c.h.b16 %v5677
      %v5872 = vunpack.c.l.b16 %v5678
      %v5873 = vunpack.c.h.b16 %v5678
      %v5874 = vunpack.c.l.b16 %v5679
      %v5875 = vunpack.c.h.b16 %v5679
      %v5876 = vunpack.c.l.b16 %v5680
      %v5877 = vunpack.c.h.b16 %v5680
      %v5878 = vunpack.c.l.b16 %v5681
      %v5879 = vunpack.c.h.b16 %v5681
      %v5880 = vunpack.c.l.b16 %v5682
      %v5881 = vunpack.c.h.b16 %v5682
      %v5882 = vunpack.c.l.b16 %v5683
      %v5883 = vunpack.c.h.b16 %v5683
      %v5884 = vunpack.c.l.b16 %v5684
      %v5885 = vunpack.c.h.b16 %v5684
      %v5886 = vunpack.c.l.b16 %v5685
      %v5887 = vunpack.c.h.b16 %v5685
      %v5888 = vunpack.c.l.b16 %v5686
      %v5889 = vunpack.c.h.b16 %v5686
      %v5890 = vunpack.c.l.b16 %v5687
      %v5891 = vunpack.c.h.b16 %v5687
      %v5892 = vunpack.c.l.b16 %v5688
      %v5893 = vunpack.c.h.b16 %v5688
      %v5894 = vunpack.c.l.b16 %v5689
      %v5895 = vunpack.c.h.b16 %v5689
      %v5896 = vunpack.c.l.b16 %v5690
      %v5897 = vunpack.c.h.b16 %v5690
      %v5898 = vunpack.c.l.b16 %v5691
      %v5899 = vunpack.c.h.b16 %v5691
      %v5900 = vunpack.c.l.b16 %v5692
      %v5901 = vunpack.c.h.b16 %v5692
      %v5902 = vunpack.c.l.b16 %v5693
      %v5903 = vunpack.c.h.b16 %v5693
      %v5904 = vunpack.c.l.b16 %v5694
      %v5905 = vunpack.c.h.b16 %v5694
      %v5906 = vunpack.c.l.b16 %v5695
      %v5907 = vunpack.c.h.b16 %v5695
      %v5908 = vunpack.c.l.b16 %v5696
      %v5909 = vunpack.c.h.b16 %v5696
      %v5910 = vunpack.c.l.b16 %v5697
      %v5911 = vunpack.c.h.b16 %v5697
      %v5912 = vunpack.c.l.b16 %v5698
      %v5913 = vunpack.c.h.b16 %v5698
      %v5914 = vunpack.c.l.b16 %v5699
      %v5915 = vunpack.c.h.b16 %v5699
      %v5916 = vunpack.c.l.b16 %v5700
      %v5917 = vunpack.c.h.b16 %v5700
      %v5918 = vunpack.c.l.b16 %v5701
      %v5919 = vunpack.c.h.b16 %v5701
      %v5920 = vunpack.c.l.b16 %v5702
      %v5921 = vunpack.c.h.b16 %v5702
      %v5922 = vunpack.c.l.b16 %v5703
      %v5923 = vunpack.c.h.b16 %v5703
      %v5924 = vunpack.c.l.b16 %v5704
      %v5925 = vunpack.c.h.b16 %v5704
      %v5926 = vunpack.c.l.b16 %v5705
      %v5927 = vunpack.c.h.b16 %v5705
      %v5928 = vunpack.c.l.b16 %v5706
      %v5929 = vunpack.c.h.b16 %v5706
      %v5930 = vunpack.c.l.b16 %v5707
      %v5931 = vunpack.c.h.b16 %v5707
      %v5932 = vunpack.c.l.b16 %v5708
      %v5933 = vunpack.c.h.b16 %v5708
      %v5934 = vunpack.c.l.b16 %v5709
      %v5935 = vunpack.c.h.b16 %v5709
      %v5936 = vunpack.c.l.b16 %v5710
      %v5937 = vunpack.c.h.b16 %v5710
      %v5938 = vunpack.c.l.b16 %v5711
      %v5939 = vunpack.c.h.b16 %v5711
      %v5940 = vunpack.c.l.b16 %v5712
      %v5941 = vunpack.c.h.b16 %v5712
      %v5942 = vunpack.c.l.b16 %v5713
      %v5943 = vunpack.c.h.b16 %v5713
      %v5944 = vunpack.c.l.b16 %v5714
      %v5945 = vunpack.c.h.b16 %v5714
      %v5946 = vunpack.c.l.b16 %v5715
      %v5947 = vunpack.c.h.b16 %v5715
      %v5948 = vunpack.c.l.b16 %v5716
      %v5949 = vunpack.c.h.b16 %v5716
      %v5950 = vunpack.c.l.b16 %v5717
      %v5951 = vunpack.c.h.b16 %v5717
      %v5952 = vunpack.c.l.b16 %v5718
      %v5953 = vunpack.c.h.b16 %v5718
      %v5954 = vunpack.c.l.b16 %v5719
      %v5955 = vunpack.c.h.b16 %v5719
      %v5956 = vunpack.c.l.b16 %v5720
      %v5957 = vunpack.c.h.b16 %v5720
      %v5958 = vunpack.c.l.b16 %v5721
      %v5959 = vunpack.c.h.b16 %v5721
      %v5960 = vunpack.c.l.b16 %v5722
      %v5961 = vunpack.c.h.b16 %v5722
      %v5962 = vunpack.c.l.b16 %v5723
      %v5963 = vunpack.c.h.b16 %v5723
      %v5964 = vunpack.c.l.b16 %v5724
      %v5965 = vunpack.c.h.b16 %v5724
      %v5966 = vunpack.c.l.b16 %v5725
      %v5967 = vunpack.c.h.b16 %v5725
      %v5968 = vunpack.c.l.b16 %v5726
      %v5969 = vunpack.c.h.b16 %v5726
      %v5970 = vunpack.c.l.b16 %v5727
      %v5971 = vunpack.c.h.b16 %v5727
      %v5972 = vunpack.c.l.b16 %v5728
      %v5973 = vunpack.c.h.b16 %v5728
      %v5974 = vunpack.c.l.b16 %v5729
      %v5975 = vunpack.c.h.b16 %v5729
      %v5976 = vunpack.c.l.b16 %v5730
      %v5977 = vunpack.c.h.b16 %v5730
      %v5978 = vunpack.c.l.b16 %v5731
      %v5979 = vunpack.c.h.b16 %v5731
      %v5980 = vunpack.c.l.b16 %v5732
      %v5981 = vunpack.c.h.b16 %v5732
      %v5982 = vunpack.c.l.b16 %v5733
      %v5983 = vunpack.c.h.b16 %v5733
      %v5984 = vunpack.c.l.b16 %v5734
      %v5985 = vunpack.c.h.b16 %v5734
      %v5986 = vunpack.c.l.b16 %v5735
      %v5987 = vunpack.c.h.b16 %v5735
      %v5988 = vunpack.c.l.b16 %v5736
      %v5989 = vunpack.c.h.b16 %v5736
      %v5990 = vunpack.c.l.b16 %v5737
      %v5991 = vunpack.c.h.b16 %v5737
      %v5992 = vunpack.c.l.b16 %v5738
      %v5993 = vunpack.c.h.b16 %v5738
      %v5994 = vunpack.c.l.b16 %v5739
      %v5995 = vunpack.c.h.b16 %v5739
      %v5996 = vunpack.c.l.b16 %v5740
      %v5997 = vunpack.c.h.b16 %v5740
      %v5998 = vunpack.c.l.b16 %v5741
      %v5999 = vunpack.c.h.b16 %v5741
      %v6000 = vunpack.c.l.b16 %v5742
      %v6001 = vunpack.c.h.b16 %v5742
      %v6002 = vunpack.c.l.b16 %v5743
      %v6003 = vunpack.c.h.b16 %v5743
      %v6004 = vunpack.c.l.b16 %v5744
      %v6005 = vunpack.c.h.b16 %v5744
      %v6006 = vunpack.c.l.b16 %v5745
      %v6007 = vunpack.c.h.b16 %v5745
      %v6008 = vunpack.c.l.b16 %v5746
      %v6009 = vunpack.c.h.b16 %v5746
      %v6010 = vunpack.c.l.b16 %v5747
      %v6011 = vunpack.c.h.b16 %v5747
      %v6012 = vunpack.c.l.b16 %v5748
      %v6013 = vunpack.c.h.b16 %v5748
      %v6014 = vunpack.c.l.b16 %v5749
      %v6015 = vunpack.c.h.b16 %v5749
      %v6016 = vunpack.c.l.b16 %v5750
      %v6017 = vunpack.c.h.b16 %v5750
      %v6018 = vunpack.c.l.b16 %v5751
      %v6019 = vunpack.c.h.b16 %v5751
      %v6020 = vunpack.c.l.b16 %v5752
      %v6021 = vunpack.c.h.b16 %v5752
      %v6022 = vunpack.c.l.b16 %v5753
      %v6023 = vunpack.c.h.b16 %v5753
      %v6024 = vunpack.c.l.b16 %v5754
      %v6025 = vunpack.c.h.b16 %v5754
      %v6026 = vunpack.c.l.b16 %v5755
      %v6027 = vunpack.c.h.b16 %v5755
      %v6028 = vunpack.c.l.b16 %v5756
      %v6029 = vunpack.c.h.b16 %v5756
      %v6030 = vunpack.c.l.b16 %v5757
      %v6031 = vunpack.c.h.b16 %v5757
      %v6032 = vunpack.c.l.b16 %v5758
      %v6033 = vunpack.c.h.b16 %v5758
      %v6034 = vunpack.c.l.b16 %v5759
      %v6035 = vunpack.c.h.b16 %v5759
      %v6036 = vunpack.c.l.b16 %v5760
      %v6037 = vunpack.c.h.b16 %v5760
      %v6038 = vunpack.c.l.b16 %v5761
      %v6039 = vunpack.c.h.b16 %v5761
      %v6040 = vunpack.c.l.b16 %v5762
      %v6041 = vunpack.c.h.b16 %v5762
      %v6042 = vunpack.c.l.b16 %v5763
      %v6043 = vunpack.c.h.b16 %v5763
      %v6044 = vunpack.c.l.b16 %v5764
      %v6045 = vunpack.c.h.b16 %v5764
      %v6046 = vunpack.c.l.b16 %v5765
      %v6047 = vunpack.c.h.b16 %v5765
      %v6048 = vunpack.c.l.b16 %v5766
      %v6049 = vunpack.c.h.b16 %v5766
      %v6050 = vunpack.c.l.b16 %v5767
      %v6051 = vunpack.c.h.b16 %v5767
      %v6052 = vunpack.c.l.b16 %v5768
      %v6053 = vunpack.c.h.b16 %v5768
      %v6054 = vunpack.c.l.b16 %v5769
      %v6055 = vunpack.c.h.b16 %v5769
      %v6056 = vunpack.c.l.b16 %v5770
      %v6057 = vunpack.c.h.b16 %v5770
      %v6058 = vunpack.c.l.b16 %v5771
      %v6059 = vunpack.c.h.b16 %v5771
      %v6060 = vpack.c.b16 %v5874, %v5868
      %v6061 = vpack.c.b16 %v5875, %v5869
      %v6062 = vpack.c.b16 %v5876, %v5870
      %v6063 = vpack.c.b16 %v5877, %v5871
      %v6064 = vpack.c.b16 %v5878, %v5872
      %v6065 = vpack.c.b16 %v5879, %v5873
      %v6066 = vpack.c.b16 %v5886, %v5880
      %v6067 = vpack.c.b16 %v5887, %v5881
      %v6068 = vpack.c.b16 %v5888, %v5882
      %v6069 = vpack.c.b16 %v5889, %v5883
      %v6070 = vpack.c.b16 %v5890, %v5884
      %v6071 = vpack.c.b16 %v5891, %v5885
      %v6072 = vpack.c.b16 %v5898, %v5892
      %v6073 = vpack.c.b16 %v5899, %v5893
      %v6074 = vpack.c.b16 %v5900, %v5894
      %v6075 = vpack.c.b16 %v5901, %v5895
      %v6076 = vpack.c.b16 %v5902, %v5896
      %v6077 = vpack.c.b16 %v5903, %v5897
      %v6078 = vpack.c.b16 %v5910, %v5904
      %v6079 = vpack.c.b16 %v5911, %v5905
      %v6080 = vpack.c.b16 %v5912, %v5906
      %v6081 = vpack.c.b16 %v5913, %v5907
      %v6082 = vpack.c.b16 %v5914, %v5908
      %v6083 = vpack.c.b16 %v5915, %v5909
      %v6084 = vpack.c.b16 %v5922, %v5916
      %v6085 = vpack.c.b16 %v5923, %v5917
      %v6086 = vpack.c.b16 %v5924, %v5918
      %v6087 = vpack.c.b16 %v5925, %v5919
      %v6088 = vpack.c.b16 %v5926, %v5920
      %v6089 = vpack.c.b16 %v5927, %v5921
      %v6090 = vpack.c.b16 %v5934, %v5928
      %v6091 = vpack.c.b16 %v5935, %v5929
      %v6092 = vpack.c.b16 %v5936, %v5930
      %v6093 = vpack.c.b16 %v5937, %v5931
      %v6094 = vpack.c.b16 %v5938, %v5932
      %v6095 = vpack.c.b16 %v5939, %v5933
      %v6096 = vpack.c.b16 %v5946, %v5940
      %v6097 = vpack.c.b16 %v5947, %v5941
      %v6098 = vpack.c.b16 %v5948, %v5942
      %v6099 = vpack.c.b16 %v5949, %v5943
      %v6100 = vpack.c.b16 %v5950, %v5944
      %v6101 = vpack.c.b16 %v5951, %v5945
      %v6102 = vpack.c.b16 %v5958, %v5952
      %v6103 = vpack.c.b16 %v5959, %v5953
      %v6104 = vpack.c.b16 %v5960, %v5954
      %v6105 = vpack.c.b16 %v5961, %v5955
      %v6106 = vpack.c.b16 %v5962, %v5956
      %v6107 = vpack.c.b16 %v5963, %v5957
      %v6108 = vpack.c.b16 %v5970, %v5964
      %v6109 = vpack.c.b16 %v5971, %v5965
      %v6110 = vpack.c.b16 %v5972, %v5966
      %v6111 = vpack.c.b16 %v5973, %v5967
      %v6112 = vpack.c.b16 %v5974, %v5968
      %v6113 = vpack.c.b16 %v5975, %v5969
      %v6114 = vpack.c.b16 %v5982, %v5976
      %v6115 = vpack.c.b16 %v5983, %v5977
      %v6116 = vpack.c.b16 %v5984, %v5978
      %v6117 = vpack.c.b16 %v5985, %v5979
      %v6118 = vpack.c.b16 %v5986, %v5980
      %v6119 = vpack.c.b16 %v5987, %v5981
      %v6120 = vpack.c.b16 %v5994, %v5988
      %v6121 = vpack.c.b16 %v5995, %v5989
      %v6122 = vpack.c.b16 %v5996, %v5990
      %v6123 = vpack.c.b16 %v5997, %v5991
      %v6124 = vpack.c.b16 %v5998, %v5992
      %v6125 = vpack.c.b16 %v5999, %v5993
      %v6126 = vpack.c.b16 %v6006, %v6000
      %v6127 = vpack.c.b16 %v6007, %v6001
      %v6128 = vpack.c.b16 %v6008, %v6002
      %v6129 = vpack.c.b16 %v6009, %v6003
      %v6130 = vpack.c.b16 %v6010, %v6004
      %v6131 = vpack.c.b16 %v6011, %v6005
      %v6132 = vpack.c.b16 %v6018, %v6012
      %v6133 = vpack.c.b16 %v6019, %v6013
      %v6134 = vpack.c.b16 %v6020, %v6014
      %v6135 = vpack.c.b16 %v6021, %v6015
      %v6136 = vpack.c.b16 %v6022, %v6016
      %v6137 = vpack.c.b16 %v6023, %v6017
      %v6138 = vpack.c.b16 %v6030, %v6024
      %v6139 = vpack.c.b16 %v6031, %v6025
      %v6140 = vpack.c.b16 %v6032, %v6026
      %v6141 = vpack.c.b16 %v6033, %v6027
      %v6142 = vpack.c.b16 %v6034, %v6028
      %v6143 = vpack.c.b16 %v6035, %v6029
      %v6144 = vpack.c.b16 %v6042, %v6036
      %v6145 = vpack.c.b16 %v6043, %v6037
      %v6146 = vpack.c.b16 %v6044, %v6038
      %v6147 = vpack.c.b16 %v6045, %v6039
      %v6148 = vpack.c.b16 %v6046, %v6040
      %v6149 = vpack.c.b16 %v6047, %v6041
      %v6150 = vpack.c.b16 %v6054, %v6048
      %v6151 = vpack.c.b16 %v6055, %v6049
      %v6152 = vpack.c.b16 %v6056, %v6050
      %v6153 = vpack.c.b16 %v6057, %v6051
      %v6154 = vpack.c.b16 %v6058, %v6052
      %v6155 = vpack.c.b16 %v6059, %v6053
      %6252 = vmatprep.subr.bf16.mxu0 %v6061
      %6253 = vmatpush1.bf16.msra.mxu0 %v6060
      %6254 = vmatprep.subr.bf16.mxu0 %v6067
      %6255 = vmatpush1.bf16.msra.mxu0 %v6066
      %6256 = vmatprep.subr.bf16.mxu0 %v6073
      %6257 = vmatpush1.bf16.msra.mxu0 %v6072
      %6258 = vmatprep.subr.bf16.mxu0 %v6079
      %6259 = vmatpush1.bf16.msra.mxu0 %v6078
      %6260 = vmatprep.subr.bf16.mxu0 %v6085
      %6261 = vmatpush1.bf16.msra.mxu0 %v6084
      %6262 = vmatprep.subr.bf16.mxu0 %v6091
      %6263 = vmatpush1.bf16.msra.mxu0 %v6090
      %6264 = vmatprep.subr.bf16.mxu0 %v6097
      %6265 = vmatpush1.bf16.msra.mxu0 %v6096
      %6266 = vmatprep.subr.bf16.mxu0 %v6103
      %6267 = vmatpush1.bf16.msra.mxu0 %v6102
      %6268 = vmatprep.subr.bf16.mxu0 %v6109
      %6269 = vmatpush1.bf16.msra.mxu0 %v6108
      %6270 = vmatprep.subr.bf16.mxu0 %v6115
      %6271 = vmatpush1.bf16.msra.mxu0 %v6114
      %6272 = vmatprep.subr.bf16.mxu0 %v6121
      %6273 = vmatpush1.bf16.msra.mxu0 %v6120
      %6274 = vmatprep.subr.bf16.mxu0 %v6127
      %6275 = vmatpush1.bf16.msra.mxu0 %v6126
      %6276 = vmatprep.subr.bf16.mxu0 %v6133
      %6277 = vmatpush1.bf16.msra.mxu0 %v6132
      %6278 = vmatprep.subr.bf16.mxu0 %v6139
      %6279 = vmatpush1.bf16.msra.mxu0 %v6138
      %6280 = vmatprep.subr.bf16.mxu0 %v6145
      %6281 = vmatpush1.bf16.msra.mxu0 %v6144
      %6282 = vmatprep.subr.bf16.mxu0 %v6151
      %6283 = vmatpush1.bf16.msra.mxu0 %v6150
      %6284 = vmatprep.mubr.bf16.mxu0 %v5675
      %6285 = vmatmul.mubr.bf16.gmra.mrb[0].mxu0 %v5674
      %v6286 = vpop.f32.mrb[0].mxu0
      %v6287 = vadd.f32 0.0, %v6286
      %v6288 = vpop.f32.mrb[0].mxu0
      %v6289 = vadd.f32 0.0, %v6288
      %v6290 = vpop.f32.mrb[0].mxu0
      %v6291 = vpop.f32.mrb[0].mxu0
      %6292 = vdwg.mxu0
      %6293 = vmatprep.subr.bf16.mxu0 %v6063
      %6294 = vmatpush1.bf16.msra.mxu0 %v6062
      %6295 = vmatprep.subr.bf16.mxu0 %v6069
      %6296 = vmatpush1.bf16.msra.mxu0 %v6068
      %6297 = vmatprep.subr.bf16.mxu0 %v6075
      %6298 = vmatpush1.bf16.msra.mxu0 %v6074
      %6299 = vmatprep.subr.bf16.mxu0 %v6081
      %6300 = vmatpush1.bf16.msra.mxu0 %v6080
      %6301 = vmatprep.subr.bf16.mxu0 %v6087
      %6302 = vmatpush1.bf16.msra.mxu0 %v6086
      %6303 = vmatprep.subr.bf16.mxu0 %v6093
      %6304 = vmatpush1.bf16.msra.mxu0 %v6092
      %6305 = vmatprep.subr.bf16.mxu0 %v6099
      %6306 = vmatpush1.bf16.msra.mxu0 %v6098
      %6307 = vmatprep.subr.bf16.mxu0 %v6105
      %6308 = vmatpush1.bf16.msra.mxu0 %v6104
      %6309 = vmatprep.subr.bf16.mxu0 %v6111
      %6310 = vmatpush1.bf16.msra.mxu0 %v6110
      %6311 = vmatprep.subr.bf16.mxu0 %v6117
      %6312 = vmatpush1.bf16.msra.mxu0 %v6116
      %6313 = vmatprep.subr.bf16.mxu0 %v6123
      %6314 = vmatpush1.bf16.msra.mxu0 %v6122
      %6315 = vmatprep.subr.bf16.mxu0 %v6129
      %6316 = vmatpush1.bf16.msra.mxu0 %v6128
      %6317 = vmatprep.subr.bf16.mxu0 %v6135
      %6318 = vmatpush1.bf16.msra.mxu0 %v6134
      %6319 = vmatprep.subr.bf16.mxu0 %v6141
      %6320 = vmatpush1.bf16.msra.mxu0 %v6140
      %6321 = vmatprep.subr.bf16.mxu0 %v6147
      %6322 = vmatpush1.bf16.msra.mxu0 %v6146
      %6323 = vmatprep.subr.bf16.mxu0 %v6153
      %6324 = vmatpush1.bf16.msra.mxu0 %v6152
      %6325 = vmatprep.mubr.bf16.mxu0 %v5675
      %6326 = vmatmul.mubr.bf16.gmra.mrb[0].mxu0 %v5674
      %v6327 = vpop.f32.mrb[0].mxu0
      %v6328 = vadd.f32 0.0, %v6327
      %v6329 = vpop.f32.mrb[0].mxu0
      %v6330 = vadd.f32 0.0, %v6329
      %v6331 = vpop.f32.mrb[0].mxu0
      %v6332 = vpop.f32.mrb[0].mxu0
      %6333 = vdwg.mxu0
      %6334 = vmatprep.subr.bf16.mxu0 %v6065
      %6335 = vmatpush1.bf16.msra.mxu0 %v6064
      %6336 = vmatprep.subr.bf16.mxu0 %v6071
      %6337 = vmatpush1.bf16.msra.mxu0 %v6070
      %6338 = vmatprep.subr.bf16.mxu0 %v6077
      %6339 = vmatpush1.bf16.msra.mxu0 %v6076
      %6340 = vmatprep.subr.bf16.mxu0 %v6083
      %6341 = vmatpush1.bf16.msra.mxu0 %v6082
      %6342 = vmatprep.subr.bf16.mxu0 %v6089
      %6343 = vmatpush1.bf16.msra.mxu0 %v6088
      %6344 = vmatprep.subr.bf16.mxu0 %v6095
      %6345 = vmatpush1.bf16.msra.mxu0 %v6094
      %6346 = vmatprep.subr.bf16.mxu0 %v6101
      %6347 = vmatpush1.bf16.msra.mxu0 %v6100
      %6348 = vmatprep.subr.bf16.mxu0 %v6107
      %6349 = vmatpush1.bf16.msra.mxu0 %v6106
      %6350 = vmatprep.subr.bf16.mxu0 %v6113
      %6351 = vmatpush1.bf16.msra.mxu0 %v6112
      %6352 = vmatprep.subr.bf16.mxu0 %v6119
      %6353 = vmatpush1.bf16.msra.mxu0 %v6118
      %6354 = vmatprep.subr.bf16.mxu0 %v6125
      %6355 = vmatpush1.bf16.msra.mxu0 %v6124
      %6356 = vmatprep.subr.bf16.mxu0 %v6131
      %6357 = vmatpush1.bf16.msra.mxu0 %v6130
      %6358 = vmatprep.subr.bf16.mxu0 %v6137
      %6359 = vmatpush1.bf16.msra.mxu0 %v6136
      %6360 = vmatprep.subr.bf16.mxu0 %v6143
      %6361 = vmatpush1.bf16.msra.mxu0 %v6142
      %6362 = vmatprep.subr.bf16.mxu0 %v6149
      %6363 = vmatpush1.bf16.msra.mxu0 %v6148
      %6364 = vmatprep.subr.bf16.mxu0 %v6155
      %6365 = vmatpush1.bf16.msra.mxu0 %v6154
      %6366 = vmatprep.mubr.bf16.mxu0 %v5675
      %6367 = vmatmul.mubr.bf16.gmra.mrb[0].mxu0 %v5674
      %v6368 = vpop.f32.mrb[0].mxu0
      %v6369 = vadd.f32 0.0, %v6368
      %v6370 = vpop.f32.mrb[0].mxu0
      %v6371 = vadd.f32 0.0, %v6370
      %v6372 = vpop.f32.mrb[0].mxu0
      %v6373 = vpop.f32.mrb[0].mxu0
      %6374 = vdwg.mxu0
      %v6375 = vadd.f32 %v5668, %v6287
      %v6376 = vadd.f32 %v5669, %v6289
      %v6377 = vxor.u32 %v6375, 2147483648
      %v6378 = vxor.u32 %v6376, 2147483648
      %v6379 = vmul.f32 %v6377, 1.442695
      %v6380 = vpow.pop %v6379
      %v6381 = vmul.f32 %v6378, 1.442695
      %v6382 = vpow.pop %v6381
      %v6383 = vadd.f32 %v6380, 1.0
      %v6384 = vadd.f32 %v6382, 1.0
      %v6385 = vrcp.pop %v6383
      %v6386 = vmul.f32 1.0, %v6385
      %v6387 = vrcp.pop %v6384
      %v6388 = vmul.f32 1.0, %v6387
      %v6389 = vadd.f32 %v5670, %v6328
      %v6390 = vadd.f32 %v5671, %v6330
      %v6391 = vxor.u32 %v6389, 2147483648
      %v6392 = vxor.u32 %v6390, 2147483648
      %v6393 = vmul.f32 %v6391, 1.442695
      %v6394 = vpow.pop %v6393
      %v6395 = vmul.f32 %v6392, 1.442695
      %v6396 = vpow.pop %v6395
      %v6397 = vadd.f32 %v6394, 1.0
      %v6398 = vadd.f32 %v6396, 1.0
      %v6399 = vrcp.pop %v6397
      %v6400 = vmul.f32 1.0, %v6399
      %v6401 = vrcp.pop %v6398
      %v6402 = vmul.f32 1.0, %v6401
      %v6404 = vlaneseq
      %v6405 = vshrl.u32 %v6404, 7
      %v6406 = vsub.s32 0, %v6405
      %v6407 = vrot.slane %v3333, %v6406
      %v6408 = vlaneseq
      %v6409 = vshrl.u32 %v6408, 7
      %v6410 = vsub.s32 1, %v6409
      %v6411 = vrot.slane %v3333, %v6410
      %v6414 = vadd.f32 %v6369, %v6407
      %v6415 = vadd.f32 %v6371, %v6411
      %v6416 = vmul.f32 %v6386, %v6414
      %v6417 = vmul.f32 %v6388, %v6415
      %v6418 = vadd.f32 %v5672, %v6416
      %v6419 = vadd.f32 %v5673, %v6417
      %v6420 = vtanh.pop %v6418
      %v6421 = vtanh.pop %v6419
      %v6422 = vsub.f32 %v5666, %v6420
      %v6423 = vsub.f32 %v5667, %v6421
      %v6424 = vmul.f32 %v6400, %v6422
      %v6425 = vmul.f32 %v6402, %v6423
      %v6426 = vadd.f32 %v6420, %v6424
      %v6427 = vadd.f32 %v6421, %v6425
      %6428 = vst [vmem:[#allocation8] sm:$0xff] %v6426
      %6429 = vst [vmem:[#allocation8 + $0x8] sm:$0xff] %v6427
    $region223: #{network_forward.1} parent=1 // pred_fallthru
      _
    %p6430 = scmp.eq.s32.totalorder %s1530, 4
    // Predicated region
    $region224: #{network_forward.1} parent=1 // pred_check
      %p6431 = pneg %p6430
    $region225: #{network_forward.1} parent=1 // pred_check_branch
      %6433 = sbr.rel (%p6431) target = $region227
    $region226: #{network_forward.1} parent=1 // pred_region
      %v6434 = vld [vmem:[#allocation8] sm:$0xff]
      %v6435 = vld [vmem:[#allocation8 + $0x8] sm:$0xff]
      %6436 = vst [vmem:[#allocation9] sm:$0xff] %v6434
      %6437 = vst [vmem:[#allocation9 + $0x8] sm:$0xff] %v6435
    $region227: #{network_forward.1} parent=1 // pred_fallthru
      _
    %p6438 = scmp.gt.s32.totalorder %s1530, 4
    // Predicated region
    $region228: #{network_forward.1} parent=1 // pred_check
      %p6439 = pneg %p6438
    $region229: #{network_forward.1} parent=1 // pred_check_branch
      %6441 = sbr.rel (%p6439) target = $region231
    $region230: #{network_forward.1} parent=1 // pred_region
      %v6442 = vld [vmem:[#allocation8] sm:$0xff]
      %v6443 = vld [vmem:[#allocation8 + $0x8] sm:$0xff]
      %v6444 = vld [vmem:[#allocation7 + $0xc0] sm:$0xff]
      %v6445 = vld [vmem:[#allocation7 + $0xc8] sm:$0xff]
      %v6446 = vld [vmem:[#allocation7 + $0xd0] sm:$0xff]
      %v6447 = vld [vmem:[#allocation7 + $0xd8] sm:$0xff]
      %v6448 = vld [vmem:[#allocation7 + $0xe0] sm:$0xff]
      %v6449 = vld [vmem:[#allocation7 + $0xe8] sm:$0xff]
      %v6450 = vpack.c.bf16 %v6442, %v6442
      %v6451 = vpack.c.bf16 %v6443, %v6443
      %v6452 = vld [vmem:[%s12] sm:$0xff]
      %v6453 = vld [vmem:[%s12 + $0x8] sm:$0xff]
      %v6454 = vld [vmem:[%s12 + $0x10] sm:$0xff]
      %v6455 = vld [vmem:[%s12 + $0x18] sm:$0xff]
      %v6456 = vld [vmem:[%s12 + $0x20] sm:$0xff]
      %v6457 = vld [vmem:[%s12 + $0x28] sm:$0xff]
      %v6458 = vld [vmem:[%s12 + $0x30] sm:$0xff]
      %v6459 = vld [vmem:[%s12 + $0x38] sm:$0xff]
      %v6460 = vld [vmem:[%s12 + $0x40] sm:$0xff]
      %v6461 = vld [vmem:[%s12 + $0x48] sm:$0xff]
      %v6462 = vld [vmem:[%s12 + $0x50] sm:$0xff]
      %v6463 = vld [vmem:[%s12 + $0x58] sm:$0xff]
      %v6464 = vld [vmem:[%s12 + $0x60] sm:$0xff]
      %v6465 = vld [vmem:[%s12 + $0x68] sm:$0xff]
      %v6466 = vld [vmem:[%s12 + $0x70] sm:$0xff]
      %v6467 = vld [vmem:[%s12 + $0x78] sm:$0xff]
      %v6468 = vld [vmem:[%s12 + $0x80] sm:$0xff]
      %v6469 = vld [vmem:[%s12 + $0x88] sm:$0xff]
      %v6470 = vld [vmem:[%s12 + $0x90] sm:$0xff]
      %v6471 = vld [vmem:[%s12 + $0x98] sm:$0xff]
      %v6472 = vld [vmem:[%s12 + $0xa0] sm:$0xff]
      %v6473 = vld [vmem:[%s12 + $0xa8] sm:$0xff]
      %v6474 = vld [vmem:[%s12 + $0xb0] sm:$0xff]
      %v6475 = vld [vmem:[%s12 + $0xb8] sm:$0xff]
      %v6476 = vld [vmem:[%s12 + $0xc0] sm:$0xff]
      %v6477 = vld [vmem:[%s12 + $0xc8] sm:$0xff]
      %v6478 = vld [vmem:[%s12 + $0xd0] sm:$0xff]
      %v6479 = vld [vmem:[%s12 + $0xd8] sm:$0xff]
      %v6480 = vld [vmem:[%s12 + $0xe0] sm:$0xff]
      %v6481 = vld [vmem:[%s12 + $0xe8] sm:$0xff]
      %v6482 = vld [vmem:[%s12 + $0xf0] sm:$0xff]
      %v6483 = vld [vmem:[%s12 + $0xf8] sm:$0xff]
      %v6484 = vld [vmem:[%s12 + $0x100] sm:$0xff]
      %v6485 = vld [vmem:[%s12 + $0x108] sm:$0xff]
      %v6486 = vld [vmem:[%s12 + $0x110] sm:$0xff]
      %v6487 = vld [vmem:[%s12 + $0x118] sm:$0xff]
      %v6488 = vld [vmem:[%s12 + $0x120] sm:$0xff]
      %v6489 = vld [vmem:[%s12 + $0x128] sm:$0xff]
      %v6490 = vld [vmem:[%s12 + $0x130] sm:$0xff]
      %v6491 = vld [vmem:[%s12 + $0x138] sm:$0xff]
      %v6492 = vld [vmem:[%s12 + $0x140] sm:$0xff]
      %v6493 = vld [vmem:[%s12 + $0x148] sm:$0xff]
      %v6494 = vld [vmem:[%s12 + $0x150] sm:$0xff]
      %v6495 = vld [vmem:[%s12 + $0x158] sm:$0xff]
      %v6496 = vld [vmem:[%s12 + $0x160] sm:$0xff]
      %v6497 = vld [vmem:[%s12 + $0x168] sm:$0xff]
      %v6498 = vld [vmem:[%s12 + $0x170] sm:$0xff]
      %v6499 = vld [vmem:[%s12 + $0x178] sm:$0xff]
      %v6500 = vld [vmem:[%s12 + $0x180] sm:$0xff]
      %v6501 = vld [vmem:[%s12 + $0x188] sm:$0xff]
      %v6502 = vld [vmem:[%s12 + $0x190] sm:$0xff]
      %v6503 = vld [vmem:[%s12 + $0x198] sm:$0xff]
      %v6504 = vld [vmem:[%s12 + $0x1a0] sm:$0xff]
      %v6505 = vld [vmem:[%s12 + $0x1a8] sm:$0xff]
      %v6506 = vld [vmem:[%s12 + $0x1b0] sm:$0xff]
      %v6507 = vld [vmem:[%s12 + $0x1b8] sm:$0xff]
      %v6508 = vld [vmem:[%s12 + $0x1c0] sm:$0xff]
      %v6509 = vld [vmem:[%s12 + $0x1c8] sm:$0xff]
      %v6510 = vld [vmem:[%s12 + $0x1d0] sm:$0xff]
      %v6511 = vld [vmem:[%s12 + $0x1d8] sm:$0xff]
      %v6512 = vld [vmem:[%s12 + $0x1e0] sm:$0xff]
      %v6513 = vld [vmem:[%s12 + $0x1e8] sm:$0xff]
      %v6514 = vld [vmem:[%s12 + $0x1f0] sm:$0xff]
      %v6515 = vld [vmem:[%s12 + $0x1f8] sm:$0xff]
      %v6516 = vld [vmem:[%s12 + $0x200] sm:$0xff]
      %v6517 = vld [vmem:[%s12 + $0x208] sm:$0xff]
      %v6518 = vld [vmem:[%s12 + $0x210] sm:$0xff]
      %v6519 = vld [vmem:[%s12 + $0x218] sm:$0xff]
      %v6520 = vld [vmem:[%s12 + $0x220] sm:$0xff]
      %v6521 = vld [vmem:[%s12 + $0x228] sm:$0xff]
      %v6522 = vld [vmem:[%s12 + $0x230] sm:$0xff]
      %v6523 = vld [vmem:[%s12 + $0x238] sm:$0xff]
      %v6524 = vld [vmem:[%s12 + $0x240] sm:$0xff]
      %v6525 = vld [vmem:[%s12 + $0x248] sm:$0xff]
      %v6526 = vld [vmem:[%s12 + $0x250] sm:$0xff]
      %v6527 = vld [vmem:[%s12 + $0x258] sm:$0xff]
      %v6528 = vld [vmem:[%s12 + $0x260] sm:$0xff]
      %v6529 = vld [vmem:[%s12 + $0x268] sm:$0xff]
      %v6530 = vld [vmem:[%s12 + $0x270] sm:$0xff]
      %v6531 = vld [vmem:[%s12 + $0x278] sm:$0xff]
      %v6532 = vld [vmem:[%s12 + $0x280] sm:$0xff]
      %v6533 = vld [vmem:[%s12 + $0x288] sm:$0xff]
      %v6534 = vld [vmem:[%s12 + $0x290] sm:$0xff]
      %v6535 = vld [vmem:[%s12 + $0x298] sm:$0xff]
      %v6536 = vld [vmem:[%s12 + $0x2a0] sm:$0xff]
      %v6537 = vld [vmem:[%s12 + $0x2a8] sm:$0xff]
      %v6538 = vld [vmem:[%s12 + $0x2b0] sm:$0xff]
      %v6539 = vld [vmem:[%s12 + $0x2b8] sm:$0xff]
      %v6540 = vld [vmem:[%s12 + $0x2c0] sm:$0xff]
      %v6541 = vld [vmem:[%s12 + $0x2c8] sm:$0xff]
      %v6542 = vld [vmem:[%s12 + $0x2d0] sm:$0xff]
      %v6543 = vld [vmem:[%s12 + $0x2d8] sm:$0xff]
      %v6544 = vld [vmem:[%s12 + $0x2e0] sm:$0xff]
      %v6545 = vld [vmem:[%s12 + $0x2e8] sm:$0xff]
      %v6546 = vld [vmem:[%s12 + $0x2f0] sm:$0xff]
      %v6547 = vld [vmem:[%s12 + $0x2f8] sm:$0xff]
      %v6644 = vunpack.c.l.b16 %v6452
      %v6645 = vunpack.c.h.b16 %v6452
      %v6646 = vunpack.c.l.b16 %v6453
      %v6647 = vunpack.c.h.b16 %v6453
      %v6648 = vunpack.c.l.b16 %v6454
      %v6649 = vunpack.c.h.b16 %v6454
      %v6650 = vunpack.c.l.b16 %v6455
      %v6651 = vunpack.c.h.b16 %v6455
      %v6652 = vunpack.c.l.b16 %v6456
      %v6653 = vunpack.c.h.b16 %v6456
      %v6654 = vunpack.c.l.b16 %v6457
      %v6655 = vunpack.c.h.b16 %v6457
      %v6656 = vunpack.c.l.b16 %v6458
      %v6657 = vunpack.c.h.b16 %v6458
      %v6658 = vunpack.c.l.b16 %v6459
      %v6659 = vunpack.c.h.b16 %v6459
      %v6660 = vunpack.c.l.b16 %v6460
      %v6661 = vunpack.c.h.b16 %v6460
      %v6662 = vunpack.c.l.b16 %v6461
      %v6663 = vunpack.c.h.b16 %v6461
      %v6664 = vunpack.c.l.b16 %v6462
      %v6665 = vunpack.c.h.b16 %v6462
      %v6666 = vunpack.c.l.b16 %v6463
      %v6667 = vunpack.c.h.b16 %v6463
      %v6668 = vunpack.c.l.b16 %v6464
      %v6669 = vunpack.c.h.b16 %v6464
      %v6670 = vunpack.c.l.b16 %v6465
      %v6671 = vunpack.c.h.b16 %v6465
      %v6672 = vunpack.c.l.b16 %v6466
      %v6673 = vunpack.c.h.b16 %v6466
      %v6674 = vunpack.c.l.b16 %v6467
      %v6675 = vunpack.c.h.b16 %v6467
      %v6676 = vunpack.c.l.b16 %v6468
      %v6677 = vunpack.c.h.b16 %v6468
      %v6678 = vunpack.c.l.b16 %v6469
      %v6679 = vunpack.c.h.b16 %v6469
      %v6680 = vunpack.c.l.b16 %v6470
      %v6681 = vunpack.c.h.b16 %v6470
      %v6682 = vunpack.c.l.b16 %v6471
      %v6683 = vunpack.c.h.b16 %v6471
      %v6684 = vunpack.c.l.b16 %v6472
      %v6685 = vunpack.c.h.b16 %v6472
      %v6686 = vunpack.c.l.b16 %v6473
      %v6687 = vunpack.c.h.b16 %v6473
      %v6688 = vunpack.c.l.b16 %v6474
      %v6689 = vunpack.c.h.b16 %v6474
      %v6690 = vunpack.c.l.b16 %v6475
      %v6691 = vunpack.c.h.b16 %v6475
      %v6692 = vunpack.c.l.b16 %v6476
      %v6693 = vunpack.c.h.b16 %v6476
      %v6694 = vunpack.c.l.b16 %v6477
      %v6695 = vunpack.c.h.b16 %v6477
      %v6696 = vunpack.c.l.b16 %v6478
      %v6697 = vunpack.c.h.b16 %v6478
      %v6698 = vunpack.c.l.b16 %v6479
      %v6699 = vunpack.c.h.b16 %v6479
      %v6700 = vunpack.c.l.b16 %v6480
      %v6701 = vunpack.c.h.b16 %v6480
      %v6702 = vunpack.c.l.b16 %v6481
      %v6703 = vunpack.c.h.b16 %v6481
      %v6704 = vunpack.c.l.b16 %v6482
      %v6705 = vunpack.c.h.b16 %v6482
      %v6706 = vunpack.c.l.b16 %v6483
      %v6707 = vunpack.c.h.b16 %v6483
      %v6708 = vunpack.c.l.b16 %v6484
      %v6709 = vunpack.c.h.b16 %v6484
      %v6710 = vunpack.c.l.b16 %v6485
      %v6711 = vunpack.c.h.b16 %v6485
      %v6712 = vunpack.c.l.b16 %v6486
      %v6713 = vunpack.c.h.b16 %v6486
      %v6714 = vunpack.c.l.b16 %v6487
      %v6715 = vunpack.c.h.b16 %v6487
      %v6716 = vunpack.c.l.b16 %v6488
      %v6717 = vunpack.c.h.b16 %v6488
      %v6718 = vunpack.c.l.b16 %v6489
      %v6719 = vunpack.c.h.b16 %v6489
      %v6720 = vunpack.c.l.b16 %v6490
      %v6721 = vunpack.c.h.b16 %v6490
      %v6722 = vunpack.c.l.b16 %v6491
      %v6723 = vunpack.c.h.b16 %v6491
      %v6724 = vunpack.c.l.b16 %v6492
      %v6725 = vunpack.c.h.b16 %v6492
      %v6726 = vunpack.c.l.b16 %v6493
      %v6727 = vunpack.c.h.b16 %v6493
      %v6728 = vunpack.c.l.b16 %v6494
      %v6729 = vunpack.c.h.b16 %v6494
      %v6730 = vunpack.c.l.b16 %v6495
      %v6731 = vunpack.c.h.b16 %v6495
      %v6732 = vunpack.c.l.b16 %v6496
      %v6733 = vunpack.c.h.b16 %v6496
      %v6734 = vunpack.c.l.b16 %v6497
      %v6735 = vunpack.c.h.b16 %v6497
      %v6736 = vunpack.c.l.b16 %v6498
      %v6737 = vunpack.c.h.b16 %v6498
      %v6738 = vunpack.c.l.b16 %v6499
      %v6739 = vunpack.c.h.b16 %v6499
      %v6740 = vunpack.c.l.b16 %v6500
      %v6741 = vunpack.c.h.b16 %v6500
      %v6742 = vunpack.c.l.b16 %v6501
      %v6743 = vunpack.c.h.b16 %v6501
      %v6744 = vunpack.c.l.b16 %v6502
      %v6745 = vunpack.c.h.b16 %v6502
      %v6746 = vunpack.c.l.b16 %v6503
      %v6747 = vunpack.c.h.b16 %v6503
      %v6748 = vunpack.c.l.b16 %v6504
      %v6749 = vunpack.c.h.b16 %v6504
      %v6750 = vunpack.c.l.b16 %v6505
      %v6751 = vunpack.c.h.b16 %v6505
      %v6752 = vunpack.c.l.b16 %v6506
      %v6753 = vunpack.c.h.b16 %v6506
      %v6754 = vunpack.c.l.b16 %v6507
      %v6755 = vunpack.c.h.b16 %v6507
      %v6756 = vunpack.c.l.b16 %v6508
      %v6757 = vunpack.c.h.b16 %v6508
      %v6758 = vunpack.c.l.b16 %v6509
      %v6759 = vunpack.c.h.b16 %v6509
      %v6760 = vunpack.c.l.b16 %v6510
      %v6761 = vunpack.c.h.b16 %v6510
      %v6762 = vunpack.c.l.b16 %v6511
      %v6763 = vunpack.c.h.b16 %v6511
      %v6764 = vunpack.c.l.b16 %v6512
      %v6765 = vunpack.c.h.b16 %v6512
      %v6766 = vunpack.c.l.b16 %v6513
      %v6767 = vunpack.c.h.b16 %v6513
      %v6768 = vunpack.c.l.b16 %v6514
      %v6769 = vunpack.c.h.b16 %v6514
      %v6770 = vunpack.c.l.b16 %v6515
      %v6771 = vunpack.c.h.b16 %v6515
      %v6772 = vunpack.c.l.b16 %v6516
      %v6773 = vunpack.c.h.b16 %v6516
      %v6774 = vunpack.c.l.b16 %v6517
      %v6775 = vunpack.c.h.b16 %v6517
      %v6776 = vunpack.c.l.b16 %v6518
      %v6777 = vunpack.c.h.b16 %v6518
      %v6778 = vunpack.c.l.b16 %v6519
      %v6779 = vunpack.c.h.b16 %v6519
      %v6780 = vunpack.c.l.b16 %v6520
      %v6781 = vunpack.c.h.b16 %v6520
      %v6782 = vunpack.c.l.b16 %v6521
      %v6783 = vunpack.c.h.b16 %v6521
      %v6784 = vunpack.c.l.b16 %v6522
      %v6785 = vunpack.c.h.b16 %v6522
      %v6786 = vunpack.c.l.b16 %v6523
      %v6787 = vunpack.c.h.b16 %v6523
      %v6788 = vunpack.c.l.b16 %v6524
      %v6789 = vunpack.c.h.b16 %v6524
      %v6790 = vunpack.c.l.b16 %v6525
      %v6791 = vunpack.c.h.b16 %v6525
      %v6792 = vunpack.c.l.b16 %v6526
      %v6793 = vunpack.c.h.b16 %v6526
      %v6794 = vunpack.c.l.b16 %v6527
      %v6795 = vunpack.c.h.b16 %v6527
      %v6796 = vunpack.c.l.b16 %v6528
      %v6797 = vunpack.c.h.b16 %v6528
      %v6798 = vunpack.c.l.b16 %v6529
      %v6799 = vunpack.c.h.b16 %v6529
      %v6800 = vunpack.c.l.b16 %v6530
      %v6801 = vunpack.c.h.b16 %v6530
      %v6802 = vunpack.c.l.b16 %v6531
      %v6803 = vunpack.c.h.b16 %v6531
      %v6804 = vunpack.c.l.b16 %v6532
      %v6805 = vunpack.c.h.b16 %v6532
      %v6806 = vunpack.c.l.b16 %v6533
      %v6807 = vunpack.c.h.b16 %v6533
      %v6808 = vunpack.c.l.b16 %v6534
      %v6809 = vunpack.c.h.b16 %v6534
      %v6810 = vunpack.c.l.b16 %v6535
      %v6811 = vunpack.c.h.b16 %v6535
      %v6812 = vunpack.c.l.b16 %v6536
      %v6813 = vunpack.c.h.b16 %v6536
      %v6814 = vunpack.c.l.b16 %v6537
      %v6815 = vunpack.c.h.b16 %v6537
      %v6816 = vunpack.c.l.b16 %v6538
      %v6817 = vunpack.c.h.b16 %v6538
      %v6818 = vunpack.c.l.b16 %v6539
      %v6819 = vunpack.c.h.b16 %v6539
      %v6820 = vunpack.c.l.b16 %v6540
      %v6821 = vunpack.c.h.b16 %v6540
      %v6822 = vunpack.c.l.b16 %v6541
      %v6823 = vunpack.c.h.b16 %v6541
      %v6824 = vunpack.c.l.b16 %v6542
      %v6825 = vunpack.c.h.b16 %v6542
      %v6826 = vunpack.c.l.b16 %v6543
      %v6827 = vunpack.c.h.b16 %v6543
      %v6828 = vunpack.c.l.b16 %v6544
      %v6829 = vunpack.c.h.b16 %v6544
      %v6830 = vunpack.c.l.b16 %v6545
      %v6831 = vunpack.c.h.b16 %v6545
      %v6832 = vunpack.c.l.b16 %v6546
      %v6833 = vunpack.c.h.b16 %v6546
      %v6834 = vunpack.c.l.b16 %v6547
      %v6835 = vunpack.c.h.b16 %v6547
      %v6836 = vpack.c.b16 %v6650, %v6644
      %v6837 = vpack.c.b16 %v6651, %v6645
      %v6838 = vpack.c.b16 %v6652, %v6646
      %v6839 = vpack.c.b16 %v6653, %v6647
      %v6840 = vpack.c.b16 %v6654, %v6648
      %v6841 = vpack.c.b16 %v6655, %v6649
      %v6842 = vpack.c.b16 %v6662, %v6656
      %v6843 = vpack.c.b16 %v6663, %v6657
      %v6844 = vpack.c.b16 %v6664, %v6658
      %v6845 = vpack.c.b16 %v6665, %v6659
      %v6846 = vpack.c.b16 %v6666, %v6660
      %v6847 = vpack.c.b16 %v6667, %v6661
      %v6848 = vpack.c.b16 %v6674, %v6668
      %v6849 = vpack.c.b16 %v6675, %v6669
      %v6850 = vpack.c.b16 %v6676, %v6670
      %v6851 = vpack.c.b16 %v6677, %v6671
      %v6852 = vpack.c.b16 %v6678, %v6672
      %v6853 = vpack.c.b16 %v6679, %v6673
      %v6854 = vpack.c.b16 %v6686, %v6680
      %v6855 = vpack.c.b16 %v6687, %v6681
      %v6856 = vpack.c.b16 %v6688, %v6682
      %v6857 = vpack.c.b16 %v6689, %v6683
      %v6858 = vpack.c.b16 %v6690, %v6684
      %v6859 = vpack.c.b16 %v6691, %v6685
      %v6860 = vpack.c.b16 %v6698, %v6692
      %v6861 = vpack.c.b16 %v6699, %v6693
      %v6862 = vpack.c.b16 %v6700, %v6694
      %v6863 = vpack.c.b16 %v6701, %v6695
      %v6864 = vpack.c.b16 %v6702, %v6696
      %v6865 = vpack.c.b16 %v6703, %v6697
      %v6866 = vpack.c.b16 %v6710, %v6704
      %v6867 = vpack.c.b16 %v6711, %v6705
      %v6868 = vpack.c.b16 %v6712, %v6706
      %v6869 = vpack.c.b16 %v6713, %v6707
      %v6870 = vpack.c.b16 %v6714, %v6708
      %v6871 = vpack.c.b16 %v6715, %v6709
      %v6872 = vpack.c.b16 %v6722, %v6716
      %v6873 = vpack.c.b16 %v6723, %v6717
      %v6874 = vpack.c.b16 %v6724, %v6718
      %v6875 = vpack.c.b16 %v6725, %v6719
      %v6876 = vpack.c.b16 %v6726, %v6720
      %v6877 = vpack.c.b16 %v6727, %v6721
      %v6878 = vpack.c.b16 %v6734, %v6728
      %v6879 = vpack.c.b16 %v6735, %v6729
      %v6880 = vpack.c.b16 %v6736, %v6730
      %v6881 = vpack.c.b16 %v6737, %v6731
      %v6882 = vpack.c.b16 %v6738, %v6732
      %v6883 = vpack.c.b16 %v6739, %v6733
      %v6884 = vpack.c.b16 %v6746, %v6740
      %v6885 = vpack.c.b16 %v6747, %v6741
      %v6886 = vpack.c.b16 %v6748, %v6742
      %v6887 = vpack.c.b16 %v6749, %v6743
      %v6888 = vpack.c.b16 %v6750, %v6744
      %v6889 = vpack.c.b16 %v6751, %v6745
      %v6890 = vpack.c.b16 %v6758, %v6752
      %v6891 = vpack.c.b16 %v6759, %v6753
      %v6892 = vpack.c.b16 %v6760, %v6754
      %v6893 = vpack.c.b16 %v6761, %v6755
      %v6894 = vpack.c.b16 %v6762, %v6756
      %v6895 = vpack.c.b16 %v6763, %v6757
      %v6896 = vpack.c.b16 %v6770, %v6764
      %v6897 = vpack.c.b16 %v6771, %v6765
      %v6898 = vpack.c.b16 %v6772, %v6766
      %v6899 = vpack.c.b16 %v6773, %v6767
      %v6900 = vpack.c.b16 %v6774, %v6768
      %v6901 = vpack.c.b16 %v6775, %v6769
      %v6902 = vpack.c.b16 %v6782, %v6776
      %v6903 = vpack.c.b16 %v6783, %v6777
      %v6904 = vpack.c.b16 %v6784, %v6778
      %v6905 = vpack.c.b16 %v6785, %v6779
      %v6906 = vpack.c.b16 %v6786, %v6780
      %v6907 = vpack.c.b16 %v6787, %v6781
      %v6908 = vpack.c.b16 %v6794, %v6788
      %v6909 = vpack.c.b16 %v6795, %v6789
      %v6910 = vpack.c.b16 %v6796, %v6790
      %v6911 = vpack.c.b16 %v6797, %v6791
      %v6912 = vpack.c.b16 %v6798, %v6792
      %v6913 = vpack.c.b16 %v6799, %v6793
      %v6914 = vpack.c.b16 %v6806, %v6800
      %v6915 = vpack.c.b16 %v6807, %v6801
      %v6916 = vpack.c.b16 %v6808, %v6802
      %v6917 = vpack.c.b16 %v6809, %v6803
      %v6918 = vpack.c.b16 %v6810, %v6804
      %v6919 = vpack.c.b16 %v6811, %v6805
      %v6920 = vpack.c.b16 %v6818, %v6812
      %v6921 = vpack.c.b16 %v6819, %v6813
      %v6922 = vpack.c.b16 %v6820, %v6814
      %v6923 = vpack.c.b16 %v6821, %v6815
      %v6924 = vpack.c.b16 %v6822, %v6816
      %v6925 = vpack.c.b16 %v6823, %v6817
      %v6926 = vpack.c.b16 %v6830, %v6824
      %v6927 = vpack.c.b16 %v6831, %v6825
      %v6928 = vpack.c.b16 %v6832, %v6826
      %v6929 = vpack.c.b16 %v6833, %v6827
      %v6930 = vpack.c.b16 %v6834, %v6828
      %v6931 = vpack.c.b16 %v6835, %v6829
      %7028 = vmatprep.subr.bf16.mxu0 %v6837
      %7029 = vmatpush1.bf16.msra.mxu0 %v6836
      %7030 = vmatprep.subr.bf16.mxu0 %v6843
      %7031 = vmatpush1.bf16.msra.mxu0 %v6842
      %7032 = vmatprep.subr.bf16.mxu0 %v6849
      %7033 = vmatpush1.bf16.msra.mxu0 %v6848
      %7034 = vmatprep.subr.bf16.mxu0 %v6855
      %7035 = vmatpush1.bf16.msra.mxu0 %v6854
      %7036 = vmatprep.subr.bf16.mxu0 %v6861
      %7037 = vmatpush1.bf16.msra.mxu0 %v6860
      %7038 = vmatprep.subr.bf16.mxu0 %v6867
      %7039 = vmatpush1.bf16.msra.mxu0 %v6866
      %7040 = vmatprep.subr.bf16.mxu0 %v6873
      %7041 = vmatpush1.bf16.msra.mxu0 %v6872
      %7042 = vmatprep.subr.bf16.mxu0 %v6879
      %7043 = vmatpush1.bf16.msra.mxu0 %v6878
      %7044 = vmatprep.subr.bf16.mxu0 %v6885
      %7045 = vmatpush1.bf16.msra.mxu0 %v6884
      %7046 = vmatprep.subr.bf16.mxu0 %v6891
      %7047 = vmatpush1.bf16.msra.mxu0 %v6890
      %7048 = vmatprep.subr.bf16.mxu0 %v6897
      %7049 = vmatpush1.bf16.msra.mxu0 %v6896
      %7050 = vmatprep.subr.bf16.mxu0 %v6903
      %7051 = vmatpush1.bf16.msra.mxu0 %v6902
      %7052 = vmatprep.subr.bf16.mxu0 %v6909
      %7053 = vmatpush1.bf16.msra.mxu0 %v6908
      %7054 = vmatprep.subr.bf16.mxu0 %v6915
      %7055 = vmatpush1.bf16.msra.mxu0 %v6914
      %7056 = vmatprep.subr.bf16.mxu0 %v6921
      %7057 = vmatpush1.bf16.msra.mxu0 %v6920
      %7058 = vmatprep.subr.bf16.mxu0 %v6927
      %7059 = vmatpush1.bf16.msra.mxu0 %v6926
      %7060 = vmatprep.mubr.bf16.mxu0 %v6451
      %7061 = vmatmul.mubr.bf16.gmra.mrb[0].mxu0 %v6450
      %v7062 = vpop.f32.mrb[0].mxu0
      %v7063 = vadd.f32 0.0, %v7062
      %v7064 = vpop.f32.mrb[0].mxu0
      %v7065 = vadd.f32 0.0, %v7064
      %v7066 = vpop.f32.mrb[0].mxu0
      %v7067 = vpop.f32.mrb[0].mxu0
      %7068 = vdwg.mxu0
      %7069 = vmatprep.subr.bf16.mxu0 %v6839
      %7070 = vmatpush1.bf16.msra.mxu0 %v6838
      %7071 = vmatprep.subr.bf16.mxu0 %v6845
      %7072 = vmatpush1.bf16.msra.mxu0 %v6844
      %7073 = vmatprep.subr.bf16.mxu0 %v6851
      %7074 = vmatpush1.bf16.msra.mxu0 %v6850
      %7075 = vmatprep.subr.bf16.mxu0 %v6857
      %7076 = vmatpush1.bf16.msra.mxu0 %v6856
      %7077 = vmatprep.subr.bf16.mxu0 %v6863
      %7078 = vmatpush1.bf16.msra.mxu0 %v6862
      %7079 = vmatprep.subr.bf16.mxu0 %v6869
      %7080 = vmatpush1.bf16.msra.mxu0 %v6868
      %7081 = vmatprep.subr.bf16.mxu0 %v6875
      %7082 = vmatpush1.bf16.msra.mxu0 %v6874
      %7083 = vmatprep.subr.bf16.mxu0 %v6881
      %7084 = vmatpush1.bf16.msra.mxu0 %v6880
      %7085 = vmatprep.subr.bf16.mxu0 %v6887
      %7086 = vmatpush1.bf16.msra.mxu0 %v6886
      %7087 = vmatprep.subr.bf16.mxu0 %v6893
      %7088 = vmatpush1.bf16.msra.mxu0 %v6892
      %7089 = vmatprep.subr.bf16.mxu0 %v6899
      %7090 = vmatpush1.bf16.msra.mxu0 %v6898
      %7091 = vmatprep.subr.bf16.mxu0 %v6905
      %7092 = vmatpush1.bf16.msra.mxu0 %v6904
      %7093 = vmatprep.subr.bf16.mxu0 %v6911
      %7094 = vmatpush1.bf16.msra.mxu0 %v6910
      %7095 = vmatprep.subr.bf16.mxu0 %v6917
      %7096 = vmatpush1.bf16.msra.mxu0 %v6916
      %7097 = vmatprep.subr.bf16.mxu0 %v6923
      %7098 = vmatpush1.bf16.msra.mxu0 %v6922
      %7099 = vmatprep.subr.bf16.mxu0 %v6929
      %7100 = vmatpush1.bf16.msra.mxu0 %v6928
      %7101 = vmatprep.mubr.bf16.mxu0 %v6451
      %7102 = vmatmul.mubr.bf16.gmra.mrb[0].mxu0 %v6450
      %v7103 = vpop.f32.mrb[0].mxu0
      %v7104 = vadd.f32 0.0, %v7103
      %v7105 = vpop.f32.mrb[0].mxu0
      %v7106 = vadd.f32 0.0, %v7105
      %v7107 = vpop.f32.mrb[0].mxu0
      %v7108 = vpop.f32.mrb[0].mxu0
      %7109 = vdwg.mxu0
      %7110 = vmatprep.subr.bf16.mxu0 %v6841
      %7111 = vmatpush1.bf16.msra.mxu0 %v6840
      %7112 = vmatprep.subr.bf16.mxu0 %v6847
      %7113 = vmatpush1.bf16.msra.mxu0 %v6846
      %7114 = vmatprep.subr.bf16.mxu0 %v6853
      %7115 = vmatpush1.bf16.msra.mxu0 %v6852
      %7116 = vmatprep.subr.bf16.mxu0 %v6859
      %7117 = vmatpush1.bf16.msra.mxu0 %v6858
      %7118 = vmatprep.subr.bf16.mxu0 %v6865
      %7119 = vmatpush1.bf16.msra.mxu0 %v6864
      %7120 = vmatprep.subr.bf16.mxu0 %v6871
      %7121 = vmatpush1.bf16.msra.mxu0 %v6870
      %7122 = vmatprep.subr.bf16.mxu0 %v6877
      %7123 = vmatpush1.bf16.msra.mxu0 %v6876
      %7124 = vmatprep.subr.bf16.mxu0 %v6883
      %7125 = vmatpush1.bf16.msra.mxu0 %v6882
      %7126 = vmatprep.subr.bf16.mxu0 %v6889
      %7127 = vmatpush1.bf16.msra.mxu0 %v6888
      %7128 = vmatprep.subr.bf16.mxu0 %v6895
      %7129 = vmatpush1.bf16.msra.mxu0 %v6894
      %7130 = vmatprep.subr.bf16.mxu0 %v6901
      %7131 = vmatpush1.bf16.msra.mxu0 %v6900
      %7132 = vmatprep.subr.bf16.mxu0 %v6907
      %7133 = vmatpush1.bf16.msra.mxu0 %v6906
      %7134 = vmatprep.subr.bf16.mxu0 %v6913
      %7135 = vmatpush1.bf16.msra.mxu0 %v6912
      %7136 = vmatprep.subr.bf16.mxu0 %v6919
      %7137 = vmatpush1.bf16.msra.mxu0 %v6918
      %7138 = vmatprep.subr.bf16.mxu0 %v6925
      %7139 = vmatpush1.bf16.msra.mxu0 %v6924
      %7140 = vmatprep.subr.bf16.mxu0 %v6931
      %7141 = vmatpush1.bf16.msra.mxu0 %v6930
      %7142 = vmatprep.mubr.bf16.mxu0 %v6451
      %7143 = vmatmul.mubr.bf16.gmra.mrb[0].mxu0 %v6450
      %v7144 = vpop.f32.mrb[0].mxu0
      %v7145 = vadd.f32 0.0, %v7144
      %v7146 = vpop.f32.mrb[0].mxu0
      %v7147 = vadd.f32 0.0, %v7146
      %v7148 = vpop.f32.mrb[0].mxu0
      %v7149 = vpop.f32.mrb[0].mxu0
      %7150 = vdwg.mxu0
      %v7151 = vadd.f32 %v6444, %v7063
      %v7152 = vadd.f32 %v6445, %v7065
      %v7153 = vxor.u32 %v7151, 2147483648
      %v7154 = vxor.u32 %v7152, 2147483648
      %v7155 = vmul.f32 %v7153, 1.442695
      %v7156 = vpow.pop %v7155
      %v7157 = vmul.f32 %v7154, 1.442695
      %v7158 = vpow.pop %v7157
      %v7159 = vadd.f32 %v7156, 1.0
      %v7160 = vadd.f32 %v7158, 1.0
      %v7161 = vrcp.pop %v7159
      %v7162 = vmul.f32 1.0, %v7161
      %v7163 = vrcp.pop %v7160
      %v7164 = vmul.f32 1.0, %v7163
      %v7165 = vadd.f32 %v6446, %v7104
      %v7166 = vadd.f32 %v6447, %v7106
      %v7167 = vxor.u32 %v7165, 2147483648
      %v7168 = vxor.u32 %v7166, 2147483648
      %v7169 = vmul.f32 %v7167, 1.442695
      %v7170 = vpow.pop %v7169
      %v7171 = vmul.f32 %v7168, 1.442695
      %v7172 = vpow.pop %v7171
      %v7173 = vadd.f32 %v7170, 1.0
      %v7174 = vadd.f32 %v7172, 1.0
      %v7175 = vrcp.pop %v7173
      %v7176 = vmul.f32 1.0, %v7175
      %v7177 = vrcp.pop %v7174
      %v7178 = vmul.f32 1.0, %v7177
      %v7180 = vlaneseq
      %v7181 = vshrl.u32 %v7180, 7
      %v7182 = vsub.s32 0, %v7181
      %v7183 = vrot.slane %v3333, %v7182
      %v7184 = vlaneseq
      %v7185 = vshrl.u32 %v7184, 7
      %v7186 = vsub.s32 1, %v7185
      %v7187 = vrot.slane %v3333, %v7186
      %v7190 = vadd.f32 %v7145, %v7183
      %v7191 = vadd.f32 %v7147, %v7187
      %v7192 = vmul.f32 %v7162, %v7190
      %v7193 = vmul.f32 %v7164, %v7191
      %v7194 = vadd.f32 %v6448, %v7192
      %v7195 = vadd.f32 %v6449, %v7193
      %v7196 = vtanh.pop %v7194
      %v7197 = vtanh.pop %v7195
      %v7198 = vsub.f32 %v6442, %v7196
      %v7199 = vsub.f32 %v6443, %v7197
      %v7200 = vmul.f32 %v7176, %v7198
      %v7201 = vmul.f32 %v7178, %v7199
      %v7202 = vadd.f32 %v7196, %v7200
      %v7203 = vadd.f32 %v7197, %v7201
      %7204 = vst [vmem:[#allocation8] sm:$0xff] %v7202
      %7205 = vst [vmem:[#allocation8 + $0x8] sm:$0xff] %v7203
    $region231: #{network_forward.1} parent=1 // pred_fallthru
      _
    %p7206 = scmp.eq.s32.totalorder %s1530, 5
    // Predicated region
    $region232: #{network_forward.1} parent=1 // pred_check
      %p7207 = pneg %p7206
    $region233: #{network_forward.1} parent=1 // pred_check_branch
      %7209 = sbr.rel (%p7207) target = $region235
    $region234: #{network_forward.1} parent=1 // pred_region
      %v7210 = vld [vmem:[#allocation8] sm:$0xff]
      %v7211 = vld [vmem:[#allocation8 + $0x8] sm:$0xff]
      %7212 = vst [vmem:[#allocation9] sm:$0xff] %v7210
      %7213 = vst [vmem:[#allocation9 + $0x8] sm:$0xff] %v7211
    $region235: #{network_forward.1} parent=1 // pred_fallthru
      _
    %p7214 = scmp.gt.s32.totalorder %s1530, 5
    // Predicated region
    $region236: #{network_forward.1} parent=1 // pred_check
      %p7215 = pneg %p7214
    $region237: #{network_forward.1} parent=1 // pred_check_branch
      %7217 = sbr.rel (%p7215) target = $region239
    $region238: #{network_forward.1} parent=1 // pred_region
      %v7218 = vld [vmem:[#allocation8] sm:$0xff]
      %v7219 = vld [vmem:[#allocation8 + $0x8] sm:$0xff]
      %v7220 = vld [vmem:[#allocation7 + $0xf0] sm:$0xff]
      %v7221 = vld [vmem:[#allocation7 + $0xf8] sm:$0xff]
      %v7222 = vld [vmem:[#allocation7 + $0x100] sm:$0xff]
      %v7223 = vld [vmem:[#allocation7 + $0x108] sm:$0xff]
      %v7224 = vld [vmem:[#allocation7 + $0x110] sm:$0xff]
      %v7225 = vld [vmem:[#allocation7 + $0x118] sm:$0xff]
      %v7226 = vpack.c.bf16 %v7218, %v7218
      %v7227 = vpack.c.bf16 %v7219, %v7219
      %v7228 = vld [vmem:[%s12] sm:$0xff]
      %v7229 = vld [vmem:[%s12 + $0x8] sm:$0xff]
      %v7230 = vld [vmem:[%s12 + $0x10] sm:$0xff]
      %v7231 = vld [vmem:[%s12 + $0x18] sm:$0xff]
      %v7232 = vld [vmem:[%s12 + $0x20] sm:$0xff]
      %v7233 = vld [vmem:[%s12 + $0x28] sm:$0xff]
      %v7234 = vld [vmem:[%s12 + $0x30] sm:$0xff]
      %v7235 = vld [vmem:[%s12 + $0x38] sm:$0xff]
      %v7236 = vld [vmem:[%s12 + $0x40] sm:$0xff]
      %v7237 = vld [vmem:[%s12 + $0x48] sm:$0xff]
      %v7238 = vld [vmem:[%s12 + $0x50] sm:$0xff]
      %v7239 = vld [vmem:[%s12 + $0x58] sm:$0xff]
      %v7240 = vld [vmem:[%s12 + $0x60] sm:$0xff]
      %v7241 = vld [vmem:[%s12 + $0x68] sm:$0xff]
      %v7242 = vld [vmem:[%s12 + $0x70] sm:$0xff]
      %v7243 = vld [vmem:[%s12 + $0x78] sm:$0xff]
      %v7244 = vld [vmem:[%s12 + $0x80] sm:$0xff]
      %v7245 = vld [vmem:[%s12 + $0x88] sm:$0xff]
      %v7246 = vld [vmem:[%s12 + $0x90] sm:$0xff]
      %v7247 = vld [vmem:[%s12 + $0x98] sm:$0xff]
      %v7248 = vld [vmem:[%s12 + $0xa0] sm:$0xff]
      %v7249 = vld [vmem:[%s12 + $0xa8] sm:$0xff]
      %v7250 = vld [vmem:[%s12 + $0xb0] sm:$0xff]
      %v7251 = vld [vmem:[%s12 + $0xb8] sm:$0xff]
      %v7252 = vld [vmem:[%s12 + $0xc0] sm:$0xff]
      %v7253 = vld [vmem:[%s12 + $0xc8] sm:$0xff]
      %v7254 = vld [vmem:[%s12 + $0xd0] sm:$0xff]
      %v7255 = vld [vmem:[%s12 + $0xd8] sm:$0xff]
      %v7256 = vld [vmem:[%s12 + $0xe0] sm:$0xff]
      %v7257 = vld [vmem:[%s12 + $0xe8] sm:$0xff]
      %v7258 = vld [vmem:[%s12 + $0xf0] sm:$0xff]
      %v7259 = vld [vmem:[%s12 + $0xf8] sm:$0xff]
      %v7260 = vld [vmem:[%s12 + $0x100] sm:$0xff]
      %v7261 = vld [vmem:[%s12 + $0x108] sm:$0xff]
      %v7262 = vld [vmem:[%s12 + $0x110] sm:$0xff]
      %v7263 = vld [vmem:[%s12 + $0x118] sm:$0xff]
      %v7264 = vld [vmem:[%s12 + $0x120] sm:$0xff]
      %v7265 = vld [vmem:[%s12 + $0x128] sm:$0xff]
      %v7266 = vld [vmem:[%s12 + $0x130] sm:$0xff]
      %v7267 = vld [vmem:[%s12 + $0x138] sm:$0xff]
      %v7268 = vld [vmem:[%s12 + $0x140] sm:$0xff]
      %v7269 = vld [vmem:[%s12 + $0x148] sm:$0xff]
      %v7270 = vld [vmem:[%s12 + $0x150] sm:$0xff]
      %v7271 = vld [vmem:[%s12 + $0x158] sm:$0xff]
      %v7272 = vld [vmem:[%s12 + $0x160] sm:$0xff]
      %v7273 = vld [vmem:[%s12 + $0x168] sm:$0xff]
      %v7274 = vld [vmem:[%s12 + $0x170] sm:$0xff]
      %v7275 = vld [vmem:[%s12 + $0x178] sm:$0xff]
      %v7276 = vld [vmem:[%s12 + $0x180] sm:$0xff]
      %v7277 = vld [vmem:[%s12 + $0x188] sm:$0xff]
      %v7278 = vld [vmem:[%s12 + $0x190] sm:$0xff]
      %v7279 = vld [vmem:[%s12 + $0x198] sm:$0xff]
      %v7280 = vld [vmem:[%s12 + $0x1a0] sm:$0xff]
      %v7281 = vld [vmem:[%s12 + $0x1a8] sm:$0xff]
      %v7282 = vld [vmem:[%s12 + $0x1b0] sm:$0xff]
      %v7283 = vld [vmem:[%s12 + $0x1b8] sm:$0xff]
      %v7284 = vld [vmem:[%s12 + $0x1c0] sm:$0xff]
      %v7285 = vld [vmem:[%s12 + $0x1c8] sm:$0xff]
      %v7286 = vld [vmem:[%s12 + $0x1d0] sm:$0xff]
      %v7287 = vld [vmem:[%s12 + $0x1d8] sm:$0xff]
      %v7288 = vld [vmem:[%s12 + $0x1e0] sm:$0xff]
      %v7289 = vld [vmem:[%s12 + $0x1e8] sm:$0xff]
      %v7290 = vld [vmem:[%s12 + $0x1f0] sm:$0xff]
      %v7291 = vld [vmem:[%s12 + $0x1f8] sm:$0xff]
      %v7292 = vld [vmem:[%s12 + $0x200] sm:$0xff]
      %v7293 = vld [vmem:[%s12 + $0x208] sm:$0xff]
      %v7294 = vld [vmem:[%s12 + $0x210] sm:$0xff]
      %v7295 = vld [vmem:[%s12 + $0x218] sm:$0xff]
      %v7296 = vld [vmem:[%s12 + $0x220] sm:$0xff]
      %v7297 = vld [vmem:[%s12 + $0x228] sm:$0xff]
      %v7298 = vld [vmem:[%s12 + $0x230] sm:$0xff]
      %v7299 = vld [vmem:[%s12 + $0x238] sm:$0xff]
      %v7300 = vld [vmem:[%s12 + $0x240] sm:$0xff]
      %v7301 = vld [vmem:[%s12 + $0x248] sm:$0xff]
      %v7302 = vld [vmem:[%s12 + $0x250] sm:$0xff]
      %v7303 = vld [vmem:[%s12 + $0x258] sm:$0xff]
      %v7304 = vld [vmem:[%s12 + $0x260] sm:$0xff]
      %v7305 = vld [vmem:[%s12 + $0x268] sm:$0xff]
      %v7306 = vld [vmem:[%s12 + $0x270] sm:$0xff]
      %v7307 = vld [vmem:[%s12 + $0x278] sm:$0xff]
      %v7308 = vld [vmem:[%s12 + $0x280] sm:$0xff]
      %v7309 = vld [vmem:[%s12 + $0x288] sm:$0xff]
      %v7310 = vld [vmem:[%s12 + $0x290] sm:$0xff]
      %v7311 = vld [vmem:[%s12 + $0x298] sm:$0xff]
      %v7312 = vld [vmem:[%s12 + $0x2a0] sm:$0xff]
      %v7313 = vld [vmem:[%s12 + $0x2a8] sm:$0xff]
      %v7314 = vld [vmem:[%s12 + $0x2b0] sm:$0xff]
      %v7315 = vld [vmem:[%s12 + $0x2b8] sm:$0xff]
      %v7316 = vld [vmem:[%s12 + $0x2c0] sm:$0xff]
      %v7317 = vld [vmem:[%s12 + $0x2c8] sm:$0xff]
      %v7318 = vld [vmem:[%s12 + $0x2d0] sm:$0xff]
      %v7319 = vld [vmem:[%s12 + $0x2d8] sm:$0xff]
      %v7320 = vld [vmem:[%s12 + $0x2e0] sm:$0xff]
      %v7321 = vld [vmem:[%s12 + $0x2e8] sm:$0xff]
      %v7322 = vld [vmem:[%s12 + $0x2f0] sm:$0xff]
      %v7323 = vld [vmem:[%s12 + $0x2f8] sm:$0xff]
      %v7420 = vunpack.c.l.b16 %v7228
      %v7421 = vunpack.c.h.b16 %v7228
      %v7422 = vunpack.c.l.b16 %v7229
      %v7423 = vunpack.c.h.b16 %v7229
      %v7424 = vunpack.c.l.b16 %v7230
      %v7425 = vunpack.c.h.b16 %v7230
      %v7426 = vunpack.c.l.b16 %v7231
      %v7427 = vunpack.c.h.b16 %v7231
      %v7428 = vunpack.c.l.b16 %v7232
      %v7429 = vunpack.c.h.b16 %v7232
      %v7430 = vunpack.c.l.b16 %v7233
      %v7431 = vunpack.c.h.b16 %v7233
      %v7432 = vunpack.c.l.b16 %v7234
      %v7433 = vunpack.c.h.b16 %v7234
      %v7434 = vunpack.c.l.b16 %v7235
      %v7435 = vunpack.c.h.b16 %v7235
      %v7436 = vunpack.c.l.b16 %v7236
      %v7437 = vunpack.c.h.b16 %v7236
      %v7438 = vunpack.c.l.b16 %v7237
      %v7439 = vunpack.c.h.b16 %v7237
      %v7440 = vunpack.c.l.b16 %v7238
      %v7441 = vunpack.c.h.b16 %v7238
      %v7442 = vunpack.c.l.b16 %v7239
      %v7443 = vunpack.c.h.b16 %v7239
      %v7444 = vunpack.c.l.b16 %v7240
      %v7445 = vunpack.c.h.b16 %v7240
      %v7446 = vunpack.c.l.b16 %v7241
      %v7447 = vunpack.c.h.b16 %v7241
      %v7448 = vunpack.c.l.b16 %v7242
      %v7449 = vunpack.c.h.b16 %v7242
      %v7450 = vunpack.c.l.b16 %v7243
      %v7451 = vunpack.c.h.b16 %v7243
      %v7452 = vunpack.c.l.b16 %v7244
      %v7453 = vunpack.c.h.b16 %v7244
      %v7454 = vunpack.c.l.b16 %v7245
      %v7455 = vunpack.c.h.b16 %v7245
      %v7456 = vunpack.c.l.b16 %v7246
      %v7457 = vunpack.c.h.b16 %v7246
      %v7458 = vunpack.c.l.b16 %v7247
      %v7459 = vunpack.c.h.b16 %v7247
      %v7460 = vunpack.c.l.b16 %v7248
      %v7461 = vunpack.c.h.b16 %v7248
      %v7462 = vunpack.c.l.b16 %v7249
      %v7463 = vunpack.c.h.b16 %v7249
      %v7464 = vunpack.c.l.b16 %v7250
      %v7465 = vunpack.c.h.b16 %v7250
      %v7466 = vunpack.c.l.b16 %v7251
      %v7467 = vunpack.c.h.b16 %v7251
      %v7468 = vunpack.c.l.b16 %v7252
      %v7469 = vunpack.c.h.b16 %v7252
      %v7470 = vunpack.c.l.b16 %v7253
      %v7471 = vunpack.c.h.b16 %v7253
      %v7472 = vunpack.c.l.b16 %v7254
      %v7473 = vunpack.c.h.b16 %v7254
      %v7474 = vunpack.c.l.b16 %v7255
      %v7475 = vunpack.c.h.b16 %v7255
      %v7476 = vunpack.c.l.b16 %v7256
      %v7477 = vunpack.c.h.b16 %v7256
      %v7478 = vunpack.c.l.b16 %v7257
      %v7479 = vunpack.c.h.b16 %v7257
      %v7480 = vunpack.c.l.b16 %v7258
      %v7481 = vunpack.c.h.b16 %v7258
      %v7482 = vunpack.c.l.b16 %v7259
      %v7483 = vunpack.c.h.b16 %v7259
      %v7484 = vunpack.c.l.b16 %v7260
      %v7485 = vunpack.c.h.b16 %v7260
      %v7486 = vunpack.c.l.b16 %v7261
      %v7487 = vunpack.c.h.b16 %v7261
      %v7488 = vunpack.c.l.b16 %v7262
      %v7489 = vunpack.c.h.b16 %v7262
      %v7490 = vunpack.c.l.b16 %v7263
      %v7491 = vunpack.c.h.b16 %v7263
      %v7492 = vunpack.c.l.b16 %v7264
      %v7493 = vunpack.c.h.b16 %v7264
      %v7494 = vunpack.c.l.b16 %v7265
      %v7495 = vunpack.c.h.b16 %v7265
      %v7496 = vunpack.c.l.b16 %v7266
      %v7497 = vunpack.c.h.b16 %v7266
      %v7498 = vunpack.c.l.b16 %v7267
      %v7499 = vunpack.c.h.b16 %v7267
      %v7500 = vunpack.c.l.b16 %v7268
      %v7501 = vunpack.c.h.b16 %v7268
      %v7502 = vunpack.c.l.b16 %v7269
      %v7503 = vunpack.c.h.b16 %v7269
      %v7504 = vunpack.c.l.b16 %v7270
      %v7505 = vunpack.c.h.b16 %v7270
      %v7506 = vunpack.c.l.b16 %v7271
      %v7507 = vunpack.c.h.b16 %v7271
      %v7508 = vunpack.c.l.b16 %v7272
      %v7509 = vunpack.c.h.b16 %v7272
      %v7510 = vunpack.c.l.b16 %v7273
      %v7511 = vunpack.c.h.b16 %v7273
      %v7512 = vunpack.c.l.b16 %v7274
      %v7513 = vunpack.c.h.b16 %v7274
      %v7514 = vunpack.c.l.b16 %v7275
      %v7515 = vunpack.c.h.b16 %v7275
      %v7516 = vunpack.c.l.b16 %v7276
      %v7517 = vunpack.c.h.b16 %v7276
      %v7518 = vunpack.c.l.b16 %v7277
      %v7519 = vunpack.c.h.b16 %v7277
      %v7520 = vunpack.c.l.b16 %v7278
      %v7521 = vunpack.c.h.b16 %v7278
      %v7522 = vunpack.c.l.b16 %v7279
      %v7523 = vunpack.c.h.b16 %v7279
      %v7524 = vunpack.c.l.b16 %v7280
      %v7525 = vunpack.c.h.b16 %v7280
      %v7526 = vunpack.c.l.b16 %v7281
      %v7527 = vunpack.c.h.b16 %v7281
      %v7528 = vunpack.c.l.b16 %v7282
      %v7529 = vunpack.c.h.b16 %v7282
      %v7530 = vunpack.c.l.b16 %v7283
      %v7531 = vunpack.c.h.b16 %v7283
      %v7532 = vunpack.c.l.b16 %v7284
      %v7533 = vunpack.c.h.b16 %v7284
      %v7534 = vunpack.c.l.b16 %v7285
      %v7535 = vunpack.c.h.b16 %v7285
      %v7536 = vunpack.c.l.b16 %v7286
      %v7537 = vunpack.c.h.b16 %v7286
      %v7538 = vunpack.c.l.b16 %v7287
      %v7539 = vunpack.c.h.b16 %v7287
      %v7540 = vunpack.c.l.b16 %v7288
      %v7541 = vunpack.c.h.b16 %v7288
      %v7542 = vunpack.c.l.b16 %v7289
      %v7543 = vunpack.c.h.b16 %v7289
      %v7544 = vunpack.c.l.b16 %v7290
      %v7545 = vunpack.c.h.b16 %v7290
      %v7546 = vunpack.c.l.b16 %v7291
      %v7547 = vunpack.c.h.b16 %v7291
      %v7548 = vunpack.c.l.b16 %v7292
      %v7549 = vunpack.c.h.b16 %v7292
      %v7550 = vunpack.c.l.b16 %v7293
      %v7551 = vunpack.c.h.b16 %v7293
      %v7552 = vunpack.c.l.b16 %v7294
      %v7553 = vunpack.c.h.b16 %v7294
      %v7554 = vunpack.c.l.b16 %v7295
      %v7555 = vunpack.c.h.b16 %v7295
      %v7556 = vunpack.c.l.b16 %v7296
      %v7557 = vunpack.c.h.b16 %v7296
      %v7558 = vunpack.c.l.b16 %v7297
      %v7559 = vunpack.c.h.b16 %v7297
      %v7560 = vunpack.c.l.b16 %v7298
      %v7561 = vunpack.c.h.b16 %v7298
      %v7562 = vunpack.c.l.b16 %v7299
      %v7563 = vunpack.c.h.b16 %v7299
      %v7564 = vunpack.c.l.b16 %v7300
      %v7565 = vunpack.c.h.b16 %v7300
      %v7566 = vunpack.c.l.b16 %v7301
      %v7567 = vunpack.c.h.b16 %v7301
      %v7568 = vunpack.c.l.b16 %v7302
      %v7569 = vunpack.c.h.b16 %v7302
      %v7570 = vunpack.c.l.b16 %v7303
      %v7571 = vunpack.c.h.b16 %v7303
      %v7572 = vunpack.c.l.b16 %v7304
      %v7573 = vunpack.c.h.b16 %v7304
      %v7574 = vunpack.c.l.b16 %v7305
      %v7575 = vunpack.c.h.b16 %v7305
      %v7576 = vunpack.c.l.b16 %v7306
      %v7577 = vunpack.c.h.b16 %v7306
      %v7578 = vunpack.c.l.b16 %v7307
      %v7579 = vunpack.c.h.b16 %v7307
      %v7580 = vunpack.c.l.b16 %v7308
      %v7581 = vunpack.c.h.b16 %v7308
      %v7582 = vunpack.c.l.b16 %v7309
      %v7583 = vunpack.c.h.b16 %v7309
      %v7584 = vunpack.c.l.b16 %v7310
      %v7585 = vunpack.c.h.b16 %v7310
      %v7586 = vunpack.c.l.b16 %v7311
      %v7587 = vunpack.c.h.b16 %v7311
      %v7588 = vunpack.c.l.b16 %v7312
      %v7589 = vunpack.c.h.b16 %v7312
      %v7590 = vunpack.c.l.b16 %v7313
      %v7591 = vunpack.c.h.b16 %v7313
      %v7592 = vunpack.c.l.b16 %v7314
      %v7593 = vunpack.c.h.b16 %v7314
      %v7594 = vunpack.c.l.b16 %v7315
      %v7595 = vunpack.c.h.b16 %v7315
      %v7596 = vunpack.c.l.b16 %v7316
      %v7597 = vunpack.c.h.b16 %v7316
      %v7598 = vunpack.c.l.b16 %v7317
      %v7599 = vunpack.c.h.b16 %v7317
      %v7600 = vunpack.c.l.b16 %v7318
      %v7601 = vunpack.c.h.b16 %v7318
      %v7602 = vunpack.c.l.b16 %v7319
      %v7603 = vunpack.c.h.b16 %v7319
      %v7604 = vunpack.c.l.b16 %v7320
      %v7605 = vunpack.c.h.b16 %v7320
      %v7606 = vunpack.c.l.b16 %v7321
      %v7607 = vunpack.c.h.b16 %v7321
      %v7608 = vunpack.c.l.b16 %v7322
      %v7609 = vunpack.c.h.b16 %v7322
      %v7610 = vunpack.c.l.b16 %v7323
      %v7611 = vunpack.c.h.b16 %v7323
      %v7612 = vpack.c.b16 %v7426, %v7420
      %v7613 = vpack.c.b16 %v7427, %v7421
      %v7614 = vpack.c.b16 %v7428, %v7422
      %v7615 = vpack.c.b16 %v7429, %v7423
      %v7616 = vpack.c.b16 %v7430, %v7424
      %v7617 = vpack.c.b16 %v7431, %v7425
      %v7618 = vpack.c.b16 %v7438, %v7432
      %v7619 = vpack.c.b16 %v7439, %v7433
      %v7620 = vpack.c.b16 %v7440, %v7434
      %v7621 = vpack.c.b16 %v7441, %v7435
      %v7622 = vpack.c.b16 %v7442, %v7436
      %v7623 = vpack.c.b16 %v7443, %v7437
      %v7624 = vpack.c.b16 %v7450, %v7444
      %v7625 = vpack.c.b16 %v7451, %v7445
      %v7626 = vpack.c.b16 %v7452, %v7446
      %v7627 = vpack.c.b16 %v7453, %v7447
      %v7628 = vpack.c.b16 %v7454, %v7448
      %v7629 = vpack.c.b16 %v7455, %v7449
      %v7630 = vpack.c.b16 %v7462, %v7456
      %v7631 = vpack.c.b16 %v7463, %v7457
      %v7632 = vpack.c.b16 %v7464, %v7458
      %v7633 = vpack.c.b16 %v7465, %v7459
      %v7634 = vpack.c.b16 %v7466, %v7460
      %v7635 = vpack.c.b16 %v7467, %v7461
      %v7636 = vpack.c.b16 %v7474, %v7468
      %v7637 = vpack.c.b16 %v7475, %v7469
      %v7638 = vpack.c.b16 %v7476, %v7470
      %v7639 = vpack.c.b16 %v7477, %v7471
      %v7640 = vpack.c.b16 %v7478, %v7472
      %v7641 = vpack.c.b16 %v7479, %v7473
      %v7642 = vpack.c.b16 %v7486, %v7480
      %v7643 = vpack.c.b16 %v7487, %v7481
      %v7644 = vpack.c.b16 %v7488, %v7482
      %v7645 = vpack.c.b16 %v7489, %v7483
      %v7646 = vpack.c.b16 %v7490, %v7484
      %v7647 = vpack.c.b16 %v7491, %v7485
      %v7648 = vpack.c.b16 %v7498, %v7492
      %v7649 = vpack.c.b16 %v7499, %v7493
      %v7650 = vpack.c.b16 %v7500, %v7494
      %v7651 = vpack.c.b16 %v7501, %v7495
      %v7652 = vpack.c.b16 %v7502, %v7496
      %v7653 = vpack.c.b16 %v7503, %v7497
      %v7654 = vpack.c.b16 %v7510, %v7504
      %v7655 = vpack.c.b16 %v7511, %v7505
      %v7656 = vpack.c.b16 %v7512, %v7506
      %v7657 = vpack.c.b16 %v7513, %v7507
      %v7658 = vpack.c.b16 %v7514, %v7508
      %v7659 = vpack.c.b16 %v7515, %v7509
      %v7660 = vpack.c.b16 %v7522, %v7516
      %v7661 = vpack.c.b16 %v7523, %v7517
      %v7662 = vpack.c.b16 %v7524, %v7518
      %v7663 = vpack.c.b16 %v7525, %v7519
      %v7664 = vpack.c.b16 %v7526, %v7520
      %v7665 = vpack.c.b16 %v7527, %v7521
      %v7666 = vpack.c.b16 %v7534, %v7528
      %v7667 = vpack.c.b16 %v7535, %v7529
      %v7668 = vpack.c.b16 %v7536, %v7530
      %v7669 = vpack.c.b16 %v7537, %v7531
      %v7670 = vpack.c.b16 %v7538, %v7532
      %v7671 = vpack.c.b16 %v7539, %v7533
      %v7672 = vpack.c.b16 %v7546, %v7540
      %v7673 = vpack.c.b16 %v7547, %v7541
      %v7674 = vpack.c.b16 %v7548, %v7542
      %v7675 = vpack.c.b16 %v7549, %v7543
      %v7676 = vpack.c.b16 %v7550, %v7544
      %v7677 = vpack.c.b16 %v7551, %v7545
      %v7678 = vpack.c.b16 %v7558, %v7552
      %v7679 = vpack.c.b16 %v7559, %v7553
      %v7680 = vpack.c.b16 %v7560, %v7554
      %v7681 = vpack.c.b16 %v7561, %v7555
      %v7682 = vpack.c.b16 %v7562, %v7556
      %v7683 = vpack.c.b16 %v7563, %v7557
      %v7684 = vpack.c.b16 %v7570, %v7564
      %v7685 = vpack.c.b16 %v7571, %v7565
      %v7686 = vpack.c.b16 %v7572, %v7566
      %v7687 = vpack.c.b16 %v7573, %v7567
      %v7688 = vpack.c.b16 %v7574, %v7568
      %v7689 = vpack.c.b16 %v7575, %v7569
      %v7690 = vpack.c.b16 %v7582, %v7576
      %v7691 = vpack.c.b16 %v7583, %v7577
      %v7692 = vpack.c.b16 %v7584, %v7578
      %v7693 = vpack.c.b16 %v7585, %v7579
      %v7694 = vpack.c.b16 %v7586, %v7580
      %v7695 = vpack.c.b16 %v7587, %v7581
      %v7696 = vpack.c.b16 %v7594, %v7588
      %v7697 = vpack.c.b16 %v7595, %v7589
      %v7698 = vpack.c.b16 %v7596, %v7590
      %v7699 = vpack.c.b16 %v7597, %v7591
      %v7700 = vpack.c.b16 %v7598, %v7592
      %v7701 = vpack.c.b16 %v7599, %v7593
      %v7702 = vpack.c.b16 %v7606, %v7600
      %v7703 = vpack.c.b16 %v7607, %v7601
      %v7704 = vpack.c.b16 %v7608, %v7602
      %v7705 = vpack.c.b16 %v7609, %v7603
      %v7706 = vpack.c.b16 %v7610, %v7604
      %v7707 = vpack.c.b16 %v7611, %v7605
      %7804 = vmatprep.subr.bf16.mxu0 %v7613
      %7805 = vmatpush1.bf16.msra.mxu0 %v7612
      %7806 = vmatprep.subr.bf16.mxu0 %v7619
      %7807 = vmatpush1.bf16.msra.mxu0 %v7618
      %7808 = vmatprep.subr.bf16.mxu0 %v7625
      %7809 = vmatpush1.bf16.msra.mxu0 %v7624
      %7810 = vmatprep.subr.bf16.mxu0 %v7631
      %7811 = vmatpush1.bf16.msra.mxu0 %v7630
      %7812 = vmatprep.subr.bf16.mxu0 %v7637
      %7813 = vmatpush1.bf16.msra.mxu0 %v7636
      %7814 = vmatprep.subr.bf16.mxu0 %v7643
      %7815 = vmatpush1.bf16.msra.mxu0 %v7642
      %7816 = vmatprep.subr.bf16.mxu0 %v7649
      %7817 = vmatpush1.bf16.msra.mxu0 %v7648
      %7818 = vmatprep.subr.bf16.mxu0 %v7655
      %7819 = vmatpush1.bf16.msra.mxu0 %v7654
      %7820 = vmatprep.subr.bf16.mxu0 %v7661
      %7821 = vmatpush1.bf16.msra.mxu0 %v7660
      %7822 = vmatprep.subr.bf16.mxu0 %v7667
      %7823 = vmatpush1.bf16.msra.mxu0 %v7666
      %7824 = vmatprep.subr.bf16.mxu0 %v7673
      %7825 = vmatpush1.bf16.msra.mxu0 %v7672
      %7826 = vmatprep.subr.bf16.mxu0 %v7679
      %7827 = vmatpush1.bf16.msra.mxu0 %v7678
      %7828 = vmatprep.subr.bf16.mxu0 %v7685
      %7829 = vmatpush1.bf16.msra.mxu0 %v7684
      %7830 = vmatprep.subr.bf16.mxu0 %v7691
      %7831 = vmatpush1.bf16.msra.mxu0 %v7690
      %7832 = vmatprep.subr.bf16.mxu0 %v7697
      %7833 = vmatpush1.bf16.msra.mxu0 %v7696
      %7834 = vmatprep.subr.bf16.mxu0 %v7703
      %7835 = vmatpush1.bf16.msra.mxu0 %v7702
      %7836 = vmatprep.mubr.bf16.mxu0 %v7227
      %7837 = vmatmul.mubr.bf16.gmra.mrb[0].mxu0 %v7226
      %v7838 = vpop.f32.mrb[0].mxu0
      %v7839 = vadd.f32 0.0, %v7838
      %v7840 = vpop.f32.mrb[0].mxu0
      %v7841 = vadd.f32 0.0, %v7840
      %v7842 = vpop.f32.mrb[0].mxu0
      %v7843 = vpop.f32.mrb[0].mxu0
      %7844 = vdwg.mxu0
      %7845 = vmatprep.subr.bf16.mxu0 %v7615
      %7846 = vmatpush1.bf16.msra.mxu0 %v7614
      %7847 = vmatprep.subr.bf16.mxu0 %v7621
      %7848 = vmatpush1.bf16.msra.mxu0 %v7620
      %7849 = vmatprep.subr.bf16.mxu0 %v7627
      %7850 = vmatpush1.bf16.msra.mxu0 %v7626
      %7851 = vmatprep.subr.bf16.mxu0 %v7633
      %7852 = vmatpush1.bf16.msra.mxu0 %v7632
      %7853 = vmatprep.subr.bf16.mxu0 %v7639
      %7854 = vmatpush1.bf16.msra.mxu0 %v7638
      %7855 = vmatprep.subr.bf16.mxu0 %v7645
      %7856 = vmatpush1.bf16.msra.mxu0 %v7644
      %7857 = vmatprep.subr.bf16.mxu0 %v7651
      %7858 = vmatpush1.bf16.msra.mxu0 %v7650
      %7859 = vmatprep.subr.bf16.mxu0 %v7657
      %7860 = vmatpush1.bf16.msra.mxu0 %v7656
      %7861 = vmatprep.subr.bf16.mxu0 %v7663
      %7862 = vmatpush1.bf16.msra.mxu0 %v7662
      %7863 = vmatprep.subr.bf16.mxu0 %v7669
      %7864 = vmatpush1.bf16.msra.mxu0 %v7668
      %7865 = vmatprep.subr.bf16.mxu0 %v7675
      %7866 = vmatpush1.bf16.msra.mxu0 %v7674
      %7867 = vmatprep.subr.bf16.mxu0 %v7681
      %7868 = vmatpush1.bf16.msra.mxu0 %v7680
      %7869 = vmatprep.subr.bf16.mxu0 %v7687
      %7870 = vmatpush1.bf16.msra.mxu0 %v7686
      %7871 = vmatprep.subr.bf16.mxu0 %v7693
      %7872 = vmatpush1.bf16.msra.mxu0 %v7692
      %7873 = vmatprep.subr.bf16.mxu0 %v7699
      %7874 = vmatpush1.bf16.msra.mxu0 %v7698
      %7875 = vmatprep.subr.bf16.mxu0 %v7705
      %7876 = vmatpush1.bf16.msra.mxu0 %v7704
      %7877 = vmatprep.mubr.bf16.mxu0 %v7227
      %7878 = vmatmul.mubr.bf16.gmra.mrb[0].mxu0 %v7226
      %v7879 = vpop.f32.mrb[0].mxu0
      %v7880 = vadd.f32 0.0, %v7879
      %v7881 = vpop.f32.mrb[0].mxu0
      %v7882 = vadd.f32 0.0, %v7881
      %v7883 = vpop.f32.mrb[0].mxu0
      %v7884 = vpop.f32.mrb[0].mxu0
      %7885 = vdwg.mxu0
      %7886 = vmatprep.subr.bf16.mxu0 %v7617
      %7887 = vmatpush1.bf16.msra.mxu0 %v7616
      %7888 = vmatprep.subr.bf16.mxu0 %v7623
      %7889 = vmatpush1.bf16.msra.mxu0 %v7622
      %7890 = vmatprep.subr.bf16.mxu0 %v7629
      %7891 = vmatpush1.bf16.msra.mxu0 %v7628
      %7892 = vmatprep.subr.bf16.mxu0 %v7635
      %7893 = vmatpush1.bf16.msra.mxu0 %v7634
      %7894 = vmatprep.subr.bf16.mxu0 %v7641
      %7895 = vmatpush1.bf16.msra.mxu0 %v7640
      %7896 = vmatprep.subr.bf16.mxu0 %v7647
      %7897 = vmatpush1.bf16.msra.mxu0 %v7646
      %7898 = vmatprep.subr.bf16.mxu0 %v7653
      %7899 = vmatpush1.bf16.msra.mxu0 %v7652
      %7900 = vmatprep.subr.bf16.mxu0 %v7659
      %7901 = vmatpush1.bf16.msra.mxu0 %v7658
      %7902 = vmatprep.subr.bf16.mxu0 %v7665
      %7903 = vmatpush1.bf16.msra.mxu0 %v7664
      %7904 = vmatprep.subr.bf16.mxu0 %v7671
      %7905 = vmatpush1.bf16.msra.mxu0 %v7670
      %7906 = vmatprep.subr.bf16.mxu0 %v7677
      %7907 = vmatpush1.bf16.msra.mxu0 %v7676
      %7908 = vmatprep.subr.bf16.mxu0 %v7683
      %7909 = vmatpush1.bf16.msra.mxu0 %v7682
      %7910 = vmatprep.subr.bf16.mxu0 %v7689
      %7911 = vmatpush1.bf16.msra.mxu0 %v7688
      %7912 = vmatprep.subr.bf16.mxu0 %v7695
      %7913 = vmatpush1.bf16.msra.mxu0 %v7694
      %7914 = vmatprep.subr.bf16.mxu0 %v7701
      %7915 = vmatpush1.bf16.msra.mxu0 %v7700
      %7916 = vmatprep.subr.bf16.mxu0 %v7707
      %7917 = vmatpush1.bf16.msra.mxu0 %v7706
      %7918 = vmatprep.mubr.bf16.mxu0 %v7227
      %7919 = vmatmul.mubr.bf16.gmra.mrb[0].mxu0 %v7226
      %v7920 = vpop.f32.mrb[0].mxu0
      %v7921 = vadd.f32 0.0, %v7920
      %v7922 = vpop.f32.mrb[0].mxu0
      %v7923 = vadd.f32 0.0, %v7922
      %v7924 = vpop.f32.mrb[0].mxu0
      %v7925 = vpop.f32.mrb[0].mxu0
      %7926 = vdwg.mxu0
      %v7927 = vadd.f32 %v7220, %v7839
      %v7928 = vadd.f32 %v7221, %v7841
      %v7929 = vxor.u32 %v7927, 2147483648
      %v7930 = vxor.u32 %v7928, 2147483648
      %v7931 = vmul.f32 %v7929, 1.442695
      %v7932 = vpow.pop %v7931
      %v7933 = vmul.f32 %v7930, 1.442695
      %v7934 = vpow.pop %v7933
      %v7935 = vadd.f32 %v7932, 1.0
      %v7936 = vadd.f32 %v7934, 1.0
      %v7937 = vrcp.pop %v7935
      %v7938 = vmul.f32 1.0, %v7937
      %v7939 = vrcp.pop %v7936
      %v7940 = vmul.f32 1.0, %v7939
      %v7941 = vadd.f32 %v7222, %v7880
      %v7942 = vadd.f32 %v7223, %v7882
      %v7943 = vxor.u32 %v7941, 2147483648
      %v7944 = vxor.u32 %v7942, 2147483648
      %v7945 = vmul.f32 %v7943, 1.442695
      %v7946 = vpow.pop %v7945
      %v7947 = vmul.f32 %v7944, 1.442695
      %v7948 = vpow.pop %v7947
      %v7949 = vadd.f32 %v7946, 1.0
      %v7950 = vadd.f32 %v7948, 1.0
      %v7951 = vrcp.pop %v7949
      %v7952 = vmul.f32 1.0, %v7951
      %v7953 = vrcp.pop %v7950
      %v7954 = vmul.f32 1.0, %v7953
      %v7956 = vlaneseq
      %v7957 = vshrl.u32 %v7956, 7
      %v7958 = vsub.s32 0, %v7957
      %v7959 = vrot.slane %v3333, %v7958
      %v7960 = vlaneseq
      %v7961 = vshrl.u32 %v7960, 7
      %v7962 = vsub.s32 1, %v7961
      %v7963 = vrot.slane %v3333, %v7962
      %v7966 = vadd.f32 %v7921, %v7959
      %v7967 = vadd.f32 %v7923, %v7963
      %v7968 = vmul.f32 %v7938, %v7966
      %v7969 = vmul.f32 %v7940, %v7967
      %v7970 = vadd.f32 %v7224, %v7968
      %v7971 = vadd.f32 %v7225, %v7969
      %v7972 = vtanh.pop %v7970
      %v7973 = vtanh.pop %v7971
      %v7974 = vsub.f32 %v7218, %v7972
      %v7975 = vsub.f32 %v7219, %v7973
      %v7976 = vmul.f32 %v7952, %v7974
      %v7977 = vmul.f32 %v7954, %v7975
      %v7978 = vadd.f32 %v7972, %v7976
      %v7979 = vadd.f32 %v7973, %v7977
      %7980 = vst [vmem:[#allocation8] sm:$0xff] %v7978
      %7981 = vst [vmem:[#allocation8 + $0x8] sm:$0xff] %v7979
    $region239: #{network_forward.1} parent=1 // pred_fallthru
      _
    %p7982 = scmp.eq.s32.totalorder %s1530, 6
    // Predicated region
    $region240: #{network_forward.1} parent=1 // pred_check
      %p7983 = pneg %p7982
    $region241: #{network_forward.1} parent=1 // pred_check_branch
      %7985 = sbr.rel (%p7983) target = $region243
    $region242: #{network_forward.1} parent=1 // pred_region
      %v7986 = vld [vmem:[#allocation8] sm:$0xff]
      %v7987 = vld [vmem:[#allocation8 + $0x8] sm:$0xff]
      %7988 = vst [vmem:[#allocation9] sm:$0xff] %v7986
      %7989 = vst [vmem:[#allocation9 + $0x8] sm:$0xff] %v7987
    $region243: #{network_forward.1} parent=1 // pred_fallthru
      _
    %p7990 = scmp.gt.s32.totalorder %s1530, 6
    // Predicated region
    $region244: #{network_forward.1} parent=1 // pred_check
      %p7991 = pneg %p7990
    $region245: #{network_forward.1} parent=1 // pred_check_branch
      %7993 = sbr.rel (%p7991) target = $region247
    $region246: #{network_forward.1} parent=1 // pred_region
      %v7994 = vld [vmem:[#allocation8] sm:$0xff]
      %v7995 = vld [vmem:[#allocation8 + $0x8] sm:$0xff]
      %v7996 = vld [vmem:[#allocation7 + $0x120] sm:$0xff]
      %v7997 = vld [vmem:[#allocation7 + $0x128] sm:$0xff]
      %v7998 = vld [vmem:[#allocation7 + $0x130] sm:$0xff]
      %v7999 = vld [vmem:[#allocation7 + $0x138] sm:$0xff]
      %v8000 = vld [vmem:[#allocation7 + $0x140] sm:$0xff]
      %v8001 = vld [vmem:[#allocation7 + $0x148] sm:$0xff]
      %v8002 = vpack.c.bf16 %v7994, %v7994
      %v8003 = vpack.c.bf16 %v7995, %v7995
      %v8004 = vld [vmem:[%s12] sm:$0xff]
      %v8005 = vld [vmem:[%s12 + $0x8] sm:$0xff]
      %v8006 = vld [vmem:[%s12 + $0x10] sm:$0xff]
      %v8007 = vld [vmem:[%s12 + $0x18] sm:$0xff]
      %v8008 = vld [vmem:[%s12 + $0x20] sm:$0xff]
      %v8009 = vld [vmem:[%s12 + $0x28] sm:$0xff]
      %v8010 = vld [vmem:[%s12 + $0x30] sm:$0xff]
      %v8011 = vld [vmem:[%s12 + $0x38] sm:$0xff]
      %v8012 = vld [vmem:[%s12 + $0x40] sm:$0xff]
      %v8013 = vld [vmem:[%s12 + $0x48] sm:$0xff]
      %v8014 = vld [vmem:[%s12 + $0x50] sm:$0xff]
      %v8015 = vld [vmem:[%s12 + $0x58] sm:$0xff]
      %v8016 = vld [vmem:[%s12 + $0x60] sm:$0xff]
      %v8017 = vld [vmem:[%s12 + $0x68] sm:$0xff]
      %v8018 = vld [vmem:[%s12 + $0x70] sm:$0xff]
      %v8019 = vld [vmem:[%s12 + $0x78] sm:$0xff]
      %v8020 = vld [vmem:[%s12 + $0x80] sm:$0xff]
      %v8021 = vld [vmem:[%s12 + $0x88] sm:$0xff]
      %v8022 = vld [vmem:[%s12 + $0x90] sm:$0xff]
      %v8023 = vld [vmem:[%s12 + $0x98] sm:$0xff]
      %v8024 = vld [vmem:[%s12 + $0xa0] sm:$0xff]
      %v8025 = vld [vmem:[%s12 + $0xa8] sm:$0xff]
      %v8026 = vld [vmem:[%s12 + $0xb0] sm:$0xff]
      %v8027 = vld [vmem:[%s12 + $0xb8] sm:$0xff]
      %v8028 = vld [vmem:[%s12 + $0xc0] sm:$0xff]
      %v8029 = vld [vmem:[%s12 + $0xc8] sm:$0xff]
      %v8030 = vld [vmem:[%s12 + $0xd0] sm:$0xff]
      %v8031 = vld [vmem:[%s12 + $0xd8] sm:$0xff]
      %v8032 = vld [vmem:[%s12 + $0xe0] sm:$0xff]
      %v8033 = vld [vmem:[%s12 + $0xe8] sm:$0xff]
      %v8034 = vld [vmem:[%s12 + $0xf0] sm:$0xff]
      %v8035 = vld [vmem:[%s12 + $0xf8] sm:$0xff]
      %v8036 = vld [vmem:[%s12 + $0x100] sm:$0xff]
      %v8037 = vld [vmem:[%s12 + $0x108] sm:$0xff]
      %v8038 = vld [vmem:[%s12 + $0x110] sm:$0xff]
      %v8039 = vld [vmem:[%s12 + $0x118] sm:$0xff]
      %v8040 = vld [vmem:[%s12 + $0x120] sm:$0xff]
      %v8041 = vld [vmem:[%s12 + $0x128] sm:$0xff]
      %v8042 = vld [vmem:[%s12 + $0x130] sm:$0xff]
      %v8043 = vld [vmem:[%s12 + $0x138] sm:$0xff]
      %v8044 = vld [vmem:[%s12 + $0x140] sm:$0xff]
      %v8045 = vld [vmem:[%s12 + $0x148] sm:$0xff]
      %v8046 = vld [vmem:[%s12 + $0x150] sm:$0xff]
      %v8047 = vld [vmem:[%s12 + $0x158] sm:$0xff]
      %v8048 = vld [vmem:[%s12 + $0x160] sm:$0xff]
      %v8049 = vld [vmem:[%s12 + $0x168] sm:$0xff]
      %v8050 = vld [vmem:[%s12 + $0x170] sm:$0xff]
      %v8051 = vld [vmem:[%s12 + $0x178] sm:$0xff]
      %v8052 = vld [vmem:[%s12 + $0x180] sm:$0xff]
      %v8053 = vld [vmem:[%s12 + $0x188] sm:$0xff]
      %v8054 = vld [vmem:[%s12 + $0x190] sm:$0xff]
      %v8055 = vld [vmem:[%s12 + $0x198] sm:$0xff]
      %v8056 = vld [vmem:[%s12 + $0x1a0] sm:$0xff]
      %v8057 = vld [vmem:[%s12 + $0x1a8] sm:$0xff]
      %v8058 = vld [vmem:[%s12 + $0x1b0] sm:$0xff]
      %v8059 = vld [vmem:[%s12 + $0x1b8] sm:$0xff]
      %v8060 = vld [vmem:[%s12 + $0x1c0] sm:$0xff]
      %v8061 = vld [vmem:[%s12 + $0x1c8] sm:$0xff]
      %v8062 = vld [vmem:[%s12 + $0x1d0] sm:$0xff]
      %v8063 = vld [vmem:[%s12 + $0x1d8] sm:$0xff]
      %v8064 = vld [vmem:[%s12 + $0x1e0] sm:$0xff]
      %v8065 = vld [vmem:[%s12 + $0x1e8] sm:$0xff]
      %v8066 = vld [vmem:[%s12 + $0x1f0] sm:$0xff]
      %v8067 = vld [vmem:[%s12 + $0x1f8] sm:$0xff]
      %v8068 = vld [vmem:[%s12 + $0x200] sm:$0xff]
      %v8069 = vld [vmem:[%s12 + $0x208] sm:$0xff]
      %v8070 = vld [vmem:[%s12 + $0x210] sm:$0xff]
      %v8071 = vld [vmem:[%s12 + $0x218] sm:$0xff]
      %v8072 = vld [vmem:[%s12 + $0x220] sm:$0xff]
      %v8073 = vld [vmem:[%s12 + $0x228] sm:$0xff]
      %v8074 = vld [vmem:[%s12 + $0x230] sm:$0xff]
      %v8075 = vld [vmem:[%s12 + $0x238] sm:$0xff]
      %v8076 = vld [vmem:[%s12 + $0x240] sm:$0xff]
      %v8077 = vld [vmem:[%s12 + $0x248] sm:$0xff]
      %v8078 = vld [vmem:[%s12 + $0x250] sm:$0xff]
      %v8079 = vld [vmem:[%s12 + $0x258] sm:$0xff]
      %v8080 = vld [vmem:[%s12 + $0x260] sm:$0xff]
      %v8081 = vld [vmem:[%s12 + $0x268] sm:$0xff]
      %v8082 = vld [vmem:[%s12 + $0x270] sm:$0xff]
      %v8083 = vld [vmem:[%s12 + $0x278] sm:$0xff]
      %v8084 = vld [vmem:[%s12 + $0x280] sm:$0xff]
      %v8085 = vld [vmem:[%s12 + $0x288] sm:$0xff]
      %v8086 = vld [vmem:[%s12 + $0x290] sm:$0xff]
      %v8087 = vld [vmem:[%s12 + $0x298] sm:$0xff]
      %v8088 = vld [vmem:[%s12 + $0x2a0] sm:$0xff]
      %v8089 = vld [vmem:[%s12 + $0x2a8] sm:$0xff]
      %v8090 = vld [vmem:[%s12 + $0x2b0] sm:$0xff]
      %v8091 = vld [vmem:[%s12 + $0x2b8] sm:$0xff]
      %v8092 = vld [vmem:[%s12 + $0x2c0] sm:$0xff]
      %v8093 = vld [vmem:[%s12 + $0x2c8] sm:$0xff]
      %v8094 = vld [vmem:[%s12 + $0x2d0] sm:$0xff]
      %v8095 = vld [vmem:[%s12 + $0x2d8] sm:$0xff]
      %v8096 = vld [vmem:[%s12 + $0x2e0] sm:$0xff]
      %v8097 = vld [vmem:[%s12 + $0x2e8] sm:$0xff]
      %v8098 = vld [vmem:[%s12 + $0x2f0] sm:$0xff]
      %v8099 = vld [vmem:[%s12 + $0x2f8] sm:$0xff]
      %v8196 = vunpack.c.l.b16 %v8004
      %v8197 = vunpack.c.h.b16 %v8004
      %v8198 = vunpack.c.l.b16 %v8005
      %v8199 = vunpack.c.h.b16 %v8005
      %v8200 = vunpack.c.l.b16 %v8006
      %v8201 = vunpack.c.h.b16 %v8006
      %v8202 = vunpack.c.l.b16 %v8007
      %v8203 = vunpack.c.h.b16 %v8007
      %v8204 = vunpack.c.l.b16 %v8008
      %v8205 = vunpack.c.h.b16 %v8008
      %v8206 = vunpack.c.l.b16 %v8009
      %v8207 = vunpack.c.h.b16 %v8009
      %v8208 = vunpack.c.l.b16 %v8010
      %v8209 = vunpack.c.h.b16 %v8010
      %v8210 = vunpack.c.l.b16 %v8011
      %v8211 = vunpack.c.h.b16 %v8011
      %v8212 = vunpack.c.l.b16 %v8012
      %v8213 = vunpack.c.h.b16 %v8012
      %v8214 = vunpack.c.l.b16 %v8013
      %v8215 = vunpack.c.h.b16 %v8013
      %v8216 = vunpack.c.l.b16 %v8014
      %v8217 = vunpack.c.h.b16 %v8014
      %v8218 = vunpack.c.l.b16 %v8015
      %v8219 = vunpack.c.h.b16 %v8015
      %v8220 = vunpack.c.l.b16 %v8016
      %v8221 = vunpack.c.h.b16 %v8016
      %v8222 = vunpack.c.l.b16 %v8017
      %v8223 = vunpack.c.h.b16 %v8017
      %v8224 = vunpack.c.l.b16 %v8018
      %v8225 = vunpack.c.h.b16 %v8018
      %v8226 = vunpack.c.l.b16 %v8019
      %v8227 = vunpack.c.h.b16 %v8019
      %v8228 = vunpack.c.l.b16 %v8020
      %v8229 = vunpack.c.h.b16 %v8020
      %v8230 = vunpack.c.l.b16 %v8021
      %v8231 = vunpack.c.h.b16 %v8021
      %v8232 = vunpack.c.l.b16 %v8022
      %v8233 = vunpack.c.h.b16 %v8022
      %v8234 = vunpack.c.l.b16 %v8023
      %v8235 = vunpack.c.h.b16 %v8023
      %v8236 = vunpack.c.l.b16 %v8024
      %v8237 = vunpack.c.h.b16 %v8024
      %v8238 = vunpack.c.l.b16 %v8025
      %v8239 = vunpack.c.h.b16 %v8025
      %v8240 = vunpack.c.l.b16 %v8026
      %v8241 = vunpack.c.h.b16 %v8026
      %v8242 = vunpack.c.l.b16 %v8027
      %v8243 = vunpack.c.h.b16 %v8027
      %v8244 = vunpack.c.l.b16 %v8028
      %v8245 = vunpack.c.h.b16 %v8028
      %v8246 = vunpack.c.l.b16 %v8029
      %v8247 = vunpack.c.h.b16 %v8029
      %v8248 = vunpack.c.l.b16 %v8030
      %v8249 = vunpack.c.h.b16 %v8030
      %v8250 = vunpack.c.l.b16 %v8031
      %v8251 = vunpack.c.h.b16 %v8031
      %v8252 = vunpack.c.l.b16 %v8032
      %v8253 = vunpack.c.h.b16 %v8032
      %v8254 = vunpack.c.l.b16 %v8033
      %v8255 = vunpack.c.h.b16 %v8033
      %v8256 = vunpack.c.l.b16 %v8034
      %v8257 = vunpack.c.h.b16 %v8034
      %v8258 = vunpack.c.l.b16 %v8035
      %v8259 = vunpack.c.h.b16 %v8035
      %v8260 = vunpack.c.l.b16 %v8036
      %v8261 = vunpack.c.h.b16 %v8036
      %v8262 = vunpack.c.l.b16 %v8037
      %v8263 = vunpack.c.h.b16 %v8037
      %v8264 = vunpack.c.l.b16 %v8038
      %v8265 = vunpack.c.h.b16 %v8038
      %v8266 = vunpack.c.l.b16 %v8039
      %v8267 = vunpack.c.h.b16 %v8039
      %v8268 = vunpack.c.l.b16 %v8040
      %v8269 = vunpack.c.h.b16 %v8040
      %v8270 = vunpack.c.l.b16 %v8041
      %v8271 = vunpack.c.h.b16 %v8041
      %v8272 = vunpack.c.l.b16 %v8042
      %v8273 = vunpack.c.h.b16 %v8042
      %v8274 = vunpack.c.l.b16 %v8043
      %v8275 = vunpack.c.h.b16 %v8043
      %v8276 = vunpack.c.l.b16 %v8044
      %v8277 = vunpack.c.h.b16 %v8044
      %v8278 = vunpack.c.l.b16 %v8045
      %v8279 = vunpack.c.h.b16 %v8045
      %v8280 = vunpack.c.l.b16 %v8046
      %v8281 = vunpack.c.h.b16 %v8046
      %v8282 = vunpack.c.l.b16 %v8047
      %v8283 = vunpack.c.h.b16 %v8047
      %v8284 = vunpack.c.l.b16 %v8048
      %v8285 = vunpack.c.h.b16 %v8048
      %v8286 = vunpack.c.l.b16 %v8049
      %v8287 = vunpack.c.h.b16 %v8049
      %v8288 = vunpack.c.l.b16 %v8050
      %v8289 = vunpack.c.h.b16 %v8050
      %v8290 = vunpack.c.l.b16 %v8051
      %v8291 = vunpack.c.h.b16 %v8051
      %v8292 = vunpack.c.l.b16 %v8052
      %v8293 = vunpack.c.h.b16 %v8052
      %v8294 = vunpack.c.l.b16 %v8053
      %v8295 = vunpack.c.h.b16 %v8053
      %v8296 = vunpack.c.l.b16 %v8054
      %v8297 = vunpack.c.h.b16 %v8054
      %v8298 = vunpack.c.l.b16 %v8055
      %v8299 = vunpack.c.h.b16 %v8055
      %v8300 = vunpack.c.l.b16 %v8056
      %v8301 = vunpack.c.h.b16 %v8056
      %v8302 = vunpack.c.l.b16 %v8057
      %v8303 = vunpack.c.h.b16 %v8057
      %v8304 = vunpack.c.l.b16 %v8058
      %v8305 = vunpack.c.h.b16 %v8058
      %v8306 = vunpack.c.l.b16 %v8059
      %v8307 = vunpack.c.h.b16 %v8059
      %v8308 = vunpack.c.l.b16 %v8060
      %v8309 = vunpack.c.h.b16 %v8060
      %v8310 = vunpack.c.l.b16 %v8061
      %v8311 = vunpack.c.h.b16 %v8061
      %v8312 = vunpack.c.l.b16 %v8062
      %v8313 = vunpack.c.h.b16 %v8062
      %v8314 = vunpack.c.l.b16 %v8063
      %v8315 = vunpack.c.h.b16 %v8063
      %v8316 = vunpack.c.l.b16 %v8064
      %v8317 = vunpack.c.h.b16 %v8064
      %v8318 = vunpack.c.l.b16 %v8065
      %v8319 = vunpack.c.h.b16 %v8065
      %v8320 = vunpack.c.l.b16 %v8066
      %v8321 = vunpack.c.h.b16 %v8066
      %v8322 = vunpack.c.l.b16 %v8067
      %v8323 = vunpack.c.h.b16 %v8067
      %v8324 = vunpack.c.l.b16 %v8068
      %v8325 = vunpack.c.h.b16 %v8068
      %v8326 = vunpack.c.l.b16 %v8069
      %v8327 = vunpack.c.h.b16 %v8069
      %v8328 = vunpack.c.l.b16 %v8070
      %v8329 = vunpack.c.h.b16 %v8070
      %v8330 = vunpack.c.l.b16 %v8071
      %v8331 = vunpack.c.h.b16 %v8071
      %v8332 = vunpack.c.l.b16 %v8072
      %v8333 = vunpack.c.h.b16 %v8072
      %v8334 = vunpack.c.l.b16 %v8073
      %v8335 = vunpack.c.h.b16 %v8073
      %v8336 = vunpack.c.l.b16 %v8074
      %v8337 = vunpack.c.h.b16 %v8074
      %v8338 = vunpack.c.l.b16 %v8075
      %v8339 = vunpack.c.h.b16 %v8075
      %v8340 = vunpack.c.l.b16 %v8076
      %v8341 = vunpack.c.h.b16 %v8076
      %v8342 = vunpack.c.l.b16 %v8077
      %v8343 = vunpack.c.h.b16 %v8077
      %v8344 = vunpack.c.l.b16 %v8078
      %v8345 = vunpack.c.h.b16 %v8078
      %v8346 = vunpack.c.l.b16 %v8079
      %v8347 = vunpack.c.h.b16 %v8079
      %v8348 = vunpack.c.l.b16 %v8080
      %v8349 = vunpack.c.h.b16 %v8080
      %v8350 = vunpack.c.l.b16 %v8081
      %v8351 = vunpack.c.h.b16 %v8081
      %v8352 = vunpack.c.l.b16 %v8082
      %v8353 = vunpack.c.h.b16 %v8082
      %v8354 = vunpack.c.l.b16 %v8083
      %v8355 = vunpack.c.h.b16 %v8083
      %v8356 = vunpack.c.l.b16 %v8084
      %v8357 = vunpack.c.h.b16 %v8084
      %v8358 = vunpack.c.l.b16 %v8085
      %v8359 = vunpack.c.h.b16 %v8085
      %v8360 = vunpack.c.l.b16 %v8086
      %v8361 = vunpack.c.h.b16 %v8086
      %v8362 = vunpack.c.l.b16 %v8087
      %v8363 = vunpack.c.h.b16 %v8087
      %v8364 = vunpack.c.l.b16 %v8088
      %v8365 = vunpack.c.h.b16 %v8088
      %v8366 = vunpack.c.l.b16 %v8089
      %v8367 = vunpack.c.h.b16 %v8089
      %v8368 = vunpack.c.l.b16 %v8090
      %v8369 = vunpack.c.h.b16 %v8090
      %v8370 = vunpack.c.l.b16 %v8091
      %v8371 = vunpack.c.h.b16 %v8091
      %v8372 = vunpack.c.l.b16 %v8092
      %v8373 = vunpack.c.h.b16 %v8092
      %v8374 = vunpack.c.l.b16 %v8093
      %v8375 = vunpack.c.h.b16 %v8093
      %v8376 = vunpack.c.l.b16 %v8094
      %v8377 = vunpack.c.h.b16 %v8094
      %v8378 = vunpack.c.l.b16 %v8095
      %v8379 = vunpack.c.h.b16 %v8095
      %v8380 = vunpack.c.l.b16 %v8096
      %v8381 = vunpack.c.h.b16 %v8096
      %v8382 = vunpack.c.l.b16 %v8097
      %v8383 = vunpack.c.h.b16 %v8097
      %v8384 = vunpack.c.l.b16 %v8098
      %v8385 = vunpack.c.h.b16 %v8098
      %v8386 = vunpack.c.l.b16 %v8099
      %v8387 = vunpack.c.h.b16 %v8099
      %v8388 = vpack.c.b16 %v8202, %v8196
      %v8389 = vpack.c.b16 %v8203, %v8197
      %v8390 = vpack.c.b16 %v8204, %v8198
      %v8391 = vpack.c.b16 %v8205, %v8199
      %v8392 = vpack.c.b16 %v8206, %v8200
      %v8393 = vpack.c.b16 %v8207, %v8201
      %v8394 = vpack.c.b16 %v8214, %v8208
      %v8395 = vpack.c.b16 %v8215, %v8209
      %v8396 = vpack.c.b16 %v8216, %v8210
      %v8397 = vpack.c.b16 %v8217, %v8211
      %v8398 = vpack.c.b16 %v8218, %v8212
      %v8399 = vpack.c.b16 %v8219, %v8213
      %v8400 = vpack.c.b16 %v8226, %v8220
      %v8401 = vpack.c.b16 %v8227, %v8221
      %v8402 = vpack.c.b16 %v8228, %v8222
      %v8403 = vpack.c.b16 %v8229, %v8223
      %v8404 = vpack.c.b16 %v8230, %v8224
      %v8405 = vpack.c.b16 %v8231, %v8225
      %v8406 = vpack.c.b16 %v8238, %v8232
      %v8407 = vpack.c.b16 %v8239, %v8233
      %v8408 = vpack.c.b16 %v8240, %v8234
      %v8409 = vpack.c.b16 %v8241, %v8235
      %v8410 = vpack.c.b16 %v8242, %v8236
      %v8411 = vpack.c.b16 %v8243, %v8237
      %v8412 = vpack.c.b16 %v8250, %v8244
      %v8413 = vpack.c.b16 %v8251, %v8245
      %v8414 = vpack.c.b16 %v8252, %v8246
      %v8415 = vpack.c.b16 %v8253, %v8247
      %v8416 = vpack.c.b16 %v8254, %v8248
      %v8417 = vpack.c.b16 %v8255, %v8249
      %v8418 = vpack.c.b16 %v8262, %v8256
      %v8419 = vpack.c.b16 %v8263, %v8257
      %v8420 = vpack.c.b16 %v8264, %v8258
      %v8421 = vpack.c.b16 %v8265, %v8259
      %v8422 = vpack.c.b16 %v8266, %v8260
      %v8423 = vpack.c.b16 %v8267, %v8261
      %v8424 = vpack.c.b16 %v8274, %v8268
      %v8425 = vpack.c.b16 %v8275, %v8269
      %v8426 = vpack.c.b16 %v8276, %v8270
      %v8427 = vpack.c.b16 %v8277, %v8271
      %v8428 = vpack.c.b16 %v8278, %v8272
      %v8429 = vpack.c.b16 %v8279, %v8273
      %v8430 = vpack.c.b16 %v8286, %v8280
      %v8431 = vpack.c.b16 %v8287, %v8281
      %v8432 = vpack.c.b16 %v8288, %v8282
      %v8433 = vpack.c.b16 %v8289, %v8283
      %v8434 = vpack.c.b16 %v8290, %v8284
      %v8435 = vpack.c.b16 %v8291, %v8285
      %v8436 = vpack.c.b16 %v8298, %v8292
      %v8437 = vpack.c.b16 %v8299, %v8293
      %v8438 = vpack.c.b16 %v8300, %v8294
      %v8439 = vpack.c.b16 %v8301, %v8295
      %v8440 = vpack.c.b16 %v8302, %v8296
      %v8441 = vpack.c.b16 %v8303, %v8297
      %v8442 = vpack.c.b16 %v8310, %v8304
      %v8443 = vpack.c.b16 %v8311, %v8305
      %v8444 = vpack.c.b16 %v8312, %v8306
      %v8445 = vpack.c.b16 %v8313, %v8307
      %v8446 = vpack.c.b16 %v8314, %v8308
      %v8447 = vpack.c.b16 %v8315, %v8309
      %v8448 = vpack.c.b16 %v8322, %v8316
      %v8449 = vpack.c.b16 %v8323, %v8317
      %v8450 = vpack.c.b16 %v8324, %v8318
      %v8451 = vpack.c.b16 %v8325, %v8319
      %v8452 = vpack.c.b16 %v8326, %v8320
      %v8453 = vpack.c.b16 %v8327, %v8321
      %v8454 = vpack.c.b16 %v8334, %v8328
      %v8455 = vpack.c.b16 %v8335, %v8329
      %v8456 = vpack.c.b16 %v8336, %v8330
      %v8457 = vpack.c.b16 %v8337, %v8331
      %v8458 = vpack.c.b16 %v8338, %v8332
      %v8459 = vpack.c.b16 %v8339, %v8333
      %v8460 = vpack.c.b16 %v8346, %v8340
      %v8461 = vpack.c.b16 %v8347, %v8341
      %v8462 = vpack.c.b16 %v8348, %v8342
      %v8463 = vpack.c.b16 %v8349, %v8343
      %v8464 = vpack.c.b16 %v8350, %v8344
      %v8465 = vpack.c.b16 %v8351, %v8345
      %v8466 = vpack.c.b16 %v8358, %v8352
      %v8467 = vpack.c.b16 %v8359, %v8353
      %v8468 = vpack.c.b16 %v8360, %v8354
      %v8469 = vpack.c.b16 %v8361, %v8355
      %v8470 = vpack.c.b16 %v8362, %v8356
      %v8471 = vpack.c.b16 %v8363, %v8357
      %v8472 = vpack.c.b16 %v8370, %v8364
      %v8473 = vpack.c.b16 %v8371, %v8365
      %v8474 = vpack.c.b16 %v8372, %v8366
      %v8475 = vpack.c.b16 %v8373, %v8367
      %v8476 = vpack.c.b16 %v8374, %v8368
      %v8477 = vpack.c.b16 %v8375, %v8369
      %v8478 = vpack.c.b16 %v8382, %v8376
      %v8479 = vpack.c.b16 %v8383, %v8377
      %v8480 = vpack.c.b16 %v8384, %v8378
      %v8481 = vpack.c.b16 %v8385, %v8379
      %v8482 = vpack.c.b16 %v8386, %v8380
      %v8483 = vpack.c.b16 %v8387, %v8381
      %8580 = vmatprep.subr.bf16.mxu0 %v8389
      %8581 = vmatpush1.bf16.msra.mxu0 %v8388
      %8582 = vmatprep.subr.bf16.mxu0 %v8395
      %8583 = vmatpush1.bf16.msra.mxu0 %v8394
      %8584 = vmatprep.subr.bf16.mxu0 %v8401
      %8585 = vmatpush1.bf16.msra.mxu0 %v8400
      %8586 = vmatprep.subr.bf16.mxu0 %v8407
      %8587 = vmatpush1.bf16.msra.mxu0 %v8406
      %8588 = vmatprep.subr.bf16.mxu0 %v8413
      %8589 = vmatpush1.bf16.msra.mxu0 %v8412
      %8590 = vmatprep.subr.bf16.mxu0 %v8419
      %8591 = vmatpush1.bf16.msra.mxu0 %v8418
      %8592 = vmatprep.subr.bf16.mxu0 %v8425
      %8593 = vmatpush1.bf16.msra.mxu0 %v8424
      %8594 = vmatprep.subr.bf16.mxu0 %v8431
      %8595 = vmatpush1.bf16.msra.mxu0 %v8430
      %8596 = vmatprep.subr.bf16.mxu0 %v8437
      %8597 = vmatpush1.bf16.msra.mxu0 %v8436
      %8598 = vmatprep.subr.bf16.mxu0 %v8443
      %8599 = vmatpush1.bf16.msra.mxu0 %v8442
      %8600 = vmatprep.subr.bf16.mxu0 %v8449
      %8601 = vmatpush1.bf16.msra.mxu0 %v8448
      %8602 = vmatprep.subr.bf16.mxu0 %v8455
      %8603 = vmatpush1.bf16.msra.mxu0 %v8454
      %8604 = vmatprep.subr.bf16.mxu0 %v8461
      %8605 = vmatpush1.bf16.msra.mxu0 %v8460
      %8606 = vmatprep.subr.bf16.mxu0 %v8467
      %8607 = vmatpush1.bf16.msra.mxu0 %v8466
      %8608 = vmatprep.subr.bf16.mxu0 %v8473
      %8609 = vmatpush1.bf16.msra.mxu0 %v8472
      %8610 = vmatprep.subr.bf16.mxu0 %v8479
      %8611 = vmatpush1.bf16.msra.mxu0 %v8478
      %8612 = vmatprep.mubr.bf16.mxu0 %v8003
      %8613 = vmatmul.mubr.bf16.gmra.mrb[0].mxu0 %v8002
      %v8614 = vpop.f32.mrb[0].mxu0
      %v8615 = vadd.f32 0.0, %v8614
      %v8616 = vpop.f32.mrb[0].mxu0
      %v8617 = vadd.f32 0.0, %v8616
      %v8618 = vpop.f32.mrb[0].mxu0
      %v8619 = vpop.f32.mrb[0].mxu0
      %8620 = vdwg.mxu0
      %8621 = vmatprep.subr.bf16.mxu0 %v8391
      %8622 = vmatpush1.bf16.msra.mxu0 %v8390
      %8623 = vmatprep.subr.bf16.mxu0 %v8397
      %8624 = vmatpush1.bf16.msra.mxu0 %v8396
      %8625 = vmatprep.subr.bf16.mxu0 %v8403
      %8626 = vmatpush1.bf16.msra.mxu0 %v8402
      %8627 = vmatprep.subr.bf16.mxu0 %v8409
      %8628 = vmatpush1.bf16.msra.mxu0 %v8408
      %8629 = vmatprep.subr.bf16.mxu0 %v8415
      %8630 = vmatpush1.bf16.msra.mxu0 %v8414
      %8631 = vmatprep.subr.bf16.mxu0 %v8421
      %8632 = vmatpush1.bf16.msra.mxu0 %v8420
      %8633 = vmatprep.subr.bf16.mxu0 %v8427
      %8634 = vmatpush1.bf16.msra.mxu0 %v8426
      %8635 = vmatprep.subr.bf16.mxu0 %v8433
      %8636 = vmatpush1.bf16.msra.mxu0 %v8432
      %8637 = vmatprep.subr.bf16.mxu0 %v8439
      %8638 = vmatpush1.bf16.msra.mxu0 %v8438
      %8639 = vmatprep.subr.bf16.mxu0 %v8445
      %8640 = vmatpush1.bf16.msra.mxu0 %v8444
      %8641 = vmatprep.subr.bf16.mxu0 %v8451
      %8642 = vmatpush1.bf16.msra.mxu0 %v8450
      %8643 = vmatprep.subr.bf16.mxu0 %v8457
      %8644 = vmatpush1.bf16.msra.mxu0 %v8456
      %8645 = vmatprep.subr.bf16.mxu0 %v8463
      %8646 = vmatpush1.bf16.msra.mxu0 %v8462
      %8647 = vmatprep.subr.bf16.mxu0 %v8469
      %8648 = vmatpush1.bf16.msra.mxu0 %v8468
      %8649 = vmatprep.subr.bf16.mxu0 %v8475
      %8650 = vmatpush1.bf16.msra.mxu0 %v8474
      %8651 = vmatprep.subr.bf16.mxu0 %v8481
      %8652 = vmatpush1.bf16.msra.mxu0 %v8480
      %8653 = vmatprep.mubr.bf16.mxu0 %v8003
      %8654 = vmatmul.mubr.bf16.gmra.mrb[0].mxu0 %v8002
      %v8655 = vpop.f32.mrb[0].mxu0
      %v8656 = vadd.f32 0.0, %v8655
      %v8657 = vpop.f32.mrb[0].mxu0
      %v8658 = vadd.f32 0.0, %v8657
      %v8659 = vpop.f32.mrb[0].mxu0
      %v8660 = vpop.f32.mrb[0].mxu0
      %8661 = vdwg.mxu0
      %8662 = vmatprep.subr.bf16.mxu0 %v8393
      %8663 = vmatpush1.bf16.msra.mxu0 %v8392
      %8664 = vmatprep.subr.bf16.mxu0 %v8399
      %8665 = vmatpush1.bf16.msra.mxu0 %v8398
      %8666 = vmatprep.subr.bf16.mxu0 %v8405
      %8667 = vmatpush1.bf16.msra.mxu0 %v8404
      %8668 = vmatprep.subr.bf16.mxu0 %v8411
      %8669 = vmatpush1.bf16.msra.mxu0 %v8410
      %8670 = vmatprep.subr.bf16.mxu0 %v8417
      %8671 = vmatpush1.bf16.msra.mxu0 %v8416
      %8672 = vmatprep.subr.bf16.mxu0 %v8423
      %8673 = vmatpush1.bf16.msra.mxu0 %v8422
      %8674 = vmatprep.subr.bf16.mxu0 %v8429
      %8675 = vmatpush1.bf16.msra.mxu0 %v8428
      %8676 = vmatprep.subr.bf16.mxu0 %v8435
      %8677 = vmatpush1.bf16.msra.mxu0 %v8434
      %8678 = vmatprep.subr.bf16.mxu0 %v8441
      %8679 = vmatpush1.bf16.msra.mxu0 %v8440
      %8680 = vmatprep.subr.bf16.mxu0 %v8447
      %8681 = vmatpush1.bf16.msra.mxu0 %v8446
      %8682 = vmatprep.subr.bf16.mxu0 %v8453
      %8683 = vmatpush1.bf16.msra.mxu0 %v8452
      %8684 = vmatprep.subr.bf16.mxu0 %v8459
      %8685 = vmatpush1.bf16.msra.mxu0 %v8458
      %8686 = vmatprep.subr.bf16.mxu0 %v8465
      %8687 = vmatpush1.bf16.msra.mxu0 %v8464
      %8688 = vmatprep.subr.bf16.mxu0 %v8471
      %8689 = vmatpush1.bf16.msra.mxu0 %v8470
      %8690 = vmatprep.subr.bf16.mxu0 %v8477
      %8691 = vmatpush1.bf16.msra.mxu0 %v8476
      %8692 = vmatprep.subr.bf16.mxu0 %v8483
      %8693 = vmatpush1.bf16.msra.mxu0 %v8482
      %8694 = vmatprep.mubr.bf16.mxu0 %v8003
      %8695 = vmatmul.mubr.bf16.gmra.mrb[0].mxu0 %v8002
      %v8696 = vpop.f32.mrb[0].mxu0
      %v8697 = vadd.f32 0.0, %v8696
      %v8698 = vpop.f32.mrb[0].mxu0
      %v8699 = vadd.f32 0.0, %v8698
      %v8700 = vpop.f32.mrb[0].mxu0
      %v8701 = vpop.f32.mrb[0].mxu0
      %8702 = vdwg.mxu0
      %v8703 = vadd.f32 %v7996, %v8615
      %v8704 = vadd.f32 %v7997, %v8617
      %v8705 = vxor.u32 %v8703, 2147483648
      %v8706 = vxor.u32 %v8704, 2147483648
      %v8707 = vmul.f32 %v8705, 1.442695
      %v8708 = vpow.pop %v8707
      %v8709 = vmul.f32 %v8706, 1.442695
      %v8710 = vpow.pop %v8709
      %v8711 = vadd.f32 %v8708, 1.0
      %v8712 = vadd.f32 %v8710, 1.0
      %v8713 = vrcp.pop %v8711
      %v8714 = vmul.f32 1.0, %v8713
      %v8715 = vrcp.pop %v8712
      %v8716 = vmul.f32 1.0, %v8715
      %v8717 = vadd.f32 %v7998, %v8656
      %v8718 = vadd.f32 %v7999, %v8658
      %v8719 = vxor.u32 %v8717, 2147483648
      %v8720 = vxor.u32 %v8718, 2147483648
      %v8721 = vmul.f32 %v8719, 1.442695
      %v8722 = vpow.pop %v8721
      %v8723 = vmul.f32 %v8720, 1.442695
      %v8724 = vpow.pop %v8723
      %v8725 = vadd.f32 %v8722, 1.0
      %v8726 = vadd.f32 %v8724, 1.0
      %v8727 = vrcp.pop %v8725
      %v8728 = vmul.f32 1.0, %v8727
      %v8729 = vrcp.pop %v8726
      %v8730 = vmul.f32 1.0, %v8729
      %v8732 = vlaneseq
      %v8733 = vshrl.u32 %v8732, 7
      %v8734 = vsub.s32 0, %v8733
      %v8735 = vrot.slane %v3333, %v8734
      %v8736 = vlaneseq
      %v8737 = vshrl.u32 %v8736, 7
      %v8738 = vsub.s32 1, %v8737
      %v8739 = vrot.slane %v3333, %v8738
      %v8742 = vadd.f32 %v8697, %v8735
      %v8743 = vadd.f32 %v8699, %v8739
      %v8744 = vmul.f32 %v8714, %v8742
      %v8745 = vmul.f32 %v8716, %v8743
      %v8746 = vadd.f32 %v8000, %v8744
      %v8747 = vadd.f32 %v8001, %v8745
      %v8748 = vtanh.pop %v8746
      %v8749 = vtanh.pop %v8747
      %v8750 = vsub.f32 %v7994, %v8748
      %v8751 = vsub.f32 %v7995, %v8749
      %v8752 = vmul.f32 %v8728, %v8750
      %v8753 = vmul.f32 %v8730, %v8751
      %v8754 = vadd.f32 %v8748, %v8752
      %v8755 = vadd.f32 %v8749, %v8753
      %8756 = vst [vmem:[#allocation8] sm:$0xff] %v8754
      %8757 = vst [vmem:[#allocation8 + $0x8] sm:$0xff] %v8755
    $region247: #{network_forward.1} parent=1 // pred_fallthru
      _
    %p8758 = scmp.eq.s32.totalorder %s1530, 7
    // Predicated region
    $region248: #{network_forward.1} parent=1 // pred_check
      %p8759 = pneg %p8758
    $region249: #{network_forward.1} parent=1 // pred_check_branch
      %8761 = sbr.rel (%p8759) target = $region251
    $region250: #{network_forward.1} parent=1 // pred_region
      %v8762 = vld [vmem:[#allocation8] sm:$0xff]
      %v8763 = vld [vmem:[#allocation8 + $0x8] sm:$0xff]
      %8764 = vst [vmem:[#allocation9] sm:$0xff] %v8762
      %8765 = vst [vmem:[#allocation9 + $0x8] sm:$0xff] %v8763
    $region251: #{network_forward.1} parent=1 // pred_fallthru
      _
    %p8766 = scmp.gt.s32.totalorder %s1530, 7
    // Predicated region
    $region252: #{network_forward.1} parent=1 // pred_check
      %p8767 = pneg %p8766
    $region253: #{network_forward.1} parent=1 // pred_check_branch
      %8769 = sbr.rel (%p8767) target = $region255
    $region254: #{network_forward.1} parent=1 // pred_region
      %v8770 = vld [vmem:[#allocation8] sm:$0xff]
      %v8771 = vld [vmem:[#allocation8 + $0x8] sm:$0xff]
      %v8772 = vld [vmem:[#allocation7 + $0x150] sm:$0xff]
      %v8773 = vld [vmem:[#allocation7 + $0x158] sm:$0xff]
      %v8774 = vld [vmem:[#allocation7 + $0x160] sm:$0xff]
      %v8775 = vld [vmem:[#allocation7 + $0x168] sm:$0xff]
      %v8776 = vld [vmem:[#allocation7 + $0x170] sm:$0xff]
      %v8777 = vld [vmem:[#allocation7 + $0x178] sm:$0xff]
      %v8778 = vpack.c.bf16 %v8770, %v8770
      %v8779 = vpack.c.bf16 %v8771, %v8771
      %v8780 = vld [vmem:[%s12] sm:$0xff]
      %v8781 = vld [vmem:[%s12 + $0x8] sm:$0xff]
      %v8782 = vld [vmem:[%s12 + $0x10] sm:$0xff]
      %v8783 = vld [vmem:[%s12 + $0x18] sm:$0xff]
      %v8784 = vld [vmem:[%s12 + $0x20] sm:$0xff]
      %v8785 = vld [vmem:[%s12 + $0x28] sm:$0xff]
      %v8786 = vld [vmem:[%s12 + $0x30] sm:$0xff]
      %v8787 = vld [vmem:[%s12 + $0x38] sm:$0xff]
      %v8788 = vld [vmem:[%s12 + $0x40] sm:$0xff]
      %v8789 = vld [vmem:[%s12 + $0x48] sm:$0xff]
      %v8790 = vld [vmem:[%s12 + $0x50] sm:$0xff]
      %v8791 = vld [vmem:[%s12 + $0x58] sm:$0xff]
      %v8792 = vld [vmem:[%s12 + $0x60] sm:$0xff]
      %v8793 = vld [vmem:[%s12 + $0x68] sm:$0xff]
      %v8794 = vld [vmem:[%s12 + $0x70] sm:$0xff]
      %v8795 = vld [vmem:[%s12 + $0x78] sm:$0xff]
      %v8796 = vld [vmem:[%s12 + $0x80] sm:$0xff]
      %v8797 = vld [vmem:[%s12 + $0x88] sm:$0xff]
      %v8798 = vld [vmem:[%s12 + $0x90] sm:$0xff]
      %v8799 = vld [vmem:[%s12 + $0x98] sm:$0xff]
      %v8800 = vld [vmem:[%s12 + $0xa0] sm:$0xff]
      %v8801 = vld [vmem:[%s12 + $0xa8] sm:$0xff]
      %v8802 = vld [vmem:[%s12 + $0xb0] sm:$0xff]
      %v8803 = vld [vmem:[%s12 + $0xb8] sm:$0xff]
      %v8804 = vld [vmem:[%s12 + $0xc0] sm:$0xff]
      %v8805 = vld [vmem:[%s12 + $0xc8] sm:$0xff]
      %v8806 = vld [vmem:[%s12 + $0xd0] sm:$0xff]
      %v8807 = vld [vmem:[%s12 + $0xd8] sm:$0xff]
      %v8808 = vld [vmem:[%s12 + $0xe0] sm:$0xff]
      %v8809 = vld [vmem:[%s12 + $0xe8] sm:$0xff]
      %v8810 = vld [vmem:[%s12 + $0xf0] sm:$0xff]
      %v8811 = vld [vmem:[%s12 + $0xf8] sm:$0xff]
      %v8812 = vld [vmem:[%s12 + $0x100] sm:$0xff]
      %v8813 = vld [vmem:[%s12 + $0x108] sm:$0xff]
      %v8814 = vld [vmem:[%s12 + $0x110] sm:$0xff]
      %v8815 = vld [vmem:[%s12 + $0x118] sm:$0xff]
      %v8816 = vld [vmem:[%s12 + $0x120] sm:$0xff]
      %v8817 = vld [vmem:[%s12 + $0x128] sm:$0xff]
      %v8818 = vld [vmem:[%s12 + $0x130] sm:$0xff]
      %v8819 = vld [vmem:[%s12 + $0x138] sm:$0xff]
      %v8820 = vld [vmem:[%s12 + $0x140] sm:$0xff]
      %v8821 = vld [vmem:[%s12 + $0x148] sm:$0xff]
      %v8822 = vld [vmem:[%s12 + $0x150] sm:$0xff]
      %v8823 = vld [vmem:[%s12 + $0x158] sm:$0xff]
      %v8824 = vld [vmem:[%s12 + $0x160] sm:$0xff]
      %v8825 = vld [vmem:[%s12 + $0x168] sm:$0xff]
      %v8826 = vld [vmem:[%s12 + $0x170] sm:$0xff]
      %v8827 = vld [vmem:[%s12 + $0x178] sm:$0xff]
      %v8828 = vld [vmem:[%s12 + $0x180] sm:$0xff]
      %v8829 = vld [vmem:[%s12 + $0x188] sm:$0xff]
      %v8830 = vld [vmem:[%s12 + $0x190] sm:$0xff]
      %v8831 = vld [vmem:[%s12 + $0x198] sm:$0xff]
      %v8832 = vld [vmem:[%s12 + $0x1a0] sm:$0xff]
      %v8833 = vld [vmem:[%s12 + $0x1a8] sm:$0xff]
      %v8834 = vld [vmem:[%s12 + $0x1b0] sm:$0xff]
      %v8835 = vld [vmem:[%s12 + $0x1b8] sm:$0xff]
      %v8836 = vld [vmem:[%s12 + $0x1c0] sm:$0xff]
      %v8837 = vld [vmem:[%s12 + $0x1c8] sm:$0xff]
      %v8838 = vld [vmem:[%s12 + $0x1d0] sm:$0xff]
      %v8839 = vld [vmem:[%s12 + $0x1d8] sm:$0xff]
      %v8840 = vld [vmem:[%s12 + $0x1e0] sm:$0xff]
      %v8841 = vld [vmem:[%s12 + $0x1e8] sm:$0xff]
      %v8842 = vld [vmem:[%s12 + $0x1f0] sm:$0xff]
      %v8843 = vld [vmem:[%s12 + $0x1f8] sm:$0xff]
      %v8844 = vld [vmem:[%s12 + $0x200] sm:$0xff]
      %v8845 = vld [vmem:[%s12 + $0x208] sm:$0xff]
      %v8846 = vld [vmem:[%s12 + $0x210] sm:$0xff]
      %v8847 = vld [vmem:[%s12 + $0x218] sm:$0xff]
      %v8848 = vld [vmem:[%s12 + $0x220] sm:$0xff]
      %v8849 = vld [vmem:[%s12 + $0x228] sm:$0xff]
      %v8850 = vld [vmem:[%s12 + $0x230] sm:$0xff]
      %v8851 = vld [vmem:[%s12 + $0x238] sm:$0xff]
      %v8852 = vld [vmem:[%s12 + $0x240] sm:$0xff]
      %v8853 = vld [vmem:[%s12 + $0x248] sm:$0xff]
      %v8854 = vld [vmem:[%s12 + $0x250] sm:$0xff]
      %v8855 = vld [vmem:[%s12 + $0x258] sm:$0xff]
      %v8856 = vld [vmem:[%s12 + $0x260] sm:$0xff]
      %v8857 = vld [vmem:[%s12 + $0x268] sm:$0xff]
      %v8858 = vld [vmem:[%s12 + $0x270] sm:$0xff]
      %v8859 = vld [vmem:[%s12 + $0x278] sm:$0xff]
      %v8860 = vld [vmem:[%s12 + $0x280] sm:$0xff]
      %v8861 = vld [vmem:[%s12 + $0x288] sm:$0xff]
      %v8862 = vld [vmem:[%s12 + $0x290] sm:$0xff]
      %v8863 = vld [vmem:[%s12 + $0x298] sm:$0xff]
      %v8864 = vld [vmem:[%s12 + $0x2a0] sm:$0xff]
      %v8865 = vld [vmem:[%s12 + $0x2a8] sm:$0xff]
      %v8866 = vld [vmem:[%s12 + $0x2b0] sm:$0xff]
      %v8867 = vld [vmem:[%s12 + $0x2b8] sm:$0xff]
      %v8868 = vld [vmem:[%s12 + $0x2c0] sm:$0xff]
      %v8869 = vld [vmem:[%s12 + $0x2c8] sm:$0xff]
      %v8870 = vld [vmem:[%s12 + $0x2d0] sm:$0xff]
      %v8871 = vld [vmem:[%s12 + $0x2d8] sm:$0xff]
      %v8872 = vld [vmem:[%s12 + $0x2e0] sm:$0xff]
      %v8873 = vld [vmem:[%s12 + $0x2e8] sm:$0xff]
      %v8874 = vld [vmem:[%s12 + $0x2f0] sm:$0xff]
      %v8875 = vld [vmem:[%s12 + $0x2f8] sm:$0xff]
      %v8972 = vunpack.c.l.b16 %v8780
      %v8973 = vunpack.c.h.b16 %v8780
      %v8974 = vunpack.c.l.b16 %v8781
      %v8975 = vunpack.c.h.b16 %v8781
      %v8976 = vunpack.c.l.b16 %v8782
      %v8977 = vunpack.c.h.b16 %v8782
      %v8978 = vunpack.c.l.b16 %v8783
      %v8979 = vunpack.c.h.b16 %v8783
      %v8980 = vunpack.c.l.b16 %v8784
      %v8981 = vunpack.c.h.b16 %v8784
      %v8982 = vunpack.c.l.b16 %v8785
      %v8983 = vunpack.c.h.b16 %v8785
      %v8984 = vunpack.c.l.b16 %v8786
      %v8985 = vunpack.c.h.b16 %v8786
      %v8986 = vunpack.c.l.b16 %v8787
      %v8987 = vunpack.c.h.b16 %v8787
      %v8988 = vunpack.c.l.b16 %v8788
      %v8989 = vunpack.c.h.b16 %v8788
      %v8990 = vunpack.c.l.b16 %v8789
      %v8991 = vunpack.c.h.b16 %v8789
      %v8992 = vunpack.c.l.b16 %v8790
      %v8993 = vunpack.c.h.b16 %v8790
      %v8994 = vunpack.c.l.b16 %v8791
      %v8995 = vunpack.c.h.b16 %v8791
      %v8996 = vunpack.c.l.b16 %v8792
      %v8997 = vunpack.c.h.b16 %v8792
      %v8998 = vunpack.c.l.b16 %v8793
      %v8999 = vunpack.c.h.b16 %v8793
      %v9000 = vunpack.c.l.b16 %v8794
      %v9001 = vunpack.c.h.b16 %v8794
      %v9002 = vunpack.c.l.b16 %v8795
      %v9003 = vunpack.c.h.b16 %v8795
      %v9004 = vunpack.c.l.b16 %v8796
      %v9005 = vunpack.c.h.b16 %v8796
      %v9006 = vunpack.c.l.b16 %v8797
      %v9007 = vunpack.c.h.b16 %v8797
      %v9008 = vunpack.c.l.b16 %v8798
      %v9009 = vunpack.c.h.b16 %v8798
      %v9010 = vunpack.c.l.b16 %v8799
      %v9011 = vunpack.c.h.b16 %v8799
      %v9012 = vunpack.c.l.b16 %v8800
      %v9013 = vunpack.c.h.b16 %v8800
      %v9014 = vunpack.c.l.b16 %v8801
      %v9015 = vunpack.c.h.b16 %v8801
      %v9016 = vunpack.c.l.b16 %v8802
      %v9017 = vunpack.c.h.b16 %v8802
      %v9018 = vunpack.c.l.b16 %v8803
      %v9019 = vunpack.c.h.b16 %v8803
      %v9020 = vunpack.c.l.b16 %v8804
      %v9021 = vunpack.c.h.b16 %v8804
      %v9022 = vunpack.c.l.b16 %v8805
      %v9023 = vunpack.c.h.b16 %v8805
      %v9024 = vunpack.c.l.b16 %v8806
      %v9025 = vunpack.c.h.b16 %v8806
      %v9026 = vunpack.c.l.b16 %v8807
      %v9027 = vunpack.c.h.b16 %v8807
      %v9028 = vunpack.c.l.b16 %v8808
      %v9029 = vunpack.c.h.b16 %v8808
      %v9030 = vunpack.c.l.b16 %v8809
      %v9031 = vunpack.c.h.b16 %v8809
      %v9032 = vunpack.c.l.b16 %v8810
      %v9033 = vunpack.c.h.b16 %v8810
      %v9034 = vunpack.c.l.b16 %v8811
      %v9035 = vunpack.c.h.b16 %v8811
      %v9036 = vunpack.c.l.b16 %v8812
      %v9037 = vunpack.c.h.b16 %v8812
      %v9038 = vunpack.c.l.b16 %v8813
      %v9039 = vunpack.c.h.b16 %v8813
      %v9040 = vunpack.c.l.b16 %v8814
      %v9041 = vunpack.c.h.b16 %v8814
      %v9042 = vunpack.c.l.b16 %v8815
      %v9043 = vunpack.c.h.b16 %v8815
      %v9044 = vunpack.c.l.b16 %v8816
      %v9045 = vunpack.c.h.b16 %v8816
      %v9046 = vunpack.c.l.b16 %v8817
      %v9047 = vunpack.c.h.b16 %v8817
      %v9048 = vunpack.c.l.b16 %v8818
      %v9049 = vunpack.c.h.b16 %v8818
      %v9050 = vunpack.c.l.b16 %v8819
      %v9051 = vunpack.c.h.b16 %v8819
      %v9052 = vunpack.c.l.b16 %v8820
      %v9053 = vunpack.c.h.b16 %v8820
      %v9054 = vunpack.c.l.b16 %v8821
      %v9055 = vunpack.c.h.b16 %v8821
      %v9056 = vunpack.c.l.b16 %v8822
      %v9057 = vunpack.c.h.b16 %v8822
      %v9058 = vunpack.c.l.b16 %v8823
      %v9059 = vunpack.c.h.b16 %v8823
      %v9060 = vunpack.c.l.b16 %v8824
      %v9061 = vunpack.c.h.b16 %v8824
      %v9062 = vunpack.c.l.b16 %v8825
      %v9063 = vunpack.c.h.b16 %v8825
      %v9064 = vunpack.c.l.b16 %v8826
      %v9065 = vunpack.c.h.b16 %v8826
      %v9066 = vunpack.c.l.b16 %v8827
      %v9067 = vunpack.c.h.b16 %v8827
      %v9068 = vunpack.c.l.b16 %v8828
      %v9069 = vunpack.c.h.b16 %v8828
      %v9070 = vunpack.c.l.b16 %v8829
      %v9071 = vunpack.c.h.b16 %v8829
      %v9072 = vunpack.c.l.b16 %v8830
      %v9073 = vunpack.c.h.b16 %v8830
      %v9074 = vunpack.c.l.b16 %v8831
      %v9075 = vunpack.c.h.b16 %v8831
      %v9076 = vunpack.c.l.b16 %v8832
      %v9077 = vunpack.c.h.b16 %v8832
      %v9078 = vunpack.c.l.b16 %v8833
      %v9079 = vunpack.c.h.b16 %v8833
      %v9080 = vunpack.c.l.b16 %v8834
      %v9081 = vunpack.c.h.b16 %v8834
      %v9082 = vunpack.c.l.b16 %v8835
      %v9083 = vunpack.c.h.b16 %v8835
      %v9084 = vunpack.c.l.b16 %v8836
      %v9085 = vunpack.c.h.b16 %v8836
      %v9086 = vunpack.c.l.b16 %v8837
      %v9087 = vunpack.c.h.b16 %v8837
      %v9088 = vunpack.c.l.b16 %v8838
      %v9089 = vunpack.c.h.b16 %v8838
      %v9090 = vunpack.c.l.b16 %v8839
      %v9091 = vunpack.c.h.b16 %v8839
      %v9092 = vunpack.c.l.b16 %v8840
      %v9093 = vunpack.c.h.b16 %v8840
      %v9094 = vunpack.c.l.b16 %v8841
      %v9095 = vunpack.c.h.b16 %v8841
      %v9096 = vunpack.c.l.b16 %v8842
      %v9097 = vunpack.c.h.b16 %v8842
      %v9098 = vunpack.c.l.b16 %v8843
      %v9099 = vunpack.c.h.b16 %v8843
      %v9100 = vunpack.c.l.b16 %v8844
      %v9101 = vunpack.c.h.b16 %v8844
      %v9102 = vunpack.c.l.b16 %v8845
      %v9103 = vunpack.c.h.b16 %v8845
      %v9104 = vunpack.c.l.b16 %v8846
      %v9105 = vunpack.c.h.b16 %v8846
      %v9106 = vunpack.c.l.b16 %v8847
      %v9107 = vunpack.c.h.b16 %v8847
      %v9108 = vunpack.c.l.b16 %v8848
      %v9109 = vunpack.c.h.b16 %v8848
      %v9110 = vunpack.c.l.b16 %v8849
      %v9111 = vunpack.c.h.b16 %v8849
      %v9112 = vunpack.c.l.b16 %v8850
      %v9113 = vunpack.c.h.b16 %v8850
      %v9114 = vunpack.c.l.b16 %v8851
      %v9115 = vunpack.c.h.b16 %v8851
      %v9116 = vunpack.c.l.b16 %v8852
      %v9117 = vunpack.c.h.b16 %v8852
      %v9118 = vunpack.c.l.b16 %v8853
      %v9119 = vunpack.c.h.b16 %v8853
      %v9120 = vunpack.c.l.b16 %v8854
      %v9121 = vunpack.c.h.b16 %v8854
      %v9122 = vunpack.c.l.b16 %v8855
      %v9123 = vunpack.c.h.b16 %v8855
      %v9124 = vunpack.c.l.b16 %v8856
      %v9125 = vunpack.c.h.b16 %v8856
      %v9126 = vunpack.c.l.b16 %v8857
      %v9127 = vunpack.c.h.b16 %v8857
      %v9128 = vunpack.c.l.b16 %v8858
      %v9129 = vunpack.c.h.b16 %v8858
      %v9130 = vunpack.c.l.b16 %v8859
      %v9131 = vunpack.c.h.b16 %v8859
      %v9132 = vunpack.c.l.b16 %v8860
      %v9133 = vunpack.c.h.b16 %v8860
      %v9134 = vunpack.c.l.b16 %v8861
      %v9135 = vunpack.c.h.b16 %v8861
      %v9136 = vunpack.c.l.b16 %v8862
      %v9137 = vunpack.c.h.b16 %v8862
      %v9138 = vunpack.c.l.b16 %v8863
      %v9139 = vunpack.c.h.b16 %v8863
      %v9140 = vunpack.c.l.b16 %v8864
      %v9141 = vunpack.c.h.b16 %v8864
      %v9142 = vunpack.c.l.b16 %v8865
      %v9143 = vunpack.c.h.b16 %v8865
      %v9144 = vunpack.c.l.b16 %v8866
      %v9145 = vunpack.c.h.b16 %v8866
      %v9146 = vunpack.c.l.b16 %v8867
      %v9147 = vunpack.c.h.b16 %v8867
      %v9148 = vunpack.c.l.b16 %v8868
      %v9149 = vunpack.c.h.b16 %v8868
      %v9150 = vunpack.c.l.b16 %v8869
      %v9151 = vunpack.c.h.b16 %v8869
      %v9152 = vunpack.c.l.b16 %v8870
      %v9153 = vunpack.c.h.b16 %v8870
      %v9154 = vunpack.c.l.b16 %v8871
      %v9155 = vunpack.c.h.b16 %v8871
      %v9156 = vunpack.c.l.b16 %v8872
      %v9157 = vunpack.c.h.b16 %v8872
      %v9158 = vunpack.c.l.b16 %v8873
      %v9159 = vunpack.c.h.b16 %v8873
      %v9160 = vunpack.c.l.b16 %v8874
      %v9161 = vunpack.c.h.b16 %v8874
      %v9162 = vunpack.c.l.b16 %v8875
      %v9163 = vunpack.c.h.b16 %v8875
      %v9164 = vpack.c.b16 %v8978, %v8972
      %v9165 = vpack.c.b16 %v8979, %v8973
      %v9166 = vpack.c.b16 %v8980, %v8974
      %v9167 = vpack.c.b16 %v8981, %v8975
      %v9168 = vpack.c.b16 %v8982, %v8976
      %v9169 = vpack.c.b16 %v8983, %v8977
      %v9170 = vpack.c.b16 %v8990, %v8984
      %v9171 = vpack.c.b16 %v8991, %v8985
      %v9172 = vpack.c.b16 %v8992, %v8986
      %v9173 = vpack.c.b16 %v8993, %v8987
      %v9174 = vpack.c.b16 %v8994, %v8988
      %v9175 = vpack.c.b16 %v8995, %v8989
      %v9176 = vpack.c.b16 %v9002, %v8996
      %v9177 = vpack.c.b16 %v9003, %v8997
      %v9178 = vpack.c.b16 %v9004, %v8998
      %v9179 = vpack.c.b16 %v9005, %v8999
      %v9180 = vpack.c.b16 %v9006, %v9000
      %v9181 = vpack.c.b16 %v9007, %v9001
      %v9182 = vpack.c.b16 %v9014, %v9008
      %v9183 = vpack.c.b16 %v9015, %v9009
      %v9184 = vpack.c.b16 %v9016, %v9010
      %v9185 = vpack.c.b16 %v9017, %v9011
      %v9186 = vpack.c.b16 %v9018, %v9012
      %v9187 = vpack.c.b16 %v9019, %v9013
      %v9188 = vpack.c.b16 %v9026, %v9020
      %v9189 = vpack.c.b16 %v9027, %v9021
      %v9190 = vpack.c.b16 %v9028, %v9022
      %v9191 = vpack.c.b16 %v9029, %v9023
      %v9192 = vpack.c.b16 %v9030, %v9024
      %v9193 = vpack.c.b16 %v9031, %v9025
      %v9194 = vpack.c.b16 %v9038, %v9032
      %v9195 = vpack.c.b16 %v9039, %v9033
      %v9196 = vpack.c.b16 %v9040, %v9034
      %v9197 = vpack.c.b16 %v9041, %v9035
      %v9198 = vpack.c.b16 %v9042, %v9036
      %v9199 = vpack.c.b16 %v9043, %v9037
      %v9200 = vpack.c.b16 %v9050, %v9044
      %v9201 = vpack.c.b16 %v9051, %v9045
      %v9202 = vpack.c.b16 %v9052, %v9046
      %v9203 = vpack.c.b16 %v9053, %v9047
      %v9204 = vpack.c.b16 %v9054, %v9048
      %v9205 = vpack.c.b16 %v9055, %v9049
      %v9206 = vpack.c.b16 %v9062, %v9056
      %v9207 = vpack.c.b16 %v9063, %v9057
      %v9208 = vpack.c.b16 %v9064, %v9058
      %v9209 = vpack.c.b16 %v9065, %v9059
      %v9210 = vpack.c.b16 %v9066, %v9060
      %v9211 = vpack.c.b16 %v9067, %v9061
      %v9212 = vpack.c.b16 %v9074, %v9068
      %v9213 = vpack.c.b16 %v9075, %v9069
      %v9214 = vpack.c.b16 %v9076, %v9070
      %v9215 = vpack.c.b16 %v9077, %v9071
      %v9216 = vpack.c.b16 %v9078, %v9072
      %v9217 = vpack.c.b16 %v9079, %v9073
      %v9218 = vpack.c.b16 %v9086, %v9080
      %v9219 = vpack.c.b16 %v9087, %v9081
      %v9220 = vpack.c.b16 %v9088, %v9082
      %v9221 = vpack.c.b16 %v9089, %v9083
      %v9222 = vpack.c.b16 %v9090, %v9084
      %v9223 = vpack.c.b16 %v9091, %v9085
      %v9224 = vpack.c.b16 %v9098, %v9092
      %v9225 = vpack.c.b16 %v9099, %v9093
      %v9226 = vpack.c.b16 %v9100, %v9094
      %v9227 = vpack.c.b16 %v9101, %v9095
      %v9228 = vpack.c.b16 %v9102, %v9096
      %v9229 = vpack.c.b16 %v9103, %v9097
      %v9230 = vpack.c.b16 %v9110, %v9104
      %v9231 = vpack.c.b16 %v9111, %v9105
      %v9232 = vpack.c.b16 %v9112, %v9106
      %v9233 = vpack.c.b16 %v9113, %v9107
      %v9234 = vpack.c.b16 %v9114, %v9108
      %v9235 = vpack.c.b16 %v9115, %v9109
      %v9236 = vpack.c.b16 %v9122, %v9116
      %v9237 = vpack.c.b16 %v9123, %v9117
      %v9238 = vpack.c.b16 %v9124, %v9118
      %v9239 = vpack.c.b16 %v9125, %v9119
      %v9240 = vpack.c.b16 %v9126, %v9120
      %v9241 = vpack.c.b16 %v9127, %v9121
      %v9242 = vpack.c.b16 %v9134, %v9128
      %v9243 = vpack.c.b16 %v9135, %v9129
      %v9244 = vpack.c.b16 %v9136, %v9130
      %v9245 = vpack.c.b16 %v9137, %v9131
      %v9246 = vpack.c.b16 %v9138, %v9132
      %v9247 = vpack.c.b16 %v9139, %v9133
      %v9248 = vpack.c.b16 %v9146, %v9140
      %v9249 = vpack.c.b16 %v9147, %v9141
      %v9250 = vpack.c.b16 %v9148, %v9142
      %v9251 = vpack.c.b16 %v9149, %v9143
      %v9252 = vpack.c.b16 %v9150, %v9144
      %v9253 = vpack.c.b16 %v9151, %v9145
      %v9254 = vpack.c.b16 %v9158, %v9152
      %v9255 = vpack.c.b16 %v9159, %v9153
      %v9256 = vpack.c.b16 %v9160, %v9154
      %v9257 = vpack.c.b16 %v9161, %v9155
      %v9258 = vpack.c.b16 %v9162, %v9156
      %v9259 = vpack.c.b16 %v9163, %v9157
      %9356 = vmatprep.subr.bf16.mxu0 %v9165
      %9357 = vmatpush1.bf16.msra.mxu0 %v9164
      %9358 = vmatprep.subr.bf16.mxu0 %v9171
      %9359 = vmatpush1.bf16.msra.mxu0 %v9170
      %9360 = vmatprep.subr.bf16.mxu0 %v9177
      %9361 = vmatpush1.bf16.msra.mxu0 %v9176
      %9362 = vmatprep.subr.bf16.mxu0 %v9183
      %9363 = vmatpush1.bf16.msra.mxu0 %v9182
      %9364 = vmatprep.subr.bf16.mxu0 %v9189
      %9365 = vmatpush1.bf16.msra.mxu0 %v9188
      %9366 = vmatprep.subr.bf16.mxu0 %v9195
      %9367 = vmatpush1.bf16.msra.mxu0 %v9194
      %9368 = vmatprep.subr.bf16.mxu0 %v9201
      %9369 = vmatpush1.bf16.msra.mxu0 %v9200
      %9370 = vmatprep.subr.bf16.mxu0 %v9207
      %9371 = vmatpush1.bf16.msra.mxu0 %v9206
      %9372 = vmatprep.subr.bf16.mxu0 %v9213
      %9373 = vmatpush1.bf16.msra.mxu0 %v9212
      %9374 = vmatprep.subr.bf16.mxu0 %v9219
      %9375 = vmatpush1.bf16.msra.mxu0 %v9218
      %9376 = vmatprep.subr.bf16.mxu0 %v9225
      %9377 = vmatpush1.bf16.msra.mxu0 %v9224
      %9378 = vmatprep.subr.bf16.mxu0 %v9231
      %9379 = vmatpush1.bf16.msra.mxu0 %v9230
      %9380 = vmatprep.subr.bf16.mxu0 %v9237
      %9381 = vmatpush1.bf16.msra.mxu0 %v9236
      %9382 = vmatprep.subr.bf16.mxu0 %v9243
      %9383 = vmatpush1.bf16.msra.mxu0 %v9242
      %9384 = vmatprep.subr.bf16.mxu0 %v9249
      %9385 = vmatpush1.bf16.msra.mxu0 %v9248
      %9386 = vmatprep.subr.bf16.mxu0 %v9255
      %9387 = vmatpush1.bf16.msra.mxu0 %v9254
      %9388 = vmatprep.mubr.bf16.mxu0 %v8779
      %9389 = vmatmul.mubr.bf16.gmra.mrb[0].mxu0 %v8778
      %v9390 = vpop.f32.mrb[0].mxu0
      %v9391 = vadd.f32 0.0, %v9390
      %v9392 = vpop.f32.mrb[0].mxu0
      %v9393 = vadd.f32 0.0, %v9392
      %v9394 = vpop.f32.mrb[0].mxu0
      %v9395 = vpop.f32.mrb[0].mxu0
      %9396 = vdwg.mxu0
      %9397 = vmatprep.subr.bf16.mxu0 %v9167
      %9398 = vmatpush1.bf16.msra.mxu0 %v9166
      %9399 = vmatprep.subr.bf16.mxu0 %v9173
      %9400 = vmatpush1.bf16.msra.mxu0 %v9172
      %9401 = vmatprep.subr.bf16.mxu0 %v9179
      %9402 = vmatpush1.bf16.msra.mxu0 %v9178
      %9403 = vmatprep.subr.bf16.mxu0 %v9185
      %9404 = vmatpush1.bf16.msra.mxu0 %v9184
      %9405 = vmatprep.subr.bf16.mxu0 %v9191
      %9406 = vmatpush1.bf16.msra.mxu0 %v9190
      %9407 = vmatprep.subr.bf16.mxu0 %v9197
      %9408 = vmatpush1.bf16.msra.mxu0 %v9196
      %9409 = vmatprep.subr.bf16.mxu0 %v9203
      %9410 = vmatpush1.bf16.msra.mxu0 %v9202
      %9411 = vmatprep.subr.bf16.mxu0 %v9209
      %9412 = vmatpush1.bf16.msra.mxu0 %v9208
      %9413 = vmatprep.subr.bf16.mxu0 %v9215
      %9414 = vmatpush1.bf16.msra.mxu0 %v9214
      %9415 = vmatprep.subr.bf16.mxu0 %v9221
      %9416 = vmatpush1.bf16.msra.mxu0 %v9220
      %9417 = vmatprep.subr.bf16.mxu0 %v9227
      %9418 = vmatpush1.bf16.msra.mxu0 %v9226
      %9419 = vmatprep.subr.bf16.mxu0 %v9233
      %9420 = vmatpush1.bf16.msra.mxu0 %v9232
      %9421 = vmatprep.subr.bf16.mxu0 %v9239
      %9422 = vmatpush1.bf16.msra.mxu0 %v9238
      %9423 = vmatprep.subr.bf16.mxu0 %v9245
      %9424 = vmatpush1.bf16.msra.mxu0 %v9244
      %9425 = vmatprep.subr.bf16.mxu0 %v9251
      %9426 = vmatpush1.bf16.msra.mxu0 %v9250
      %9427 = vmatprep.subr.bf16.mxu0 %v9257
      %9428 = vmatpush1.bf16.msra.mxu0 %v9256
      %9429 = vmatprep.mubr.bf16.mxu0 %v8779
      %9430 = vmatmul.mubr.bf16.gmra.mrb[0].mxu0 %v8778
      %v9431 = vpop.f32.mrb[0].mxu0
      %v9432 = vadd.f32 0.0, %v9431
      %v9433 = vpop.f32.mrb[0].mxu0
      %v9434 = vadd.f32 0.0, %v9433
      %v9435 = vpop.f32.mrb[0].mxu0
      %v9436 = vpop.f32.mrb[0].mxu0
      %9437 = vdwg.mxu0
      %9438 = vmatprep.subr.bf16.mxu0 %v9169
      %9439 = vmatpush1.bf16.msra.mxu0 %v9168
      %9440 = vmatprep.subr.bf16.mxu0 %v9175
      %9441 = vmatpush1.bf16.msra.mxu0 %v9174
      %9442 = vmatprep.subr.bf16.mxu0 %v9181
      %9443 = vmatpush1.bf16.msra.mxu0 %v9180
      %9444 = vmatprep.subr.bf16.mxu0 %v9187
      %9445 = vmatpush1.bf16.msra.mxu0 %v9186
      %9446 = vmatprep.subr.bf16.mxu0 %v9193
      %9447 = vmatpush1.bf16.msra.mxu0 %v9192
      %9448 = vmatprep.subr.bf16.mxu0 %v9199
      %9449 = vmatpush1.bf16.msra.mxu0 %v9198
      %9450 = vmatprep.subr.bf16.mxu0 %v9205
      %9451 = vmatpush1.bf16.msra.mxu0 %v9204
      %9452 = vmatprep.subr.bf16.mxu0 %v9211
      %9453 = vmatpush1.bf16.msra.mxu0 %v9210
      %9454 = vmatprep.subr.bf16.mxu0 %v9217
      %9455 = vmatpush1.bf16.msra.mxu0 %v9216
      %9456 = vmatprep.subr.bf16.mxu0 %v9223
      %9457 = vmatpush1.bf16.msra.mxu0 %v9222
      %9458 = vmatprep.subr.bf16.mxu0 %v9229
      %9459 = vmatpush1.bf16.msra.mxu0 %v9228
      %9460 = vmatprep.subr.bf16.mxu0 %v9235
      %9461 = vmatpush1.bf16.msra.mxu0 %v9234
      %9462 = vmatprep.subr.bf16.mxu0 %v9241
      %9463 = vmatpush1.bf16.msra.mxu0 %v9240
      %9464 = vmatprep.subr.bf16.mxu0 %v9247
      %9465 = vmatpush1.bf16.msra.mxu0 %v9246
      %9466 = vmatprep.subr.bf16.mxu0 %v9253
      %9467 = vmatpush1.bf16.msra.mxu0 %v9252
      %9468 = vmatprep.subr.bf16.mxu0 %v9259
      %9469 = vmatpush1.bf16.msra.mxu0 %v9258
      %9470 = vmatprep.mubr.bf16.mxu0 %v8779
      %9471 = vmatmul.mubr.bf16.gmra.mrb[0].mxu0 %v8778
      %v9472 = vpop.f32.mrb[0].mxu0
      %v9473 = vadd.f32 0.0, %v9472
      %v9474 = vpop.f32.mrb[0].mxu0
      %v9475 = vadd.f32 0.0, %v9474
      %v9476 = vpop.f32.mrb[0].mxu0
      %v9477 = vpop.f32.mrb[0].mxu0
      %9478 = vdwg.mxu0
      %v9479 = vadd.f32 %v8772, %v9391
      %v9480 = vadd.f32 %v8773, %v9393
      %v9481 = vxor.u32 %v9479, 2147483648
      %v9482 = vxor.u32 %v9480, 2147483648
      %v9483 = vmul.f32 %v9481, 1.442695
      %v9484 = vpow.pop %v9483
      %v9485 = vmul.f32 %v9482, 1.442695
      %v9486 = vpow.pop %v9485
      %v9487 = vadd.f32 %v9484, 1.0
      %v9488 = vadd.f32 %v9486, 1.0
      %v9489 = vrcp.pop %v9487
      %v9490 = vmul.f32 1.0, %v9489
      %v9491 = vrcp.pop %v9488
      %v9492 = vmul.f32 1.0, %v9491
      %v9493 = vadd.f32 %v8774, %v9432
      %v9494 = vadd.f32 %v8775, %v9434
      %v9495 = vxor.u32 %v9493, 2147483648
      %v9496 = vxor.u32 %v9494, 2147483648
      %v9497 = vmul.f32 %v9495, 1.442695
      %v9498 = vpow.pop %v9497
      %v9499 = vmul.f32 %v9496, 1.442695
      %v9500 = vpow.pop %v9499
      %v9501 = vadd.f32 %v9498, 1.0
      %v9502 = vadd.f32 %v9500, 1.0
      %v9503 = vrcp.pop %v9501
      %v9504 = vmul.f32 1.0, %v9503
      %v9505 = vrcp.pop %v9502
      %v9506 = vmul.f32 1.0, %v9505
      %v9508 = vlaneseq
      %v9509 = vshrl.u32 %v9508, 7
      %v9510 = vsub.s32 0, %v9509
      %v9511 = vrot.slane %v3333, %v9510
      %v9512 = vlaneseq
      %v9513 = vshrl.u32 %v9512, 7
      %v9514 = vsub.s32 1, %v9513
      %v9515 = vrot.slane %v3333, %v9514
      %v9518 = vadd.f32 %v9473, %v9511
      %v9519 = vadd.f32 %v9475, %v9515
      %v9520 = vmul.f32 %v9490, %v9518
      %v9521 = vmul.f32 %v9492, %v9519
      %v9522 = vadd.f32 %v8776, %v9520
      %v9523 = vadd.f32 %v8777, %v9521
      %v9524 = vtanh.pop %v9522
      %v9525 = vtanh.pop %v9523
      %v9526 = vsub.f32 %v8770, %v9524
      %v9527 = vsub.f32 %v8771, %v9525
      %v9528 = vmul.f32 %v9504, %v9526
      %v9529 = vmul.f32 %v9506, %v9527
      %v9530 = vadd.f32 %v9524, %v9528
      %v9531 = vadd.f32 %v9525, %v9529
      %9532 = vst [vmem:[#allocation8] sm:$0xff] %v9530
      %9533 = vst [vmem:[#allocation8 + $0x8] sm:$0xff] %v9531
    $region255: #{network_forward.1} parent=1 // pred_fallthru
      _
    %p9534 = scmp.eq.s32.totalorder %s1530, 8
    // Predicated region
    $region256: #{network_forward.1} parent=1 // pred_check
      %p9535 = pneg %p9534
    $region257: #{network_forward.1} parent=1 // pred_check_branch
      %9537 = sbr.rel (%p9535) target = $region259
    $region258: #{network_forward.1} parent=1 // pred_region
      %v9538 = vld [vmem:[#allocation8] sm:$0xff]
      %v9539 = vld [vmem:[#allocation8 + $0x8] sm:$0xff]
      %9540 = vst [vmem:[#allocation9] sm:$0xff] %v9538
      %9541 = vst [vmem:[#allocation9 + $0x8] sm:$0xff] %v9539
    $region259: #{network_forward.1} parent=1 // pred_fallthru
      _
    %v9542 = vld [vmem:[%s2] sm:$0xff]
    %v9543 = vstv %s1530
    %vm9544 = vcmp.eq.s32.totalorder %v9542, %v9543
    %v9545 = vld [vmem:[#allocation9] sm:$0xff]
    %v9546 = vld [vmem:[#allocation9 + $0x8] sm:$0xff]
    %v9547 = vsel %vm9544, 1, 0
    %9548 = vset.pattern.permute.xlu0 0
    %9549 = vperm.xlu0 %9548, %v9547
    %v9550 = vpop.permute.xlu0 %9549
    %vm9551 = vcmp.eq.s32.totalorder %v9550, 1
    %v9552 = vsel %vm9551, %v9545, 0.0
    %v9553 = vsel %vm9551, %v9546, 0.0
    %s9554 = smul.u32 4, 32
    %s9555 = smul.u32 %s9554, 3
    %s9556 = sshll.u32 %s9555, 4
    %9557 = dma.done %s125, %s9556
    %s9558 = smul.u32 4, 64
    %s9559 = smul.u32 %s9558, 3
    %s9560 = sshll.u32 %s9559, 4
    %9561 = dma.done %s558, %s9560
    %v9562 = vpack.c.bf16 %v9552, %v9552
    %v9563 = vpack.c.bf16 %v9553, %v9553
    %v9564 = vld [vmem:[#allocation3] sm:$0xff]
    %v9565 = vld [vmem:[#allocation3 + $0x8] sm:$0xff]
    %v9566 = vld [vmem:[#allocation3 + $0x10] sm:$0xff]
    %v9567 = vld [vmem:[#allocation3 + $0x18] sm:$0xff]
    %v9568 = vld [vmem:[#allocation3 + $0x20] sm:$0xff]
    %v9569 = vld [vmem:[#allocation3 + $0x28] sm:$0xff]
    %v9570 = vld [vmem:[#allocation3 + $0x30] sm:$0xff]
    %v9571 = vld [vmem:[#allocation3 + $0x38] sm:$0xff]
    %v9572 = vld [vmem:[#allocation3 + $0x40] sm:$0xff]
    %v9573 = vld [vmem:[#allocation3 + $0x48] sm:$0xff]
    %v9574 = vld [vmem:[#allocation3 + $0x50] sm:$0xff]
    %v9575 = vld [vmem:[#allocation3 + $0x58] sm:$0xff]
    %v9576 = vld [vmem:[#allocation3 + $0x60] sm:$0xff]
    %v9577 = vld [vmem:[#allocation3 + $0x68] sm:$0xff]
    %v9578 = vld [vmem:[#allocation3 + $0x70] sm:$0xff]
    %v9579 = vld [vmem:[#allocation3 + $0x78] sm:$0xff]
    %v9580 = vld [vmem:[#allocation3 + $0x80] sm:$0xff]
    %v9581 = vld [vmem:[#allocation3 + $0x88] sm:$0xff]
    %v9582 = vld [vmem:[#allocation3 + $0x90] sm:$0xff]
    %v9583 = vld [vmem:[#allocation3 + $0x98] sm:$0xff]
    %v9584 = vld [vmem:[#allocation3 + $0xa0] sm:$0xff]
    %v9585 = vld [vmem:[#allocation3 + $0xa8] sm:$0xff]
    %v9586 = vld [vmem:[#allocation3 + $0xb0] sm:$0xff]
    %v9587 = vld [vmem:[#allocation3 + $0xb8] sm:$0xff]
    %v9588 = vld [vmem:[#allocation3 + $0xc0] sm:$0xff]
    %v9589 = vld [vmem:[#allocation3 + $0xc8] sm:$0xff]
    %v9590 = vld [vmem:[#allocation3 + $0xd0] sm:$0xff]
    %v9591 = vld [vmem:[#allocation3 + $0xd8] sm:$0xff]
    %v9592 = vld [vmem:[#allocation3 + $0xe0] sm:$0xff]
    %v9593 = vld [vmem:[#allocation3 + $0xe8] sm:$0xff]
    %v9594 = vld [vmem:[#allocation3 + $0xf0] sm:$0xff]
    %v9595 = vld [vmem:[#allocation3 + $0xf8] sm:$0xff]
    %v9596 = vld [vmem:[#allocation3 + $0x100] sm:$0xff]
    %v9597 = vld [vmem:[#allocation3 + $0x108] sm:$0xff]
    %v9598 = vld [vmem:[#allocation3 + $0x110] sm:$0xff]
    %v9599 = vld [vmem:[#allocation3 + $0x118] sm:$0xff]
    %v9600 = vld [vmem:[#allocation3 + $0x120] sm:$0xff]
    %v9601 = vld [vmem:[#allocation3 + $0x128] sm:$0xff]
    %v9602 = vld [vmem:[#allocation3 + $0x130] sm:$0xff]
    %v9603 = vld [vmem:[#allocation3 + $0x138] sm:$0xff]
    %v9604 = vld [vmem:[#allocation3 + $0x140] sm:$0xff]
    %v9605 = vld [vmem:[#allocation3 + $0x148] sm:$0xff]
    %v9606 = vld [vmem:[#allocation3 + $0x150] sm:$0xff]
    %v9607 = vld [vmem:[#allocation3 + $0x158] sm:$0xff]
    %v9608 = vld [vmem:[#allocation3 + $0x160] sm:$0xff]
    %v9609 = vld [vmem:[#allocation3 + $0x168] sm:$0xff]
    %v9610 = vld [vmem:[#allocation3 + $0x170] sm:$0xff]
    %v9611 = vld [vmem:[#allocation3 + $0x178] sm:$0xff]
    %v9612 = vld [vmem:[#allocation4] sm:$0xff]
    %v9613 = vld [vmem:[#allocation4 + $0x8] sm:$0xff]
    %v9614 = vld [vmem:[#allocation4 + $0x10] sm:$0xff]
    %v9615 = vld [vmem:[#allocation4 + $0x18] sm:$0xff]
    %v9616 = vld [vmem:[#allocation4 + $0x20] sm:$0xff]
    %v9617 = vld [vmem:[#allocation4 + $0x28] sm:$0xff]
    %v9618 = vld [vmem:[#allocation4 + $0x30] sm:$0xff]
    %v9619 = vld [vmem:[#allocation4 + $0x38] sm:$0xff]
    %v9620 = vld [vmem:[#allocation4 + $0x40] sm:$0xff]
    %v9621 = vld [vmem:[#allocation4 + $0x48] sm:$0xff]
    %v9622 = vld [vmem:[#allocation4 + $0x50] sm:$0xff]
    %v9623 = vld [vmem:[#allocation4 + $0x58] sm:$0xff]
    %v9624 = vld [vmem:[#allocation4 + $0x60] sm:$0xff]
    %v9625 = vld [vmem:[#allocation4 + $0x68] sm:$0xff]
    %v9626 = vld [vmem:[#allocation4 + $0x70] sm:$0xff]
    %v9627 = vld [vmem:[#allocation4 + $0x78] sm:$0xff]
    %v9628 = vld [vmem:[#allocation4 + $0x80] sm:$0xff]
    %v9629 = vld [vmem:[#allocation4 + $0x88] sm:$0xff]
    %v9630 = vld [vmem:[#allocation4 + $0x90] sm:$0xff]
    %v9631 = vld [vmem:[#allocation4 + $0x98] sm:$0xff]
    %v9632 = vld [vmem:[#allocation4 + $0xa0] sm:$0xff]
    %v9633 = vld [vmem:[#allocation4 + $0xa8] sm:$0xff]
    %v9634 = vld [vmem:[#allocation4 + $0xb0] sm:$0xff]
    %v9635 = vld [vmem:[#allocation4 + $0xb8] sm:$0xff]
    %v9636 = vld [vmem:[#allocation4 + $0xc0] sm:$0xff]
    %v9637 = vld [vmem:[#allocation4 + $0xc8] sm:$0xff]
    %v9638 = vld [vmem:[#allocation4 + $0xd0] sm:$0xff]
    %v9639 = vld [vmem:[#allocation4 + $0xd8] sm:$0xff]
    %v9640 = vld [vmem:[#allocation4 + $0xe0] sm:$0xff]
    %v9641 = vld [vmem:[#allocation4 + $0xe8] sm:$0xff]
    %v9642 = vld [vmem:[#allocation4 + $0xf0] sm:$0xff]
    %v9643 = vld [vmem:[#allocation4 + $0xf8] sm:$0xff]
    %v9644 = vld [vmem:[#allocation4 + $0x100] sm:$0xff]
    %v9645 = vld [vmem:[#allocation4 + $0x108] sm:$0xff]
    %v9646 = vld [vmem:[#allocation4 + $0x110] sm:$0xff]
    %v9647 = vld [vmem:[#allocation4 + $0x118] sm:$0xff]
    %v9648 = vld [vmem:[#allocation4 + $0x120] sm:$0xff]
    %v9649 = vld [vmem:[#allocation4 + $0x128] sm:$0xff]
    %v9650 = vld [vmem:[#allocation4 + $0x130] sm:$0xff]
    %v9651 = vld [vmem:[#allocation4 + $0x138] sm:$0xff]
    %v9652 = vld [vmem:[#allocation4 + $0x140] sm:$0xff]
    %v9653 = vld [vmem:[#allocation4 + $0x148] sm:$0xff]
    %v9654 = vld [vmem:[#allocation4 + $0x150] sm:$0xff]
    %v9655 = vld [vmem:[#allocation4 + $0x158] sm:$0xff]
    %v9656 = vld [vmem:[#allocation4 + $0x160] sm:$0xff]
    %v9657 = vld [vmem:[#allocation4 + $0x168] sm:$0xff]
    %v9658 = vld [vmem:[#allocation4 + $0x170] sm:$0xff]
    %v9659 = vld [vmem:[#allocation4 + $0x178] sm:$0xff]
    %v9660 = vld [vmem:[#allocation4 + $0x180] sm:$0xff]
    %v9661 = vld [vmem:[#allocation4 + $0x188] sm:$0xff]
    %v9662 = vld [vmem:[#allocation4 + $0x190] sm:$0xff]
    %v9663 = vld [vmem:[#allocation4 + $0x198] sm:$0xff]
    %v9664 = vld [vmem:[#allocation4 + $0x1a0] sm:$0xff]
    %v9665 = vld [vmem:[#allocation4 + $0x1a8] sm:$0xff]
    %v9666 = vld [vmem:[#allocation4 + $0x1b0] sm:$0xff]
    %v9667 = vld [vmem:[#allocation4 + $0x1b8] sm:$0xff]
    %v9668 = vld [vmem:[#allocation4 + $0x1c0] sm:$0xff]
    %v9669 = vld [vmem:[#allocation4 + $0x1c8] sm:$0xff]
    %v9670 = vld [vmem:[#allocation4 + $0x1d0] sm:$0xff]
    %v9671 = vld [vmem:[#allocation4 + $0x1d8] sm:$0xff]
    %v9672 = vld [vmem:[#allocation4 + $0x1e0] sm:$0xff]
    %v9673 = vld [vmem:[#allocation4 + $0x1e8] sm:$0xff]
    %v9674 = vld [vmem:[#allocation4 + $0x1f0] sm:$0xff]
    %v9675 = vld [vmem:[#allocation4 + $0x1f8] sm:$0xff]
    %v9676 = vld [vmem:[#allocation4 + $0x200] sm:$0xff]
    %v9677 = vld [vmem:[#allocation4 + $0x208] sm:$0xff]
    %v9678 = vld [vmem:[#allocation4 + $0x210] sm:$0xff]
    %v9679 = vld [vmem:[#allocation4 + $0x218] sm:$0xff]
    %v9680 = vld [vmem:[#allocation4 + $0x220] sm:$0xff]
    %v9681 = vld [vmem:[#allocation4 + $0x228] sm:$0xff]
    %v9682 = vld [vmem:[#allocation4 + $0x230] sm:$0xff]
    %v9683 = vld [vmem:[#allocation4 + $0x238] sm:$0xff]
    %v9684 = vld [vmem:[#allocation4 + $0x240] sm:$0xff]
    %v9685 = vld [vmem:[#allocation4 + $0x248] sm:$0xff]
    %v9686 = vld [vmem:[#allocation4 + $0x250] sm:$0xff]
    %v9687 = vld [vmem:[#allocation4 + $0x258] sm:$0xff]
    %v9688 = vld [vmem:[#allocation4 + $0x260] sm:$0xff]
    %v9689 = vld [vmem:[#allocation4 + $0x268] sm:$0xff]
    %v9690 = vld [vmem:[#allocation4 + $0x270] sm:$0xff]
    %v9691 = vld [vmem:[#allocation4 + $0x278] sm:$0xff]
    %v9692 = vld [vmem:[#allocation4 + $0x280] sm:$0xff]
    %v9693 = vld [vmem:[#allocation4 + $0x288] sm:$0xff]
    %v9694 = vld [vmem:[#allocation4 + $0x290] sm:$0xff]
    %v9695 = vld [vmem:[#allocation4 + $0x298] sm:$0xff]
    %v9696 = vld [vmem:[#allocation4 + $0x2a0] sm:$0xff]
    %v9697 = vld [vmem:[#allocation4 + $0x2a8] sm:$0xff]
    %v9698 = vld [vmem:[#allocation4 + $0x2b0] sm:$0xff]
    %v9699 = vld [vmem:[#allocation4 + $0x2b8] sm:$0xff]
    %v9700 = vld [vmem:[#allocation4 + $0x2c0] sm:$0xff]
    %v9701 = vld [vmem:[#allocation4 + $0x2c8] sm:$0xff]
    %v9702 = vld [vmem:[#allocation4 + $0x2d0] sm:$0xff]
    %v9703 = vld [vmem:[#allocation4 + $0x2d8] sm:$0xff]
    %v9704 = vld [vmem:[#allocation4 + $0x2e0] sm:$0xff]
    %v9705 = vld [vmem:[#allocation4 + $0x2e8] sm:$0xff]
    %v9706 = vld [vmem:[#allocation4 + $0x2f0] sm:$0xff]
    %v9707 = vld [vmem:[#allocation4 + $0x2f8] sm:$0xff]
    %9708 = vmatprep.subr.bf16.mxu0 %v9613
    %9709 = vmatpush1.bf16.msra.mxu0 %v9612
    %9710 = vmatprep.subr.bf16.mxu0 %v9616
    %9711 = vmatpush1.bf16.msra.mxu0 %v9615
    %9712 = vmatprep.subr.bf16.mxu0 %v9619
    %9713 = vmatpush1.bf16.msra.mxu0 %v9618
    %9714 = vmatprep.subr.bf16.mxu0 %v9622
    %9715 = vmatpush1.bf16.msra.mxu0 %v9621
    %9716 = vmatprep.subr.bf16.mxu0 %v9625
    %9717 = vmatpush1.bf16.msra.mxu0 %v9624
    %9718 = vmatprep.subr.bf16.mxu0 %v9628
    %9719 = vmatpush1.bf16.msra.mxu0 %v9627
    %9720 = vmatprep.subr.bf16.mxu0 %v9631
    %9721 = vmatpush1.bf16.msra.mxu0 %v9630
    %9722 = vmatprep.subr.bf16.mxu0 %v9634
    %9723 = vmatpush1.bf16.msra.mxu0 %v9633
    %9724 = vmatprep.subr.bf16.mxu0 %v9637
    %9725 = vmatpush1.bf16.msra.mxu0 %v9636
    %9726 = vmatprep.subr.bf16.mxu0 %v9640
    %9727 = vmatpush1.bf16.msra.mxu0 %v9639
    %9728 = vmatprep.subr.bf16.mxu0 %v9643
    %9729 = vmatpush1.bf16.msra.mxu0 %v9642
    %9730 = vmatprep.subr.bf16.mxu0 %v9646
    %9731 = vmatpush1.bf16.msra.mxu0 %v9645
    %9732 = vmatprep.subr.bf16.mxu0 %v9649
    %9733 = vmatpush1.bf16.msra.mxu0 %v9648
    %9734 = vmatprep.subr.bf16.mxu0 %v9652
    %9735 = vmatpush1.bf16.msra.mxu0 %v9651
    %9736 = vmatprep.subr.bf16.mxu0 %v9655
    %9737 = vmatpush1.bf16.msra.mxu0 %v9654
    %9738 = vmatprep.subr.bf16.mxu0 %v9658
    %9739 = vmatpush1.bf16.msra.mxu0 %v9657
    %9740 = vmatprep.mubr.bf16.mxu0 %v1616
    %9741 = vmatmul.mubr.bf16.gmra.mrb[0].mxu0 %v1615
    %v9742 = vpop.f32.mrb[0].mxu0
    %v9743 = vadd.f32 0.0, %v9742
    %v9744 = vpop.f32.mrb[0].mxu0
    %v9745 = vadd.f32 0.0, %v9744
    %v9746 = vpop.f32.mrb[0].mxu0
    %v9747 = vpop.f32.mrb[0].mxu0
    %9748 = vdwg.mxu0
    %9749 = vmatprep.subr.bf16.mxu0 %v9661
    %9750 = vmatpush1.bf16.msra.mxu0 %v9660
    %9751 = vmatprep.subr.bf16.mxu0 %v9664
    %9752 = vmatpush1.bf16.msra.mxu0 %v9663
    %9753 = vmatprep.subr.bf16.mxu0 %v9667
    %9754 = vmatpush1.bf16.msra.mxu0 %v9666
    %9755 = vmatprep.subr.bf16.mxu0 %v9670
    %9756 = vmatpush1.bf16.msra.mxu0 %v9669
    %9757 = vmatprep.subr.bf16.mxu0 %v9673
    %9758 = vmatpush1.bf16.msra.mxu0 %v9672
    %9759 = vmatprep.subr.bf16.mxu0 %v9676
    %9760 = vmatpush1.bf16.msra.mxu0 %v9675
    %9761 = vmatprep.subr.bf16.mxu0 %v9679
    %9762 = vmatpush1.bf16.msra.mxu0 %v9678
    %9763 = vmatprep.subr.bf16.mxu0 %v9682
    %9764 = vmatpush1.bf16.msra.mxu0 %v9681
    %9765 = vmatprep.subr.bf16.mxu0 %v9685
    %9766 = vmatpush1.bf16.msra.mxu0 %v9684
    %9767 = vmatprep.subr.bf16.mxu0 %v9688
    %9768 = vmatpush1.bf16.msra.mxu0 %v9687
    %9769 = vmatprep.subr.bf16.mxu0 %v9691
    %9770 = vmatpush1.bf16.msra.mxu0 %v9690
    %9771 = vmatprep.subr.bf16.mxu0 %v9694
    %9772 = vmatpush1.bf16.msra.mxu0 %v9693
    %9773 = vmatprep.subr.bf16.mxu0 %v9697
    %9774 = vmatpush1.bf16.msra.mxu0 %v9696
    %9775 = vmatprep.subr.bf16.mxu0 %v9700
    %9776 = vmatpush1.bf16.msra.mxu0 %v9699
    %9777 = vmatprep.subr.bf16.mxu0 %v9703
    %9778 = vmatpush1.bf16.msra.mxu0 %v9702
    %9779 = vmatprep.subr.bf16.mxu0 %v9706
    %9780 = vmatpush1.bf16.msra.mxu0 %v9705
    %9781 = vmatprep.mubr.bf16.mxu0 %v1618
    %9782 = vmatmul.mubr.bf16.gmra.mrb[0].mxu0 %v1617
    %v9783 = vpop.f32.mrb[0].mxu0
    %v9784 = vadd.f32 %v9743, %v9783
    %v9785 = vpop.f32.mrb[0].mxu0
    %v9786 = vadd.f32 %v9745, %v9785
    %v9787 = vpop.f32.mrb[0].mxu0
    %v9788 = vpop.f32.mrb[0].mxu0
    %9789 = vdwg.mxu0
    %9790 = vmatprep.subr.bf16.mxu0 0
    %9791 = vmatpush1.bf16.msra.mxu0 %v9614
    %9792 = vmatprep.subr.bf16.mxu0 0
    %9793 = vmatpush1.bf16.msra.mxu0 %v9617
    %9794 = vmatprep.subr.bf16.mxu0 0
    %9795 = vmatpush1.bf16.msra.mxu0 %v9620
    %9796 = vmatprep.subr.bf16.mxu0 0
    %9797 = vmatpush1.bf16.msra.mxu0 %v9623
    %9798 = vmatprep.subr.bf16.mxu0 0
    %9799 = vmatpush1.bf16.msra.mxu0 %v9626
    %9800 = vmatprep.subr.bf16.mxu0 0
    %9801 = vmatpush1.bf16.msra.mxu0 %v9629
    %9802 = vmatprep.subr.bf16.mxu0 0
    %9803 = vmatpush1.bf16.msra.mxu0 %v9632
    %9804 = vmatprep.subr.bf16.mxu0 0
    %9805 = vmatpush1.bf16.msra.mxu0 %v9635
    %9806 = vmatprep.subr.bf16.mxu0 0
    %9807 = vmatpush1.bf16.msra.mxu0 %v9638
    %9808 = vmatprep.subr.bf16.mxu0 0
    %9809 = vmatpush1.bf16.msra.mxu0 %v9641
    %9810 = vmatprep.subr.bf16.mxu0 0
    %9811 = vmatpush1.bf16.msra.mxu0 %v9644
    %9812 = vmatprep.subr.bf16.mxu0 0
    %9813 = vmatpush1.bf16.msra.mxu0 %v9647
    %9814 = vmatprep.subr.bf16.mxu0 0
    %9815 = vmatpush1.bf16.msra.mxu0 %v9650
    %9816 = vmatprep.subr.bf16.mxu0 0
    %9817 = vmatpush1.bf16.msra.mxu0 %v9653
    %9818 = vmatprep.subr.bf16.mxu0 0
    %9819 = vmatpush1.bf16.msra.mxu0 %v9656
    %9820 = vmatprep.subr.bf16.mxu0 0
    %9821 = vmatpush1.bf16.msra.mxu0 %v9659
    %9822 = vmatprep.mubr.bf16.mxu0 %v1616
    %9823 = vmatmul.mubr.bf16.gmra.mrb[0].mxu0 %v1615
    %v9824 = vpop.f32.mrb[0].mxu0
    %v9825 = vadd.f32 0.0, %v9824
    %v9826 = vpop.f32.mrb[0].mxu0
    %v9827 = vpop.f32.mrb[0].mxu0
    %v9828 = vpop.f32.mrb[0].mxu0
    %9829 = vdwg.mxu0
    %9830 = vmatprep.subr.bf16.mxu0 0
    %9831 = vmatpush1.bf16.msra.mxu0 %v9662
    %9832 = vmatprep.subr.bf16.mxu0 0
    %9833 = vmatpush1.bf16.msra.mxu0 %v9665
    %9834 = vmatprep.subr.bf16.mxu0 0
    %9835 = vmatpush1.bf16.msra.mxu0 %v9668
    %9836 = vmatprep.subr.bf16.mxu0 0
    %9837 = vmatpush1.bf16.msra.mxu0 %v9671
    %9838 = vmatprep.subr.bf16.mxu0 0
    %9839 = vmatpush1.bf16.msra.mxu0 %v9674
    %9840 = vmatprep.subr.bf16.mxu0 0
    %9841 = vmatpush1.bf16.msra.mxu0 %v9677
    %9842 = vmatprep.subr.bf16.mxu0 0
    %9843 = vmatpush1.bf16.msra.mxu0 %v9680
    %9844 = vmatprep.subr.bf16.mxu0 0
    %9845 = vmatpush1.bf16.msra.mxu0 %v9683
    %9846 = vmatprep.subr.bf16.mxu0 0
    %9847 = vmatpush1.bf16.msra.mxu0 %v9686
    %9848 = vmatprep.subr.bf16.mxu0 0
    %9849 = vmatpush1.bf16.msra.mxu0 %v9689
    %9850 = vmatprep.subr.bf16.mxu0 0
    %9851 = vmatpush1.bf16.msra.mxu0 %v9692
    %9852 = vmatprep.subr.bf16.mxu0 0
    %9853 = vmatpush1.bf16.msra.mxu0 %v9695
    %9854 = vmatprep.subr.bf16.mxu0 0
    %9855 = vmatpush1.bf16.msra.mxu0 %v9698
    %9856 = vmatprep.subr.bf16.mxu0 0
    %9857 = vmatpush1.bf16.msra.mxu0 %v9701
    %9858 = vmatprep.subr.bf16.mxu0 0
    %9859 = vmatpush1.bf16.msra.mxu0 %v9704
    %9860 = vmatprep.subr.bf16.mxu0 0
    %9861 = vmatpush1.bf16.msra.mxu0 %v9707
    %9862 = vmatprep.mubr.bf16.mxu0 %v1618
    %9863 = vmatmul.mubr.bf16.gmra.mrb[0].mxu0 %v1617
    %v9864 = vpop.f32.mrb[0].mxu0
    %v9865 = vadd.f32 %v9825, %v9864
    %v9866 = vpop.f32.mrb[0].mxu0
    %v9867 = vpop.f32.mrb[0].mxu0
    %v9868 = vpop.f32.mrb[0].mxu0
    %9869 = vdwg.mxu0
    %9870 = vmatprep.subr.bf16.mxu0 %v9565
    %9871 = vmatpush1.bf16.msra.mxu0 %v9564
    %9872 = vmatprep.subr.bf16.mxu0 %v9568
    %9873 = vmatpush1.bf16.msra.mxu0 %v9567
    %9874 = vmatprep.subr.bf16.mxu0 %v9571
    %9875 = vmatpush1.bf16.msra.mxu0 %v9570
    %9876 = vmatprep.subr.bf16.mxu0 %v9574
    %9877 = vmatpush1.bf16.msra.mxu0 %v9573
    %9878 = vmatprep.subr.bf16.mxu0 %v9577
    %9879 = vmatpush1.bf16.msra.mxu0 %v9576
    %9880 = vmatprep.subr.bf16.mxu0 %v9580
    %9881 = vmatpush1.bf16.msra.mxu0 %v9579
    %9882 = vmatprep.subr.bf16.mxu0 %v9583
    %9883 = vmatpush1.bf16.msra.mxu0 %v9582
    %9884 = vmatprep.subr.bf16.mxu0 %v9586
    %9885 = vmatpush1.bf16.msra.mxu0 %v9585
    %9886 = vmatprep.subr.bf16.mxu0 %v9589
    %9887 = vmatpush1.bf16.msra.mxu0 %v9588
    %9888 = vmatprep.subr.bf16.mxu0 %v9592
    %9889 = vmatpush1.bf16.msra.mxu0 %v9591
    %9890 = vmatprep.subr.bf16.mxu0 %v9595
    %9891 = vmatpush1.bf16.msra.mxu0 %v9594
    %9892 = vmatprep.subr.bf16.mxu0 %v9598
    %9893 = vmatpush1.bf16.msra.mxu0 %v9597
    %9894 = vmatprep.subr.bf16.mxu0 %v9601
    %9895 = vmatpush1.bf16.msra.mxu0 %v9600
    %9896 = vmatprep.subr.bf16.mxu0 %v9604
    %9897 = vmatpush1.bf16.msra.mxu0 %v9603
    %9898 = vmatprep.subr.bf16.mxu0 %v9607
    %9899 = vmatpush1.bf16.msra.mxu0 %v9606
    %9900 = vmatprep.subr.bf16.mxu0 %v9610
    %9901 = vmatpush1.bf16.msra.mxu0 %v9609
    %9902 = vmatprep.mubr.bf16.mxu0 %v9563
    %9903 = vmatmul.mubr.bf16.gmra.mrb[0].mxu0 %v9562
    %v9904 = vpop.f32.mrb[0].mxu0
    %v9905 = vadd.f32 %v9784, %v9904
    %v9906 = vpop.f32.mrb[0].mxu0
    %v9907 = vadd.f32 %v9786, %v9906
    %v9908 = vpop.f32.mrb[0].mxu0
    %v9909 = vpop.f32.mrb[0].mxu0
    %9910 = vdwg.mxu0
    %9911 = vmatprep.subr.bf16.mxu0 0
    %9912 = vmatpush1.bf16.msra.mxu0 %v9566
    %9913 = vmatprep.subr.bf16.mxu0 0
    %9914 = vmatpush1.bf16.msra.mxu0 %v9569
    %9915 = vmatprep.subr.bf16.mxu0 0
    %9916 = vmatpush1.bf16.msra.mxu0 %v9572
    %9917 = vmatprep.subr.bf16.mxu0 0
    %9918 = vmatpush1.bf16.msra.mxu0 %v9575
    %9919 = vmatprep.subr.bf16.mxu0 0
    %9920 = vmatpush1.bf16.msra.mxu0 %v9578
    %9921 = vmatprep.subr.bf16.mxu0 0
    %9922 = vmatpush1.bf16.msra.mxu0 %v9581
    %9923 = vmatprep.subr.bf16.mxu0 0
    %9924 = vmatpush1.bf16.msra.mxu0 %v9584
    %9925 = vmatprep.subr.bf16.mxu0 0
    %9926 = vmatpush1.bf16.msra.mxu0 %v9587
    %9927 = vmatprep.subr.bf16.mxu0 0
    %9928 = vmatpush1.bf16.msra.mxu0 %v9590
    %9929 = vmatprep.subr.bf16.mxu0 0
    %9930 = vmatpush1.bf16.msra.mxu0 %v9593
    %9931 = vmatprep.subr.bf16.mxu0 0
    %9932 = vmatpush1.bf16.msra.mxu0 %v9596
    %9933 = vmatprep.subr.bf16.mxu0 0
    %9934 = vmatpush1.bf16.msra.mxu0 %v9599
    %9935 = vmatprep.subr.bf16.mxu0 0
    %9936 = vmatpush1.bf16.msra.mxu0 %v9602
    %9937 = vmatprep.subr.bf16.mxu0 0
    %9938 = vmatpush1.bf16.msra.mxu0 %v9605
    %9939 = vmatprep.subr.bf16.mxu0 0
    %9940 = vmatpush1.bf16.msra.mxu0 %v9608
    %9941 = vmatprep.subr.bf16.mxu0 0
    %9942 = vmatpush1.bf16.msra.mxu0 %v9611
    %9943 = vmatprep.mubr.bf16.mxu0 %v9563
    %9944 = vmatmul.mubr.bf16.gmra.mrb[0].mxu0 %v9562
    %v9945 = vpop.f32.mrb[0].mxu0
    %v9946 = vadd.f32 %v9865, %v9945
    %v9947 = vpop.f32.mrb[0].mxu0
    %v9948 = vpop.f32.mrb[0].mxu0
    %v9949 = vpop.f32.mrb[0].mxu0
    %9950 = vdwg.mxu0
    %v9951 = vld [vmem:[%s14] sm:$0x7]
    %v9953 = vlaneseq
    %v9954 = vshrl.u32 %v9953, 7
    %v9955 = vsub.s32 0, %v9954
    %v9956 = vrot.slane %v9951, %v9955
    %v9957 = vlaneseq
    %v9958 = vshrl.u32 %v9957, 7
    %v9959 = vsub.s32 1, %v9958
    %v9960 = vrot.slane %v9951, %v9959
    %v9961 = vlaneseq
    %v9962 = vshrl.u32 %v9961, 7
    %v9963 = vsub.s32 2, %v9962
    %v9964 = vrot.slane %v9951, %v9963
    %v9968 = vadd.f32 %v9905, %v9956
    %v9969 = vadd.f32 %v9907, %v9960
    %v9970 = vadd.f32 %v9946, %v9964
    %v9971 = vmax.f32 %v9968, 0.0
    %v9972 = vmax.f32 %v9969, 0.0
    %v9973 = vmax.f32 %v9970, 0.0
    %s9974 = smul.u32 4, 38
    %s9975 = smul.u32 %s9974, 3
    %s9976 = sshll.u32 %s9975, 4
    %9977 = dma.done %s1375, %s9976
    %v9978 = vpack.c.bf16 %v9971, %v9971
    %v9979 = vpack.c.bf16 %v9972, %v9972
    %v9980 = vpack.c.bf16 %v9973, %v9973
    %v9981 = vld [vmem:[#allocation5] sm:$0xff]
    %v9982 = vld [vmem:[#allocation5 + $0x8] sm:$0xf]
    %v9983 = vld [vmem:[#allocation5 + $0xc] sm:$0xff]
    %v9984 = vld [vmem:[#allocation5 + $0x14] sm:$0xf]
    %v9985 = vld [vmem:[#allocation5 + $0x18] sm:$0xff]
    %v9986 = vld [vmem:[#allocation5 + $0x20] sm:$0xf]
    %v9987 = vld [vmem:[#allocation5 + $0x24] sm:$0xff]
    %v9988 = vld [vmem:[#allocation5 + $0x2c] sm:$0xf]
    %v9989 = vld [vmem:[#allocation5 + $0x30] sm:$0xff]
    %v9990 = vld [vmem:[#allocation5 + $0x38] sm:$0xf]
    %v9991 = vld [vmem:[#allocation5 + $0x3c] sm:$0xff]
    %v9992 = vld [vmem:[#allocation5 + $0x44] sm:$0xf]
    %v9993 = vld [vmem:[#allocation5 + $0x48] sm:$0xff]
    %v9994 = vld [vmem:[#allocation5 + $0x50] sm:$0xf]
    %v9995 = vld [vmem:[#allocation5 + $0x54] sm:$0xff]
    %v9996 = vld [vmem:[#allocation5 + $0x5c] sm:$0xf]
    %v9997 = vld [vmem:[#allocation5 + $0x60] sm:$0xff]
    %v9998 = vld [vmem:[#allocation5 + $0x68] sm:$0xf]
    %v9999 = vld [vmem:[#allocation5 + $0x6c] sm:$0xff]
    %v10000 = vld [vmem:[#allocation5 + $0x74] sm:$0xf]
    %v10001 = vld [vmem:[#allocation5 + $0x78] sm:$0xff]
    %v10002 = vld [vmem:[#allocation5 + $0x80] sm:$0xf]
    %v10003 = vld [vmem:[#allocation5 + $0x84] sm:$0xff]
    %v10004 = vld [vmem:[#allocation5 + $0x8c] sm:$0xf]
    %v10005 = vld [vmem:[#allocation5 + $0x90] sm:$0xff]
    %v10006 = vld [vmem:[#allocation5 + $0x98] sm:$0xf]
    %v10007 = vld [vmem:[#allocation5 + $0x9c] sm:$0xff]
    %v10008 = vld [vmem:[#allocation5 + $0xa4] sm:$0xf]
    %v10009 = vld [vmem:[#allocation5 + $0xa8] sm:$0xff]
    %v10010 = vld [vmem:[#allocation5 + $0xb0] sm:$0xf]
    %v10011 = vld [vmem:[#allocation5 + $0xb4] sm:$0xff]
    %v10012 = vld [vmem:[#allocation5 + $0xbc] sm:$0xf]
    %v10013 = vld [vmem:[#allocation5 + $0xc0] sm:$0xff]
    %v10014 = vld [vmem:[#allocation5 + $0xc8] sm:$0xf]
    %v10015 = vld [vmem:[#allocation5 + $0xcc] sm:$0xff]
    %v10016 = vld [vmem:[#allocation5 + $0xd4] sm:$0xf]
    %v10017 = vld [vmem:[#allocation5 + $0xd8] sm:$0xff]
    %v10018 = vld [vmem:[#allocation5 + $0xe0] sm:$0xf]
    %v10019 = vld [vmem:[#allocation5 + $0xe4] sm:$0xff]
    %v10020 = vld [vmem:[#allocation5 + $0xec] sm:$0xf]
    %v10021 = vld [vmem:[#allocation5 + $0xf0] sm:$0xff]
    %v10022 = vld [vmem:[#allocation5 + $0xf8] sm:$0xf]
    %v10023 = vld [vmem:[#allocation5 + $0xfc] sm:$0xff]
    %v10024 = vld [vmem:[#allocation5 + $0x104] sm:$0xf]
    %v10025 = vld [vmem:[#allocation5 + $0x108] sm:$0xff]
    %v10026 = vld [vmem:[#allocation5 + $0x110] sm:$0xf]
    %v10027 = vld [vmem:[#allocation5 + $0x114] sm:$0xff]
    %v10028 = vld [vmem:[#allocation5 + $0x11c] sm:$0xf]
    %v10029 = vld [vmem:[#allocation5 + $0x120] sm:$0xff]
    %v10030 = vld [vmem:[#allocation5 + $0x128] sm:$0xf]
    %v10031 = vld [vmem:[#allocation5 + $0x12c] sm:$0xff]
    %v10032 = vld [vmem:[#allocation5 + $0x134] sm:$0xf]
    %v10033 = vld [vmem:[#allocation5 + $0x138] sm:$0xff]
    %v10034 = vld [vmem:[#allocation5 + $0x140] sm:$0xf]
    %v10035 = vld [vmem:[#allocation5 + $0x144] sm:$0xff]
    %v10036 = vld [vmem:[#allocation5 + $0x14c] sm:$0xf]
    %v10037 = vld [vmem:[#allocation5 + $0x150] sm:$0xff]
    %v10038 = vld [vmem:[#allocation5 + $0x158] sm:$0xf]
    %v10039 = vld [vmem:[#allocation5 + $0x15c] sm:$0xff]
    %v10040 = vld [vmem:[#allocation5 + $0x164] sm:$0xf]
    %v10041 = vld [vmem:[#allocation5 + $0x168] sm:$0xff]
    %v10042 = vld [vmem:[#allocation5 + $0x170] sm:$0xf]
    %v10043 = vld [vmem:[#allocation5 + $0x174] sm:$0xff]
    %v10044 = vld [vmem:[#allocation5 + $0x17c] sm:$0xf]
    %v10045 = vld [vmem:[#allocation5 + $0x180] sm:$0xff]
    %v10046 = vld [vmem:[#allocation5 + $0x188] sm:$0xf]
    %v10047 = vld [vmem:[#allocation5 + $0x18c] sm:$0xff]
    %v10048 = vld [vmem:[#allocation5 + $0x194] sm:$0xf]
    %v10049 = vld [vmem:[#allocation5 + $0x198] sm:$0xff]
    %v10050 = vld [vmem:[#allocation5 + $0x1a0] sm:$0xf]
    %v10051 = vld [vmem:[#allocation5 + $0x1a4] sm:$0xff]
    %v10052 = vld [vmem:[#allocation5 + $0x1ac] sm:$0xf]
    %v10053 = vld [vmem:[#allocation5 + $0x1b0] sm:$0xff]
    %v10054 = vld [vmem:[#allocation5 + $0x1b8] sm:$0xf]
    %v10055 = vld [vmem:[#allocation5 + $0x1bc] sm:$0x33]
    %v10056 = vld [vmem:[#allocation5 + $0x1c4] sm:$0x3]
    %v10057 = vld [vmem:[%s15] sm:$0x7]
    %v10059 = vlaneseq
    %v10060 = vshrl.u32 %v10059, 7
    %v10061 = vsub.s32 0, %v10060
    %v10062 = vrot.slane %v10057, %v10061
    %v10063 = vlaneseq
    %v10064 = vshrl.u32 %v10063, 7
    %v10065 = vsub.s32 1, %v10064
    %v10066 = vrot.slane %v10057, %v10065
    %v10067 = vlaneseq
    %v10068 = vshrl.u32 %v10067, 7
    %v10069 = vsub.s32 2, %v10068
    %v10070 = vrot.slane %v10057, %v10069
    %v10150 = vunpack.c.l.b16 %v9981
    %v10151 = vunpack.c.h.b16 %v9981
    %v10152 = vunpack.c.l.b16 %v9982
    %v10153 = vunpack.c.l.b16 %v9983
    %v10154 = vunpack.c.h.b16 %v9983
    %v10155 = vunpack.c.l.b16 %v9984
    %v10156 = vunpack.c.l.b16 %v9985
    %v10157 = vunpack.c.h.b16 %v9985
    %v10158 = vunpack.c.l.b16 %v9986
    %v10159 = vunpack.c.l.b16 %v9987
    %v10160 = vunpack.c.h.b16 %v9987
    %v10161 = vunpack.c.l.b16 %v9988
    %v10162 = vunpack.c.l.b16 %v9989
    %v10163 = vunpack.c.h.b16 %v9989
    %v10164 = vunpack.c.l.b16 %v9990
    %v10165 = vunpack.c.l.b16 %v9991
    %v10166 = vunpack.c.h.b16 %v9991
    %v10167 = vunpack.c.l.b16 %v9992
    %v10168 = vunpack.c.l.b16 %v9993
    %v10169 = vunpack.c.h.b16 %v9993
    %v10170 = vunpack.c.l.b16 %v9994
    %v10171 = vunpack.c.l.b16 %v9995
    %v10172 = vunpack.c.h.b16 %v9995
    %v10173 = vunpack.c.l.b16 %v9996
    %v10174 = vunpack.c.l.b16 %v9997
    %v10175 = vunpack.c.h.b16 %v9997
    %v10176 = vunpack.c.l.b16 %v9998
    %v10177 = vunpack.c.l.b16 %v9999
    %v10178 = vunpack.c.h.b16 %v9999
    %v10179 = vunpack.c.l.b16 %v10000
    %v10180 = vunpack.c.l.b16 %v10001
    %v10181 = vunpack.c.h.b16 %v10001
    %v10182 = vunpack.c.l.b16 %v10002
    %v10183 = vunpack.c.l.b16 %v10003
    %v10184 = vunpack.c.h.b16 %v10003
    %v10185 = vunpack.c.l.b16 %v10004
    %v10186 = vunpack.c.l.b16 %v10005
    %v10187 = vunpack.c.h.b16 %v10005
    %v10188 = vunpack.c.l.b16 %v10006
    %v10189 = vunpack.c.l.b16 %v10007
    %v10190 = vunpack.c.h.b16 %v10007
    %v10191 = vunpack.c.l.b16 %v10008
    %v10192 = vunpack.c.l.b16 %v10009
    %v10193 = vunpack.c.h.b16 %v10009
    %v10194 = vunpack.c.l.b16 %v10010
    %v10195 = vunpack.c.l.b16 %v10011
    %v10196 = vunpack.c.h.b16 %v10011
    %v10197 = vunpack.c.l.b16 %v10012
    %v10198 = vunpack.c.l.b16 %v10013
    %v10199 = vunpack.c.h.b16 %v10013
    %v10200 = vunpack.c.l.b16 %v10014
    %v10201 = vunpack.c.l.b16 %v10015
    %v10202 = vunpack.c.h.b16 %v10015
    %v10203 = vunpack.c.l.b16 %v10016
    %v10204 = vunpack.c.l.b16 %v10017
    %v10205 = vunpack.c.h.b16 %v10017
    %v10206 = vunpack.c.l.b16 %v10018
    %v10207 = vunpack.c.l.b16 %v10019
    %v10208 = vunpack.c.h.b16 %v10019
    %v10209 = vunpack.c.l.b16 %v10020
    %v10210 = vunpack.c.l.b16 %v10021
    %v10211 = vunpack.c.h.b16 %v10021
    %v10212 = vunpack.c.l.b16 %v10022
    %v10213 = vunpack.c.l.b16 %v10023
    %v10214 = vunpack.c.h.b16 %v10023
    %v10215 = vunpack.c.l.b16 %v10024
    %v10216 = vunpack.c.l.b16 %v10025
    %v10217 = vunpack.c.h.b16 %v10025
    %v10218 = vunpack.c.l.b16 %v10026
    %v10219 = vunpack.c.l.b16 %v10027
    %v10220 = vunpack.c.h.b16 %v10027
    %v10221 = vunpack.c.l.b16 %v10028
    %v10222 = vunpack.c.l.b16 %v10029
    %v10223 = vunpack.c.h.b16 %v10029
    %v10224 = vunpack.c.l.b16 %v10030
    %v10225 = vunpack.c.l.b16 %v10031
    %v10226 = vunpack.c.h.b16 %v10031
    %v10227 = vunpack.c.l.b16 %v10032
    %v10228 = vunpack.c.l.b16 %v10033
    %v10229 = vunpack.c.h.b16 %v10033
    %v10230 = vunpack.c.l.b16 %v10034
    %v10231 = vunpack.c.l.b16 %v10035
    %v10232 = vunpack.c.h.b16 %v10035
    %v10233 = vunpack.c.l.b16 %v10036
    %v10234 = vunpack.c.l.b16 %v10037
    %v10235 = vunpack.c.h.b16 %v10037
    %v10236 = vunpack.c.l.b16 %v10038
    %v10237 = vunpack.c.l.b16 %v10039
    %v10238 = vunpack.c.h.b16 %v10039
    %v10239 = vunpack.c.l.b16 %v10040
    %v10240 = vunpack.c.l.b16 %v10041
    %v10241 = vunpack.c.h.b16 %v10041
    %v10242 = vunpack.c.l.b16 %v10042
    %v10243 = vunpack.c.l.b16 %v10043
    %v10244 = vunpack.c.h.b16 %v10043
    %v10245 = vunpack.c.l.b16 %v10044
    %v10246 = vunpack.c.l.b16 %v10045
    %v10247 = vunpack.c.h.b16 %v10045
    %v10248 = vunpack.c.l.b16 %v10046
    %v10249 = vunpack.c.l.b16 %v10047
    %v10250 = vunpack.c.h.b16 %v10047
    %v10251 = vunpack.c.l.b16 %v10048
    %v10252 = vunpack.c.l.b16 %v10049
    %v10253 = vunpack.c.h.b16 %v10049
    %v10254 = vunpack.c.l.b16 %v10050
    %v10255 = vunpack.c.l.b16 %v10051
    %v10256 = vunpack.c.h.b16 %v10051
    %v10257 = vunpack.c.l.b16 %v10052
    %v10258 = vunpack.c.l.b16 %v10053
    %v10259 = vunpack.c.h.b16 %v10053
    %v10260 = vunpack.c.l.b16 %v10054
    %v10261 = vunpack.c.l.b16 %v10055
    %v10262 = vunpack.c.h.b16 %v10055
    %v10263 = vunpack.c.l.b16 %v10056
    %v10264 = vpack.c.b16 %v10153, %v10150
    %v10265 = vpack.c.b16 %v10154, %v10151
    %v10266 = vpack.c.b16 %v10155, %v10152
    %v10267 = vpack.c.b16 %v10159, %v10156
    %v10268 = vpack.c.b16 %v10160, %v10157
    %v10269 = vpack.c.b16 %v10161, %v10158
    %v10270 = vpack.c.b16 %v10165, %v10162
    %v10271 = vpack.c.b16 %v10166, %v10163
    %v10272 = vpack.c.b16 %v10167, %v10164
    %v10273 = vpack.c.b16 %v10171, %v10168
    %v10274 = vpack.c.b16 %v10172, %v10169
    %v10275 = vpack.c.b16 %v10173, %v10170
    %v10276 = vpack.c.b16 %v10177, %v10174
    %v10277 = vpack.c.b16 %v10178, %v10175
    %v10278 = vpack.c.b16 %v10179, %v10176
    %v10279 = vpack.c.b16 %v10183, %v10180
    %v10280 = vpack.c.b16 %v10184, %v10181
    %v10281 = vpack.c.b16 %v10185, %v10182
    %v10282 = vpack.c.b16 %v10189, %v10186
    %v10283 = vpack.c.b16 %v10190, %v10187
    %v10284 = vpack.c.b16 %v10191, %v10188
    %v10285 = vpack.c.b16 %v10195, %v10192
    %v10286 = vpack.c.b16 %v10196, %v10193
    %v10287 = vpack.c.b16 %v10197, %v10194
    %v10288 = vpack.c.b16 %v10201, %v10198
    %v10289 = vpack.c.b16 %v10202, %v10199
    %v10290 = vpack.c.b16 %v10203, %v10200
    %v10291 = vpack.c.b16 %v10207, %v10204
    %v10292 = vpack.c.b16 %v10208, %v10205
    %v10293 = vpack.c.b16 %v10209, %v10206
    %v10294 = vpack.c.b16 %v10213, %v10210
    %v10295 = vpack.c.b16 %v10214, %v10211
    %v10296 = vpack.c.b16 %v10215, %v10212
    %v10297 = vpack.c.b16 %v10219, %v10216
    %v10298 = vpack.c.b16 %v10220, %v10217
    %v10299 = vpack.c.b16 %v10221, %v10218
    %v10300 = vpack.c.b16 %v10225, %v10222
    %v10301 = vpack.c.b16 %v10226, %v10223
    %v10302 = vpack.c.b16 %v10227, %v10224
    %v10303 = vpack.c.b16 %v10231, %v10228
    %v10304 = vpack.c.b16 %v10232, %v10229
    %v10305 = vpack.c.b16 %v10233, %v10230
    %v10306 = vpack.c.b16 %v10237, %v10234
    %v10307 = vpack.c.b16 %v10238, %v10235
    %v10308 = vpack.c.b16 %v10239, %v10236
    %v10309 = vpack.c.b16 %v10243, %v10240
    %v10310 = vpack.c.b16 %v10244, %v10241
    %v10311 = vpack.c.b16 %v10245, %v10242
    %v10312 = vpack.c.b16 %v10249, %v10246
    %v10313 = vpack.c.b16 %v10250, %v10247
    %v10314 = vpack.c.b16 %v10251, %v10248
    %v10315 = vpack.c.b16 %v10255, %v10252
    %v10316 = vpack.c.b16 %v10256, %v10253
    %v10317 = vpack.c.b16 %v10257, %v10254
    %v10318 = vpack.c.b16 %v10261, %v10258
    %v10319 = vpack.c.b16 %v10262, %v10259
    %v10320 = vpack.c.b16 %v10263, %v10260
    %v10376 = vsel %vm2815, %v9980, 0
    %v10379 = vsel %vm2828, %v10318, 0
    %v10382 = vsel %vm2828, %v10319, 0
    %v10385 = vsel %vm2828, %v10320, 0
    %10387 = vmatprep.subr.bf16.mxu0 %v10265
    %10388 = vmatpush1.bf16.msra.mxu0 %v10264
    %10389 = vmatprep.subr.bf16.mxu0 %v10268
    %10390 = vmatpush1.bf16.msra.mxu0 %v10267
    %10391 = vmatprep.subr.bf16.mxu0 %v10271
    %10392 = vmatpush1.bf16.msra.mxu0 %v10270
    %10393 = vmatprep.subr.bf16.mxu0 %v10274
    %10394 = vmatpush1.bf16.msra.mxu0 %v10273
    %10395 = vmatprep.subr.bf16.mxu0 %v10277
    %10396 = vmatpush1.bf16.msra.mxu0 %v10276
    %10397 = vmatprep.subr.bf16.mxu0 %v10280
    %10398 = vmatpush1.bf16.msra.mxu0 %v10279
    %10399 = vmatprep.subr.bf16.mxu0 %v10283
    %10400 = vmatpush1.bf16.msra.mxu0 %v10282
    %10401 = vmatprep.subr.bf16.mxu0 %v10286
    %10402 = vmatpush1.bf16.msra.mxu0 %v10285
    %10403 = vmatprep.subr.bf16.mxu0 %v10289
    %10404 = vmatpush1.bf16.msra.mxu0 %v10288
    %10405 = vmatprep.subr.bf16.mxu0 %v10292
    %10406 = vmatpush1.bf16.msra.mxu0 %v10291
    %10407 = vmatprep.subr.bf16.mxu0 %v10295
    %10408 = vmatpush1.bf16.msra.mxu0 %v10294
    %10409 = vmatprep.subr.bf16.mxu0 %v10298
    %10410 = vmatpush1.bf16.msra.mxu0 %v10297
    %10411 = vmatprep.subr.bf16.mxu0 %v10301
    %10412 = vmatpush1.bf16.msra.mxu0 %v10300
    %10413 = vmatprep.subr.bf16.mxu0 %v10304
    %10414 = vmatpush1.bf16.msra.mxu0 %v10303
    %10415 = vmatprep.subr.bf16.mxu0 %v10307
    %10416 = vmatpush1.bf16.msra.mxu0 %v10306
    %10417 = vmatprep.subr.bf16.mxu0 %v10310
    %10418 = vmatpush1.bf16.msra.mxu0 %v10309
    %10419 = vmatprep.mubr.bf16.mxu0 %v9979
    %10420 = vmatmul.mubr.bf16.gmra.mrb[0].mxu0 %v9978
    %v10421 = vpop.f32.mrb[0].mxu0
    %v10422 = vadd.f32 %v10062, %v10421
    %v10423 = vpop.f32.mrb[0].mxu0
    %v10424 = vadd.f32 %v10066, %v10423
    %v10425 = vpop.f32.mrb[0].mxu0
    %v10426 = vpop.f32.mrb[0].mxu0
    %10427 = vdwg.mxu0
    %10428 = vmatprep.subr.bf16.mxu0 %v10313
    %10429 = vmatpush1.bf16.msra.mxu0 %v10312
    %10430 = vmatprep.subr.bf16.mxu0 %v10316
    %10431 = vmatpush1.bf16.msra.mxu0 %v10315
    %10432 = vmatprep.subr.bf16.mxu0 %v10382
    %10433 = vmatpush1.bf16.msra.mxu0 %v10379
    %10434 = vmatprep.subr.bf16.mxu0 0
    %10435 = vmatpush1.bf16.msra.mxu0 0
    %10436 = vmatprep.subr.bf16.mxu0 0
    %10437 = vmatpush1.bf16.msra.mxu0 0
    %10438 = vmatprep.subr.bf16.mxu0 0
    %10439 = vmatpush1.bf16.msra.mxu0 0
    %10440 = vmatprep.subr.bf16.mxu0 0
    %10441 = vmatpush1.bf16.msra.mxu0 0
    %10442 = vmatprep.subr.bf16.mxu0 0
    %10443 = vmatpush1.bf16.msra.mxu0 0
    %10444 = vmatprep.subr.bf16.mxu0 0
    %10445 = vmatpush1.bf16.msra.mxu0 0
    %10446 = vmatprep.subr.bf16.mxu0 0
    %10447 = vmatpush1.bf16.msra.mxu0 0
    %10448 = vmatprep.subr.bf16.mxu0 0
    %10449 = vmatpush1.bf16.msra.mxu0 0
    %10450 = vmatprep.subr.bf16.mxu0 0
    %10451 = vmatpush1.bf16.msra.mxu0 0
    %10452 = vmatprep.subr.bf16.mxu0 0
    %10453 = vmatpush1.bf16.msra.mxu0 0
    %10454 = vmatprep.subr.bf16.mxu0 0
    %10455 = vmatpush1.bf16.msra.mxu0 0
    %10456 = vmatprep.subr.bf16.mxu0 0
    %10457 = vmatpush1.bf16.msra.mxu0 0
    %10458 = vmatprep.subr.bf16.mxu0 0
    %10459 = vmatpush1.bf16.msra.mxu0 0
    %10460 = vmatprep.mubr.bf16.mxu0 0
    %10461 = vmatmul.mubr.bf16.gmra.mrb[0].mxu0 %v10376
    %v10462 = vpop.f32.mrb[0].mxu0
    %v10463 = vadd.f32 %v10422, %v10462
    %v10464 = vpop.f32.mrb[0].mxu0
    %v10465 = vadd.f32 %v10424, %v10464
    %v10466 = vpop.f32.mrb[0].mxu0
    %v10467 = vpop.f32.mrb[0].mxu0
    %10468 = vdwg.mxu0
    %10469 = vmatprep.subr.bf16.mxu0 0
    %10470 = vmatpush1.bf16.msra.mxu0 %v10266
    %10471 = vmatprep.subr.bf16.mxu0 0
    %10472 = vmatpush1.bf16.msra.mxu0 %v10269
    %10473 = vmatprep.subr.bf16.mxu0 0
    %10474 = vmatpush1.bf16.msra.mxu0 %v10272
    %10475 = vmatprep.subr.bf16.mxu0 0
    %10476 = vmatpush1.bf16.msra.mxu0 %v10275
    %10477 = vmatprep.subr.bf16.mxu0 0
    %10478 = vmatpush1.bf16.msra.mxu0 %v10278
    %10479 = vmatprep.subr.bf16.mxu0 0
    %10480 = vmatpush1.bf16.msra.mxu0 %v10281
    %10481 = vmatprep.subr.bf16.mxu0 0
    %10482 = vmatpush1.bf16.msra.mxu0 %v10284
    %10483 = vmatprep.subr.bf16.mxu0 0
    %10484 = vmatpush1.bf16.msra.mxu0 %v10287
    %10485 = vmatprep.subr.bf16.mxu0 0
    %10486 = vmatpush1.bf16.msra.mxu0 %v10290
    %10487 = vmatprep.subr.bf16.mxu0 0
    %10488 = vmatpush1.bf16.msra.mxu0 %v10293
    %10489 = vmatprep.subr.bf16.mxu0 0
    %10490 = vmatpush1.bf16.msra.mxu0 %v10296
    %10491 = vmatprep.subr.bf16.mxu0 0
    %10492 = vmatpush1.bf16.msra.mxu0 %v10299
    %10493 = vmatprep.subr.bf16.mxu0 0
    %10494 = vmatpush1.bf16.msra.mxu0 %v10302
    %10495 = vmatprep.subr.bf16.mxu0 0
    %10496 = vmatpush1.bf16.msra.mxu0 %v10305
    %10497 = vmatprep.subr.bf16.mxu0 0
    %10498 = vmatpush1.bf16.msra.mxu0 %v10308
    %10499 = vmatprep.subr.bf16.mxu0 0
    %10500 = vmatpush1.bf16.msra.mxu0 %v10311
    %10501 = vmatprep.mubr.bf16.mxu0 %v9979
    %10502 = vmatmul.mubr.bf16.gmra.mrb[0].mxu0 %v9978
    %v10503 = vpop.f32.mrb[0].mxu0
    %v10504 = vadd.f32 %v10070, %v10503
    %v10505 = vpop.f32.mrb[0].mxu0
    %v10506 = vpop.f32.mrb[0].mxu0
    %v10507 = vpop.f32.mrb[0].mxu0
    %10508 = vdwg.mxu0
    %10509 = vmatprep.subr.bf16.mxu0 0
    %10510 = vmatpush1.bf16.msra.mxu0 %v10314
    %10511 = vmatprep.subr.bf16.mxu0 0
    %10512 = vmatpush1.bf16.msra.mxu0 %v10317
    %10513 = vmatprep.subr.bf16.mxu0 0
    %10514 = vmatpush1.bf16.msra.mxu0 %v10385
    %10515 = vmatprep.subr.bf16.mxu0 0
    %10516 = vmatpush1.bf16.msra.mxu0 0
    %10517 = vmatprep.subr.bf16.mxu0 0
    %10518 = vmatpush1.bf16.msra.mxu0 0
    %10519 = vmatprep.subr.bf16.mxu0 0
    %10520 = vmatpush1.bf16.msra.mxu0 0
    %10521 = vmatprep.subr.bf16.mxu0 0
    %10522 = vmatpush1.bf16.msra.mxu0 0
    %10523 = vmatprep.subr.bf16.mxu0 0
    %10524 = vmatpush1.bf16.msra.mxu0 0
    %10525 = vmatprep.subr.bf16.mxu0 0
    %10526 = vmatpush1.bf16.msra.mxu0 0
    %10527 = vmatprep.subr.bf16.mxu0 0
    %10528 = vmatpush1.bf16.msra.mxu0 0
    %10529 = vmatprep.subr.bf16.mxu0 0
    %10530 = vmatpush1.bf16.msra.mxu0 0
    %10531 = vmatprep.subr.bf16.mxu0 0
    %10532 = vmatpush1.bf16.msra.mxu0 0
    %10533 = vmatprep.subr.bf16.mxu0 0
    %10534 = vmatpush1.bf16.msra.mxu0 0
    %10535 = vmatprep.subr.bf16.mxu0 0
    %10536 = vmatpush1.bf16.msra.mxu0 0
    %10537 = vmatprep.subr.bf16.mxu0 0
    %10538 = vmatpush1.bf16.msra.mxu0 0
    %10539 = vmatprep.subr.bf16.mxu0 0
    %10540 = vmatpush1.bf16.msra.mxu0 0
    %10541 = vmatprep.mubr.bf16.mxu0 0
    %10542 = vmatmul.mubr.bf16.gmra.mrb[0].mxu0 %v10376
    %v10543 = vpop.f32.mrb[0].mxu0
    %v10544 = vadd.f32 %v10504, %v10543
    %v10545 = vpop.f32.mrb[0].mxu0
    %v10546 = vpop.f32.mrb[0].mxu0
    %v10547 = vpop.f32.mrb[0].mxu0
    %10548 = vdwg.mxu0
    %s10549 = smul.u32 4, 8
    %s10550 = smul.u32 %s10549, 1
    %s10551 = smul.u32 %s10550, 3
    %s10552 = sshll.u32 %s10551, 4
    %10553 = dma.done [#allocation6], %s10552
    %v10554 = vld [vmem:[#allocation2] sm:$0x77]
    %v10555 = vld [vmem:[#allocation2 + $0x8] sm:$0x7]
    %v10556 = vld [vmem:[#allocation2 + $0xc] sm:$0x77]
    %v10557 = vld [vmem:[#allocation2 + $0x14] sm:$0x7]
    %v10558 = vld [vmem:[#allocation2 + $0x18] sm:$0x77]
    %v10559 = vld [vmem:[#allocation2 + $0x20] sm:$0x7]
    %v10560 = vld [vmem:[#allocation2 + $0x24] sm:$0x77]
    %v10561 = vld [vmem:[#allocation2 + $0x2c] sm:$0x7]
    %v10562 = vld [vmem:[#allocation2 + $0x30] sm:$0x77]
    %v10563 = vld [vmem:[#allocation2 + $0x38] sm:$0x7]
    %v10564 = vld [vmem:[#allocation2 + $0x3c] sm:$0x77]
    %v10565 = vld [vmem:[#allocation2 + $0x44] sm:$0x7]
    %v10566 = vld [vmem:[#allocation2 + $0x48] sm:$0x77]
    %v10567 = vld [vmem:[#allocation2 + $0x50] sm:$0x7]
    %v10568 = vld [vmem:[#allocation2 + $0x54] sm:$0x77]
    %v10569 = vld [vmem:[#allocation2 + $0x5c] sm:$0x7]
    %v10570 = vunpack.c.l.bf16 %v10554
    %v10571 = vunpack.c.h.bf16 %v10554
    %v10572 = vunpack.c.l.bf16 %v10555
    %v10573 = vunpack.c.l.bf16 %v10556
    %v10574 = vunpack.c.h.bf16 %v10556
    %v10575 = vunpack.c.l.bf16 %v10557
    %v10576 = vunpack.c.l.bf16 %v10558
    %v10577 = vunpack.c.h.bf16 %v10558
    %v10578 = vunpack.c.l.bf16 %v10559
    %v10579 = vunpack.c.l.bf16 %v10560
    %v10580 = vunpack.c.h.bf16 %v10560
    %v10581 = vunpack.c.l.bf16 %v10561
    %v10582 = vunpack.c.l.bf16 %v10562
    %v10583 = vunpack.c.h.bf16 %v10562
    %v10584 = vunpack.c.l.bf16 %v10563
    %v10585 = vunpack.c.l.bf16 %v10564
    %v10586 = vunpack.c.h.bf16 %v10564
    %v10587 = vunpack.c.l.bf16 %v10565
    %v10588 = vunpack.c.l.bf16 %v10566
    %v10589 = vunpack.c.h.bf16 %v10566
    %v10590 = vunpack.c.l.bf16 %v10567
    %v10591 = vunpack.c.l.bf16 %v10568
    %v10592 = vunpack.c.h.bf16 %v10568
    %v10593 = vunpack.c.l.bf16 %v10569
    %v10597 = vcombine.low %v10463, %v10465
    %v10598 = vcombine.high %v10463, %v10465
    %v10599 = vcombine.high %v10544, %v10544
    %v10601 = vunpack.c.l.s4 1966171168
    %v10602 = vunpack.c.0.s8 %v10601
    %v10603 = vlaneseq
    %v10604 = vshrl.u32 %v10603, 7
    %v10605 = vsub.s32 %v10602, %v10604
    %v10606 = vrot.slane %v10597, %v10605
    %v10608 = vunpack.c.l.s4 1966171168
    %v10609 = vunpack.c.0.s8 %v10608
    %v10610 = vlaneseq
    %v10611 = vshrl.u32 %v10610, 7
    %v10612 = vsub.s32 %v10609, %v10611
    %v10613 = vrot.slane %v10598, %v10612
    %v10615 = vunpack.c.l.s4 1966171168
    %v10616 = vunpack.c.0.s8 %v10615
    %v10617 = vlaneseq
    %v10618 = vshrl.u32 %v10617, 7
    %v10619 = vsub.s32 %v10616, %v10618
    %v10620 = vrot.slane %v10544, %v10619
    %v10622 = vunpack.c.l.s4 1966171168
    %v10623 = vunpack.c.0.s8 %v10622
    %v10624 = vlaneseq
    %v10625 = vshrl.u32 %v10624, 7
    %v10626 = vsub.s32 %v10623, %v10625
    %v10627 = vrot.slane %v10599, %v10626
    %v10628 = vcombine.low %v10606, %v10620
    %v10629 = vcombine.high %v10606, %v10620
    %v10630 = vcombine.low %v10613, %v10627
    %v10631 = vcombine.high %v10613, %v10627
    %v10633 = vunpack.c.l.s4 1966171168
    %v10634 = vunpack.c.0.s8 %v10633
    %v10635 = vlaneseq
    %v10636 = vshrl.u32 %v10635, 7
    %v10637 = vsub.s32 %v10634, %v10636
    %v10638 = vrot.slane %v10628, %v10637
    %v10640 = vunpack.c.l.s4 1966171168
    %v10641 = vunpack.c.0.s8 %v10640
    %v10642 = vlaneseq
    %v10643 = vshrl.u32 %v10642, 7
    %v10644 = vsub.s32 %v10641, %v10643
    %v10645 = vrot.slane %v10630, %v10644
    %v10647 = vunpack.c.l.s4 1966171168
    %v10648 = vunpack.c.0.s8 %v10647
    %v10649 = vlaneseq
    %v10650 = vshrl.u32 %v10649, 7
    %v10651 = vsub.s32 %v10648, %v10650
    %v10652 = vrot.slane %v10629, %v10651
    %v10654 = vunpack.c.l.s4 1966171168
    %v10655 = vunpack.c.0.s8 %v10654
    %v10656 = vlaneseq
    %v10657 = vshrl.u32 %v10656, 7
    %v10658 = vsub.s32 %v10655, %v10657
    %v10659 = vrot.slane %v10631, %v10658
    %v10660 = vcombine.high %v10638, %v10638
    %v10661 = vcombine.high %v10645, %v10645
    %v10662 = vcombine.high %v10652, %v10652
    %v10663 = vcombine.high %v10659, %v10659
    %v10664 = vlaneseq
    %v10665 = vshrl.u32 %v10664, 7
    %v10666 = vsub.s32 0, %v10665
    %v10667 = vrot.slane %v10638, %v10666
    %v10668 = vlaneseq
    %v10669 = vshrl.u32 %v10668, 7
    %v10670 = vsub.s32 1, %v10669
    %v10671 = vrot.slane %v10638, %v10670
    %v10672 = vlaneseq
    %v10673 = vshrl.u32 %v10672, 7
    %v10674 = vsub.s32 2, %v10673
    %v10675 = vrot.slane %v10638, %v10674
    %v10676 = vlaneseq
    %v10677 = vshrl.u32 %v10676, 7
    %v10678 = vsub.s32 0, %v10677
    %v10679 = vrot.slane %v10652, %v10678
    %v10680 = vlaneseq
    %v10681 = vshrl.u32 %v10680, 7
    %v10682 = vsub.s32 1, %v10681
    %v10683 = vrot.slane %v10652, %v10682
    %v10684 = vlaneseq
    %v10685 = vshrl.u32 %v10684, 7
    %v10686 = vsub.s32 2, %v10685
    %v10687 = vrot.slane %v10652, %v10686
    %v10688 = vlaneseq
    %v10689 = vshrl.u32 %v10688, 7
    %v10690 = vsub.s32 0, %v10689
    %v10691 = vrot.slane %v10660, %v10690
    %v10692 = vlaneseq
    %v10693 = vshrl.u32 %v10692, 7
    %v10694 = vsub.s32 1, %v10693
    %v10695 = vrot.slane %v10660, %v10694
    %v10696 = vlaneseq
    %v10697 = vshrl.u32 %v10696, 7
    %v10698 = vsub.s32 2, %v10697
    %v10699 = vrot.slane %v10660, %v10698
    %v10700 = vlaneseq
    %v10701 = vshrl.u32 %v10700, 7
    %v10702 = vsub.s32 0, %v10701
    %v10703 = vrot.slane %v10662, %v10702
    %v10704 = vlaneseq
    %v10705 = vshrl.u32 %v10704, 7
    %v10706 = vsub.s32 1, %v10705
    %v10707 = vrot.slane %v10662, %v10706
    %v10708 = vlaneseq
    %v10709 = vshrl.u32 %v10708, 7
    %v10710 = vsub.s32 2, %v10709
    %v10711 = vrot.slane %v10662, %v10710
    %v10712 = vlaneseq
    %v10713 = vshrl.u32 %v10712, 7
    %v10714 = vsub.s32 0, %v10713
    %v10715 = vrot.slane %v10645, %v10714
    %v10716 = vlaneseq
    %v10717 = vshrl.u32 %v10716, 7
    %v10718 = vsub.s32 1, %v10717
    %v10719 = vrot.slane %v10645, %v10718
    %v10720 = vlaneseq
    %v10721 = vshrl.u32 %v10720, 7
    %v10722 = vsub.s32 2, %v10721
    %v10723 = vrot.slane %v10645, %v10722
    %v10724 = vlaneseq
    %v10725 = vshrl.u32 %v10724, 7
    %v10726 = vsub.s32 0, %v10725
    %v10727 = vrot.slane %v10659, %v10726
    %v10728 = vlaneseq
    %v10729 = vshrl.u32 %v10728, 7
    %v10730 = vsub.s32 1, %v10729
    %v10731 = vrot.slane %v10659, %v10730
    %v10732 = vlaneseq
    %v10733 = vshrl.u32 %v10732, 7
    %v10734 = vsub.s32 2, %v10733
    %v10735 = vrot.slane %v10659, %v10734
    %v10736 = vlaneseq
    %v10737 = vshrl.u32 %v10736, 7
    %v10738 = vsub.s32 0, %v10737
    %v10739 = vrot.slane %v10661, %v10738
    %v10740 = vlaneseq
    %v10741 = vshrl.u32 %v10740, 7
    %v10742 = vsub.s32 1, %v10741
    %v10743 = vrot.slane %v10661, %v10742
    %v10744 = vlaneseq
    %v10745 = vshrl.u32 %v10744, 7
    %v10746 = vsub.s32 2, %v10745
    %v10747 = vrot.slane %v10661, %v10746
    %v10748 = vlaneseq
    %v10749 = vshrl.u32 %v10748, 7
    %v10750 = vsub.s32 0, %v10749
    %v10751 = vrot.slane %v10663, %v10750
    %v10752 = vlaneseq
    %v10753 = vshrl.u32 %v10752, 7
    %v10754 = vsub.s32 1, %v10753
    %v10755 = vrot.slane %v10663, %v10754
    %v10756 = vlaneseq
    %v10757 = vshrl.u32 %v10756, 7
    %v10758 = vsub.s32 2, %v10757
    %v10759 = vrot.slane %v10663, %v10758
    %v10784 = vmul.f32 %v10570, %v10667
    %v10785 = vmul.f32 %v10571, %v10671
    %v10786 = vmul.f32 %v10572, %v10675
    %v10787 = vmul.f32 %v10573, %v10679
    %v10788 = vmul.f32 %v10574, %v10683
    %v10789 = vmul.f32 %v10575, %v10687
    %v10790 = vmul.f32 %v10576, %v10691
    %v10791 = vmul.f32 %v10577, %v10695
    %v10792 = vmul.f32 %v10578, %v10699
    %v10793 = vmul.f32 %v10579, %v10703
    %v10794 = vmul.f32 %v10580, %v10707
    %v10795 = vmul.f32 %v10581, %v10711
    %v10796 = vmul.f32 %v10582, %v10715
    %v10797 = vmul.f32 %v10583, %v10719
    %v10798 = vmul.f32 %v10584, %v10723
    %v10799 = vmul.f32 %v10585, %v10727
    %v10800 = vmul.f32 %v10586, %v10731
    %v10801 = vmul.f32 %v10587, %v10735
    %v10802 = vmul.f32 %v10588, %v10739
    %v10803 = vmul.f32 %v10589, %v10743
    %v10804 = vmul.f32 %v10590, %v10747
    %v10805 = vmul.f32 %v10591, %v10751
    %v10806 = vmul.f32 %v10592, %v10755
    %v10807 = vmul.f32 %v10593, %v10759
    %v10808 = vsel %vm2828, %v10784, 0.0
    %v10809 = vsel %vm2828, %v10785, 0.0
    %v10810 = vadd.f32 %v10808, %v10809
    %vm10811 = vcmask 357376
    %v10812 = vsel %vm10811, %v10786, 0.0
    %v10813 = vadd.f32 %v10810, %v10812
    %10814 = vadd.xlane.f32.xlu0 %v10813
    %v10815 = vpop.xlane.xlu0 %10814
    %v10816 = vsel %vm2828, %v10787, 0.0
    %v10817 = vsel %vm2828, %v10788, 0.0
    %v10818 = vadd.f32 %v10816, %v10817
    %v10819 = vsel %vm10811, %v10789, 0.0
    %v10820 = vadd.f32 %v10818, %v10819
    %10821 = vadd.xlane.f32.xlu0 %v10820
    %v10822 = vpop.xlane.xlu0 %10821
    %v10823 = vsel %vm2828, %v10790, 0.0
    %v10824 = vsel %vm2828, %v10791, 0.0
    %v10825 = vadd.f32 %v10823, %v10824
    %v10826 = vsel %vm10811, %v10792, 0.0
    %v10827 = vadd.f32 %v10825, %v10826
    %10828 = vadd.xlane.f32.xlu0 %v10827
    %v10829 = vpop.xlane.xlu0 %10828
    %v10830 = vsel %vm2828, %v10793, 0.0
    %v10831 = vsel %vm2828, %v10794, 0.0
    %v10832 = vadd.f32 %v10830, %v10831
    %v10833 = vsel %vm10811, %v10795, 0.0
    %v10834 = vadd.f32 %v10832, %v10833
    %10835 = vadd.xlane.f32.xlu0 %v10834
    %v10836 = vpop.xlane.xlu0 %10835
    %v10837 = vsel %vm2828, %v10796, 0.0
    %v10838 = vsel %vm2828, %v10797, 0.0
    %v10839 = vadd.f32 %v10837, %v10838
    %v10840 = vsel %vm10811, %v10798, 0.0
    %v10841 = vadd.f32 %v10839, %v10840
    %10842 = vadd.xlane.f32.xlu0 %v10841
    %v10843 = vpop.xlane.xlu0 %10842
    %v10844 = vsel %vm2828, %v10799, 0.0
    %v10845 = vsel %vm2828, %v10800, 0.0
    %v10846 = vadd.f32 %v10844, %v10845
    %v10847 = vsel %vm10811, %v10801, 0.0
    %v10848 = vadd.f32 %v10846, %v10847
    %10849 = vadd.xlane.f32.xlu0 %v10848
    %v10850 = vpop.xlane.xlu0 %10849
    %v10851 = vsel %vm2828, %v10802, 0.0
    %v10852 = vsel %vm2828, %v10803, 0.0
    %v10853 = vadd.f32 %v10851, %v10852
    %v10854 = vsel %vm10811, %v10804, 0.0
    %v10855 = vadd.f32 %v10853, %v10854
    %10856 = vadd.xlane.f32.xlu0 %v10855
    %v10857 = vpop.xlane.xlu0 %10856
    %v10858 = vsel %vm2828, %v10805, 0.0
    %v10859 = vsel %vm2828, %v10806, 0.0
    %v10860 = vadd.f32 %v10858, %v10859
    %v10861 = vsel %vm10811, %v10807, 0.0
    %v10862 = vadd.f32 %v10860, %v10861
    %10863 = vadd.xlane.f32.xlu0 %v10862
    %v10864 = vpop.xlane.xlu0 %10863
    %v10873 = vlaneseq
    %v10874 = vand.u32 %v10873, 127
    %v10875 = vlaneseq
    %v10876 = vshrl.u32 %v10875, 7
    %v10877 = vsub.s32 %v10874, %v10876
    %v10878 = vrot.slane %v10815, %v10877
    %v10879 = vlaneseq
    %v10880 = vshrl.u32 %v10879, 7
    %v10881 = vsub.s32 %v10874, %v10880
    %v10882 = vrot.slane %v10822, %v10881
    %v10883 = vlaneseq
    %v10884 = vshrl.u32 %v10883, 7
    %v10885 = vsub.s32 %v10874, %v10884
    %v10886 = vrot.slane %v10829, %v10885
    %v10887 = vlaneseq
    %v10888 = vshrl.u32 %v10887, 7
    %v10889 = vsub.s32 %v10874, %v10888
    %v10890 = vrot.slane %v10836, %v10889
    %v10891 = vlaneseq
    %v10892 = vshrl.u32 %v10891, 7
    %v10893 = vsub.s32 %v10874, %v10892
    %v10894 = vrot.slane %v10843, %v10893
    %v10895 = vlaneseq
    %v10896 = vshrl.u32 %v10895, 7
    %v10897 = vsub.s32 %v10874, %v10896
    %v10898 = vrot.slane %v10850, %v10897
    %v10899 = vlaneseq
    %v10900 = vshrl.u32 %v10899, 7
    %v10901 = vsub.s32 %v10874, %v10900
    %v10902 = vrot.slane %v10857, %v10901
    %v10903 = vlaneseq
    %v10904 = vshrl.u32 %v10903, 7
    %v10905 = vsub.s32 %v10874, %v10904
    %v10906 = vrot.slane %v10864, %v10905
    %vm10907 = vcmask 1041409
    %v10908 = vsel %vm10907, %v10882, %v10878
    %vm10909 = vcmask 1042434
    %v10910 = vsel %vm10909, %v10886, %v10908
    %vm10911 = vcmask 1043459
    %v10912 = vsel %vm10911, %v10890, %v10910
    %vm10913 = vcmask 1044484
    %v10914 = vsel %vm10913, %v10894, %v10912
    %vm10915 = vcmask 1045509
    %v10916 = vsel %vm10915, %v10898, %v10914
    %vm10917 = vcmask 1046534
    %v10918 = vsel %vm10917, %v10902, %v10916
    %vm10919 = vcmask 1047559
    %v10920 = vsel %vm10919, %v10906, %v10918
    %vm10922 = vcmask 48128
    %v10923 = vsel %vm10922, %v10920, -inf
    %10924 = vmax.xlane.f32.xlu0 %v10923
    %v10925 = vpop.xlane.xlu0 %10924
    %v10927 = vlaneseq
    %v10928 = vshrl.u32 %v10927, 7
    %v10929 = vsub.s32 0, %v10928
    %v10930 = vrot.slane %v10925, %v10929
    %v10931 = vlaneseq
    %v10932 = vshrl.u32 %v10931, 7
    %v10933 = vsub.s32 1, %v10932
    %v10934 = vrot.slane %v10925, %v10933
    %v10935 = vlaneseq
    %v10936 = vshrl.u32 %v10935, 7
    %v10937 = vsub.s32 2, %v10936
    %v10938 = vrot.slane %v10925, %v10937
    %v10939 = vlaneseq
    %v10940 = vshrl.u32 %v10939, 7
    %v10941 = vsub.s32 3, %v10940
    %v10942 = vrot.slane %v10925, %v10941
    %v10943 = vlaneseq
    %v10944 = vshrl.u32 %v10943, 7
    %v10945 = vsub.s32 4, %v10944
    %v10946 = vrot.slane %v10925, %v10945
    %v10947 = vlaneseq
    %v10948 = vshrl.u32 %v10947, 7
    %v10949 = vsub.s32 5, %v10948
    %v10950 = vrot.slane %v10925, %v10949
    %v10951 = vlaneseq
    %v10952 = vshrl.u32 %v10951, 7
    %v10953 = vsub.s32 6, %v10952
    %v10954 = vrot.slane %v10925, %v10953
    %v10955 = vlaneseq
    %v10956 = vshrl.u32 %v10955, 7
    %v10957 = vsub.s32 7, %v10956
    %v10958 = vrot.slane %v10925, %v10957
    %v10967 = vsub.f32 %v10815, %v10930
    %v10968 = vsub.f32 %v10822, %v10934
    %v10969 = vsub.f32 %v10829, %v10938
    %v10970 = vsub.f32 %v10836, %v10942
    %v10971 = vsub.f32 %v10843, %v10946
    %v10972 = vsub.f32 %v10850, %v10950
    %v10973 = vsub.f32 %v10857, %v10954
    %v10974 = vsub.f32 %v10864, %v10958
    %v10975 = vmul.f32 %v10967, 1.442695
    %v10976 = vpow.pop %v10975
    %v10977 = vmul.f32 %v10968, 1.442695
    %v10978 = vpow.pop %v10977
    %v10979 = vmul.f32 %v10969, 1.442695
    %v10980 = vpow.pop %v10979
    %v10981 = vmul.f32 %v10970, 1.442695
    %v10982 = vpow.pop %v10981
    %v10983 = vmul.f32 %v10971, 1.442695
    %v10984 = vpow.pop %v10983
    %v10985 = vmul.f32 %v10972, 1.442695
    %v10986 = vpow.pop %v10985
    %v10987 = vmul.f32 %v10973, 1.442695
    %v10988 = vpow.pop %v10987
    %v10989 = vmul.f32 %v10974, 1.442695
    %v10990 = vpow.pop %v10989
    %10999 = vset.pattern.permute.xlu0 0
    %11000 = vperm.xlu0 %10999, %v10976
    %v11001 = vpop.permute.xlu0 %11000
    %11002 = vset.pattern.permute.xlu0 0
    %11003 = vperm.xlu0 %11002, %v10978
    %v11004 = vpop.permute.xlu0 %11003
    %11005 = vset.pattern.permute.xlu0 0
    %11006 = vperm.xlu0 %11005, %v10980
    %v11007 = vpop.permute.xlu0 %11006
    %11008 = vset.pattern.permute.xlu0 0
    %11009 = vperm.xlu0 %11008, %v10982
    %v11010 = vpop.permute.xlu0 %11009
    %11011 = vset.pattern.permute.xlu0 0
    %11012 = vperm.xlu0 %11011, %v10984
    %v11013 = vpop.permute.xlu0 %11012
    %11014 = vset.pattern.permute.xlu0 0
    %11015 = vperm.xlu0 %11014, %v10986
    %v11016 = vpop.permute.xlu0 %11015
    %11017 = vset.pattern.permute.xlu0 0
    %11018 = vperm.xlu0 %11017, %v10988
    %v11019 = vpop.permute.xlu0 %11018
    %11020 = vset.pattern.permute.xlu0 0
    %11021 = vperm.xlu0 %11020, %v10990
    %v11022 = vpop.permute.xlu0 %11021
    %v11023 = vlaneseq
    %v11024 = vshrl.u32 %v11023, 7
    %v11025 = vsub.s32 %v10874, %v11024
    %v11026 = vrot.slane %v11001, %v11025
    %v11027 = vlaneseq
    %v11028 = vshrl.u32 %v11027, 7
    %v11029 = vsub.s32 %v10874, %v11028
    %v11030 = vrot.slane %v11004, %v11029
    %v11031 = vlaneseq
    %v11032 = vshrl.u32 %v11031, 7
    %v11033 = vsub.s32 %v10874, %v11032
    %v11034 = vrot.slane %v11007, %v11033
    %v11035 = vlaneseq
    %v11036 = vshrl.u32 %v11035, 7
    %v11037 = vsub.s32 %v10874, %v11036
    %v11038 = vrot.slane %v11010, %v11037
    %v11039 = vlaneseq
    %v11040 = vshrl.u32 %v11039, 7
    %v11041 = vsub.s32 %v10874, %v11040
    %v11042 = vrot.slane %v11013, %v11041
    %v11043 = vlaneseq
    %v11044 = vshrl.u32 %v11043, 7
    %v11045 = vsub.s32 %v10874, %v11044
    %v11046 = vrot.slane %v11016, %v11045
    %v11047 = vlaneseq
    %v11048 = vshrl.u32 %v11047, 7
    %v11049 = vsub.s32 %v10874, %v11048
    %v11050 = vrot.slane %v11019, %v11049
    %v11051 = vlaneseq
    %v11052 = vshrl.u32 %v11051, 7
    %v11053 = vsub.s32 %v10874, %v11052
    %v11054 = vrot.slane %v11022, %v11053
    %v11055 = vsel %vm10907, %v11030, %v11026
    %v11056 = vsel %vm10909, %v11034, %v11055
    %v11057 = vsel %vm10911, %v11038, %v11056
    %v11058 = vsel %vm10913, %v11042, %v11057
    %v11059 = vsel %vm10915, %v11046, %v11058
    %v11060 = vsel %vm10917, %v11050, %v11059
    %v11061 = vsel %vm10919, %v11054, %v11060
    %v11063 = vsel %vm10922, %v11061, 0.0
    %11064 = vadd.xlane.f32.xlu0 %v11063
    %v11065 = vpop.xlane.xlu0 %11064
    %v11067 = vlaneseq
    %v11068 = vshrl.u32 %v11067, 7
    %v11069 = vsub.s32 0, %v11068
    %v11070 = vrot.slane %v11065, %v11069
    %v11071 = vlaneseq
    %v11072 = vshrl.u32 %v11071, 7
    %v11073 = vsub.s32 1, %v11072
    %v11074 = vrot.slane %v11065, %v11073
    %v11075 = vlaneseq
    %v11076 = vshrl.u32 %v11075, 7
    %v11077 = vsub.s32 2, %v11076
    %v11078 = vrot.slane %v11065, %v11077
    %v11079 = vlaneseq
    %v11080 = vshrl.u32 %v11079, 7
    %v11081 = vsub.s32 3, %v11080
    %v11082 = vrot.slane %v11065, %v11081
    %v11083 = vlaneseq
    %v11084 = vshrl.u32 %v11083, 7
    %v11085 = vsub.s32 4, %v11084
    %v11086 = vrot.slane %v11065, %v11085
    %v11087 = vlaneseq
    %v11088 = vshrl.u32 %v11087, 7
    %v11089 = vsub.s32 5, %v11088
    %v11090 = vrot.slane %v11065, %v11089
    %v11091 = vlaneseq
    %v11092 = vshrl.u32 %v11091, 7
    %v11093 = vsub.s32 6, %v11092
    %v11094 = vrot.slane %v11065, %v11093
    %v11095 = vlaneseq
    %v11096 = vshrl.u32 %v11095, 7
    %v11097 = vsub.s32 7, %v11096
    %v11098 = vrot.slane %v11065, %v11097
    %v11107 = vrcp.pop %v11070
    %v11108 = vmul.f32 %v10976, %v11107
    %v11109 = vrcp.pop %v11074
    %v11110 = vmul.f32 %v10978, %v11109
    %v11111 = vrcp.pop %v11078
    %v11112 = vmul.f32 %v10980, %v11111
    %v11113 = vrcp.pop %v11082
    %v11114 = vmul.f32 %v10982, %v11113
    %v11115 = vrcp.pop %v11086
    %v11116 = vmul.f32 %v10984, %v11115
    %v11117 = vrcp.pop %v11090
    %v11118 = vmul.f32 %v10986, %v11117
    %v11119 = vrcp.pop %v11094
    %v11120 = vmul.f32 %v10988, %v11119
    %v11121 = vrcp.pop %v11098
    %v11122 = vmul.f32 %v10990, %v11121
    %11131 = vset.pattern.permute.xlu0 0
    %11132 = vperm.xlu0 %11131, %v11108
    %v11133 = vpop.permute.xlu0 %11132
    %11134 = vset.pattern.permute.xlu0 0
    %11135 = vperm.xlu0 %11134, %v11110
    %v11136 = vpop.permute.xlu0 %11135
    %11137 = vset.pattern.permute.xlu0 0
    %11138 = vperm.xlu0 %11137, %v11112
    %v11139 = vpop.permute.xlu0 %11138
    %11140 = vset.pattern.permute.xlu0 0
    %11141 = vperm.xlu0 %11140, %v11114
    %v11142 = vpop.permute.xlu0 %11141
    %11143 = vset.pattern.permute.xlu0 0
    %11144 = vperm.xlu0 %11143, %v11116
    %v11145 = vpop.permute.xlu0 %11144
    %11146 = vset.pattern.permute.xlu0 0
    %11147 = vperm.xlu0 %11146, %v11118
    %v11148 = vpop.permute.xlu0 %11147
    %11149 = vset.pattern.permute.xlu0 0
    %11150 = vperm.xlu0 %11149, %v11120
    %v11151 = vpop.permute.xlu0 %11150
    %11152 = vset.pattern.permute.xlu0 0
    %11153 = vperm.xlu0 %11152, %v11122
    %v11154 = vpop.permute.xlu0 %11153
    %v11155 = vlaneseq
    %v11156 = vshrl.u32 %v11155, 7
    %v11157 = vsub.s32 %v10874, %v11156
    %v11158 = vrot.slane %v11133, %v11157
    %v11159 = vlaneseq
    %v11160 = vshrl.u32 %v11159, 7
    %v11161 = vsub.s32 %v10874, %v11160
    %v11162 = vrot.slane %v11136, %v11161
    %v11163 = vlaneseq
    %v11164 = vshrl.u32 %v11163, 7
    %v11165 = vsub.s32 %v10874, %v11164
    %v11166 = vrot.slane %v11139, %v11165
    %v11167 = vlaneseq
    %v11168 = vshrl.u32 %v11167, 7
    %v11169 = vsub.s32 %v10874, %v11168
    %v11170 = vrot.slane %v11142, %v11169
    %v11171 = vlaneseq
    %v11172 = vshrl.u32 %v11171, 7
    %v11173 = vsub.s32 %v10874, %v11172
    %v11174 = vrot.slane %v11145, %v11173
    %v11175 = vlaneseq
    %v11176 = vshrl.u32 %v11175, 7
    %v11177 = vsub.s32 %v10874, %v11176
    %v11178 = vrot.slane %v11148, %v11177
    %v11179 = vlaneseq
    %v11180 = vshrl.u32 %v11179, 7
    %v11181 = vsub.s32 %v10874, %v11180
    %v11182 = vrot.slane %v11151, %v11181
    %v11183 = vlaneseq
    %v11184 = vshrl.u32 %v11183, 7
    %v11185 = vsub.s32 %v10874, %v11184
    %v11186 = vrot.slane %v11154, %v11185
    %v11187 = vsel %vm10907, %v11162, %v11158
    %v11188 = vsel %vm10909, %v11166, %v11187
    %v11189 = vsel %vm10911, %v11170, %v11188
    %v11190 = vsel %vm10913, %v11174, %v11189
    %v11191 = vsel %vm10915, %v11178, %v11190
    %v11192 = vsel %vm10917, %v11182, %v11191
    %v11193 = vsel %vm10919, %v11186, %v11192
    %11195 = vst.msk [vmem:[%s16] sm:$0xff] %vm10922, %v11193
    // Predicated region
    $region260: #{network_forward.1} parent=1 // pred_check
      _
    $region261: #{network_forward.1} parent=1 // pred_check_branch
      %11197 = sbr.rel (0) target = $region263
    $region262: #{network_forward.1} parent=1 // pred_region
      _
    $region263: #{network_forward.1} parent=1 // pred_fallthru
      _
    // Predicated region
    $region264: #{network_forward.1} parent=1 // pred_check
      _
    $region265: #{network_forward.1} parent=1 // pred_check_branch
      %11199 = sbr.rel (0) target = $region267
    $region266: #{network_forward.1} parent=1 // pred_region
      _
    $region267: #{network_forward.1} parent=1 // pred_fallthru
      _
    %11200 = vsyncpa [#allocation12], 1
  %11201 = vsyncmov [#allocation6]
  %s11202 = vpop.sfrf %11201
  %p11203 = scmp.eq.s32.totalorder %s11202, 0
  %p11204 = pneg %p11203
  %11206 = shalt.err (%p11204)
  %s11207 = scalar_lea.sflag [#allocation6], 1
  %11208 = vsyncmov %s11207
  %s11209 = vpop.sfrf %11208
  %p11210 = scmp.eq.s32.totalorder %s11209, 0
  %p11211 = pneg %p11210
  %11213 = shalt.err (%p11211)
  %s11214 = scalar_lea.sflag [#allocation6], 2
  %11215 = vsyncmov %s11214
  %s11216 = vpop.sfrf %11215
  %p11217 = scmp.eq.s32.totalorder %s11216, 0
  %p11218 = pneg %p11217
  %11220 = shalt.err (%p11218)
  %s11221 = scalar_lea.sflag [#allocation6], 3
  %11222 = vsyncmov %s11221
  %s11223 = vpop.sfrf %11222
  %p11224 = scmp.eq.s32.totalorder %s11223, 0
  %p11225 = pneg %p11224
  %11227 = shalt.err (%p11225)

</llo_original>
